<compile_context>
chip_gen: v7x
topology: tpu7x:2x2x1
jax: 0.10.0
libtpu: 0.0.40
codegen_flags: <defaults>
</compile_context>

<pallas_src>
import numpy as np

import jax
import jax.numpy as jnp
from jax import lax
from jax.experimental import pallas as pl
from jax.experimental.pallas import tpu as pltpu


# ----------------------------- static geometry ------------------------------

C1, C2 = 32, 64          # conv1 / conv2 output channels
SAMP = 4                 # samples lane-packed per grid step (4 * 32 = 128 lanes)

WP1 = 32                 # conv1 padded row pitch (multiple of 8 -> aligned y shifts)
R1 = 30 * WP1 + 8        # rows of the padded, flattened conv1 input  = 968
WP2 = 16                 # conv2 padded row pitch (14 + 2)
R2 = 16 * WP2 + 2        # rows of conv2's zero-padded input buffer   = 258
N2 = 14 * WP2            # conv2 output rows (row = y*16 + x)         = 224


def _round_up(n, m):
    return ((n + m - 1) // m) * m


# ------------------------- pooling select/repack gathers ---------------------
# pool1: after the dy-max, d has 96 rows = [y-pair0: x 0..31 | unused | y-pair1: x 0..31].
#   g1e/g1o select x = 2*px / 2*px+1 (px = 0..13) and scatter them into a 32-row slab
#   laid out exactly like two rows of conv2's zero-padded buffer (zeros at x=0,15).
# pool2: after the dy-max, d2 has 208 rows (r = y*16 + x); g2e/g2o select the stride-2
#   pixels of the even-y rows into NHWC-flattened (7*py + px) order.

def _build_gathers():
    g1e = np.zeros((2 * WP2, 96), np.float32)
    g1o = np.zeros((2 * WP2, 96), np.float32)
    for jy in range(2):
        for px in range(14):
            g1e[WP2 * jy + px + 1, 64 * jy + 2 * px] = 1.0
            g1o[WP2 * jy + px + 1, 64 * jy + 2 * px + 1] = 1.0
    g2e = np.zeros((49, 208), np.float32)
    g2o = np.zeros((49, 208), np.float32)
    for py in range(7):
        for px in range(7):
            g2e[7 * py + px, 2 * WP2 * py + 2 * px] = 1.0
            g2o[7 * py + px, 2 * WP2 * py + 2 * px + 1] = 1.0
    return g1e, g1o, g2e, g2o


# ----------------------------- Pallas kernels -------------------------------


def _conv_tower_kernel(x_ref, w1t_ref, b1t_ref, w2bd_ref, b2t_ref,
                       g1e_ref, g1o_ref, g2e_ref, g2o_ref,
                       out_ref, buf2_ref, slab_ref, acc2_ref):
    """conv1+relu+pool1+conv2+relu+pool2 for 4 lane-packed samples, all in VMEM."""
    # conv2's padded input buffer: zero once, interior rows are overwritten below.
    buf2_ref[...] = jnp.zeros_like(buf2_ref)

    w1t = w1t_ref[...]          # (9, 128)  conv1 taps, tiled over the 4 samples
    b1t = b1t_ref[...]          # (1, 128)
    g1e = g1e_ref[...]          # (32, 96)
    g1o = g1o_ref[...]          # (32, 96)

    # ---- conv1 (1 -> 32, 3x3, pad 1) + bias + relu + 2x2 maxpool ----------------
    # 7 chunks of 4 output rows (= 2 pool rows = 128 flattened rows): live
    # accumulator is only (128, 128) = 16 vregs, all lanes full.
    for k in range(7):
        base = 128 * k
        c = jnp.zeros((128, 128), jnp.float32)
        for ky in range(3):
            for kx in range(3):
                tap = ky * 3 + kx
                off = ky * WP1 + kx
                c = c + x_ref[0, base + off:base + off + 128, :] * w1t[tap:tap + 1, :]
        c = jnp.maximum(c + b1t, 0.0)
        # dy-max with a sublane-aligned shift of 32 rows, then two tiny gather dots
        # that pick even/odd x and repack straight into conv2's padded layout.
        d = jnp.maximum(c[0:96, :], c[32:128, :])
        p = jnp.maximum(jnp.dot(g1e, d, preferred_element_type=jnp.float32),
                        jnp.dot(g1o, d, preferred_element_type=jnp.float32))
        row0 = WP2 * (2 * k + 1)
        buf2_ref[row0:row0 + 32, :] = p

    # ---- conv2 (32 -> 64, 3x3, pad 1): one K-fused dot over a (224, 1152) slab ----
    for ky in range(3):
        for kx in range(3):
            tap = ky * 3 + kx
            off = ky * WP2 + kx
            slab_ref[:, 128 * tap:128 * (tap + 1)] = buf2_ref[off:off + N2, :]

    b2t = b2t_ref[...]          # (1, 256)
    for mb in range(2):         # M-chunked so the live dot result stays at 28 vregs
        r0 = 112 * mb
        acc = jnp.dot(slab_ref[r0:r0 + 112, :], w2bd_ref[...],
                      preferred_element_type=jnp.float32)
        acc2_ref[r0:r0 + 112, :] = jnp.maximum(acc + b2t, 0.0)

    # ---- 2x2 maxpool + NHWC-flattened, lane-dense (49, 256) output ----------------
    d2 = jnp.maximum(acc2_ref[0:208, :], acc2_ref[16:224, :])
    out_ref[0, :, :] = jnp.maximum(
        jnp.dot(g2e_ref[...], d2, preferred_element_type=jnp.float32),
        jnp.dot(g2o_ref[...], d2, preferred_element_type=jnp.float32))


def _fc_kernel(x_ref, w1_ref, b1_ref, w2_ref, b2_ref, h_ref, o_ref):
    """Fused fc1(+relu) and fc2 for one batch tile; weights resident in VMEM."""
    h = jnp.maximum(
        jnp.dot(x_ref[...], w1_ref[...], preferred_element_type=jnp.float32)
        + b1_ref[...], 0.0)
    h_ref[...] = h
    o_ref[...] = (jnp.dot(h, w2_ref[...], preferred_element_type=jnp.float32)
                  + b2_ref[...])


# ----------------------------- Pallas wrappers -------------------------------


def conv_tower(xexp, w1t, b1t, w2bd, b2t, g1e, g1o, g2e, g2o):
    """xexp: (G, R1, 128) lane-packed padded images -> (G, 49, 256) pooled features."""
    ng = xexp.shape[0]
    const = lambda i: (0, 0)          # constant block index -> resident in VMEM
    return pl.pallas_call(
        _conv_tower_kernel,
        out_shape=jax.ShapeDtypeStruct((ng, 49, SAMP * C2), jnp.float32),
        grid=(ng,),
        in_specs=[
            pl.BlockSpec((1, R1, SAMP * C1), lambda i: (i, 0, 0)),
            pl.BlockSpec((9, SAMP * C1), const),
            pl.BlockSpec((1, SAMP * C1), const),
            pl.BlockSpec((9 * SAMP * C1, SAMP * C2), const),
            pl.BlockSpec((1, SAMP * C2), const),
            pl.BlockSpec((2 * WP2, 96), const),
            pl.BlockSpec((2 * WP2, 96), const),
            pl.BlockSpec((49, 208), const),
            pl.BlockSpec((49, 208), const),
        ],
        out_specs=pl.BlockSpec((1, 49, SAMP * C2), lambda i: (i, 0, 0)),
        scratch_shapes=[
            pltpu.VMEM((R2, SAMP * C1), jnp.float32),        # pooled1 (conv2 input)
            pltpu.VMEM((N2, 9 * SAMP * C1), jnp.float32),    # conv2 K-fused tap slab
            pltpu.VMEM((N2, SAMP * C2), jnp.float32),        # conv2 output rows
        ],
        compiler_params=pltpu.CompilerParams(
            dimension_semantics=("parallel",),
            vmem_limit_bytes=32 * 1024 * 1024),
    )(xexp, w1t, b1t, w2bd, b2t, g1e, g1o, g2e, g2o)


def fc_head(flat, fw1n, fb1, fw2t, fb2, tm):
    """flat: (B_pad, 3136) -> (relu(fc1) (B_pad, 64), fc2 (B_pad, 10)); batch-tiled."""
    bsz = flat.shape[0]
    return pl.pallas_call(
        _fc_kernel,
        out_shape=(jax.ShapeDtypeStruct((bsz, 64), jnp.float32),
                   jax.ShapeDtypeStruct((bsz, 10), jnp.float32)),
        grid=(bsz // tm,),
        in_specs=[
            pl.BlockSpec((tm, 49 * C2), lambda i: (i, 0)),
            pl.BlockSpec((49 * C2, 64), lambda i: (0, 0)),
            pl.BlockSpec((1, 64), lambda i: (0, 0)),
            pl.BlockSpec((64, 10), lambda i: (0, 0)),
            pl.BlockSpec((1, 10), lambda i: (0, 0)),
        ],
        out_specs=(pl.BlockSpec((tm, 64), lambda i: (i, 0)),
                   pl.BlockSpec((tm, 10), lambda i: (i, 0))),
        compiler_params=pltpu.CompilerParams(
            dimension_semantics=("parallel",),
            vmem_limit_bytes=32 * 1024 * 1024),
    )(flat, fw1n, fb1, fw2t, fb2)


# ------------------------ one-time weight re-layout ---------------------------


def prepare_params(params):
    """Hoisted out of the per-call forward path (review item): call once."""
    w1, b1, w2, b2, fw1, fb1, fw2, fb2 = params
    # conv1 (32,1,3,3) -> taps-as-rows (9,32), tiled across the 4 lane-packed samples
    w1rows = jnp.transpose(w1, (2, 3, 1, 0)).reshape(9, C1)
    w1t = jnp.tile(w1rows, (1, SAMP))                              # (9, 128)
    b1t = jnp.tile(b1.reshape(1, C1), (1, SAMP))                   # (1, 128)
    # conv2 (64,32,3,3) -> (tap, ci, co), block-diagonal over the 4 samples
    w2r = jnp.transpose(w2, (2, 3, 1, 0)).reshape(9, C1, C2)
    eye = jnp.eye(SAMP, dtype=jnp.float32)
    w2bd = (eye[None, :, None, :, None] *
            w2r[:, None, :, None, :]).reshape(9 * SAMP * C1, SAMP * C2)  # (1152, 256)
    b2t = jnp.tile(b2.reshape(1, C2), (1, SAMP))                   # (1, 256)
    # fc1 weight permuted so the NHWC-flattened pooled activations match NCHW .view()
    fw1n = jnp.transpose(fw1.reshape(64, C2, 7, 7), (2, 3, 1, 0)).reshape(49 * C2, 64)
    fw2t = fw2.T
    g1e, g1o, g2e, g2o = (jnp.asarray(g) for g in _build_gathers())
    return (w1t, b1t, w2bd, b2t, fw1n, fb1.reshape(1, 64), fw2t, fb2.reshape(1, 10),
            g1e, g1o, g2e, g2o)


# ------------------------------ MultiCNN forward ------------------------------


def multicnn_forward(x_nchw, packed):
    """Mirrors MultiCNN.forward; returns (out_fc1, out_fc2)."""
    (w1t, b1t, w2bd, b2t, fw1n, fb1r, fw2t, fb2r, g1e, g1o, g2e, g2o) = packed
    bsz = x_nchw.shape[0]
    b4 = _round_up(bsz, SAMP)
    ng = b4 // SAMP

    # Pad 28x28 -> 30 rows of pitch 32 (left pad 1, right pad 3), flatten, pad to R1.
    xp = jnp.pad(x_nchw.reshape(bsz, 28, 28).astype(jnp.float32),
                 ((0, b4 - bsz), (1, 1), (1, 3)))                  # (b4, 30, 32)
    xflat = jnp.pad(xp.reshape(b4, 30 * WP1), ((0, 0), (0, R1 - 30 * WP1)))
    # Lane-pack 4 samples per group, each broadcast over its 32 channel lanes.
    xexp = jnp.broadcast_to(xflat.reshape(ng, SAMP, R1)[:, :, :, None],
                            (ng, SAMP, R1, C1))
    xexp = jnp.transpose(xexp, (0, 2, 1, 3)).reshape(ng, R1, SAMP * C1)

    pooled = conv_tower(xexp, w1t, b1t, w2bd, b2t, g1e, g1o, g2e, g2o)  # (ng,49,256)

    # Unpack samples from the lane dim; columns are NHWC-flat (fc1 weight permuted).
    flat = jnp.transpose(pooled.reshape(ng, 49, SAMP, C2),
                         (0, 2, 1, 3)).reshape(b4, 49 * C2)

    # fc head gridded over batch tiles ("parallel" -> both TCs on v7x).
    if b4 >= 128:
        b_fc, tm = _round_up(b4, 128), 128
    else:
        b_fc = _round_up(b4, 8)
        tm = b_fc
    flat = jnp.pad(flat, ((0, b_fc - b4), (0, 0)))
    h, o = fc_head(flat, fw1n, fb1r, fw2t, fb2r, tm)
    return h[:bsz], o[:bsz]


# ------------------------------ pure-JAX reference ----------------------------


def reference_forward(x_nchw, params):
    w1, b1, w2, b2, fw1, fb1, fw2, fb2 = params
    dn = ("NCHW", "OIHW", "NCHW")
    hp = lax.Precision.HIGHEST

    y = lax.conv_general_dilated(x_nchw, w1, (1, 1), ((1, 1), (1, 1)),
                                 dimension_numbers=dn, precision=hp)
    y = jax.nn.relu(y + b1[None, :, None, None])
    y = lax.reduce_window(y, -jnp.inf, lax.max, (1, 1, 2, 2), (1, 1, 2, 2), "VALID")

    y = lax.conv_general_dilated(y, w2, (1, 1), ((1, 1), (1, 1)),
                                 dimension_numbers=dn, precision=hp)
    y = jax.nn.relu(y + b2[None, :, None, None])
    y = lax.reduce_window(y, -jnp.inf, lax.max, (1, 1, 2, 2), (1, 1, 2, 2), "VALID")

    flat = y.reshape(y.shape[0], -1)
    h = jax.nn.relu(jnp.dot(flat, fw1.T, precision=hp) + fb1)
    o = jnp.dot(h, fw2.T, precision=hp) + fb2
    return h, o


# ------------------------------ main -----------------------------------------


if __name__ == "__main__":
    key = jax.random.PRNGKey(0)
    ks = jax.random.split(key, 9)

    # Deterministic synthetic parameters, PyTorch shapes:
    #   conv1: (32, 1, 3, 3), conv2: (64, 32, 3, 3), fc1: (64, 3136), fc2: (10, 64)
    w1 = 0.05 * jax.random.normal(ks[0], (32, 1, 3, 3), jnp.float32)
    b1 = 0.05 * jax.random.normal(ks[1], (32,), jnp.float32)
    w2 = 0.05 * jax.random.normal(ks[2], (64, 32, 3, 3), jnp.float32)
    b2 = 0.05 * jax.random.normal(ks[3], (64,), jnp.float32)
    fw1 = 0.02 * jax.random.normal(ks[4], (64, 64 * 7 * 7), jnp.float32)
    fb1 = 0.02 * jax.random.normal(ks[5], (64,), jnp.float32)
    fw2 = 0.05 * jax.random.normal(ks[6], (10, 64), jnp.float32)
    fb2 = 0.05 * jax.random.normal(ks[7], (10,), jnp.float32)
    params = (w1, b1, w2, b2, fw1, fb1, fw2, fb2)
    packed = prepare_params(params)          # one-time re-layout, outside the jit

    # Small batch; 28x28x1 spatial size is dictated by fc1 = Linear(64*7*7, 64).
    x = jax.random.normal(ks[8], (2, 1, 28, 28), jnp.float32)

    fwd = jax.jit(multicnn_forward)
    out_fc1, out_fc2 = fwd(x, packed)
    jax.block_until_ready((out_fc1, out_fc2))

    ref_fc1, ref_fc2 = reference_forward(x, params)
    jax.block_until_ready((ref_fc1, ref_fc2))

    assert out_fc1.shape == (2, 64) and out_fc2.shape == (2, 10)
    assert jnp.allclose(out_fc1, ref_fc1, atol=1e-4, rtol=1e-4)
    assert jnp.allclose(out_fc2, ref_fc2, atol=1e-4, rtol=1e-4)

    print("KERNEL_OK")
</pallas_src>

<mosaic_0001>
module attributes {stable_mosaic.version = 11 : i64} {
  func.func @_conv_tower_kernel(%arg0: i32, %arg1: memref<1x968x128xf32, #tpu.memory_space<vmem>>, %arg2: memref<9x128xf32, #tpu.memory_space<vmem>>, %arg3: memref<1x128xf32, #tpu.memory_space<vmem>>, %arg4: memref<1152x256xf32, #tpu.memory_space<vmem>>, %arg5: memref<1x256xf32, #tpu.memory_space<vmem>>, %arg6: memref<32x96xf32, #tpu.memory_space<vmem>>, %arg7: memref<32x96xf32, #tpu.memory_space<vmem>>, %arg8: memref<49x208xf32, #tpu.memory_space<vmem>>, %arg9: memref<49x208xf32, #tpu.memory_space<vmem>>, %arg10: memref<1x49x256xf32, #tpu.memory_space<vmem>>, %arg11: memref<258x128xf32, #tpu.memory_space<vmem>>, %arg12: memref<224x1152xf32, #tpu.memory_space<vmem>>, %arg13: memref<224x256xf32, #tpu.memory_space<vmem>>) attributes {dimension_semantics = [#tpu.dimension_semantics<parallel>], iteration_bounds = array<i64: 1>, scalar_prefetch = 0 : i64, scratch_operands = 3 : i64, tpu.core_type = #tpu.core_type<tc>, window_params = [{transform_indices = @transform_0, window_bounds = array<i64: 1, 968, 128>}, {pipeline_mode = #tpu.pipeline_mode<synchronous>, transform_indices = @transform_1, window_bounds = array<i64: 9, 128>}, {pipeline_mode = #tpu.pipeline_mode<synchronous>, transform_indices = @transform_2, window_bounds = array<i64: 1, 128>}, {pipeline_mode = #tpu.pipeline_mode<synchronous>, transform_indices = @transform_3, window_bounds = array<i64: 1152, 256>}, {pipeline_mode = #tpu.pipeline_mode<synchronous>, transform_indices = @transform_4, window_bounds = array<i64: 1, 256>}, {pipeline_mode = #tpu.pipeline_mode<synchronous>, transform_indices = @transform_5, window_bounds = array<i64: 32, 96>}, {pipeline_mode = #tpu.pipeline_mode<synchronous>, transform_indices = @transform_6, window_bounds = array<i64: 32, 96>}, {pipeline_mode = #tpu.pipeline_mode<synchronous>, transform_indices = @transform_7, window_bounds = array<i64: 49, 208>}, {pipeline_mode = #tpu.pipeline_mode<synchronous>, transform_indices = @transform_8, window_bounds = array<i64: 49, 208>}, {transform_indices = @transform_9, window_bounds = array<i64: 1, 49, 256>}]} {
    %cst = arith.constant 0.000000e+00 : f32
    %0 = vector.broadcast %cst : f32 to vector<258x128xf32>
    %c0 = arith.constant 0 : index
    %c0_0 = arith.constant 0 : index
    %1 = vector.load %arg11[%c0, %c0_0] : memref<258x128xf32, #tpu.memory_space<vmem>>, vector<258x128xf32>
    tpu.vector_store %arg11[%c0, %c0_0], %0 {strides = array<i32>} : memref<258x128xf32, #tpu.memory_space<vmem>>, vector<258x128xf32>,
    %c0_1 = arith.constant 0 : index
    %c0_2 = arith.constant 0 : index
    %2 = vector.load %arg2[%c0_1, %c0_2] : memref<9x128xf32, #tpu.memory_space<vmem>>, vector<9x128xf32>
    %c0_3 = arith.constant 0 : index
    %c0_4 = arith.constant 0 : index
    %3 = vector.load %arg3[%c0_3, %c0_4] : memref<1x128xf32, #tpu.memory_space<vmem>>, vector<1x128xf32>
    %c0_5 = arith.constant 0 : index
    %c0_6 = arith.constant 0 : index
    %4 = vector.load %arg6[%c0_5, %c0_6] : memref<32x96xf32, #tpu.memory_space<vmem>>, vector<32x96xf32>
    %c0_7 = arith.constant 0 : index
    %c0_8 = arith.constant 0 : index
    %5 = vector.load %arg7[%c0_7, %c0_8] : memref<32x96xf32, #tpu.memory_space<vmem>>, vector<32x96xf32>
    %cst_9 = arith.constant 0.000000e+00 : f32
    %6 = vector.broadcast %cst_9 : f32 to vector<128x128xf32>
    %c0_10 = arith.constant 0 : index
    %c0_11 = arith.constant 0 : index
    %c0_12 = arith.constant 0 : index
    %7 = vector.load %arg1[%c0_10, %c0_11, %c0_12] : memref<1x968x128xf32, #tpu.memory_space<vmem>>, vector<1x128x128xf32>
    %8 = vector.shape_cast %7 : vector<1x128x128xf32> to vector<128x128xf32>
    %9 = vector.extract_strided_slice %2 {offsets = [0, 0], sizes = [1, 128], strides = [1, 1]} : vector<9x128xf32> to vector<1x128xf32>
    %10 = vector.broadcast %9 : vector<1x128xf32> to vector<128x128xf32>
    %11 = arith.mulf %8, %10 : vector<128x128xf32>
    %12 = arith.addf %6, %11 : vector<128x128xf32>
    %c0_13 = arith.constant 0 : index
    %c1 = arith.constant 1 : index
    %c0_14 = arith.constant 0 : index
    %13 = vector.load %arg1[%c0_13, %c1, %c0_14] : memref<1x968x128xf32, #tpu.memory_space<vmem>>, vector<1x128x128xf32>
    %14 = vector.shape_cast %13 : vector<1x128x128xf32> to vector<128x128xf32>
    %15 = vector.extract_strided_slice %2 {offsets = [1, 0], sizes = [1, 128], strides = [1, 1]} : vector<9x128xf32> to vector<1x128xf32>
    %16 = vector.broadcast %15 : vector<1x128xf32> to vector<128x128xf32>
    %17 = arith.mulf %14, %16 : vector<128x128xf32>
    %18 = arith.addf %12, %17 : vector<128x128xf32>
    %c0_15 = arith.constant 0 : index
    %c2 = arith.constant 2 : index
    %c0_16 = arith.constant 0 : index
    %19 = vector.load %arg1[%c0_15, %c2, %c0_16] : memref<1x968x128xf32, #tpu.memory_space<vmem>>, vector<1x128x128xf32>
    %20 = vector.shape_cast %19 : vector<1x128x128xf32> to vector<128x128xf32>
    %21 = vector.extract_strided_slice %2 {offsets = [2, 0], sizes = [1, 128], strides = [1, 1]} : vector<9x128xf32> to vector<1x128xf32>
    %22 = vector.broadcast %21 : vector<1x128xf32> to vector<128x128xf32>
    %23 = arith.mulf %20, %22 : vector<128x128xf32>
    %24 = arith.addf %18, %23 : vector<128x128xf32>
    %c0_17 = arith.constant 0 : index
    %c32 = arith.constant 32 : index
    %c0_18 = arith.constant 0 : index
    %25 = vector.load %arg1[%c0_17, %c32, %c0_18] : memref<1x968x128xf32, #tpu.memory_space<vmem>>, vector<1x128x128xf32>
    %26 = vector.shape_cast %25 : vector<1x128x128xf32> to vector<128x128xf32>
    %27 = vector.extract_strided_slice %2 {offsets = [3, 0], sizes = [1, 128], strides = [1, 1]} : vector<9x128xf32> to vector<1x128xf32>
    %28 = vector.broadcast %27 : vector<1x128xf32> to vector<128x128xf32>
    %29 = arith.mulf %26, %28 : vector<128x128xf32>
    %30 = arith.addf %24, %29 : vector<128x128xf32>
    %c0_19 = arith.constant 0 : index
    %c33 = arith.constant 33 : index
    %c0_20 = arith.constant 0 : index
    %31 = vector.load %arg1[%c0_19, %c33, %c0_20] : memref<1x968x128xf32, #tpu.memory_space<vmem>>, vector<1x128x128xf32>
    %32 = vector.shape_cast %31 : vector<1x128x128xf32> to vector<128x128xf32>
    %33 = vector.extract_strided_slice %2 {offsets = [4, 0], sizes = [1, 128], strides = [1, 1]} : vector<9x128xf32> to vector<1x128xf32>
    %34 = vector.broadcast %33 : vector<1x128xf32> to vector<128x128xf32>
    %35 = arith.mulf %32, %34 : vector<128x128xf32>
    %36 = arith.addf %30, %35 : vector<128x128xf32>
    %c0_21 = arith.constant 0 : index
    %c34 = arith.constant 34 : index
    %c0_22 = arith.constant 0 : index
    %37 = vector.load %arg1[%c0_21, %c34, %c0_22] : memref<1x968x128xf32, #tpu.memory_space<vmem>>, vector<1x128x128xf32>
    %38 = vector.shape_cast %37 : vector<1x128x128xf32> to vector<128x128xf32>
    %39 = vector.extract_strided_slice %2 {offsets = [5, 0], sizes = [1, 128], strides = [1, 1]} : vector<9x128xf32> to vector<1x128xf32>
    %40 = vector.broadcast %39 : vector<1x128xf32> to vector<128x128xf32>
    %41 = arith.mulf %38, %40 : vector<128x128xf32>
    %42 = arith.addf %36, %41 : vector<128x128xf32>
    %c0_23 = arith.constant 0 : index
    %c64 = arith.constant 64 : index
    %c0_24 = arith.constant 0 : index
    %43 = vector.load %arg1[%c0_23, %c64, %c0_24] : memref<1x968x128xf32, #tpu.memory_space<vmem>>, vector<1x128x128xf32>
    %44 = vector.shape_cast %43 : vector<1x128x128xf32> to vector<128x128xf32>
    %45 = vector.extract_strided_slice %2 {offsets = [6, 0], sizes = [1, 128], strides = [1, 1]} : vector<9x128xf32> to vector<1x128xf32>
    %46 = vector.broadcast %45 : vector<1x128xf32> to vector<128x128xf32>
    %47 = arith.mulf %44, %46 : vector<128x128xf32>
    %48 = arith.addf %42, %47 : vector<128x128xf32>
    %c0_25 = arith.constant 0 : index
    %c65 = arith.constant 65 : index
    %c0_26 = arith.constant 0 : index
    %49 = vector.load %arg1[%c0_25, %c65, %c0_26] : memref<1x968x128xf32, #tpu.memory_space<vmem>>, vector<1x128x128xf32>
    %50 = vector.shape_cast %49 : vector<1x128x128xf32> to vector<128x128xf32>
    %51 = vector.extract_strided_slice %2 {offsets = [7, 0], sizes = [1, 128], strides = [1, 1]} : vector<9x128xf32> to vector<1x128xf32>
    %52 = vector.broadcast %51 : vector<1x128xf32> to vector<128x128xf32>
    %53 = arith.mulf %50, %52 : vector<128x128xf32>
    %54 = arith.addf %48, %53 : vector<128x128xf32>
    %c0_27 = arith.constant 0 : index
    %c66 = arith.constant 66 : index
    %c0_28 = arith.constant 0 : index
    %55 = vector.load %arg1[%c0_27, %c66, %c0_28] : memref<1x968x128xf32, #tpu.memory_space<vmem>>, vector<1x128x128xf32>
    %56 = vector.shape_cast %55 : vector<1x128x128xf32> to vector<128x128xf32>
    %57 = vector.extract_strided_slice %2 {offsets = [8, 0], sizes = [1, 128], strides = [1, 1]} : vector<9x128xf32> to vector<1x128xf32>
    %58 = vector.broadcast %57 : vector<1x128xf32> to vector<128x128xf32>
    %59 = arith.mulf %56, %58 : vector<128x128xf32>
    %60 = arith.addf %54, %59 : vector<128x128xf32>
    %61 = vector.broadcast %3 : vector<1x128xf32> to vector<128x128xf32>
    %62 = arith.addf %60, %61 : vector<128x128xf32>
    %cst_29 = arith.constant 0.000000e+00 : f32
    %63 = vector.broadcast %cst_29 : f32 to vector<128x128xf32>
    %64 = arith.maximumf %62, %63 : vector<128x128xf32>
    %65 = vector.extract_strided_slice %64 {offsets = [0, 0], sizes = [96, 128], strides = [1, 1]} : vector<128x128xf32> to vector<96x128xf32>
    %66 = vector.extract_strided_slice %64 {offsets = [32, 0], sizes = [96, 128], strides = [1, 1]} : vector<128x128xf32> to vector<96x128xf32>
    %67 = arith.maximumf %65, %66 : vector<96x128xf32>
    %cst_30 = arith.constant dense<0.000000e+00> : vector<32x128xf32>
    %68 = tpu.matmul %4, %67, %cst_30 {dimension_numbers = #tpu.dot_dimension_numbers<[1], [0], [0], [1], [0, 0, 1, 1], [], []>} : vector<32x96xf32>, vector<96x128xf32>, vector<32x128xf32> -> vector<32x128xf32>
    %cst_31 = arith.constant dense<0.000000e+00> : vector<32x128xf32>
    %69 = tpu.matmul %5, %67, %cst_31 {dimension_numbers = #tpu.dot_dimension_numbers<[1], [0], [0], [1], [0, 0, 1, 1], [], []>} : vector<32x96xf32>, vector<96x128xf32>, vector<32x128xf32> -> vector<32x128xf32>
    %70 = arith.maximumf %68, %69 : vector<32x128xf32>
    %c16 = arith.constant 16 : index
    %c0_32 = arith.constant 0 : index
    %71 = vector.load %arg11[%c16, %c0_32] : memref<258x128xf32, #tpu.memory_space<vmem>>, vector<32x128xf32>
    tpu.vector_store %arg11[%c16, %c0_32], %70 {strides = array<i32>} : memref<258x128xf32, #tpu.memory_space<vmem>>, vector<32x128xf32>,
    %cst_33 = arith.constant 0.000000e+00 : f32
    %72 = vector.broadcast %cst_33 : f32 to vector<128x128xf32>
    %c0_34 = arith.constant 0 : index
    %c128 = arith.constant 128 : index
    %c0_35 = arith.constant 0 : index
    %73 = vector.load %arg1[%c0_34, %c128, %c0_35] : memref<1x968x128xf32, #tpu.memory_space<vmem>>, vector<1x128x128xf32>
    %74 = vector.shape_cast %73 : vector<1x128x128xf32> to vector<128x128xf32>
    %75 = vector.extract_strided_slice %2 {offsets = [0, 0], sizes = [1, 128], strides = [1, 1]} : vector<9x128xf32> to vector<1x128xf32>
    %76 = vector.broadcast %75 : vector<1x128xf32> to vector<128x128xf32>
    %77 = arith.mulf %74, %76 : vector<128x128xf32>
    %78 = arith.addf %72, %77 : vector<128x128xf32>
    %c0_36 = arith.constant 0 : index
    %c129 = arith.constant 129 : index
    %c0_37 = arith.constant 0 : index
    %79 = vector.load %arg1[%c0_36, %c129, %c0_37] : memref<1x968x128xf32, #tpu.memory_space<vmem>>, vector<1x128x128xf32>
    %80 = vector.shape_cast %79 : vector<1x128x128xf32> to vector<128x128xf32>
    %81 = vector.extract_strided_slice %2 {offsets = [1, 0], sizes = [1, 128], strides = [1, 1]} : vector<9x128xf32> to vector<1x128xf32>
    %82 = vector.broadcast %81 : vector<1x128xf32> to vector<128x128xf32>
    %83 = arith.mulf %80, %82 : vector<128x128xf32>
    %84 = arith.addf %78, %83 : vector<128x128xf32>
    %c0_38 = arith.constant 0 : index
    %c130 = arith.constant 130 : index
    %c0_39 = arith.constant 0 : index
    %85 = vector.load %arg1[%c0_38, %c130, %c0_39] : memref<1x968x128xf32, #tpu.memory_space<vmem>>, vector<1x128x128xf32>
    %86 = vector.shape_cast %85 : vector<1x128x128xf32> to vector<128x128xf32>
    %87 = vector.extract_strided_slice %2 {offsets = [2, 0], sizes = [1, 128], strides = [1, 1]} : vector<9x128xf32> to vector<1x128xf32>
    %88 = vector.broadcast %87 : vector<1x128xf32> to vector<128x128xf32>
    %89 = arith.mulf %86, %88 : vector<128x128xf32>
    %90 = arith.addf %84, %89 : vector<128x128xf32>
    %c0_40 = arith.constant 0 : index
    %c160 = arith.constant 160 : index
    %c0_41 = arith.constant 0 : index
    %91 = vector.load %arg1[%c0_40, %c160, %c0_41] : memref<1x968x128xf32, #tpu.memory_space<vmem>>, vector<1x128x128xf32>
    %92 = vector.shape_cast %91 : vector<1x128x128xf32> to vector<128x128xf32>
    %93 = vector.extract_strided_slice %2 {offsets = [3, 0], sizes = [1, 128], strides = [1, 1]} : vector<9x128xf32> to vector<1x128xf32>
    %94 = vector.broadcast %93 : vector<1x128xf32> to vector<128x128xf32>
    %95 = arith.mulf %92, %94 : vector<128x128xf32>
    %96 = arith.addf %90, %95 : vector<128x128xf32>
    %c0_42 = arith.constant 0 : index
    %c161 = arith.constant 161 : index
    %c0_43 = arith.constant 0 : index
    %97 = vector.load %arg1[%c0_42, %c161, %c0_43] : memref<1x968x128xf32, #tpu.memory_space<vmem>>, vector<1x128x128xf32>
    %98 = vector.shape_cast %97 : vector<1x128x128xf32> to vector<128x128xf32>
    %99 = vector.extract_strided_slice %2 {offsets = [4, 0], sizes = [1, 128], strides = [1, 1]} : vector<9x128xf32> to vector<1x128xf32>
    %100 = vector.broadcast %99 : vector<1x128xf32> to vector<128x128xf32>
    %101 = arith.mulf %98, %100 : vector<128x128xf32>
    %102 = arith.addf %96, %101 : vector<128x128xf32>
    %c0_44 = arith.constant 0 : index
    %c162 = arith.constant 162 : index
    %c0_45 = arith.constant 0 : index
    %103 = vector.load %arg1[%c0_44, %c162, %c0_45] : memref<1x968x128xf32, #tpu.memory_space<vmem>>, vector<1x128x128xf32>
    %104 = vector.shape_cast %103 : vector<1x128x128xf32> to vector<128x128xf32>
    %105 = vector.extract_strided_slice %2 {offsets = [5, 0], sizes = [1, 128], strides = [1, 1]} : vector<9x128xf32> to vector<1x128xf32>
    %106 = vector.broadcast %105 : vector<1x128xf32> to vector<128x128xf32>
    %107 = arith.mulf %104, %106 : vector<128x128xf32>
    %108 = arith.addf %102, %107 : vector<128x128xf32>
    %c0_46 = arith.constant 0 : index
    %c192 = arith.constant 192 : index
    %c0_47 = arith.constant 0 : index
    %109 = vector.load %arg1[%c0_46, %c192, %c0_47] : memref<1x968x128xf32, #tpu.memory_space<vmem>>, vector<1x128x128xf32>
    %110 = vector.shape_cast %109 : vector<1x128x128xf32> to vector<128x128xf32>
    %111 = vector.extract_strided_slice %2 {offsets = [6, 0], sizes = [1, 128], strides = [1, 1]} : vector<9x128xf32> to vector<1x128xf32>
    %112 = vector.broadcast %111 : vector<1x128xf32> to vector<128x128xf32>
    %113 = arith.mulf %110, %112 : vector<128x128xf32>
    %114 = arith.addf %108, %113 : vector<128x128xf32>
    %c0_48 = arith.constant 0 : index
    %c193 = arith.constant 193 : index
    %c0_49 = arith.constant 0 : index
    %115 = vector.load %arg1[%c0_48, %c193, %c0_49] : memref<1x968x128xf32, #tpu.memory_space<vmem>>, vector<1x128x128xf32>
    %116 = vector.shape_cast %115 : vector<1x128x128xf32> to vector<128x128xf32>
    %117 = vector.extract_strided_slice %2 {offsets = [7, 0], sizes = [1, 128], strides = [1, 1]} : vector<9x128xf32> to vector<1x128xf32>
    %118 = vector.broadcast %117 : vector<1x128xf32> to vector<128x128xf32>
    %119 = arith.mulf %116, %118 : vector<128x128xf32>
    %120 = arith.addf %114, %119 : vector<128x128xf32>
    %c0_50 = arith.constant 0 : index
    %c194 = arith.constant 194 : index
    %c0_51 = arith.constant 0 : index
    %121 = vector.load %arg1[%c0_50, %c194, %c0_51] : memref<1x968x128xf32, #tpu.memory_space<vmem>>, vector<1x128x128xf32>
    %122 = vector.shape_cast %121 : vector<1x128x128xf32> to vector<128x128xf32>
    %123 = vector.extract_strided_slice %2 {offsets = [8, 0], sizes = [1, 128], strides = [1, 1]} : vector<9x128xf32> to vector<1x128xf32>
    %124 = vector.broadcast %123 : vector<1x128xf32> to vector<128x128xf32>
    %125 = arith.mulf %122, %124 : vector<128x128xf32>
    %126 = arith.addf %120, %125 : vector<128x128xf32>
    %127 = vector.broadcast %3 : vector<1x128xf32> to vector<128x128xf32>
    %128 = arith.addf %126, %127 : vector<128x128xf32>
    %cst_52 = arith.constant 0.000000e+00 : f32
    %129 = vector.broadcast %cst_52 : f32 to vector<128x128xf32>
    %130 = arith.maximumf %128, %129 : vector<128x128xf32>
    %131 = vector.extract_strided_slice %130 {offsets = [0, 0], sizes = [96, 128], strides = [1, 1]} : vector<128x128xf32> to vector<96x128xf32>
    %132 = vector.extract_strided_slice %130 {offsets = [32, 0], sizes = [96, 128], strides = [1, 1]} : vector<128x128xf32> to vector<96x128xf32>
    %133 = arith.maximumf %131, %132 : vector<96x128xf32>
    %cst_53 = arith.constant dense<0.000000e+00> : vector<32x128xf32>
    %134 = tpu.matmul %4, %133, %cst_53 {dimension_numbers = #tpu.dot_dimension_numbers<[1], [0], [0], [1], [0, 0, 1, 1], [], []>} : vector<32x96xf32>, vector<96x128xf32>, vector<32x128xf32> -> vector<32x128xf32>
    %cst_54 = arith.constant dense<0.000000e+00> : vector<32x128xf32>
    %135 = tpu.matmul %5, %133, %cst_54 {dimension_numbers = #tpu.dot_dimension_numbers<[1], [0], [0], [1], [0, 0, 1, 1], [], []>} : vector<32x96xf32>, vector<96x128xf32>, vector<32x128xf32> -> vector<32x128xf32>
    %136 = arith.maximumf %134, %135 : vector<32x128xf32>
    %c48 = arith.constant 48 : index
    %c0_55 = arith.constant 0 : index
    %137 = vector.load %arg11[%c48, %c0_55] : memref<258x128xf32, #tpu.memory_space<vmem>>, vector<32x128xf32>
    tpu.vector_store %arg11[%c48, %c0_55], %136 {strides = array<i32>} : memref<258x128xf32, #tpu.memory_space<vmem>>, vector<32x128xf32>,
    %cst_56 = arith.constant 0.000000e+00 : f32
    %138 = vector.broadcast %cst_56 : f32 to vector<128x128xf32>
    %c0_57 = arith.constant 0 : index
    %c256 = arith.constant 256 : index
    %c0_58 = arith.constant 0 : index
    %139 = vector.load %arg1[%c0_57, %c256, %c0_58] : memref<1x968x128xf32, #tpu.memory_space<vmem>>, vector<1x128x128xf32>
    %140 = vector.shape_cast %139 : vector<1x128x128xf32> to vector<128x128xf32>
    %141 = vector.extract_strided_slice %2 {offsets = [0, 0], sizes = [1, 128], strides = [1, 1]} : vector<9x128xf32> to vector<1x128xf32>
    %142 = vector.broadcast %141 : vector<1x128xf32> to vector<128x128xf32>
    %143 = arith.mulf %140, %142 : vector<128x128xf32>
    %144 = arith.addf %138, %143 : vector<128x128xf32>
    %c0_59 = arith.constant 0 : index
    %c257 = arith.constant 257 : index
    %c0_60 = arith.constant 0 : index
    %145 = vector.load %arg1[%c0_59, %c257, %c0_60] : memref<1x968x128xf32, #tpu.memory_space<vmem>>, vector<1x128x128xf32>
    %146 = vector.shape_cast %145 : vector<1x128x128xf32> to vector<128x128xf32>
    %147 = vector.extract_strided_slice %2 {offsets = [1, 0], sizes = [1, 128], strides = [1, 1]} : vector<9x128xf32> to vector<1x128xf32>
    %148 = vector.broadcast %147 : vector<1x128xf32> to vector<128x128xf32>
    %149 = arith.mulf %146, %148 : vector<128x128xf32>
    %150 = arith.addf %144, %149 : vector<128x128xf32>
    %c0_61 = arith.constant 0 : index
    %c258 = arith.constant 258 : index
    %c0_62 = arith.constant 0 : index
    %151 = vector.load %arg1[%c0_61, %c258, %c0_62] : memref<1x968x128xf32, #tpu.memory_space<vmem>>, vector<1x128x128xf32>
    %152 = vector.shape_cast %151 : vector<1x128x128xf32> to vector<128x128xf32>
    %153 = vector.extract_strided_slice %2 {offsets = [2, 0], sizes = [1, 128], strides = [1, 1]} : vector<9x128xf32> to vector<1x128xf32>
    %154 = vector.broadcast %153 : vector<1x128xf32> to vector<128x128xf32>
    %155 = arith.mulf %152, %154 : vector<128x128xf32>
    %156 = arith.addf %150, %155 : vector<128x128xf32>
    %c0_63 = arith.constant 0 : index
    %c288 = arith.constant 288 : index
    %c0_64 = arith.constant 0 : index
    %157 = vector.load %arg1[%c0_63, %c288, %c0_64] : memref<1x968x128xf32, #tpu.memory_space<vmem>>, vector<1x128x128xf32>
    %158 = vector.shape_cast %157 : vector<1x128x128xf32> to vector<128x128xf32>
    %159 = vector.extract_strided_slice %2 {offsets = [3, 0], sizes = [1, 128], strides = [1, 1]} : vector<9x128xf32> to vector<1x128xf32>
    %160 = vector.broadcast %159 : vector<1x128xf32> to vector<128x128xf32>
    %161 = arith.mulf %158, %160 : vector<128x128xf32>
    %162 = arith.addf %156, %161 : vector<128x128xf32>
    %c0_65 = arith.constant 0 : index
    %c289 = arith.constant 289 : index
    %c0_66 = arith.constant 0 : index
    %163 = vector.load %arg1[%c0_65, %c289, %c0_66] : memref<1x968x128xf32, #tpu.memory_space<vmem>>, vector<1x128x128xf32>
    %164 = vector.shape_cast %163 : vector<1x128x128xf32> to vector<128x128xf32>
    %165 = vector.extract_strided_slice %2 {offsets = [4, 0], sizes = [1, 128], strides = [1, 1]} : vector<9x128xf32> to vector<1x128xf32>
    %166 = vector.broadcast %165 : vector<1x128xf32> to vector<128x128xf32>
    %167 = arith.mulf %164, %166 : vector<128x128xf32>
    %168 = arith.addf %162, %167 : vector<128x128xf32>
    %c0_67 = arith.constant 0 : index
    %c290 = arith.constant 290 : index
    %c0_68 = arith.constant 0 : index
    %169 = vector.load %arg1[%c0_67, %c290, %c0_68] : memref<1x968x128xf32, #tpu.memory_space<vmem>>, vector<1x128x128xf32>
    %170 = vector.shape_cast %169 : vector<1x128x128xf32> to vector<128x128xf32>
    %171 = vector.extract_strided_slice %2 {offsets = [5, 0], sizes = [1, 128], strides = [1, 1]} : vector<9x128xf32> to vector<1x128xf32>
    %172 = vector.broadcast %171 : vector<1x128xf32> to vector<128x128xf32>
    %173 = arith.mulf %170, %172 : vector<128x128xf32>
    %174 = arith.addf %168, %173 : vector<128x128xf32>
    %c0_69 = arith.constant 0 : index
    %c320 = arith.constant 320 : index
    %c0_70 = arith.constant 0 : index
    %175 = vector.load %arg1[%c0_69, %c320, %c0_70] : memref<1x968x128xf32, #tpu.memory_space<vmem>>, vector<1x128x128xf32>
    %176 = vector.shape_cast %175 : vector<1x128x128xf32> to vector<128x128xf32>
    %177 = vector.extract_strided_slice %2 {offsets = [6, 0], sizes = [1, 128], strides = [1, 1]} : vector<9x128xf32> to vector<1x128xf32>
    %178 = vector.broadcast %177 : vector<1x128xf32> to vector<128x128xf32>
    %179 = arith.mulf %176, %178 : vector<128x128xf32>
    %180 = arith.addf %174, %179 : vector<128x128xf32>
    %c0_71 = arith.constant 0 : index
    %c321 = arith.constant 321 : index
    %c0_72 = arith.constant 0 : index
    %181 = vector.load %arg1[%c0_71, %c321, %c0_72] : memref<1x968x128xf32, #tpu.memory_space<vmem>>, vector<1x128x128xf32>
    %182 = vector.shape_cast %181 : vector<1x128x128xf32> to vector<128x128xf32>
    %183 = vector.extract_strided_slice %2 {offsets = [7, 0], sizes = [1, 128], strides = [1, 1]} : vector<9x128xf32> to vector<1x128xf32>
    %184 = vector.broadcast %183 : vector<1x128xf32> to vector<128x128xf32>
    %185 = arith.mulf %182, %184 : vector<128x128xf32>
    %186 = arith.addf %180, %185 : vector<128x128xf32>
    %c0_73 = arith.constant 0 : index
    %c322 = arith.constant 322 : index
    %c0_74 = arith.constant 0 : index
    %187 = vector.load %arg1[%c0_73, %c322, %c0_74] : memref<1x968x128xf32, #tpu.memory_space<vmem>>, vector<1x128x128xf32>
    %188 = vector.shape_cast %187 : vector<1x128x128xf32> to vector<128x128xf32>
    %189 = vector.extract_strided_slice %2 {offsets = [8, 0], sizes = [1, 128], strides = [1, 1]} : vector<9x128xf32> to vector<1x128xf32>
    %190 = vector.broadcast %189 : vector<1x128xf32> to vector<128x128xf32>
    %191 = arith.mulf %188, %190 : vector<128x128xf32>
    %192 = arith.addf %186, %191 : vector<128x128xf32>
    %193 = vector.broadcast %3 : vector<1x128xf32> to vector<128x128xf32>
    %194 = arith.addf %192, %193 : vector<128x128xf32>
    %cst_75 = arith.constant 0.000000e+00 : f32
    %195 = vector.broadcast %cst_75 : f32 to vector<128x128xf32>
    %196 = arith.maximumf %194, %195 : vector<128x128xf32>
    %197 = vector.extract_strided_slice %196 {offsets = [0, 0], sizes = [96, 128], strides = [1, 1]} : vector<128x128xf32> to vector<96x128xf32>
    %198 = vector.extract_strided_slice %196 {offsets = [32, 0], sizes = [96, 128], strides = [1, 1]} : vector<128x128xf32> to vector<96x128xf32>
    %199 = arith.maximumf %197, %198 : vector<96x128xf32>
    %cst_76 = arith.constant dense<0.000000e+00> : vector<32x128xf32>
    %200 = tpu.matmul %4, %199, %cst_76 {dimension_numbers = #tpu.dot_dimension_numbers<[1], [0], [0], [1], [0, 0, 1, 1], [], []>} : vector<32x96xf32>, vector<96x128xf32>, vector<32x128xf32> -> vector<32x128xf32>
    %cst_77 = arith.constant dense<0.000000e+00> : vector<32x128xf32>
    %201 = tpu.matmul %5, %199, %cst_77 {dimension_numbers = #tpu.dot_dimension_numbers<[1], [0], [0], [1], [0, 0, 1, 1], [], []>} : vector<32x96xf32>, vector<96x128xf32>, vector<32x128xf32> -> vector<32x128xf32>
    %202 = arith.maximumf %200, %201 : vector<32x128xf32>
    %c80 = arith.constant 80 : index
    %c0_78 = arith.constant 0 : index
    %203 = vector.load %arg11[%c80, %c0_78] : memref<258x128xf32, #tpu.memory_space<vmem>>, vector<32x128xf32>
    tpu.vector_store %arg11[%c80, %c0_78], %202 {strides = array<i32>} : memref<258x128xf32, #tpu.memory_space<vmem>>, vector<32x128xf32>,
    %cst_79 = arith.constant 0.000000e+00 : f32
    %204 = vector.broadcast %cst_79 : f32 to vector<128x128xf32>
    %c0_80 = arith.constant 0 : index
    %c384 = arith.constant 384 : index
    %c0_81 = arith.constant 0 : index
    %205 = vector.load %arg1[%c0_80, %c384, %c0_81] : memref<1x968x128xf32, #tpu.memory_space<vmem>>, vector<1x128x128xf32>
    %206 = vector.shape_cast %205 : vector<1x128x128xf32> to vector<128x128xf32>
    %207 = vector.extract_strided_slice %2 {offsets = [0, 0], sizes = [1, 128], strides = [1, 1]} : vector<9x128xf32> to vector<1x128xf32>
    %208 = vector.broadcast %207 : vector<1x128xf32> to vector<128x128xf32>
    %209 = arith.mulf %206, %208 : vector<128x128xf32>
    %210 = arith.addf %204, %209 : vector<128x128xf32>
    %c0_82 = arith.constant 0 : index
    %c385 = arith.constant 385 : index
    %c0_83 = arith.constant 0 : index
    %211 = vector.load %arg1[%c0_82, %c385, %c0_83] : memref<1x968x128xf32, #tpu.memory_space<vmem>>, vector<1x128x128xf32>
    %212 = vector.shape_cast %211 : vector<1x128x128xf32> to vector<128x128xf32>
    %213 = vector.extract_strided_slice %2 {offsets = [1, 0], sizes = [1, 128], strides = [1, 1]} : vector<9x128xf32> to vector<1x128xf32>
    %214 = vector.broadcast %213 : vector<1x128xf32> to vector<128x128xf32>
    %215 = arith.mulf %212, %214 : vector<128x128xf32>
    %216 = arith.addf %210, %215 : vector<128x128xf32>
    %c0_84 = arith.constant 0 : index
    %c386 = arith.constant 386 : index
    %c0_85 = arith.constant 0 : index
    %217 = vector.load %arg1[%c0_84, %c386, %c0_85] : memref<1x968x128xf32, #tpu.memory_space<vmem>>, vector<1x128x128xf32>
    %218 = vector.shape_cast %217 : vector<1x128x128xf32> to vector<128x128xf32>
    %219 = vector.extract_strided_slice %2 {offsets = [2, 0], sizes = [1, 128], strides = [1, 1]} : vector<9x128xf32> to vector<1x128xf32>
    %220 = vector.broadcast %219 : vector<1x128xf32> to vector<128x128xf32>
    %221 = arith.mulf %218, %220 : vector<128x128xf32>
    %222 = arith.addf %216, %221 : vector<128x128xf32>
    %c0_86 = arith.constant 0 : index
    %c416 = arith.constant 416 : index
    %c0_87 = arith.constant 0 : index
    %223 = vector.load %arg1[%c0_86, %c416, %c0_87] : memref<1x968x128xf32, #tpu.memory_space<vmem>>, vector<1x128x128xf32>
    %224 = vector.shape_cast %223 : vector<1x128x128xf32> to vector<128x128xf32>
    %225 = vector.extract_strided_slice %2 {offsets = [3, 0], sizes = [1, 128], strides = [1, 1]} : vector<9x128xf32> to vector<1x128xf32>
    %226 = vector.broadcast %225 : vector<1x128xf32> to vector<128x128xf32>
    %227 = arith.mulf %224, %226 : vector<128x128xf32>
    %228 = arith.addf %222, %227 : vector<128x128xf32>
    %c0_88 = arith.constant 0 : index
    %c417 = arith.constant 417 : index
    %c0_89 = arith.constant 0 : index
    %229 = vector.load %arg1[%c0_88, %c417, %c0_89] : memref<1x968x128xf32, #tpu.memory_space<vmem>>, vector<1x128x128xf32>
    %230 = vector.shape_cast %229 : vector<1x128x128xf32> to vector<128x128xf32>
    %231 = vector.extract_strided_slice %2 {offsets = [4, 0], sizes = [1, 128], strides = [1, 1]} : vector<9x128xf32> to vector<1x128xf32>
    %232 = vector.broadcast %231 : vector<1x128xf32> to vector<128x128xf32>
    %233 = arith.mulf %230, %232 : vector<128x128xf32>
    %234 = arith.addf %228, %233 : vector<128x128xf32>
    %c0_90 = arith.constant 0 : index
    %c418 = arith.constant 418 : index
    %c0_91 = arith.constant 0 : index
    %235 = vector.load %arg1[%c0_90, %c418, %c0_91] : memref<1x968x128xf32, #tpu.memory_space<vmem>>, vector<1x128x128xf32>
    %236 = vector.shape_cast %235 : vector<1x128x128xf32> to vector<128x128xf32>
    %237 = vector.extract_strided_slice %2 {offsets = [5, 0], sizes = [1, 128], strides = [1, 1]} : vector<9x128xf32> to vector<1x128xf32>
    %238 = vector.broadcast %237 : vector<1x128xf32> to vector<128x128xf32>
    %239 = arith.mulf %236, %238 : vector<128x128xf32>
    %240 = arith.addf %234, %239 : vector<128x128xf32>
    %c0_92 = arith.constant 0 : index
    %c448 = arith.constant 448 : index
    %c0_93 = arith.constant 0 : index
    %241 = vector.load %arg1[%c0_92, %c448, %c0_93] : memref<1x968x128xf32, #tpu.memory_space<vmem>>, vector<1x128x128xf32>
    %242 = vector.shape_cast %241 : vector<1x128x128xf32> to vector<128x128xf32>
    %243 = vector.extract_strided_slice %2 {offsets = [6, 0], sizes = [1, 128], strides = [1, 1]} : vector<9x128xf32> to vector<1x128xf32>
    %244 = vector.broadcast %243 : vector<1x128xf32> to vector<128x128xf32>
    %245 = arith.mulf %242, %244 : vector<128x128xf32>
    %246 = arith.addf %240, %245 : vector<128x128xf32>
    %c0_94 = arith.constant 0 : index
    %c449 = arith.constant 449 : index
    %c0_95 = arith.constant 0 : index
    %247 = vector.load %arg1[%c0_94, %c449, %c0_95] : memref<1x968x128xf32, #tpu.memory_space<vmem>>, vector<1x128x128xf32>
    %248 = vector.shape_cast %247 : vector<1x128x128xf32> to vector<128x128xf32>
    %249 = vector.extract_strided_slice %2 {offsets = [7, 0], sizes = [1, 128], strides = [1, 1]} : vector<9x128xf32> to vector<1x128xf32>
    %250 = vector.broadcast %249 : vector<1x128xf32> to vector<128x128xf32>
    %251 = arith.mulf %248, %250 : vector<128x128xf32>
    %252 = arith.addf %246, %251 : vector<128x128xf32>
    %c0_96 = arith.constant 0 : index
    %c450 = arith.constant 450 : index
    %c0_97 = arith.constant 0 : index
    %253 = vector.load %arg1[%c0_96, %c450, %c0_97] : memref<1x968x128xf32, #tpu.memory_space<vmem>>, vector<1x128x128xf32>
    %254 = vector.shape_cast %253 : vector<1x128x128xf32> to vector<128x128xf32>
    %255 = vector.extract_strided_slice %2 {offsets = [8, 0], sizes = [1, 128], strides = [1, 1]} : vector<9x128xf32> to vector<1x128xf32>
    %256 = vector.broadcast %255 : vector<1x128xf32> to vector<128x128xf32>
    %257 = arith.mulf %254, %256 : vector<128x128xf32>
    %258 = arith.addf %252, %257 : vector<128x128xf32>
    %259 = vector.broadcast %3 : vector<1x128xf32> to vector<128x128xf32>
    %260 = arith.addf %258, %259 : vector<128x128xf32>
    %cst_98 = arith.constant 0.000000e+00 : f32
    %261 = vector.broadcast %cst_98 : f32 to vector<128x128xf32>
    %262 = arith.maximumf %260, %261 : vector<128x128xf32>
    %263 = vector.extract_strided_slice %262 {offsets = [0, 0], sizes = [96, 128], strides = [1, 1]} : vector<128x128xf32> to vector<96x128xf32>
    %264 = vector.extract_strided_slice %262 {offsets = [32, 0], sizes = [96, 128], strides = [1, 1]} : vector<128x128xf32> to vector<96x128xf32>
    %265 = arith.maximumf %263, %264 : vector<96x128xf32>
    %cst_99 = arith.constant dense<0.000000e+00> : vector<32x128xf32>
    %266 = tpu.matmul %4, %265, %cst_99 {dimension_numbers = #tpu.dot_dimension_numbers<[1], [0], [0], [1], [0, 0, 1, 1], [], []>} : vector<32x96xf32>, vector<96x128xf32>, vector<32x128xf32> -> vector<32x128xf32>
    %cst_100 = arith.constant dense<0.000000e+00> : vector<32x128xf32>
    %267 = tpu.matmul %5, %265, %cst_100 {dimension_numbers = #tpu.dot_dimension_numbers<[1], [0], [0], [1], [0, 0, 1, 1], [], []>} : vector<32x96xf32>, vector<96x128xf32>, vector<32x128xf32> -> vector<32x128xf32>
    %268 = arith.maximumf %266, %267 : vector<32x128xf32>
    %c112 = arith.constant 112 : index
    %c0_101 = arith.constant 0 : index
    %269 = vector.load %arg11[%c112, %c0_101] : memref<258x128xf32, #tpu.memory_space<vmem>>, vector<32x128xf32>
    tpu.vector_store %arg11[%c112, %c0_101], %268 {strides = array<i32>} : memref<258x128xf32, #tpu.memory_space<vmem>>, vector<32x128xf32>,
    %cst_102 = arith.constant 0.000000e+00 : f32
    %270 = vector.broadcast %cst_102 : f32 to vector<128x128xf32>
    %c0_103 = arith.constant 0 : index
    %c512 = arith.constant 512 : index
    %c0_104 = arith.constant 0 : index
    %271 = vector.load %arg1[%c0_103, %c512, %c0_104] : memref<1x968x128xf32, #tpu.memory_space<vmem>>, vector<1x128x128xf32>
    %272 = vector.shape_cast %271 : vector<1x128x128xf32> to vector<128x128xf32>
    %273 = vector.extract_strided_slice %2 {offsets = [0, 0], sizes = [1, 128], strides = [1, 1]} : vector<9x128xf32> to vector<1x128xf32>
    %274 = vector.broadcast %273 : vector<1x128xf32> to vector<128x128xf32>
    %275 = arith.mulf %272, %274 : vector<128x128xf32>
    %276 = arith.addf %270, %275 : vector<128x128xf32>
    %c0_105 = arith.constant 0 : index
    %c513 = arith.constant 513 : index
    %c0_106 = arith.constant 0 : index
    %277 = vector.load %arg1[%c0_105, %c513, %c0_106] : memref<1x968x128xf32, #tpu.memory_space<vmem>>, vector<1x128x128xf32>
    %278 = vector.shape_cast %277 : vector<1x128x128xf32> to vector<128x128xf32>
    %279 = vector.extract_strided_slice %2 {offsets = [1, 0], sizes = [1, 128], strides = [1, 1]} : vector<9x128xf32> to vector<1x128xf32>
    %280 = vector.broadcast %279 : vector<1x128xf32> to vector<128x128xf32>
    %281 = arith.mulf %278, %280 : vector<128x128xf32>
    %282 = arith.addf %276, %281 : vector<128x128xf32>
    %c0_107 = arith.constant 0 : index
    %c514 = arith.constant 514 : index
    %c0_108 = arith.constant 0 : index
    %283 = vector.load %arg1[%c0_107, %c514, %c0_108] : memref<1x968x128xf32, #tpu.memory_space<vmem>>, vector<1x128x128xf32>
    %284 = vector.shape_cast %283 : vector<1x128x128xf32> to vector<128x128xf32>
    %285 = vector.extract_strided_slice %2 {offsets = [2, 0], sizes = [1, 128], strides = [1, 1]} : vector<9x128xf32> to vector<1x128xf32>
    %286 = vector.broadcast %285 : vector<1x128xf32> to vector<128x128xf32>
    %287 = arith.mulf %284, %286 : vector<128x128xf32>
    %288 = arith.addf %282, %287 : vector<128x128xf32>
    %c0_109 = arith.constant 0 : index
    %c544 = arith.constant 544 : index
    %c0_110 = arith.constant 0 : index
    %289 = vector.load %arg1[%c0_109, %c544, %c0_110] : memref<1x968x128xf32, #tpu.memory_space<vmem>>, vector<1x128x128xf32>
    %290 = vector.shape_cast %289 : vector<1x128x128xf32> to vector<128x128xf32>
    %291 = vector.extract_strided_slice %2 {offsets = [3, 0], sizes = [1, 128], strides = [1, 1]} : vector<9x128xf32> to vector<1x128xf32>
    %292 = vector.broadcast %291 : vector<1x128xf32> to vector<128x128xf32>
    %293 = arith.mulf %290, %292 : vector<128x128xf32>
    %294 = arith.addf %288, %293 : vector<128x128xf32>
    %c0_111 = arith.constant 0 : index
    %c545 = arith.constant 545 : index
    %c0_112 = arith.constant 0 : index
    %295 = vector.load %arg1[%c0_111, %c545, %c0_112] : memref<1x968x128xf32, #tpu.memory_space<vmem>>, vector<1x128x128xf32>
    %296 = vector.shape_cast %295 : vector<1x128x128xf32> to vector<128x128xf32>
    %297 = vector.extract_strided_slice %2 {offsets = [4, 0], sizes = [1, 128], strides = [1, 1]} : vector<9x128xf32> to vector<1x128xf32>
    %298 = vector.broadcast %297 : vector<1x128xf32> to vector<128x128xf32>
    %299 = arith.mulf %296, %298 : vector<128x128xf32>
    %300 = arith.addf %294, %299 : vector<128x128xf32>
    %c0_113 = arith.constant 0 : index
    %c546 = arith.constant 546 : index
    %c0_114 = arith.constant 0 : index
    %301 = vector.load %arg1[%c0_113, %c546, %c0_114] : memref<1x968x128xf32, #tpu.memory_space<vmem>>, vector<1x128x128xf32>
    %302 = vector.shape_cast %301 : vector<1x128x128xf32> to vector<128x128xf32>
    %303 = vector.extract_strided_slice %2 {offsets = [5, 0], sizes = [1, 128], strides = [1, 1]} : vector<9x128xf32> to vector<1x128xf32>
    %304 = vector.broadcast %303 : vector<1x128xf32> to vector<128x128xf32>
    %305 = arith.mulf %302, %304 : vector<128x128xf32>
    %306 = arith.addf %300, %305 : vector<128x128xf32>
    %c0_115 = arith.constant 0 : index
    %c576 = arith.constant 576 : index
    %c0_116 = arith.constant 0 : index
    %307 = vector.load %arg1[%c0_115, %c576, %c0_116] : memref<1x968x128xf32, #tpu.memory_space<vmem>>, vector<1x128x128xf32>
    %308 = vector.shape_cast %307 : vector<1x128x128xf32> to vector<128x128xf32>
    %309 = vector.extract_strided_slice %2 {offsets = [6, 0], sizes = [1, 128], strides = [1, 1]} : vector<9x128xf32> to vector<1x128xf32>
    %310 = vector.broadcast %309 : vector<1x128xf32> to vector<128x128xf32>
    %311 = arith.mulf %308, %310 : vector<128x128xf32>
    %312 = arith.addf %306, %311 : vector<128x128xf32>
    %c0_117 = arith.constant 0 : index
    %c577 = arith.constant 577 : index
    %c0_118 = arith.constant 0 : index
    %313 = vector.load %arg1[%c0_117, %c577, %c0_118] : memref<1x968x128xf32, #tpu.memory_space<vmem>>, vector<1x128x128xf32>
    %314 = vector.shape_cast %313 : vector<1x128x128xf32> to vector<128x128xf32>
    %315 = vector.extract_strided_slice %2 {offsets = [7, 0], sizes = [1, 128], strides = [1, 1]} : vector<9x128xf32> to vector<1x128xf32>
    %316 = vector.broadcast %315 : vector<1x128xf32> to vector<128x128xf32>
    %317 = arith.mulf %314, %316 : vector<128x128xf32>
    %318 = arith.addf %312, %317 : vector<128x128xf32>
    %c0_119 = arith.constant 0 : index
    %c578 = arith.constant 578 : index
    %c0_120 = arith.constant 0 : index
    %319 = vector.load %arg1[%c0_119, %c578, %c0_120] : memref<1x968x128xf32, #tpu.memory_space<vmem>>, vector<1x128x128xf32>
    %320 = vector.shape_cast %319 : vector<1x128x128xf32> to vector<128x128xf32>
    %321 = vector.extract_strided_slice %2 {offsets = [8, 0], sizes = [1, 128], strides = [1, 1]} : vector<9x128xf32> to vector<1x128xf32>
    %322 = vector.broadcast %321 : vector<1x128xf32> to vector<128x128xf32>
    %323 = arith.mulf %320, %322 : vector<128x128xf32>
    %324 = arith.addf %318, %323 : vector<128x128xf32>
    %325 = vector.broadcast %3 : vector<1x128xf32> to vector<128x128xf32>
    %326 = arith.addf %324, %325 : vector<128x128xf32>
    %cst_121 = arith.constant 0.000000e+00 : f32
    %327 = vector.broadcast %cst_121 : f32 to vector<128x128xf32>
    %328 = arith.maximumf %326, %327 : vector<128x128xf32>
    %329 = vector.extract_strided_slice %328 {offsets = [0, 0], sizes = [96, 128], strides = [1, 1]} : vector<128x128xf32> to vector<96x128xf32>
    %330 = vector.extract_strided_slice %328 {offsets = [32, 0], sizes = [96, 128], strides = [1, 1]} : vector<128x128xf32> to vector<96x128xf32>
    %331 = arith.maximumf %329, %330 : vector<96x128xf32>
    %cst_122 = arith.constant dense<0.000000e+00> : vector<32x128xf32>
    %332 = tpu.matmul %4, %331, %cst_122 {dimension_numbers = #tpu.dot_dimension_numbers<[1], [0], [0], [1], [0, 0, 1, 1], [], []>} : vector<32x96xf32>, vector<96x128xf32>, vector<32x128xf32> -> vector<32x128xf32>
    %cst_123 = arith.constant dense<0.000000e+00> : vector<32x128xf32>
    %333 = tpu.matmul %5, %331, %cst_123 {dimension_numbers = #tpu.dot_dimension_numbers<[1], [0], [0], [1], [0, 0, 1, 1], [], []>} : vector<32x96xf32>, vector<96x128xf32>, vector<32x128xf32> -> vector<32x128xf32>
    %334 = arith.maximumf %332, %333 : vector<32x128xf32>
    %c144 = arith.constant 144 : index
    %c0_124 = arith.constant 0 : index
    %335 = vector.load %arg11[%c144, %c0_124] : memref<258x128xf32, #tpu.memory_space<vmem>>, vector<32x128xf32>
    tpu.vector_store %arg11[%c144, %c0_124], %334 {strides = array<i32>} : memref<258x128xf32, #tpu.memory_space<vmem>>, vector<32x128xf32>,
    %cst_125 = arith.constant 0.000000e+00 : f32
    %336 = vector.broadcast %cst_125 : f32 to vector<128x128xf32>
    %c0_126 = arith.constant 0 : index
    %c640 = arith.constant 640 : index
    %c0_127 = arith.constant 0 : index
    %337 = vector.load %arg1[%c0_126, %c640, %c0_127] : memref<1x968x128xf32, #tpu.memory_space<vmem>>, vector<1x128x128xf32>
    %338 = vector.shape_cast %337 : vector<1x128x128xf32> to vector<128x128xf32>
    %339 = vector.extract_strided_slice %2 {offsets = [0, 0], sizes = [1, 128], strides = [1, 1]} : vector<9x128xf32> to vector<1x128xf32>
    %340 = vector.broadcast %339 : vector<1x128xf32> to vector<128x128xf32>
    %341 = arith.mulf %338, %340 : vector<128x128xf32>
    %342 = arith.addf %336, %341 : vector<128x128xf32>
    %c0_128 = arith.constant 0 : index
    %c641 = arith.constant 641 : index
    %c0_129 = arith.constant 0 : index
    %343 = vector.load %arg1[%c0_128, %c641, %c0_129] : memref<1x968x128xf32, #tpu.memory_space<vmem>>, vector<1x128x128xf32>
    %344 = vector.shape_cast %343 : vector<1x128x128xf32> to vector<128x128xf32>
    %345 = vector.extract_strided_slice %2 {offsets = [1, 0], sizes = [1, 128], strides = [1, 1]} : vector<9x128xf32> to vector<1x128xf32>
    %346 = vector.broadcast %345 : vector<1x128xf32> to vector<128x128xf32>
    %347 = arith.mulf %344, %346 : vector<128x128xf32>
    %348 = arith.addf %342, %347 : vector<128x128xf32>
    %c0_130 = arith.constant 0 : index
    %c642 = arith.constant 642 : index
    %c0_131 = arith.constant 0 : index
    %349 = vector.load %arg1[%c0_130, %c642, %c0_131] : memref<1x968x128xf32, #tpu.memory_space<vmem>>, vector<1x128x128xf32>
    %350 = vector.shape_cast %349 : vector<1x128x128xf32> to vector<128x128xf32>
    %351 = vector.extract_strided_slice %2 {offsets = [2, 0], sizes = [1, 128], strides = [1, 1]} : vector<9x128xf32> to vector<1x128xf32>
    %352 = vector.broadcast %351 : vector<1x128xf32> to vector<128x128xf32>
    %353 = arith.mulf %350, %352 : vector<128x128xf32>
    %354 = arith.addf %348, %353 : vector<128x128xf32>
    %c0_132 = arith.constant 0 : index
    %c672 = arith.constant 672 : index
    %c0_133 = arith.constant 0 : index
    %355 = vector.load %arg1[%c0_132, %c672, %c0_133] : memref<1x968x128xf32, #tpu.memory_space<vmem>>, vector<1x128x128xf32>
    %356 = vector.shape_cast %355 : vector<1x128x128xf32> to vector<128x128xf32>
    %357 = vector.extract_strided_slice %2 {offsets = [3, 0], sizes = [1, 128], strides = [1, 1]} : vector<9x128xf32> to vector<1x128xf32>
    %358 = vector.broadcast %357 : vector<1x128xf32> to vector<128x128xf32>
    %359 = arith.mulf %356, %358 : vector<128x128xf32>
    %360 = arith.addf %354, %359 : vector<128x128xf32>
    %c0_134 = arith.constant 0 : index
    %c673 = arith.constant 673 : index
    %c0_135 = arith.constant 0 : index
    %361 = vector.load %arg1[%c0_134, %c673, %c0_135] : memref<1x968x128xf32, #tpu.memory_space<vmem>>, vector<1x128x128xf32>
    %362 = vector.shape_cast %361 : vector<1x128x128xf32> to vector<128x128xf32>
    %363 = vector.extract_strided_slice %2 {offsets = [4, 0], sizes = [1, 128], strides = [1, 1]} : vector<9x128xf32> to vector<1x128xf32>
    %364 = vector.broadcast %363 : vector<1x128xf32> to vector<128x128xf32>
    %365 = arith.mulf %362, %364 : vector<128x128xf32>
    %366 = arith.addf %360, %365 : vector<128x128xf32>
    %c0_136 = arith.constant 0 : index
    %c674 = arith.constant 674 : index
    %c0_137 = arith.constant 0 : index
    %367 = vector.load %arg1[%c0_136, %c674, %c0_137] : memref<1x968x128xf32, #tpu.memory_space<vmem>>, vector<1x128x128xf32>
    %368 = vector.shape_cast %367 : vector<1x128x128xf32> to vector<128x128xf32>
    %369 = vector.extract_strided_slice %2 {offsets = [5, 0], sizes = [1, 128], strides = [1, 1]} : vector<9x128xf32> to vector<1x128xf32>
    %370 = vector.broadcast %369 : vector<1x128xf32> to vector<128x128xf32>
    %371 = arith.mulf %368, %370 : vector<128x128xf32>
    %372 = arith.addf %366, %371 : vector<128x128xf32>
    %c0_138 = arith.constant 0 : index
    %c704 = arith.constant 704 : index
    %c0_139 = arith.constant 0 : index
    %373 = vector.load %arg1[%c0_138, %c704, %c0_139] : memref<1x968x128xf32, #tpu.memory_space<vmem>>, vector<1x128x128xf32>
    %374 = vector.shape_cast %373 : vector<1x128x128xf32> to vector<128x128xf32>
    %375 = vector.extract_strided_slice %2 {offsets = [6, 0], sizes = [1, 128], strides = [1, 1]} : vector<9x128xf32> to vector<1x128xf32>
    %376 = vector.broadcast %375 : vector<1x128xf32> to vector<128x128xf32>
    %377 = arith.mulf %374, %376 : vector<128x128xf32>
    %378 = arith.addf %372, %377 : vector<128x128xf32>
    %c0_140 = arith.constant 0 : index
    %c705 = arith.constant 705 : index
    %c0_141 = arith.constant 0 : index
    %379 = vector.load %arg1[%c0_140, %c705, %c0_141] : memref<1x968x128xf32, #tpu.memory_space<vmem>>, vector<1x128x128xf32>
    %380 = vector.shape_cast %379 : vector<1x128x128xf32> to vector<128x128xf32>
    %381 = vector.extract_strided_slice %2 {offsets = [7, 0], sizes = [1, 128], strides = [1, 1]} : vector<9x128xf32> to vector<1x128xf32>
    %382 = vector.broadcast %381 : vector<1x128xf32> to vector<128x128xf32>
    %383 = arith.mulf %380, %382 : vector<128x128xf32>
    %384 = arith.addf %378, %383 : vector<128x128xf32>
    %c0_142 = arith.constant 0 : index
    %c706 = arith.constant 706 : index
    %c0_143 = arith.constant 0 : index
    %385 = vector.load %arg1[%c0_142, %c706, %c0_143] : memref<1x968x128xf32, #tpu.memory_space<vmem>>, vector<1x128x128xf32>
    %386 = vector.shape_cast %385 : vector<1x128x128xf32> to vector<128x128xf32>
    %387 = vector.extract_strided_slice %2 {offsets = [8, 0], sizes = [1, 128], strides = [1, 1]} : vector<9x128xf32> to vector<1x128xf32>
    %388 = vector.broadcast %387 : vector<1x128xf32> to vector<128x128xf32>
    %389 = arith.mulf %386, %388 : vector<128x128xf32>
    %390 = arith.addf %384, %389 : vector<128x128xf32>
    %391 = vector.broadcast %3 : vector<1x128xf32> to vector<128x128xf32>
    %392 = arith.addf %390, %391 : vector<128x128xf32>
    %cst_144 = arith.constant 0.000000e+00 : f32
    %393 = vector.broadcast %cst_144 : f32 to vector<128x128xf32>
    %394 = arith.maximumf %392, %393 : vector<128x128xf32>
    %395 = vector.extract_strided_slice %394 {offsets = [0, 0], sizes = [96, 128], strides = [1, 1]} : vector<128x128xf32> to vector<96x128xf32>
    %396 = vector.extract_strided_slice %394 {offsets = [32, 0], sizes = [96, 128], strides = [1, 1]} : vector<128x128xf32> to vector<96x128xf32>
    %397 = arith.maximumf %395, %396 : vector<96x128xf32>
    %cst_145 = arith.constant dense<0.000000e+00> : vector<32x128xf32>
    %398 = tpu.matmul %4, %397, %cst_145 {dimension_numbers = #tpu.dot_dimension_numbers<[1], [0], [0], [1], [0, 0, 1, 1], [], []>} : vector<32x96xf32>, vector<96x128xf32>, vector<32x128xf32> -> vector<32x128xf32>
    %cst_146 = arith.constant dense<0.000000e+00> : vector<32x128xf32>
    %399 = tpu.matmul %5, %397, %cst_146 {dimension_numbers = #tpu.dot_dimension_numbers<[1], [0], [0], [1], [0, 0, 1, 1], [], []>} : vector<32x96xf32>, vector<96x128xf32>, vector<32x128xf32> -> vector<32x128xf32>
    %400 = arith.maximumf %398, %399 : vector<32x128xf32>
    %c176 = arith.constant 176 : index
    %c0_147 = arith.constant 0 : index
    %401 = vector.load %arg11[%c176, %c0_147] : memref<258x128xf32, #tpu.memory_space<vmem>>, vector<32x128xf32>
    tpu.vector_store %arg11[%c176, %c0_147], %400 {strides = array<i32>} : memref<258x128xf32, #tpu.memory_space<vmem>>, vector<32x128xf32>,
    %cst_148 = arith.constant 0.000000e+00 : f32
    %402 = vector.broadcast %cst_148 : f32 to vector<128x128xf32>
    %c0_149 = arith.constant 0 : index
    %c768 = arith.constant 768 : index
    %c0_150 = arith.constant 0 : index
    %403 = vector.load %arg1[%c0_149, %c768, %c0_150] : memref<1x968x128xf32, #tpu.memory_space<vmem>>, vector<1x128x128xf32>
    %404 = vector.shape_cast %403 : vector<1x128x128xf32> to vector<128x128xf32>
    %405 = vector.extract_strided_slice %2 {offsets = [0, 0], sizes = [1, 128], strides = [1, 1]} : vector<9x128xf32> to vector<1x128xf32>
    %406 = vector.broadcast %405 : vector<1x128xf32> to vector<128x128xf32>
    %407 = arith.mulf %404, %406 : vector<128x128xf32>
    %408 = arith.addf %402, %407 : vector<128x128xf32>
    %c0_151 = arith.constant 0 : index
    %c769 = arith.constant 769 : index
    %c0_152 = arith.constant 0 : index
    %409 = vector.load %arg1[%c0_151, %c769, %c0_152] : memref<1x968x128xf32, #tpu.memory_space<vmem>>, vector<1x128x128xf32>
    %410 = vector.shape_cast %409 : vector<1x128x128xf32> to vector<128x128xf32>
    %411 = vector.extract_strided_slice %2 {offsets = [1, 0], sizes = [1, 128], strides = [1, 1]} : vector<9x128xf32> to vector<1x128xf32>
    %412 = vector.broadcast %411 : vector<1x128xf32> to vector<128x128xf32>
    %413 = arith.mulf %410, %412 : vector<128x128xf32>
    %414 = arith.addf %408, %413 : vector<128x128xf32>
    %c0_153 = arith.constant 0 : index
    %c770 = arith.constant 770 : index
    %c0_154 = arith.constant 0 : index
    %415 = vector.load %arg1[%c0_153, %c770, %c0_154] : memref<1x968x128xf32, #tpu.memory_space<vmem>>, vector<1x128x128xf32>
    %416 = vector.shape_cast %415 : vector<1x128x128xf32> to vector<128x128xf32>
    %417 = vector.extract_strided_slice %2 {offsets = [2, 0], sizes = [1, 128], strides = [1, 1]} : vector<9x128xf32> to vector<1x128xf32>
    %418 = vector.broadcast %417 : vector<1x128xf32> to vector<128x128xf32>
    %419 = arith.mulf %416, %418 : vector<128x128xf32>
    %420 = arith.addf %414, %419 : vector<128x128xf32>
    %c0_155 = arith.constant 0 : index
    %c800 = arith.constant 800 : index
    %c0_156 = arith.constant 0 : index
    %421 = vector.load %arg1[%c0_155, %c800, %c0_156] : memref<1x968x128xf32, #tpu.memory_space<vmem>>, vector<1x128x128xf32>
    %422 = vector.shape_cast %421 : vector<1x128x128xf32> to vector<128x128xf32>
    %423 = vector.extract_strided_slice %2 {offsets = [3, 0], sizes = [1, 128], strides = [1, 1]} : vector<9x128xf32> to vector<1x128xf32>
    %424 = vector.broadcast %423 : vector<1x128xf32> to vector<128x128xf32>
    %425 = arith.mulf %422, %424 : vector<128x128xf32>
    %426 = arith.addf %420, %425 : vector<128x128xf32>
    %c0_157 = arith.constant 0 : index
    %c801 = arith.constant 801 : index
    %c0_158 = arith.constant 0 : index
    %427 = vector.load %arg1[%c0_157, %c801, %c0_158] : memref<1x968x128xf32, #tpu.memory_space<vmem>>, vector<1x128x128xf32>
    %428 = vector.shape_cast %427 : vector<1x128x128xf32> to vector<128x128xf32>
    %429 = vector.extract_strided_slice %2 {offsets = [4, 0], sizes = [1, 128], strides = [1, 1]} : vector<9x128xf32> to vector<1x128xf32>
    %430 = vector.broadcast %429 : vector<1x128xf32> to vector<128x128xf32>
    %431 = arith.mulf %428, %430 : vector<128x128xf32>
    %432 = arith.addf %426, %431 : vector<128x128xf32>
    %c0_159 = arith.constant 0 : index
    %c802 = arith.constant 802 : index
    %c0_160 = arith.constant 0 : index
    %433 = vector.load %arg1[%c0_159, %c802, %c0_160] : memref<1x968x128xf32, #tpu.memory_space<vmem>>, vector<1x128x128xf32>
    %434 = vector.shape_cast %433 : vector<1x128x128xf32> to vector<128x128xf32>
    %435 = vector.extract_strided_slice %2 {offsets = [5, 0], sizes = [1, 128], strides = [1, 1]} : vector<9x128xf32> to vector<1x128xf32>
    %436 = vector.broadcast %435 : vector<1x128xf32> to vector<128x128xf32>
    %437 = arith.mulf %434, %436 : vector<128x128xf32>
    %438 = arith.addf %432, %437 : vector<128x128xf32>
    %c0_161 = arith.constant 0 : index
    %c832 = arith.constant 832 : index
    %c0_162 = arith.constant 0 : index
    %439 = vector.load %arg1[%c0_161, %c832, %c0_162] : memref<1x968x128xf32, #tpu.memory_space<vmem>>, vector<1x128x128xf32>
    %440 = vector.shape_cast %439 : vector<1x128x128xf32> to vector<128x128xf32>
    %441 = vector.extract_strided_slice %2 {offsets = [6, 0], sizes = [1, 128], strides = [1, 1]} : vector<9x128xf32> to vector<1x128xf32>
    %442 = vector.broadcast %441 : vector<1x128xf32> to vector<128x128xf32>
    %443 = arith.mulf %440, %442 : vector<128x128xf32>
    %444 = arith.addf %438, %443 : vector<128x128xf32>
    %c0_163 = arith.constant 0 : index
    %c833 = arith.constant 833 : index
    %c0_164 = arith.constant 0 : index
    %445 = vector.load %arg1[%c0_163, %c833, %c0_164] : memref<1x968x128xf32, #tpu.memory_space<vmem>>, vector<1x128x128xf32>
    %446 = vector.shape_cast %445 : vector<1x128x128xf32> to vector<128x128xf32>
    %447 = vector.extract_strided_slice %2 {offsets = [7, 0], sizes = [1, 128], strides = [1, 1]} : vector<9x128xf32> to vector<1x128xf32>
    %448 = vector.broadcast %447 : vector<1x128xf32> to vector<128x128xf32>
    %449 = arith.mulf %446, %448 : vector<128x128xf32>
    %450 = arith.addf %444, %449 : vector<128x128xf32>
    %c0_165 = arith.constant 0 : index
    %c834 = arith.constant 834 : index
    %c0_166 = arith.constant 0 : index
    %451 = vector.load %arg1[%c0_165, %c834, %c0_166] : memref<1x968x128xf32, #tpu.memory_space<vmem>>, vector<1x128x128xf32>
    %452 = vector.shape_cast %451 : vector<1x128x128xf32> to vector<128x128xf32>
    %453 = vector.extract_strided_slice %2 {offsets = [8, 0], sizes = [1, 128], strides = [1, 1]} : vector<9x128xf32> to vector<1x128xf32>
    %454 = vector.broadcast %453 : vector<1x128xf32> to vector<128x128xf32>
    %455 = arith.mulf %452, %454 : vector<128x128xf32>
    %456 = arith.addf %450, %455 : vector<128x128xf32>
    %457 = vector.broadcast %3 : vector<1x128xf32> to vector<128x128xf32>
    %458 = arith.addf %456, %457 : vector<128x128xf32>
    %cst_167 = arith.constant 0.000000e+00 : f32
    %459 = vector.broadcast %cst_167 : f32 to vector<128x128xf32>
    %460 = arith.maximumf %458, %459 : vector<128x128xf32>
    %461 = vector.extract_strided_slice %460 {offsets = [0, 0], sizes = [96, 128], strides = [1, 1]} : vector<128x128xf32> to vector<96x128xf32>
    %462 = vector.extract_strided_slice %460 {offsets = [32, 0], sizes = [96, 128], strides = [1, 1]} : vector<128x128xf32> to vector<96x128xf32>
    %463 = arith.maximumf %461, %462 : vector<96x128xf32>
    %cst_168 = arith.constant dense<0.000000e+00> : vector<32x128xf32>
    %464 = tpu.matmul %4, %463, %cst_168 {dimension_numbers = #tpu.dot_dimension_numbers<[1], [0], [0], [1], [0, 0, 1, 1], [], []>} : vector<32x96xf32>, vector<96x128xf32>, vector<32x128xf32> -> vector<32x128xf32>
    %cst_169 = arith.constant dense<0.000000e+00> : vector<32x128xf32>
    %465 = tpu.matmul %5, %463, %cst_169 {dimension_numbers = #tpu.dot_dimension_numbers<[1], [0], [0], [1], [0, 0, 1, 1], [], []>} : vector<32x96xf32>, vector<96x128xf32>, vector<32x128xf32> -> vector<32x128xf32>
    %466 = arith.maximumf %464, %465 : vector<32x128xf32>
    %c208 = arith.constant 208 : index
    %c0_170 = arith.constant 0 : index
    %467 = vector.load %arg11[%c208, %c0_170] : memref<258x128xf32, #tpu.memory_space<vmem>>, vector<32x128xf32>
    tpu.vector_store %arg11[%c208, %c0_170], %466 {strides = array<i32>} : memref<258x128xf32, #tpu.memory_space<vmem>>, vector<32x128xf32>,
    %c0_171 = arith.constant 0 : index
    %c0_172 = arith.constant 0 : index
    %468 = vector.load %arg11[%c0_171, %c0_172] : memref<258x128xf32, #tpu.memory_space<vmem>>, vector<224x128xf32>
    %c0_173 = arith.constant 0 : index
    %c0_174 = arith.constant 0 : index
    %469 = vector.load %arg12[%c0_173, %c0_174] : memref<224x1152xf32, #tpu.memory_space<vmem>>, vector<224x128xf32>
    tpu.vector_store %arg12[%c0_173, %c0_174], %468 {strides = array<i32>} : memref<224x1152xf32, #tpu.memory_space<vmem>>, vector<224x128xf32>,
    %c1_175 = arith.constant 1 : index
    %c0_176 = arith.constant 0 : index
    %470 = vector.load %arg11[%c1_175, %c0_176] : memref<258x128xf32, #tpu.memory_space<vmem>>, vector<224x128xf32>
    %c0_177 = arith.constant 0 : index
    %c128_178 = arith.constant 128 : index
    %471 = vector.load %arg12[%c0_177, %c128_178] : memref<224x1152xf32, #tpu.memory_space<vmem>>, vector<224x128xf32>
    tpu.vector_store %arg12[%c0_177, %c128_178], %470 {strides = array<i32>} : memref<224x1152xf32, #tpu.memory_space<vmem>>, vector<224x128xf32>,
    %c2_179 = arith.constant 2 : index
    %c0_180 = arith.constant 0 : index
    %472 = vector.load %arg11[%c2_179, %c0_180] : memref<258x128xf32, #tpu.memory_space<vmem>>, vector<224x128xf32>
    %c0_181 = arith.constant 0 : index
    %c256_182 = arith.constant 256 : index
    %473 = vector.load %arg12[%c0_181, %c256_182] : memref<224x1152xf32, #tpu.memory_space<vmem>>, vector<224x128xf32>
    tpu.vector_store %arg12[%c0_181, %c256_182], %472 {strides = array<i32>} : memref<224x1152xf32, #tpu.memory_space<vmem>>, vector<224x128xf32>,
    %c16_183 = arith.constant 16 : index
    %c0_184 = arith.constant 0 : index
    %474 = vector.load %arg11[%c16_183, %c0_184] : memref<258x128xf32, #tpu.memory_space<vmem>>, vector<224x128xf32>
    %c0_185 = arith.constant 0 : index
    %c384_186 = arith.constant 384 : index
    %475 = vector.load %arg12[%c0_185, %c384_186] : memref<224x1152xf32, #tpu.memory_space<vmem>>, vector<224x128xf32>
    tpu.vector_store %arg12[%c0_185, %c384_186], %474 {strides = array<i32>} : memref<224x1152xf32, #tpu.memory_space<vmem>>, vector<224x128xf32>,
    %c17 = arith.constant 17 : index
    %c0_187 = arith.constant 0 : index
    %476 = vector.load %arg11[%c17, %c0_187] : memref<258x128xf32, #tpu.memory_space<vmem>>, vector<224x128xf32>
    %c0_188 = arith.constant 0 : index
    %c512_189 = arith.constant 512 : index
    %477 = vector.load %arg12[%c0_188, %c512_189] : memref<224x1152xf32, #tpu.memory_space<vmem>>, vector<224x128xf32>
    tpu.vector_store %arg12[%c0_188, %c512_189], %476 {strides = array<i32>} : memref<224x1152xf32, #tpu.memory_space<vmem>>, vector<224x128xf32>,
    %c18 = arith.constant 18 : index
    %c0_190 = arith.constant 0 : index
    %478 = vector.load %arg11[%c18, %c0_190] : memref<258x128xf32, #tpu.memory_space<vmem>>, vector<224x128xf32>
    %c0_191 = arith.constant 0 : index
    %c640_192 = arith.constant 640 : index
    %479 = vector.load %arg12[%c0_191, %c640_192] : memref<224x1152xf32, #tpu.memory_space<vmem>>, vector<224x128xf32>
    tpu.vector_store %arg12[%c0_191, %c640_192], %478 {strides = array<i32>} : memref<224x1152xf32, #tpu.memory_space<vmem>>, vector<224x128xf32>,
    %c32_193 = arith.constant 32 : index
    %c0_194 = arith.constant 0 : index
    %480 = vector.load %arg11[%c32_193, %c0_194] : memref<258x128xf32, #tpu.memory_space<vmem>>, vector<224x128xf32>
    %c0_195 = arith.constant 0 : index
    %c768_196 = arith.constant 768 : index
    %481 = vector.load %arg12[%c0_195, %c768_196] : memref<224x1152xf32, #tpu.memory_space<vmem>>, vector<224x128xf32>
    tpu.vector_store %arg12[%c0_195, %c768_196], %480 {strides = array<i32>} : memref<224x1152xf32, #tpu.memory_space<vmem>>, vector<224x128xf32>,
    %c33_197 = arith.constant 33 : index
    %c0_198 = arith.constant 0 : index
    %482 = vector.load %arg11[%c33_197, %c0_198] : memref<258x128xf32, #tpu.memory_space<vmem>>, vector<224x128xf32>
    %c0_199 = arith.constant 0 : index
    %c896 = arith.constant 896 : index
    %483 = vector.load %arg12[%c0_199, %c896] : memref<224x1152xf32, #tpu.memory_space<vmem>>, vector<224x128xf32>
    tpu.vector_store %arg12[%c0_199, %c896], %482 {strides = array<i32>} : memref<224x1152xf32, #tpu.memory_space<vmem>>, vector<224x128xf32>,
    %c34_200 = arith.constant 34 : index
    %c0_201 = arith.constant 0 : index
    %484 = vector.load %arg11[%c34_200, %c0_201] : memref<258x128xf32, #tpu.memory_space<vmem>>, vector<224x128xf32>
    %c0_202 = arith.constant 0 : index
    %c1024 = arith.constant 1024 : index
    %485 = vector.load %arg12[%c0_202, %c1024] : memref<224x1152xf32, #tpu.memory_space<vmem>>, vector<224x128xf32>
    tpu.vector_store %arg12[%c0_202, %c1024], %484 {strides = array<i32>} : memref<224x1152xf32, #tpu.memory_space<vmem>>, vector<224x128xf32>,
    %c0_203 = arith.constant 0 : index
    %c0_204 = arith.constant 0 : index
    %486 = vector.load %arg5[%c0_203, %c0_204] : memref<1x256xf32, #tpu.memory_space<vmem>>, vector<1x256xf32>
    %c0_205 = arith.constant 0 : index
    %c0_206 = arith.constant 0 : index
    %487 = vector.load %arg12[%c0_205, %c0_206] : memref<224x1152xf32, #tpu.memory_space<vmem>>, vector<112x1152xf32>
    %c0_207 = arith.constant 0 : index
    %c0_208 = arith.constant 0 : index
    %488 = vector.load %arg4[%c0_207, %c0_208] : memref<1152x256xf32, #tpu.memory_space<vmem>>, vector<1152x256xf32>
    %cst_209 = arith.constant dense<0.000000e+00> : vector<112x256xf32>
    %489 = tpu.matmul %487, %488, %cst_209 {dimension_numbers = #tpu.dot_dimension_numbers<[1], [0], [0], [1], [0, 0, 1, 1], [], []>} : vector<112x1152xf32>, vector<1152x256xf32>, vector<112x256xf32> -> vector<112x256xf32>
    %490 = vector.broadcast %486 : vector<1x256xf32> to vector<112x256xf32>
    %491 = arith.addf %489, %490 : vector<112x256xf32>
    %cst_210 = arith.constant 0.000000e+00 : f32
    %492 = vector.broadcast %cst_210 : f32 to vector<112x256xf32>
    %493 = arith.maximumf %491, %492 : vector<112x256xf32>
    %c0_211 = arith.constant 0 : index
    %c0_212 = arith.constant 0 : index
    %494 = vector.load %arg13[%c0_211, %c0_212] : memref<224x256xf32, #tpu.memory_space<vmem>>, vector<112x256xf32>
    tpu.vector_store %arg13[%c0_211, %c0_212], %493 {strides = array<i32>} : memref<224x256xf32, #tpu.memory_space<vmem>>, vector<112x256xf32>,
    %c112_213 = arith.constant 112 : index
    %c0_214 = arith.constant 0 : index
    %495 = vector.load %arg12[%c112_213, %c0_214] : memref<224x1152xf32, #tpu.memory_space<vmem>>, vector<112x1152xf32>
    %c0_215 = arith.constant 0 : index
    %c0_216 = arith.constant 0 : index
    %496 = vector.load %arg4[%c0_215, %c0_216] : memref<1152x256xf32, #tpu.memory_space<vmem>>, vector<1152x256xf32>
    %cst_217 = arith.constant dense<0.000000e+00> : vector<112x256xf32>
    %497 = tpu.matmul %495, %496, %cst_217 {dimension_numbers = #tpu.dot_dimension_numbers<[1], [0], [0], [1], [0, 0, 1, 1], [], []>} : vector<112x1152xf32>, vector<1152x256xf32>, vector<112x256xf32> -> vector<112x256xf32>
    %498 = vector.broadcast %486 : vector<1x256xf32> to vector<112x256xf32>
    %499 = arith.addf %497, %498 : vector<112x256xf32>
    %cst_218 = arith.constant 0.000000e+00 : f32
    %500 = vector.broadcast %cst_218 : f32 to vector<112x256xf32>
    %501 = arith.maximumf %499, %500 : vector<112x256xf32>
    %c112_219 = arith.constant 112 : index
    %c0_220 = arith.constant 0 : index
    %502 = vector.load %arg13[%c112_219, %c0_220] : memref<224x256xf32, #tpu.memory_space<vmem>>, vector<112x256xf32>
    tpu.vector_store %arg13[%c112_219, %c0_220], %501 {strides = array<i32>} : memref<224x256xf32, #tpu.memory_space<vmem>>, vector<112x256xf32>,
    %c0_221 = arith.constant 0 : index
    %c0_222 = arith.constant 0 : index
    %503 = vector.load %arg13[%c0_221, %c0_222] : memref<224x256xf32, #tpu.memory_space<vmem>>, vector<208x256xf32>
    %c16_223 = arith.constant 16 : index
    %c0_224 = arith.constant 0 : index
    %504 = vector.load %arg13[%c16_223, %c0_224] : memref<224x256xf32, #tpu.memory_space<vmem>>, vector<208x256xf32>
    %505 = arith.maximumf %503, %504 : vector<208x256xf32>
    %c0_225 = arith.constant 0 : index
    %c0_226 = arith.constant 0 : index
    %506 = vector.load %arg8[%c0_225, %c0_226] : memref<49x208xf32, #tpu.memory_space<vmem>>, vector<49x208xf32>
    %cst_227 = arith.constant dense<0.000000e+00> : vector<49x256xf32>
    %507 = tpu.matmul %506, %505, %cst_227 {dimension_numbers = #tpu.dot_dimension_numbers<[1], [0], [0], [1], [0, 0, 1, 1], [], []>} : vector<49x208xf32>, vector<208x256xf32>, vector<49x256xf32> -> vector<49x256xf32>
    %c0_228 = arith.constant 0 : index
    %c0_229 = arith.constant 0 : index
    %508 = vector.load %arg9[%c0_228, %c0_229] : memref<49x208xf32, #tpu.memory_space<vmem>>, vector<49x208xf32>
    %cst_230 = arith.constant dense<0.000000e+00> : vector<49x256xf32>
    %509 = tpu.matmul %508, %505, %cst_230 {dimension_numbers = #tpu.dot_dimension_numbers<[1], [0], [0], [1], [0, 0, 1, 1], [], []>} : vector<49x208xf32>, vector<208x256xf32>, vector<49x256xf32> -> vector<49x256xf32>
    %510 = arith.maximumf %507, %509 : vector<49x256xf32>
    %c0_231 = arith.constant 0 : index
    %c0_232 = arith.constant 0 : index
    %c0_233 = arith.constant 0 : index
    %511 = vector.load %arg10[%c0_231, %c0_232, %c0_233] : memref<1x49x256xf32, #tpu.memory_space<vmem>>, vector<1x49x256xf32>
    %512 = vector.shape_cast %511 : vector<1x49x256xf32> to vector<49x256xf32>
    %513 = vector.shape_cast %510 : vector<49x256xf32> to vector<1x49x256xf32>
    tpu.vector_store %arg10[%c0_231, %c0_232, %c0_233], %513 {strides = array<i32>} : memref<1x49x256xf32, #tpu.memory_space<vmem>>, vector<1x49x256xf32>,
    return
  }
  func.func @transform_0(%arg0: i32) -> (i32, i32, i32) {
    %c0_i32 = arith.constant 0 : i32
    %c0_i32_0 = arith.constant 0 : i32
    %c0_i32_1 = arith.constant 0 : i32
    return %arg0, %c0_i32, %c0_i32_0 : i32, i32, i32
  }
  func.func @transform_1(%arg0: i32) -> (i32, i32) {
    %c0_i32 = arith.constant 0 : i32
    %c0_i32_0 = arith.constant 0 : i32
    %c0_i32_1 = arith.constant 0 : i32
    return %c0_i32, %c0_i32_0 : i32, i32
  }
  func.func @transform_2(%arg0: i32) -> (i32, i32) {
    %c0_i32 = arith.constant 0 : i32
    %c0_i32_0 = arith.constant 0 : i32
    %c0_i32_1 = arith.constant 0 : i32
    return %c0_i32, %c0_i32_0 : i32, i32
  }
  func.func @transform_3(%arg0: i32) -> (i32, i32) {
    %c0_i32 = arith.constant 0 : i32
    %c0_i32_0 = arith.constant 0 : i32
    %c0_i32_1 = arith.constant 0 : i32
    return %c0_i32, %c0_i32_0 : i32, i32
  }
  func.func @transform_4(%arg0: i32) -> (i32, i32) {
    %c0_i32 = arith.constant 0 : i32
    %c0_i32_0 = arith.constant 0 : i32
    %c0_i32_1 = arith.constant 0 : i32
    return %c0_i32, %c0_i32_0 : i32, i32
  }
  func.func @transform_5(%arg0: i32) -> (i32, i32) {
    %c0_i32 = arith.constant 0 : i32
    %c0_i32_0 = arith.constant 0 : i32
    %c0_i32_1 = arith.constant 0 : i32
    return %c0_i32, %c0_i32_0 : i32, i32
  }
  func.func @transform_6(%arg0: i32) -> (i32, i32) {
    %c0_i32 = arith.constant 0 : i32
    %c0_i32_0 = arith.constant 0 : i32
    %c0_i32_1 = arith.constant 0 : i32
    return %c0_i32, %c0_i32_0 : i32, i32
  }
  func.func @transform_7(%arg0: i32) -> (i32, i32) {
    %c0_i32 = arith.constant 0 : i32
    %c0_i32_0 = arith.constant 0 : i32
    %c0_i32_1 = arith.constant 0 : i32
    return %c0_i32, %c0_i32_0 : i32, i32
  }
  func.func @transform_8(%arg0: i32) -> (i32, i32) {
    %c0_i32 = arith.constant 0 : i32
    %c0_i32_0 = arith.constant 0 : i32
    %c0_i32_1 = arith.constant 0 : i32
    return %c0_i32, %c0_i32_0 : i32, i32
  }
  func.func @transform_9(%arg0: i32) -> (i32, i32, i32) {
    %c0_i32 = arith.constant 0 : i32
    %c0_i32_0 = arith.constant 0 : i32
    %c0_i32_1 = arith.constant 0 : i32
    return %arg0, %c0_i32, %c0_i32_0 : i32, i32, i32
  }
}

module attributes {stable_mosaic.version = 11 : i64} {
  func.func @_fc_kernel(%arg0: i32, %arg1: memref<8x3136xf32, #tpu.memory_space<vmem>>, %arg2: memref<3136x64xf32, #tpu.memory_space<vmem>>, %arg3: memref<1x64xf32, #tpu.memory_space<vmem>>, %arg4: memref<64x10xf32, #tpu.memory_space<vmem>>, %arg5: memref<1x10xf32, #tpu.memory_space<vmem>>, %arg6: memref<8x64xf32, #tpu.memory_space<vmem>>, %arg7: memref<8x10xf32, #tpu.memory_space<vmem>>) attributes {dimension_semantics = [#tpu.dimension_semantics<parallel>], iteration_bounds = array<i64: 1>, scalar_prefetch = 0 : i64, scratch_operands = 0 : i64, tpu.core_type = #tpu.core_type<tc>, window_params = [{transform_indices = @transform_0, window_bounds = array<i64: 8, 3136>}, {pipeline_mode = #tpu.pipeline_mode<synchronous>, transform_indices = @transform_1, window_bounds = array<i64: 3136, 64>}, {pipeline_mode = #tpu.pipeline_mode<synchronous>, transform_indices = @transform_2, window_bounds = array<i64: 1, 64>}, {pipeline_mode = #tpu.pipeline_mode<synchronous>, transform_indices = @transform_3, window_bounds = array<i64: 64, 10>}, {pipeline_mode = #tpu.pipeline_mode<synchronous>, transform_indices = @transform_4, window_bounds = array<i64: 1, 10>}, {transform_indices = @transform_5, window_bounds = array<i64: 8, 64>}, {transform_indices = @transform_6, window_bounds = array<i64: 8, 10>}]} {
    %c0 = arith.constant 0 : index
    %c0_0 = arith.constant 0 : index
    %0 = vector.load %arg1[%c0, %c0_0] : memref<8x3136xf32, #tpu.memory_space<vmem>>, vector<8x3136xf32>
    %c0_1 = arith.constant 0 : index
    %c0_2 = arith.constant 0 : index
    %1 = vector.load %arg2[%c0_1, %c0_2] : memref<3136x64xf32, #tpu.memory_space<vmem>>, vector<3136x64xf32>
    %cst = arith.constant dense<0.000000e+00> : vector<8x64xf32>
    %2 = tpu.matmul %0, %1, %cst {dimension_numbers = #tpu.dot_dimension_numbers<[1], [0], [0], [1], [0, 0, 1, 1], [], []>} : vector<8x3136xf32>, vector<3136x64xf32>, vector<8x64xf32> -> vector<8x64xf32>
    %c0_3 = arith.constant 0 : index
    %c0_4 = arith.constant 0 : index
    %3 = vector.load %arg3[%c0_3, %c0_4] : memref<1x64xf32, #tpu.memory_space<vmem>>, vector<1x64xf32>
    %4 = vector.broadcast %3 : vector<1x64xf32> to vector<8x64xf32>
    %5 = arith.addf %2, %4 : vector<8x64xf32>
    %cst_5 = arith.constant 0.000000e+00 : f32
    %6 = vector.broadcast %cst_5 : f32 to vector<8x64xf32>
    %7 = arith.maximumf %5, %6 : vector<8x64xf32>
    %c0_6 = arith.constant 0 : index
    %c0_7 = arith.constant 0 : index
    %8 = vector.load %arg6[%c0_6, %c0_7] : memref<8x64xf32, #tpu.memory_space<vmem>>, vector<8x64xf32>
    tpu.vector_store %arg6[%c0_6, %c0_7], %7 {strides = array<i32>} : memref<8x64xf32, #tpu.memory_space<vmem>>, vector<8x64xf32>,
    %c0_8 = arith.constant 0 : index
    %c0_9 = arith.constant 0 : index
    %9 = vector.load %arg4[%c0_8, %c0_9] : memref<64x10xf32, #tpu.memory_space<vmem>>, vector<64x10xf32>
    %cst_10 = arith.constant dense<0.000000e+00> : vector<8x10xf32>
    %10 = tpu.matmul %7, %9, %cst_10 {dimension_numbers = #tpu.dot_dimension_numbers<[1], [0], [0], [1], [0, 0, 1, 1], [], []>} : vector<8x64xf32>, vector<64x10xf32>, vector<8x10xf32> -> vector<8x10xf32>
    %c0_11 = arith.constant 0 : index
    %c0_12 = arith.constant 0 : index
    %11 = vector.load %arg5[%c0_11, %c0_12] : memref<1x10xf32, #tpu.memory_space<vmem>>, vector<1x10xf32>
    %12 = vector.broadcast %11 : vector<1x10xf32> to vector<8x10xf32>
    %13 = arith.addf %10, %12 : vector<8x10xf32>
    %c0_13 = arith.constant 0 : index
    %c0_14 = arith.constant 0 : index
    %14 = vector.load %arg7[%c0_13, %c0_14] : memref<8x10xf32, #tpu.memory_space<vmem>>, vector<8x10xf32>
    tpu.vector_store %arg7[%c0_13, %c0_14], %13 {strides = array<i32>} : memref<8x10xf32, #tpu.memory_space<vmem>>, vector<8x10xf32>,
    return
  }
  func.func @transform_0(%arg0: i32) -> (i32, i32) {
    %c0_i32 = arith.constant 0 : i32
    %c0_i32_0 = arith.constant 0 : i32
    return %arg0, %c0_i32 : i32, i32
  }
  func.func @transform_1(%arg0: i32) -> (i32, i32) {
    %c0_i32 = arith.constant 0 : i32
    %c0_i32_0 = arith.constant 0 : i32
    %c0_i32_1 = arith.constant 0 : i32
    return %c0_i32, %c0_i32_0 : i32, i32
  }
  func.func @transform_2(%arg0: i32) -> (i32, i32) {
    %c0_i32 = arith.constant 0 : i32
    %c0_i32_0 = arith.constant 0 : i32
    %c0_i32_1 = arith.constant 0 : i32
    return %c0_i32, %c0_i32_0 : i32, i32
  }
  func.func @transform_3(%arg0: i32) -> (i32, i32) {
    %c0_i32 = arith.constant 0 : i32
    %c0_i32_0 = arith.constant 0 : i32
    %c0_i32_1 = arith.constant 0 : i32
    return %c0_i32, %c0_i32_0 : i32, i32
  }
  func.func @transform_4(%arg0: i32) -> (i32, i32) {
    %c0_i32 = arith.constant 0 : i32
    %c0_i32_0 = arith.constant 0 : i32
    %c0_i32_1 = arith.constant 0 : i32
    return %c0_i32, %c0_i32_0 : i32, i32
  }
  func.func @transform_5(%arg0: i32) -> (i32, i32) {
    %c0_i32 = arith.constant 0 : i32
    %c0_i32_0 = arith.constant 0 : i32
    return %arg0, %c0_i32 : i32, i32
  }
  func.func @transform_6(%arg0: i32) -> (i32, i32) {
    %c0_i32 = arith.constant 0 : i32
    %c0_i32_0 = arith.constant 0 : i32
    return %arg0, %c0_i32 : i32, i32
  }
}

</mosaic_0001>

<llo_original>
// kernel: multicnn_forward.3
$region0: #{multicnn_forward.3}
  #allocation0 [shape = 'u32[]', space=smem, size = 0x4, offset = 0x4, fixed_abs, tag = 'smem constant byte address 0x4 - core index']
  #allocation1 [shape = 'u32[144,128]{1,0:T(1,128)}', space=vmem, size = 0x12000, scoped, tag = 'internal scratch']
  %s0 = inlined_call_operand.vmem [shape: f32[8,3136], index: 0, kind: input, shape index: {}]
  %s1 = inlined_call_operand.vmem [shape: f32[3136,64], index: 1, kind: input, shape index: {}]
  %s2 = inlined_call_operand.vmem [shape: f32[1,64], index: 2, kind: input, shape index: {}]
  %s3 = inlined_call_operand.vmem [shape: f32[64,10], index: 3, kind: input, shape index: {}]
  %s4 = inlined_call_operand.vmem [shape: f32[1,10], index: 4, kind: input, shape index: {}]
  %s5 = inlined_call_operand.vmem [shape: f32[8,64], index: 5, kind: output, shape index: {0}]
  %s6 = inlined_call_operand.vmem [shape: f32[8,10], index: 6, kind: output, shape index: {1}]
  %7 = xla_tuple %s5, %s6
  %s8 = sld [smem:[#allocation0]]
  $region38: #{multicnn_forward.3} parent=0
    _
  %s10 = ssub.s32 1, %s8
  %s11 = scalar_select 0, %s10, %s8
  // Predicated region
  $region2: #{multicnn_forward.3} parent=0 // pred_check
    _
  $region3: #{multicnn_forward.3} parent=0 // pred_check_branch
    %13 = sbr.rel (0) target = $region5
  $region4: #{multicnn_forward.3} parent=0 // pred_region
    _
  $region5: #{multicnn_forward.3} parent=0 // pred_fallthru
    _
  // Predicated region
  $region6: #{multicnn_forward.3} parent=0 // pred_check
    _
  $region7: #{multicnn_forward.3} parent=0 // pred_check_branch
    %15 = sbr.rel (0) target = $region9
  $region8: #{multicnn_forward.3} parent=0 // pred_region
    _
  $region9: #{multicnn_forward.3} parent=0 // pred_fallthru
    _
  // Predicated region
  $region10: #{multicnn_forward.3} parent=0 // pred_check
    _
  $region11: #{multicnn_forward.3} parent=0 // pred_check_branch
    %17 = sbr.rel (0) target = $region13
  $region12: #{multicnn_forward.3} parent=0 // pred_region
    _
  $region13: #{multicnn_forward.3} parent=0 // pred_fallthru
    _
  // Predicated region
  $region14: #{multicnn_forward.3} parent=0 // pred_check
    _
  $region15: #{multicnn_forward.3} parent=0 // pred_check_branch
    %19 = sbr.rel (0) target = $region17
  $region16: #{multicnn_forward.3} parent=0 // pred_region
    _
  $region17: #{multicnn_forward.3} parent=0 // pred_fallthru
    _
  // Predicated region
  $region18: #{multicnn_forward.3} parent=0 // pred_check
    _
  $region19: #{multicnn_forward.3} parent=0 // pred_check_branch
    %21 = sbr.rel (0) target = $region21
  $region20: #{multicnn_forward.3} parent=0 // pred_region
    _
  $region21: #{multicnn_forward.3} parent=0 // pred_fallthru
    _
  %v22 = vld [vmem:[%s0] sm:$0xff]
  %v23 = vld [vmem:[%s0 + $0x8] sm:$0xff]
  %v24 = vld [vmem:[%s0 + $0x10] sm:$0xff]
  %v25 = vld [vmem:[%s0 + $0x18] sm:$0xff]
  %v26 = vld [vmem:[%s0 + $0x20] sm:$0xff]
  %v27 = vld [vmem:[%s0 + $0x28] sm:$0xff]
  %v28 = vld [vmem:[%s0 + $0x30] sm:$0xff]
  %v29 = vld [vmem:[%s0 + $0x38] sm:$0xff]
  %v30 = vld [vmem:[%s0 + $0x40] sm:$0xff]
  %v31 = vld [vmem:[%s0 + $0x48] sm:$0xff]
  %v32 = vld [vmem:[%s0 + $0x50] sm:$0xff]
  %v33 = vld [vmem:[%s0 + $0x58] sm:$0xff]
  %v34 = vld [vmem:[%s0 + $0x60] sm:$0xff]
  %v35 = vld [vmem:[%s0 + $0x68] sm:$0xff]
  %v36 = vld [vmem:[%s0 + $0x70] sm:$0xff]
  %v37 = vld [vmem:[%s0 + $0x78] sm:$0xff]
  %v38 = vld [vmem:[%s0 + $0x80] sm:$0xff]
  %v39 = vld [vmem:[%s0 + $0x88] sm:$0xff]
  %v40 = vld [vmem:[%s0 + $0x90] sm:$0xff]
  %v41 = vld [vmem:[%s0 + $0x98] sm:$0xff]
  %v42 = vld [vmem:[%s0 + $0xa0] sm:$0xff]
  %v43 = vld [vmem:[%s0 + $0xa8] sm:$0xff]
  %v44 = vld [vmem:[%s0 + $0xb0] sm:$0xff]
  %v45 = vld [vmem:[%s0 + $0xb8] sm:$0xff]
  %v46 = vld [vmem:[%s0 + $0xc0] sm:$0xff]
  %v47 = vld [vmem:[%s1] sm:$0xff]
  %v48 = vld [vmem:[%s1 + $0x8] sm:$0xff]
  %v49 = vld [vmem:[%s1 + $0x10] sm:$0xff]
  %v50 = vld [vmem:[%s1 + $0x18] sm:$0xff]
  %v51 = vld [vmem:[%s1 + $0x20] sm:$0xff]
  %v52 = vld [vmem:[%s1 + $0x28] sm:$0xff]
  %v53 = vld [vmem:[%s1 + $0x30] sm:$0xff]
  %v54 = vld [vmem:[%s1 + $0x38] sm:$0xff]
  %v55 = vld [vmem:[%s1 + $0x40] sm:$0xff]
  %v56 = vld [vmem:[%s1 + $0x48] sm:$0xff]
  %v57 = vld [vmem:[%s1 + $0x50] sm:$0xff]
  %v58 = vld [vmem:[%s1 + $0x58] sm:$0xff]
  %v59 = vld [vmem:[%s1 + $0x60] sm:$0xff]
  %v60 = vld [vmem:[%s1 + $0x68] sm:$0xff]
  %v61 = vld [vmem:[%s1 + $0x70] sm:$0xff]
  %v62 = vld [vmem:[%s1 + $0x78] sm:$0xff]
  %v63 = vld [vmem:[%s1 + $0x80] sm:$0xff]
  %v64 = vld [vmem:[%s1 + $0x88] sm:$0xff]
  %v65 = vld [vmem:[%s1 + $0x90] sm:$0xff]
  %v66 = vld [vmem:[%s1 + $0x98] sm:$0xff]
  %v67 = vld [vmem:[%s1 + $0xa0] sm:$0xff]
  %v68 = vld [vmem:[%s1 + $0xa8] sm:$0xff]
  %v69 = vld [vmem:[%s1 + $0xb0] sm:$0xff]
  %v70 = vld [vmem:[%s1 + $0xb8] sm:$0xff]
  %v71 = vld [vmem:[%s1 + $0xc0] sm:$0xff]
  %v72 = vld [vmem:[%s1 + $0xc8] sm:$0xff]
  %v73 = vld [vmem:[%s1 + $0xd0] sm:$0xff]
  %v74 = vld [vmem:[%s1 + $0xd8] sm:$0xff]
  %v75 = vld [vmem:[%s1 + $0xe0] sm:$0xff]
  %v76 = vld [vmem:[%s1 + $0xe8] sm:$0xff]
  %v77 = vld [vmem:[%s1 + $0xf0] sm:$0xff]
  %v78 = vld [vmem:[%s1 + $0xf8] sm:$0xff]
  %v79 = vld [vmem:[%s1 + $0x100] sm:$0xff]
  %v80 = vld [vmem:[%s1 + $0x108] sm:$0xff]
  %v81 = vld [vmem:[%s1 + $0x110] sm:$0xff]
  %v82 = vld [vmem:[%s1 + $0x118] sm:$0xff]
  %v83 = vld [vmem:[%s1 + $0x120] sm:$0xff]
  %v84 = vld [vmem:[%s1 + $0x128] sm:$0xff]
  %v85 = vld [vmem:[%s1 + $0x130] sm:$0xff]
  %v86 = vld [vmem:[%s1 + $0x138] sm:$0xff]
  %v87 = vld [vmem:[%s1 + $0x140] sm:$0xff]
  %v88 = vld [vmem:[%s1 + $0x148] sm:$0xff]
  %v89 = vld [vmem:[%s1 + $0x150] sm:$0xff]
  %v90 = vld [vmem:[%s1 + $0x158] sm:$0xff]
  %v91 = vld [vmem:[%s1 + $0x160] sm:$0xff]
  %v92 = vld [vmem:[%s1 + $0x168] sm:$0xff]
  %v93 = vld [vmem:[%s1 + $0x170] sm:$0xff]
  %v94 = vld [vmem:[%s1 + $0x178] sm:$0xff]
  %v95 = vld [vmem:[%s1 + $0x180] sm:$0xff]
  %v96 = vld [vmem:[%s1 + $0x188] sm:$0xff]
  %v97 = vld [vmem:[%s1 + $0x190] sm:$0xff]
  %v98 = vld [vmem:[%s1 + $0x198] sm:$0xff]
  %v99 = vld [vmem:[%s1 + $0x1a0] sm:$0xff]
  %v100 = vld [vmem:[%s1 + $0x1a8] sm:$0xff]
  %v101 = vld [vmem:[%s1 + $0x1b0] sm:$0xff]
  %v102 = vld [vmem:[%s1 + $0x1b8] sm:$0xff]
  %v103 = vld [vmem:[%s1 + $0x1c0] sm:$0xff]
  %v104 = vld [vmem:[%s1 + $0x1c8] sm:$0xff]
  %v105 = vld [vmem:[%s1 + $0x1d0] sm:$0xff]
  %v106 = vld [vmem:[%s1 + $0x1d8] sm:$0xff]
  %v107 = vld [vmem:[%s1 + $0x1e0] sm:$0xff]
  %v108 = vld [vmem:[%s1 + $0x1e8] sm:$0xff]
  %v109 = vld [vmem:[%s1 + $0x1f0] sm:$0xff]
  %v110 = vld [vmem:[%s1 + $0x1f8] sm:$0xff]
  %v111 = vld [vmem:[%s1 + $0x200] sm:$0xff]
  %v112 = vld [vmem:[%s1 + $0x208] sm:$0xff]
  %v113 = vld [vmem:[%s1 + $0x210] sm:$0xff]
  %v114 = vld [vmem:[%s1 + $0x218] sm:$0xff]
  %v115 = vld [vmem:[%s1 + $0x220] sm:$0xff]
  %v116 = vld [vmem:[%s1 + $0x228] sm:$0xff]
  %v117 = vld [vmem:[%s1 + $0x230] sm:$0xff]
  %v118 = vld [vmem:[%s1 + $0x238] sm:$0xff]
  %v119 = vld [vmem:[%s1 + $0x240] sm:$0xff]
  %v120 = vld [vmem:[%s1 + $0x248] sm:$0xff]
  %v121 = vld [vmem:[%s1 + $0x250] sm:$0xff]
  %v122 = vld [vmem:[%s1 + $0x258] sm:$0xff]
  %v123 = vld [vmem:[%s1 + $0x260] sm:$0xff]
  %v124 = vld [vmem:[%s1 + $0x268] sm:$0xff]
  %v125 = vld [vmem:[%s1 + $0x270] sm:$0xff]
  %v126 = vld [vmem:[%s1 + $0x278] sm:$0xff]
  %v127 = vld [vmem:[%s1 + $0x280] sm:$0xff]
  %v128 = vld [vmem:[%s1 + $0x288] sm:$0xff]
  %v129 = vld [vmem:[%s1 + $0x290] sm:$0xff]
  %v130 = vld [vmem:[%s1 + $0x298] sm:$0xff]
  %v131 = vld [vmem:[%s1 + $0x2a0] sm:$0xff]
  %v132 = vld [vmem:[%s1 + $0x2a8] sm:$0xff]
  %v133 = vld [vmem:[%s1 + $0x2b0] sm:$0xff]
  %v134 = vld [vmem:[%s1 + $0x2b8] sm:$0xff]
  %v135 = vld [vmem:[%s1 + $0x2c0] sm:$0xff]
  %v136 = vld [vmem:[%s1 + $0x2c8] sm:$0xff]
  %v137 = vld [vmem:[%s1 + $0x2d0] sm:$0xff]
  %v138 = vld [vmem:[%s1 + $0x2d8] sm:$0xff]
  %v139 = vld [vmem:[%s1 + $0x2e0] sm:$0xff]
  %v140 = vld [vmem:[%s1 + $0x2e8] sm:$0xff]
  %v141 = vld [vmem:[%s1 + $0x2f0] sm:$0xff]
  %v142 = vld [vmem:[%s1 + $0x2f8] sm:$0xff]
  %v143 = vld [vmem:[%s1 + $0x300] sm:$0xff]
  %v144 = vld [vmem:[%s1 + $0x308] sm:$0xff]
  %v145 = vld [vmem:[%s1 + $0x310] sm:$0xff]
  %v146 = vld [vmem:[%s1 + $0x318] sm:$0xff]
  %v147 = vld [vmem:[%s1 + $0x320] sm:$0xff]
  %v148 = vld [vmem:[%s1 + $0x328] sm:$0xff]
  %v149 = vld [vmem:[%s1 + $0x330] sm:$0xff]
  %v150 = vld [vmem:[%s1 + $0x338] sm:$0xff]
  %v151 = vld [vmem:[%s1 + $0x340] sm:$0xff]
  %v152 = vld [vmem:[%s1 + $0x348] sm:$0xff]
  %v153 = vld [vmem:[%s1 + $0x350] sm:$0xff]
  %v154 = vld [vmem:[%s1 + $0x358] sm:$0xff]
  %v155 = vld [vmem:[%s1 + $0x360] sm:$0xff]
  %v156 = vld [vmem:[%s1 + $0x368] sm:$0xff]
  %v157 = vld [vmem:[%s1 + $0x370] sm:$0xff]
  %v158 = vld [vmem:[%s1 + $0x378] sm:$0xff]
  %v159 = vld [vmem:[%s1 + $0x380] sm:$0xff]
  %v160 = vld [vmem:[%s1 + $0x388] sm:$0xff]
  %v161 = vld [vmem:[%s1 + $0x390] sm:$0xff]
  %v162 = vld [vmem:[%s1 + $0x398] sm:$0xff]
  %v163 = vld [vmem:[%s1 + $0x3a0] sm:$0xff]
  %v164 = vld [vmem:[%s1 + $0x3a8] sm:$0xff]
  %v165 = vld [vmem:[%s1 + $0x3b0] sm:$0xff]
  %v166 = vld [vmem:[%s1 + $0x3b8] sm:$0xff]
  %v167 = vld [vmem:[%s1 + $0x3c0] sm:$0xff]
  %v168 = vld [vmem:[%s1 + $0x3c8] sm:$0xff]
  %v169 = vld [vmem:[%s1 + $0x3d0] sm:$0xff]
  %v170 = vld [vmem:[%s1 + $0x3d8] sm:$0xff]
  %v171 = vld [vmem:[%s1 + $0x3e0] sm:$0xff]
  %v172 = vld [vmem:[%s1 + $0x3e8] sm:$0xff]
  %v173 = vld [vmem:[%s1 + $0x3f0] sm:$0xff]
  %v174 = vld [vmem:[%s1 + $0x3f8] sm:$0xff]
  %v175 = vld [vmem:[%s1 + $0x400] sm:$0xff]
  %v176 = vld [vmem:[%s1 + $0x408] sm:$0xff]
  %v177 = vld [vmem:[%s1 + $0x410] sm:$0xff]
  %v178 = vld [vmem:[%s1 + $0x418] sm:$0xff]
  %v179 = vld [vmem:[%s1 + $0x420] sm:$0xff]
  %v180 = vld [vmem:[%s1 + $0x428] sm:$0xff]
  %v181 = vld [vmem:[%s1 + $0x430] sm:$0xff]
  %v182 = vld [vmem:[%s1 + $0x438] sm:$0xff]
  %v183 = vld [vmem:[%s1 + $0x440] sm:$0xff]
  %v184 = vld [vmem:[%s1 + $0x448] sm:$0xff]
  %v185 = vld [vmem:[%s1 + $0x450] sm:$0xff]
  %v186 = vld [vmem:[%s1 + $0x458] sm:$0xff]
  %v187 = vld [vmem:[%s1 + $0x460] sm:$0xff]
  %v188 = vld [vmem:[%s1 + $0x468] sm:$0xff]
  %v189 = vld [vmem:[%s1 + $0x470] sm:$0xff]
  %v190 = vld [vmem:[%s1 + $0x478] sm:$0xff]
  %v191 = vld [vmem:[%s1 + $0x480] sm:$0xff]
  %v192 = vld [vmem:[%s1 + $0x488] sm:$0xff]
  %v193 = vld [vmem:[%s1 + $0x490] sm:$0xff]
  %v194 = vld [vmem:[%s1 + $0x498] sm:$0xff]
  %v195 = vld [vmem:[%s1 + $0x4a0] sm:$0xff]
  %v196 = vld [vmem:[%s1 + $0x4a8] sm:$0xff]
  %v197 = vld [vmem:[%s1 + $0x4b0] sm:$0xff]
  %v198 = vld [vmem:[%s1 + $0x4b8] sm:$0xff]
  %v199 = vld [vmem:[%s1 + $0x4c0] sm:$0xff]
  %v200 = vld [vmem:[%s1 + $0x4c8] sm:$0xff]
  %v201 = vld [vmem:[%s1 + $0x4d0] sm:$0xff]
  %v202 = vld [vmem:[%s1 + $0x4d8] sm:$0xff]
  %v203 = vld [vmem:[%s1 + $0x4e0] sm:$0xff]
  %v204 = vld [vmem:[%s1 + $0x4e8] sm:$0xff]
  %v205 = vld [vmem:[%s1 + $0x4f0] sm:$0xff]
  %v206 = vld [vmem:[%s1 + $0x4f8] sm:$0xff]
  %v207 = vld [vmem:[%s1 + $0x500] sm:$0xff]
  %v208 = vld [vmem:[%s1 + $0x508] sm:$0xff]
  %v209 = vld [vmem:[%s1 + $0x510] sm:$0xff]
  %v210 = vld [vmem:[%s1 + $0x518] sm:$0xff]
  %v211 = vld [vmem:[%s1 + $0x520] sm:$0xff]
  %v212 = vld [vmem:[%s1 + $0x528] sm:$0xff]
  %v213 = vld [vmem:[%s1 + $0x530] sm:$0xff]
  %v214 = vld [vmem:[%s1 + $0x538] sm:$0xff]
  %v215 = vld [vmem:[%s1 + $0x540] sm:$0xff]
  %v216 = vld [vmem:[%s1 + $0x548] sm:$0xff]
  %v217 = vld [vmem:[%s1 + $0x550] sm:$0xff]
  %v218 = vld [vmem:[%s1 + $0x558] sm:$0xff]
  %v219 = vld [vmem:[%s1 + $0x560] sm:$0xff]
  %v220 = vld [vmem:[%s1 + $0x568] sm:$0xff]
  %v221 = vld [vmem:[%s1 + $0x570] sm:$0xff]
  %v222 = vld [vmem:[%s1 + $0x578] sm:$0xff]
  %v223 = vld [vmem:[%s1 + $0x580] sm:$0xff]
  %v224 = vld [vmem:[%s1 + $0x588] sm:$0xff]
  %v225 = vld [vmem:[%s1 + $0x590] sm:$0xff]
  %v226 = vld [vmem:[%s1 + $0x598] sm:$0xff]
  %v227 = vld [vmem:[%s1 + $0x5a0] sm:$0xff]
  %v228 = vld [vmem:[%s1 + $0x5a8] sm:$0xff]
  %v229 = vld [vmem:[%s1 + $0x5b0] sm:$0xff]
  %v230 = vld [vmem:[%s1 + $0x5b8] sm:$0xff]
  %v231 = vld [vmem:[%s1 + $0x5c0] sm:$0xff]
  %v232 = vld [vmem:[%s1 + $0x5c8] sm:$0xff]
  %v233 = vld [vmem:[%s1 + $0x5d0] sm:$0xff]
  %v234 = vld [vmem:[%s1 + $0x5d8] sm:$0xff]
  %v235 = vld [vmem:[%s1 + $0x5e0] sm:$0xff]
  %v236 = vld [vmem:[%s1 + $0x5e8] sm:$0xff]
  %v237 = vld [vmem:[%s1 + $0x5f0] sm:$0xff]
  %v238 = vld [vmem:[%s1 + $0x5f8] sm:$0xff]
  %v239 = vld [vmem:[%s1 + $0x600] sm:$0xff]
  %v240 = vld [vmem:[%s1 + $0x608] sm:$0xff]
  %v241 = vld [vmem:[%s1 + $0x610] sm:$0xff]
  %v242 = vld [vmem:[%s1 + $0x618] sm:$0xff]
  %v243 = vld [vmem:[%s1 + $0x620] sm:$0xff]
  %v244 = vld [vmem:[%s1 + $0x628] sm:$0xff]
  %v245 = vld [vmem:[%s1 + $0x630] sm:$0xff]
  %v246 = vld [vmem:[%s1 + $0x638] sm:$0xff]
  %v247 = vld [vmem:[%s1 + $0x640] sm:$0xff]
  %v248 = vld [vmem:[%s1 + $0x648] sm:$0xff]
  %v249 = vld [vmem:[%s1 + $0x650] sm:$0xff]
  %v250 = vld [vmem:[%s1 + $0x658] sm:$0xff]
  %v251 = vld [vmem:[%s1 + $0x660] sm:$0xff]
  %v252 = vld [vmem:[%s1 + $0x668] sm:$0xff]
  %v253 = vld [vmem:[%s1 + $0x670] sm:$0xff]
  %v254 = vld [vmem:[%s1 + $0x678] sm:$0xff]
  %v255 = vld [vmem:[%s1 + $0x680] sm:$0xff]
  %v256 = vld [vmem:[%s1 + $0x688] sm:$0xff]
  %v257 = vld [vmem:[%s1 + $0x690] sm:$0xff]
  %v258 = vld [vmem:[%s1 + $0x698] sm:$0xff]
  %v259 = vld [vmem:[%s1 + $0x6a0] sm:$0xff]
  %v260 = vld [vmem:[%s1 + $0x6a8] sm:$0xff]
  %v261 = vld [vmem:[%s1 + $0x6b0] sm:$0xff]
  %v262 = vld [vmem:[%s1 + $0x6b8] sm:$0xff]
  %v263 = vld [vmem:[%s1 + $0x6c0] sm:$0xff]
  %v264 = vld [vmem:[%s1 + $0x6c8] sm:$0xff]
  %v265 = vld [vmem:[%s1 + $0x6d0] sm:$0xff]
  %v266 = vld [vmem:[%s1 + $0x6d8] sm:$0xff]
  %v267 = vld [vmem:[%s1 + $0x6e0] sm:$0xff]
  %v268 = vld [vmem:[%s1 + $0x6e8] sm:$0xff]
  %v269 = vld [vmem:[%s1 + $0x6f0] sm:$0xff]
  %v270 = vld [vmem:[%s1 + $0x6f8] sm:$0xff]
  %v271 = vld [vmem:[%s1 + $0x700] sm:$0xff]
  %v272 = vld [vmem:[%s1 + $0x708] sm:$0xff]
  %v273 = vld [vmem:[%s1 + $0x710] sm:$0xff]
  %v274 = vld [vmem:[%s1 + $0x718] sm:$0xff]
  %v275 = vld [vmem:[%s1 + $0x720] sm:$0xff]
  %v276 = vld [vmem:[%s1 + $0x728] sm:$0xff]
  %v277 = vld [vmem:[%s1 + $0x730] sm:$0xff]
  %v278 = vld [vmem:[%s1 + $0x738] sm:$0xff]
  %v279 = vld [vmem:[%s1 + $0x740] sm:$0xff]
  %v280 = vld [vmem:[%s1 + $0x748] sm:$0xff]
  %v281 = vld [vmem:[%s1 + $0x750] sm:$0xff]
  %v282 = vld [vmem:[%s1 + $0x758] sm:$0xff]
  %v283 = vld [vmem:[%s1 + $0x760] sm:$0xff]
  %v284 = vld [vmem:[%s1 + $0x768] sm:$0xff]
  %v285 = vld [vmem:[%s1 + $0x770] sm:$0xff]
  %v286 = vld [vmem:[%s1 + $0x778] sm:$0xff]
  %v287 = vld [vmem:[%s1 + $0x780] sm:$0xff]
  %v288 = vld [vmem:[%s1 + $0x788] sm:$0xff]
  %v289 = vld [vmem:[%s1 + $0x790] sm:$0xff]
  %v290 = vld [vmem:[%s1 + $0x798] sm:$0xff]
  %v291 = vld [vmem:[%s1 + $0x7a0] sm:$0xff]
  %v292 = vld [vmem:[%s1 + $0x7a8] sm:$0xff]
  %v293 = vld [vmem:[%s1 + $0x7b0] sm:$0xff]
  %v294 = vld [vmem:[%s1 + $0x7b8] sm:$0xff]
  %v295 = vld [vmem:[%s1 + $0x7c0] sm:$0xff]
  %v296 = vld [vmem:[%s1 + $0x7c8] sm:$0xff]
  %v297 = vld [vmem:[%s1 + $0x7d0] sm:$0xff]
  %v298 = vld [vmem:[%s1 + $0x7d8] sm:$0xff]
  %v299 = vld [vmem:[%s1 + $0x7e0] sm:$0xff]
  %v300 = vld [vmem:[%s1 + $0x7e8] sm:$0xff]
  %v301 = vld [vmem:[%s1 + $0x7f0] sm:$0xff]
  %v302 = vld [vmem:[%s1 + $0x7f8] sm:$0xff]
  %v303 = vld [vmem:[%s1 + $0x800] sm:$0xff]
  %v304 = vld [vmem:[%s1 + $0x808] sm:$0xff]
  %v305 = vld [vmem:[%s1 + $0x810] sm:$0xff]
  %v306 = vld [vmem:[%s1 + $0x818] sm:$0xff]
  %v307 = vld [vmem:[%s1 + $0x820] sm:$0xff]
  %v308 = vld [vmem:[%s1 + $0x828] sm:$0xff]
  %v309 = vld [vmem:[%s1 + $0x830] sm:$0xff]
  %v310 = vld [vmem:[%s1 + $0x838] sm:$0xff]
  %v311 = vld [vmem:[%s1 + $0x840] sm:$0xff]
  %v312 = vld [vmem:[%s1 + $0x848] sm:$0xff]
  %v313 = vld [vmem:[%s1 + $0x850] sm:$0xff]
  %v314 = vld [vmem:[%s1 + $0x858] sm:$0xff]
  %v315 = vld [vmem:[%s1 + $0x860] sm:$0xff]
  %v316 = vld [vmem:[%s1 + $0x868] sm:$0xff]
  %v317 = vld [vmem:[%s1 + $0x870] sm:$0xff]
  %v318 = vld [vmem:[%s1 + $0x878] sm:$0xff]
  %v319 = vld [vmem:[%s1 + $0x880] sm:$0xff]
  %v320 = vld [vmem:[%s1 + $0x888] sm:$0xff]
  %v321 = vld [vmem:[%s1 + $0x890] sm:$0xff]
  %v322 = vld [vmem:[%s1 + $0x898] sm:$0xff]
  %v323 = vld [vmem:[%s1 + $0x8a0] sm:$0xff]
  %v324 = vld [vmem:[%s1 + $0x8a8] sm:$0xff]
  %v325 = vld [vmem:[%s1 + $0x8b0] sm:$0xff]
  %v326 = vld [vmem:[%s1 + $0x8b8] sm:$0xff]
  %v327 = vld [vmem:[%s1 + $0x8c0] sm:$0xff]
  %v328 = vld [vmem:[%s1 + $0x8c8] sm:$0xff]
  %v329 = vld [vmem:[%s1 + $0x8d0] sm:$0xff]
  %v330 = vld [vmem:[%s1 + $0x8d8] sm:$0xff]
  %v331 = vld [vmem:[%s1 + $0x8e0] sm:$0xff]
  %v332 = vld [vmem:[%s1 + $0x8e8] sm:$0xff]
  %v333 = vld [vmem:[%s1 + $0x8f0] sm:$0xff]
  %v334 = vld [vmem:[%s1 + $0x8f8] sm:$0xff]
  %v335 = vld [vmem:[%s1 + $0x900] sm:$0xff]
  %v336 = vld [vmem:[%s1 + $0x908] sm:$0xff]
  %v337 = vld [vmem:[%s1 + $0x910] sm:$0xff]
  %v338 = vld [vmem:[%s1 + $0x918] sm:$0xff]
  %v339 = vld [vmem:[%s1 + $0x920] sm:$0xff]
  %v340 = vld [vmem:[%s1 + $0x928] sm:$0xff]
  %v341 = vld [vmem:[%s1 + $0x930] sm:$0xff]
  %v342 = vld [vmem:[%s1 + $0x938] sm:$0xff]
  %v343 = vld [vmem:[%s1 + $0x940] sm:$0xff]
  %v344 = vld [vmem:[%s1 + $0x948] sm:$0xff]
  %v345 = vld [vmem:[%s1 + $0x950] sm:$0xff]
  %v346 = vld [vmem:[%s1 + $0x958] sm:$0xff]
  %v347 = vld [vmem:[%s1 + $0x960] sm:$0xff]
  %v348 = vld [vmem:[%s1 + $0x968] sm:$0xff]
  %v349 = vld [vmem:[%s1 + $0x970] sm:$0xff]
  %v350 = vld [vmem:[%s1 + $0x978] sm:$0xff]
  %v351 = vld [vmem:[%s1 + $0x980] sm:$0xff]
  %v352 = vld [vmem:[%s1 + $0x988] sm:$0xff]
  %v353 = vld [vmem:[%s1 + $0x990] sm:$0xff]
  %v354 = vld [vmem:[%s1 + $0x998] sm:$0xff]
  %v355 = vld [vmem:[%s1 + $0x9a0] sm:$0xff]
  %v356 = vld [vmem:[%s1 + $0x9a8] sm:$0xff]
  %v357 = vld [vmem:[%s1 + $0x9b0] sm:$0xff]
  %v358 = vld [vmem:[%s1 + $0x9b8] sm:$0xff]
  %v359 = vld [vmem:[%s1 + $0x9c0] sm:$0xff]
  %v360 = vld [vmem:[%s1 + $0x9c8] sm:$0xff]
  %v361 = vld [vmem:[%s1 + $0x9d0] sm:$0xff]
  %v362 = vld [vmem:[%s1 + $0x9d8] sm:$0xff]
  %v363 = vld [vmem:[%s1 + $0x9e0] sm:$0xff]
  %v364 = vld [vmem:[%s1 + $0x9e8] sm:$0xff]
  %v365 = vld [vmem:[%s1 + $0x9f0] sm:$0xff]
  %v366 = vld [vmem:[%s1 + $0x9f8] sm:$0xff]
  %v367 = vld [vmem:[%s1 + $0xa00] sm:$0xff]
  %v368 = vld [vmem:[%s1 + $0xa08] sm:$0xff]
  %v369 = vld [vmem:[%s1 + $0xa10] sm:$0xff]
  %v370 = vld [vmem:[%s1 + $0xa18] sm:$0xff]
  %v371 = vld [vmem:[%s1 + $0xa20] sm:$0xff]
  %v372 = vld [vmem:[%s1 + $0xa28] sm:$0xff]
  %v373 = vld [vmem:[%s1 + $0xa30] sm:$0xff]
  %v374 = vld [vmem:[%s1 + $0xa38] sm:$0xff]
  %v375 = vld [vmem:[%s1 + $0xa40] sm:$0xff]
  %v376 = vld [vmem:[%s1 + $0xa48] sm:$0xff]
  %v377 = vld [vmem:[%s1 + $0xa50] sm:$0xff]
  %v378 = vld [vmem:[%s1 + $0xa58] sm:$0xff]
  %v379 = vld [vmem:[%s1 + $0xa60] sm:$0xff]
  %v380 = vld [vmem:[%s1 + $0xa68] sm:$0xff]
  %v381 = vld [vmem:[%s1 + $0xa70] sm:$0xff]
  %v382 = vld [vmem:[%s1 + $0xa78] sm:$0xff]
  %v383 = vld [vmem:[%s1 + $0xa80] sm:$0xff]
  %v384 = vld [vmem:[%s1 + $0xa88] sm:$0xff]
  %v385 = vld [vmem:[%s1 + $0xa90] sm:$0xff]
  %v386 = vld [vmem:[%s1 + $0xa98] sm:$0xff]
  %v387 = vld [vmem:[%s1 + $0xaa0] sm:$0xff]
  %v388 = vld [vmem:[%s1 + $0xaa8] sm:$0xff]
  %v389 = vld [vmem:[%s1 + $0xab0] sm:$0xff]
  %v390 = vld [vmem:[%s1 + $0xab8] sm:$0xff]
  %v391 = vld [vmem:[%s1 + $0xac0] sm:$0xff]
  %v392 = vld [vmem:[%s1 + $0xac8] sm:$0xff]
  %v393 = vld [vmem:[%s1 + $0xad0] sm:$0xff]
  %v394 = vld [vmem:[%s1 + $0xad8] sm:$0xff]
  %v395 = vld [vmem:[%s1 + $0xae0] sm:$0xff]
  %v396 = vld [vmem:[%s1 + $0xae8] sm:$0xff]
  %v397 = vld [vmem:[%s1 + $0xaf0] sm:$0xff]
  %v398 = vld [vmem:[%s1 + $0xaf8] sm:$0xff]
  %v399 = vld [vmem:[%s1 + $0xb00] sm:$0xff]
  %v400 = vld [vmem:[%s1 + $0xb08] sm:$0xff]
  %v401 = vld [vmem:[%s1 + $0xb10] sm:$0xff]
  %v402 = vld [vmem:[%s1 + $0xb18] sm:$0xff]
  %v403 = vld [vmem:[%s1 + $0xb20] sm:$0xff]
  %v404 = vld [vmem:[%s1 + $0xb28] sm:$0xff]
  %v405 = vld [vmem:[%s1 + $0xb30] sm:$0xff]
  %v406 = vld [vmem:[%s1 + $0xb38] sm:$0xff]
  %v407 = vld [vmem:[%s1 + $0xb40] sm:$0xff]
  %v408 = vld [vmem:[%s1 + $0xb48] sm:$0xff]
  %v409 = vld [vmem:[%s1 + $0xb50] sm:$0xff]
  %v410 = vld [vmem:[%s1 + $0xb58] sm:$0xff]
  %v411 = vld [vmem:[%s1 + $0xb60] sm:$0xff]
  %v412 = vld [vmem:[%s1 + $0xb68] sm:$0xff]
  %v413 = vld [vmem:[%s1 + $0xb70] sm:$0xff]
  %v414 = vld [vmem:[%s1 + $0xb78] sm:$0xff]
  %v415 = vld [vmem:[%s1 + $0xb80] sm:$0xff]
  %v416 = vld [vmem:[%s1 + $0xb88] sm:$0xff]
  %v417 = vld [vmem:[%s1 + $0xb90] sm:$0xff]
  %v418 = vld [vmem:[%s1 + $0xb98] sm:$0xff]
  %v419 = vld [vmem:[%s1 + $0xba0] sm:$0xff]
  %v420 = vld [vmem:[%s1 + $0xba8] sm:$0xff]
  %v421 = vld [vmem:[%s1 + $0xbb0] sm:$0xff]
  %v422 = vld [vmem:[%s1 + $0xbb8] sm:$0xff]
  %v423 = vld [vmem:[%s1 + $0xbc0] sm:$0xff]
  %v424 = vld [vmem:[%s1 + $0xbc8] sm:$0xff]
  %v425 = vld [vmem:[%s1 + $0xbd0] sm:$0xff]
  %v426 = vld [vmem:[%s1 + $0xbd8] sm:$0xff]
  %v427 = vld [vmem:[%s1 + $0xbe0] sm:$0xff]
  %v428 = vld [vmem:[%s1 + $0xbe8] sm:$0xff]
  %v429 = vld [vmem:[%s1 + $0xbf0] sm:$0xff]
  %v430 = vld [vmem:[%s1 + $0xbf8] sm:$0xff]
  %v431 = vld [vmem:[%s1 + $0xc00] sm:$0xff]
  %v432 = vld [vmem:[%s1 + $0xc08] sm:$0xff]
  %v433 = vld [vmem:[%s1 + $0xc10] sm:$0xff]
  %v434 = vld [vmem:[%s1 + $0xc18] sm:$0xff]
  %v435 = vld [vmem:[%s1 + $0xc20] sm:$0xff]
  %v436 = vld [vmem:[%s1 + $0xc28] sm:$0xff]
  %v437 = vld [vmem:[%s1 + $0xc30] sm:$0xff]
  %v438 = vld [vmem:[%s1 + $0xc38] sm:$0xff]
  %v439 = vld [vmem:[%s2] sm:$0x1]
  %v441 = vlaneseq
  %v442 = vshrl.u32 %v441, 7
  %v443 = vsub.s32 0, %v442
  %v444 = vrot.slane %v439, %v443
  %vm446 = vcmask 523264
  %v448 = vsel %vm446, %v46, 0
  %450 = vmatprep.subr.mxu0 0.0
  %451 = vmatpush1.msra.mxu0 %v47
  %452 = vmatprep.subr.mxu0 0.0
  %453 = vmatpush1.msra.mxu0 %v48
  %454 = vmatprep.subr.mxu0 0.0
  %455 = vmatpush1.msra.mxu0 %v49
  %456 = vmatprep.subr.mxu0 0.0
  %457 = vmatpush1.msra.mxu0 %v50
  %458 = vmatprep.subr.mxu0 0.0
  %459 = vmatpush1.msra.mxu0 %v51
  %460 = vmatprep.subr.mxu0 0.0
  %461 = vmatpush1.msra.mxu0 %v52
  %462 = vmatprep.subr.mxu0 0.0
  %463 = vmatpush1.msra.mxu0 %v53
  %464 = vmatprep.subr.mxu0 0.0
  %465 = vmatpush1.msra.mxu0 %v54
  %466 = vmatprep.subr.mxu0 0.0
  %467 = vmatpush1.msra.mxu0 %v55
  %468 = vmatprep.subr.mxu0 0.0
  %469 = vmatpush1.msra.mxu0 %v56
  %470 = vmatprep.subr.mxu0 0.0
  %471 = vmatpush1.msra.mxu0 %v57
  %472 = vmatprep.subr.mxu0 0.0
  %473 = vmatpush1.msra.mxu0 %v58
  %474 = vmatprep.subr.mxu0 0.0
  %475 = vmatpush1.msra.mxu0 %v59
  %476 = vmatprep.subr.mxu0 0.0
  %477 = vmatpush1.msra.mxu0 %v60
  %478 = vmatprep.subr.mxu0 0.0
  %479 = vmatpush1.msra.mxu0 %v61
  %480 = vmatprep.subr.mxu0 0.0
  %481 = vmatpush1.msra.mxu0 %v62
  %482 = vmatprep.subr.mxu0 0.0
  %483 = vmatpush1.msra.mxu0 %v63
  %484 = vmatprep.subr.mxu0 0.0
  %485 = vmatpush1.msra.mxu0 %v64
  %486 = vmatprep.subr.mxu0 0.0
  %487 = vmatpush1.msra.mxu0 %v65
  %488 = vmatprep.subr.mxu0 0.0
  %489 = vmatpush1.msra.mxu0 %v66
  %490 = vmatprep.subr.mxu0 0.0
  %491 = vmatpush1.msra.mxu0 %v67
  %492 = vmatprep.subr.mxu0 0.0
  %493 = vmatpush1.msra.mxu0 %v68
  %494 = vmatprep.subr.mxu0 0.0
  %495 = vmatpush1.msra.mxu0 %v69
  %496 = vmatprep.subr.mxu0 0.0
  %497 = vmatpush1.msra.mxu0 %v70
  %498 = vmatprep.subr.mxu0 0.0
  %499 = vmatpush1.msra.mxu0 %v71
  %500 = vmatprep.subr.mxu0 0.0
  %501 = vmatpush1.msra.mxu0 %v72
  %502 = vmatprep.subr.mxu0 0.0
  %503 = vmatpush1.msra.mxu0 %v73
  %504 = vmatprep.subr.mxu0 0.0
  %505 = vmatpush1.msra.mxu0 %v74
  %506 = vmatprep.subr.mxu0 0.0
  %507 = vmatpush1.msra.mxu0 %v75
  %508 = vmatprep.subr.mxu0 0.0
  %509 = vmatpush1.msra.mxu0 %v76
  %510 = vmatprep.subr.mxu0 0.0
  %511 = vmatpush1.msra.mxu0 %v77
  %512 = vmatprep.subr.mxu0 0.0
  %513 = vmatpush1.msra.mxu0 %v78
  %514 = vmatprep.mubr.f32.mxu0 %v23
  %515 = vmatmul.mubr.f32.gmra.mrb[0].mxu0 %v22
  %v516 = vpop.f32.mrb[0].mxu0
  %v517 = vadd.f32 %v444, %v516
  %v518 = vpop.f32.mrb[0].mxu0
  %519 = vdwg.mxu0
  %520 = vmatprep.subr.mxu0 0.0
  %521 = vmatpush1.msra.mxu0 %v79
  %522 = vmatprep.subr.mxu0 0.0
  %523 = vmatpush1.msra.mxu0 %v80
  %524 = vmatprep.subr.mxu0 0.0
  %525 = vmatpush1.msra.mxu0 %v81
  %526 = vmatprep.subr.mxu0 0.0
  %527 = vmatpush1.msra.mxu0 %v82
  %528 = vmatprep.subr.mxu0 0.0
  %529 = vmatpush1.msra.mxu0 %v83
  %530 = vmatprep.subr.mxu0 0.0
  %531 = vmatpush1.msra.mxu0 %v84
  %532 = vmatprep.subr.mxu0 0.0
  %533 = vmatpush1.msra.mxu0 %v85
  %534 = vmatprep.subr.mxu0 0.0
  %535 = vmatpush1.msra.mxu0 %v86
  %536 = vmatprep.subr.mxu0 0.0
  %537 = vmatpush1.msra.mxu0 %v87
  %538 = vmatprep.subr.mxu0 0.0
  %539 = vmatpush1.msra.mxu0 %v88
  %540 = vmatprep.subr.mxu0 0.0
  %541 = vmatpush1.msra.mxu0 %v89
  %542 = vmatprep.subr.mxu0 0.0
  %543 = vmatpush1.msra.mxu0 %v90
  %544 = vmatprep.subr.mxu0 0.0
  %545 = vmatpush1.msra.mxu0 %v91
  %546 = vmatprep.subr.mxu0 0.0
  %547 = vmatpush1.msra.mxu0 %v92
  %548 = vmatprep.subr.mxu0 0.0
  %549 = vmatpush1.msra.mxu0 %v93
  %550 = vmatprep.subr.mxu0 0.0
  %551 = vmatpush1.msra.mxu0 %v94
  %552 = vmatprep.subr.mxu0 0.0
  %553 = vmatpush1.msra.mxu0 %v95
  %554 = vmatprep.subr.mxu0 0.0
  %555 = vmatpush1.msra.mxu0 %v96
  %556 = vmatprep.subr.mxu0 0.0
  %557 = vmatpush1.msra.mxu0 %v97
  %558 = vmatprep.subr.mxu0 0.0
  %559 = vmatpush1.msra.mxu0 %v98
  %560 = vmatprep.subr.mxu0 0.0
  %561 = vmatpush1.msra.mxu0 %v99
  %562 = vmatprep.subr.mxu0 0.0
  %563 = vmatpush1.msra.mxu0 %v100
  %564 = vmatprep.subr.mxu0 0.0
  %565 = vmatpush1.msra.mxu0 %v101
  %566 = vmatprep.subr.mxu0 0.0
  %567 = vmatpush1.msra.mxu0 %v102
  %568 = vmatprep.subr.mxu0 0.0
  %569 = vmatpush1.msra.mxu0 %v103
  %570 = vmatprep.subr.mxu0 0.0
  %571 = vmatpush1.msra.mxu0 %v104
  %572 = vmatprep.subr.mxu0 0.0
  %573 = vmatpush1.msra.mxu0 %v105
  %574 = vmatprep.subr.mxu0 0.0
  %575 = vmatpush1.msra.mxu0 %v106
  %576 = vmatprep.subr.mxu0 0.0
  %577 = vmatpush1.msra.mxu0 %v107
  %578 = vmatprep.subr.mxu0 0.0
  %579 = vmatpush1.msra.mxu0 %v108
  %580 = vmatprep.subr.mxu0 0.0
  %581 = vmatpush1.msra.mxu0 %v109
  %582 = vmatprep.subr.mxu0 0.0
  %583 = vmatpush1.msra.mxu0 %v110
  %584 = vmatprep.mubr.f32.mxu0 %v25
  %585 = vmatmul.mubr.f32.gmra.mrb[0].mxu0 %v24
  %v586 = vpop.f32.mrb[0].mxu0
  %v587 = vadd.f32 %v517, %v586
  %v588 = vpop.f32.mrb[0].mxu0
  %589 = vdwg.mxu0
  %590 = vmatprep.subr.mxu0 0.0
  %591 = vmatpush1.msra.mxu0 %v111
  %592 = vmatprep.subr.mxu0 0.0
  %593 = vmatpush1.msra.mxu0 %v112
  %594 = vmatprep.subr.mxu0 0.0
  %595 = vmatpush1.msra.mxu0 %v113
  %596 = vmatprep.subr.mxu0 0.0
  %597 = vmatpush1.msra.mxu0 %v114
  %598 = vmatprep.subr.mxu0 0.0
  %599 = vmatpush1.msra.mxu0 %v115
  %600 = vmatprep.subr.mxu0 0.0
  %601 = vmatpush1.msra.mxu0 %v116
  %602 = vmatprep.subr.mxu0 0.0
  %603 = vmatpush1.msra.mxu0 %v117
  %604 = vmatprep.subr.mxu0 0.0
  %605 = vmatpush1.msra.mxu0 %v118
  %606 = vmatprep.subr.mxu0 0.0
  %607 = vmatpush1.msra.mxu0 %v119
  %608 = vmatprep.subr.mxu0 0.0
  %609 = vmatpush1.msra.mxu0 %v120
  %610 = vmatprep.subr.mxu0 0.0
  %611 = vmatpush1.msra.mxu0 %v121
  %612 = vmatprep.subr.mxu0 0.0
  %613 = vmatpush1.msra.mxu0 %v122
  %614 = vmatprep.subr.mxu0 0.0
  %615 = vmatpush1.msra.mxu0 %v123
  %616 = vmatprep.subr.mxu0 0.0
  %617 = vmatpush1.msra.mxu0 %v124
  %618 = vmatprep.subr.mxu0 0.0
  %619 = vmatpush1.msra.mxu0 %v125
  %620 = vmatprep.subr.mxu0 0.0
  %621 = vmatpush1.msra.mxu0 %v126
  %622 = vmatprep.subr.mxu0 0.0
  %623 = vmatpush1.msra.mxu0 %v127
  %624 = vmatprep.subr.mxu0 0.0
  %625 = vmatpush1.msra.mxu0 %v128
  %626 = vmatprep.subr.mxu0 0.0
  %627 = vmatpush1.msra.mxu0 %v129
  %628 = vmatprep.subr.mxu0 0.0
  %629 = vmatpush1.msra.mxu0 %v130
  %630 = vmatprep.subr.mxu0 0.0
  %631 = vmatpush1.msra.mxu0 %v131
  %632 = vmatprep.subr.mxu0 0.0
  %633 = vmatpush1.msra.mxu0 %v132
  %634 = vmatprep.subr.mxu0 0.0
  %635 = vmatpush1.msra.mxu0 %v133
  %636 = vmatprep.subr.mxu0 0.0
  %637 = vmatpush1.msra.mxu0 %v134
  %638 = vmatprep.subr.mxu0 0.0
  %639 = vmatpush1.msra.mxu0 %v135
  %640 = vmatprep.subr.mxu0 0.0
  %641 = vmatpush1.msra.mxu0 %v136
  %642 = vmatprep.subr.mxu0 0.0
  %643 = vmatpush1.msra.mxu0 %v137
  %644 = vmatprep.subr.mxu0 0.0
  %645 = vmatpush1.msra.mxu0 %v138
  %646 = vmatprep.subr.mxu0 0.0
  %647 = vmatpush1.msra.mxu0 %v139
  %648 = vmatprep.subr.mxu0 0.0
  %649 = vmatpush1.msra.mxu0 %v140
  %650 = vmatprep.subr.mxu0 0.0
  %651 = vmatpush1.msra.mxu0 %v141
  %652 = vmatprep.subr.mxu0 0.0
  %653 = vmatpush1.msra.mxu0 %v142
  %654 = vmatprep.mubr.f32.mxu0 %v27
  %655 = vmatmul.mubr.f32.gmra.mrb[0].mxu0 %v26
  %v656 = vpop.f32.mrb[0].mxu0
  %v657 = vadd.f32 %v587, %v656
  %v658 = vpop.f32.mrb[0].mxu0
  %659 = vdwg.mxu0
  %660 = vmatprep.subr.mxu0 0.0
  %661 = vmatpush1.msra.mxu0 %v143
  %662 = vmatprep.subr.mxu0 0.0
  %663 = vmatpush1.msra.mxu0 %v144
  %664 = vmatprep.subr.mxu0 0.0
  %665 = vmatpush1.msra.mxu0 %v145
  %666 = vmatprep.subr.mxu0 0.0
  %667 = vmatpush1.msra.mxu0 %v146
  %668 = vmatprep.subr.mxu0 0.0
  %669 = vmatpush1.msra.mxu0 %v147
  %670 = vmatprep.subr.mxu0 0.0
  %671 = vmatpush1.msra.mxu0 %v148
  %672 = vmatprep.subr.mxu0 0.0
  %673 = vmatpush1.msra.mxu0 %v149
  %674 = vmatprep.subr.mxu0 0.0
  %675 = vmatpush1.msra.mxu0 %v150
  %676 = vmatprep.subr.mxu0 0.0
  %677 = vmatpush1.msra.mxu0 %v151
  %678 = vmatprep.subr.mxu0 0.0
  %679 = vmatpush1.msra.mxu0 %v152
  %680 = vmatprep.subr.mxu0 0.0
  %681 = vmatpush1.msra.mxu0 %v153
  %682 = vmatprep.subr.mxu0 0.0
  %683 = vmatpush1.msra.mxu0 %v154
  %684 = vmatprep.subr.mxu0 0.0
  %685 = vmatpush1.msra.mxu0 %v155
  %686 = vmatprep.subr.mxu0 0.0
  %687 = vmatpush1.msra.mxu0 %v156
  %688 = vmatprep.subr.mxu0 0.0
  %689 = vmatpush1.msra.mxu0 %v157
  %690 = vmatprep.subr.mxu0 0.0
  %691 = vmatpush1.msra.mxu0 %v158
  %692 = vmatprep.subr.mxu0 0.0
  %693 = vmatpush1.msra.mxu0 %v159
  %694 = vmatprep.subr.mxu0 0.0
  %695 = vmatpush1.msra.mxu0 %v160
  %696 = vmatprep.subr.mxu0 0.0
  %697 = vmatpush1.msra.mxu0 %v161
  %698 = vmatprep.subr.mxu0 0.0
  %699 = vmatpush1.msra.mxu0 %v162
  %700 = vmatprep.subr.mxu0 0.0
  %701 = vmatpush1.msra.mxu0 %v163
  %702 = vmatprep.subr.mxu0 0.0
  %703 = vmatpush1.msra.mxu0 %v164
  %704 = vmatprep.subr.mxu0 0.0
  %705 = vmatpush1.msra.mxu0 %v165
  %706 = vmatprep.subr.mxu0 0.0
  %707 = vmatpush1.msra.mxu0 %v166
  %708 = vmatprep.subr.mxu0 0.0
  %709 = vmatpush1.msra.mxu0 %v167
  %710 = vmatprep.subr.mxu0 0.0
  %711 = vmatpush1.msra.mxu0 %v168
  %712 = vmatprep.subr.mxu0 0.0
  %713 = vmatpush1.msra.mxu0 %v169
  %714 = vmatprep.subr.mxu0 0.0
  %715 = vmatpush1.msra.mxu0 %v170
  %716 = vmatprep.subr.mxu0 0.0
  %717 = vmatpush1.msra.mxu0 %v171
  %718 = vmatprep.subr.mxu0 0.0
  %719 = vmatpush1.msra.mxu0 %v172
  %720 = vmatprep.subr.mxu0 0.0
  %721 = vmatpush1.msra.mxu0 %v173
  %722 = vmatprep.subr.mxu0 0.0
  %723 = vmatpush1.msra.mxu0 %v174
  %724 = vmatprep.mubr.f32.mxu0 %v29
  %725 = vmatmul.mubr.f32.gmra.mrb[0].mxu0 %v28
  %v726 = vpop.f32.mrb[0].mxu0
  %v727 = vadd.f32 %v657, %v726
  %v728 = vpop.f32.mrb[0].mxu0
  %729 = vdwg.mxu0
  %730 = vmatprep.subr.mxu0 0.0
  %731 = vmatpush1.msra.mxu0 %v175
  %732 = vmatprep.subr.mxu0 0.0
  %733 = vmatpush1.msra.mxu0 %v176
  %734 = vmatprep.subr.mxu0 0.0
  %735 = vmatpush1.msra.mxu0 %v177
  %736 = vmatprep.subr.mxu0 0.0
  %737 = vmatpush1.msra.mxu0 %v178
  %738 = vmatprep.subr.mxu0 0.0
  %739 = vmatpush1.msra.mxu0 %v179
  %740 = vmatprep.subr.mxu0 0.0
  %741 = vmatpush1.msra.mxu0 %v180
  %742 = vmatprep.subr.mxu0 0.0
  %743 = vmatpush1.msra.mxu0 %v181
  %744 = vmatprep.subr.mxu0 0.0
  %745 = vmatpush1.msra.mxu0 %v182
  %746 = vmatprep.subr.mxu0 0.0
  %747 = vmatpush1.msra.mxu0 %v183
  %748 = vmatprep.subr.mxu0 0.0
  %749 = vmatpush1.msra.mxu0 %v184
  %750 = vmatprep.subr.mxu0 0.0
  %751 = vmatpush1.msra.mxu0 %v185
  %752 = vmatprep.subr.mxu0 0.0
  %753 = vmatpush1.msra.mxu0 %v186
  %754 = vmatprep.subr.mxu0 0.0
  %755 = vmatpush1.msra.mxu0 %v187
  %756 = vmatprep.subr.mxu0 0.0
  %757 = vmatpush1.msra.mxu0 %v188
  %758 = vmatprep.subr.mxu0 0.0
  %759 = vmatpush1.msra.mxu0 %v189
  %760 = vmatprep.subr.mxu0 0.0
  %761 = vmatpush1.msra.mxu0 %v190
  %762 = vmatprep.subr.mxu0 0.0
  %763 = vmatpush1.msra.mxu0 %v191
  %764 = vmatprep.subr.mxu0 0.0
  %765 = vmatpush1.msra.mxu0 %v192
  %766 = vmatprep.subr.mxu0 0.0
  %767 = vmatpush1.msra.mxu0 %v193
  %768 = vmatprep.subr.mxu0 0.0
  %769 = vmatpush1.msra.mxu0 %v194
  %770 = vmatprep.subr.mxu0 0.0
  %771 = vmatpush1.msra.mxu0 %v195
  %772 = vmatprep.subr.mxu0 0.0
  %773 = vmatpush1.msra.mxu0 %v196
  %774 = vmatprep.subr.mxu0 0.0
  %775 = vmatpush1.msra.mxu0 %v197
  %776 = vmatprep.subr.mxu0 0.0
  %777 = vmatpush1.msra.mxu0 %v198
  %778 = vmatprep.subr.mxu0 0.0
  %779 = vmatpush1.msra.mxu0 %v199
  %780 = vmatprep.subr.mxu0 0.0
  %781 = vmatpush1.msra.mxu0 %v200
  %782 = vmatprep.subr.mxu0 0.0
  %783 = vmatpush1.msra.mxu0 %v201
  %784 = vmatprep.subr.mxu0 0.0
  %785 = vmatpush1.msra.mxu0 %v202
  %786 = vmatprep.subr.mxu0 0.0
  %787 = vmatpush1.msra.mxu0 %v203
  %788 = vmatprep.subr.mxu0 0.0
  %789 = vmatpush1.msra.mxu0 %v204
  %790 = vmatprep.subr.mxu0 0.0
  %791 = vmatpush1.msra.mxu0 %v205
  %792 = vmatprep.subr.mxu0 0.0
  %793 = vmatpush1.msra.mxu0 %v206
  %794 = vmatprep.mubr.f32.mxu0 %v31
  %795 = vmatmul.mubr.f32.gmra.mrb[0].mxu0 %v30
  %v796 = vpop.f32.mrb[0].mxu0
  %v797 = vadd.f32 %v727, %v796
  %v798 = vpop.f32.mrb[0].mxu0
  %799 = vdwg.mxu0
  %800 = vmatprep.subr.mxu0 0.0
  %801 = vmatpush1.msra.mxu0 %v207
  %802 = vmatprep.subr.mxu0 0.0
  %803 = vmatpush1.msra.mxu0 %v208
  %804 = vmatprep.subr.mxu0 0.0
  %805 = vmatpush1.msra.mxu0 %v209
  %806 = vmatprep.subr.mxu0 0.0
  %807 = vmatpush1.msra.mxu0 %v210
  %808 = vmatprep.subr.mxu0 0.0
  %809 = vmatpush1.msra.mxu0 %v211
  %810 = vmatprep.subr.mxu0 0.0
  %811 = vmatpush1.msra.mxu0 %v212
  %812 = vmatprep.subr.mxu0 0.0
  %813 = vmatpush1.msra.mxu0 %v213
  %814 = vmatprep.subr.mxu0 0.0
  %815 = vmatpush1.msra.mxu0 %v214
  %816 = vmatprep.subr.mxu0 0.0
  %817 = vmatpush1.msra.mxu0 %v215
  %818 = vmatprep.subr.mxu0 0.0
  %819 = vmatpush1.msra.mxu0 %v216
  %820 = vmatprep.subr.mxu0 0.0
  %821 = vmatpush1.msra.mxu0 %v217
  %822 = vmatprep.subr.mxu0 0.0
  %823 = vmatpush1.msra.mxu0 %v218
  %824 = vmatprep.subr.mxu0 0.0
  %825 = vmatpush1.msra.mxu0 %v219
  %826 = vmatprep.subr.mxu0 0.0
  %827 = vmatpush1.msra.mxu0 %v220
  %828 = vmatprep.subr.mxu0 0.0
  %829 = vmatpush1.msra.mxu0 %v221
  %830 = vmatprep.subr.mxu0 0.0
  %831 = vmatpush1.msra.mxu0 %v222
  %832 = vmatprep.subr.mxu0 0.0
  %833 = vmatpush1.msra.mxu0 %v223
  %834 = vmatprep.subr.mxu0 0.0
  %835 = vmatpush1.msra.mxu0 %v224
  %836 = vmatprep.subr.mxu0 0.0
  %837 = vmatpush1.msra.mxu0 %v225
  %838 = vmatprep.subr.mxu0 0.0
  %839 = vmatpush1.msra.mxu0 %v226
  %840 = vmatprep.subr.mxu0 0.0
  %841 = vmatpush1.msra.mxu0 %v227
  %842 = vmatprep.subr.mxu0 0.0
  %843 = vmatpush1.msra.mxu0 %v228
  %844 = vmatprep.subr.mxu0 0.0
  %845 = vmatpush1.msra.mxu0 %v229
  %846 = vmatprep.subr.mxu0 0.0
  %847 = vmatpush1.msra.mxu0 %v230
  %848 = vmatprep.subr.mxu0 0.0
  %849 = vmatpush1.msra.mxu0 %v231
  %850 = vmatprep.subr.mxu0 0.0
  %851 = vmatpush1.msra.mxu0 %v232
  %852 = vmatprep.subr.mxu0 0.0
  %853 = vmatpush1.msra.mxu0 %v233
  %854 = vmatprep.subr.mxu0 0.0
  %855 = vmatpush1.msra.mxu0 %v234
  %856 = vmatprep.subr.mxu0 0.0
  %857 = vmatpush1.msra.mxu0 %v235
  %858 = vmatprep.subr.mxu0 0.0
  %859 = vmatpush1.msra.mxu0 %v236
  %860 = vmatprep.subr.mxu0 0.0
  %861 = vmatpush1.msra.mxu0 %v237
  %862 = vmatprep.subr.mxu0 0.0
  %863 = vmatpush1.msra.mxu0 %v238
  %864 = vmatprep.mubr.f32.mxu0 %v33
  %865 = vmatmul.mubr.f32.gmra.mrb[0].mxu0 %v32
  %v866 = vpop.f32.mrb[0].mxu0
  %v867 = vadd.f32 %v797, %v866
  %v868 = vpop.f32.mrb[0].mxu0
  %869 = vdwg.mxu0
  %870 = vmatprep.subr.mxu0 0.0
  %871 = vmatpush1.msra.mxu0 %v239
  %872 = vmatprep.subr.mxu0 0.0
  %873 = vmatpush1.msra.mxu0 %v240
  %874 = vmatprep.subr.mxu0 0.0
  %875 = vmatpush1.msra.mxu0 %v241
  %876 = vmatprep.subr.mxu0 0.0
  %877 = vmatpush1.msra.mxu0 %v242
  %878 = vmatprep.subr.mxu0 0.0
  %879 = vmatpush1.msra.mxu0 %v243
  %880 = vmatprep.subr.mxu0 0.0
  %881 = vmatpush1.msra.mxu0 %v244
  %882 = vmatprep.subr.mxu0 0.0
  %883 = vmatpush1.msra.mxu0 %v245
  %884 = vmatprep.subr.mxu0 0.0
  %885 = vmatpush1.msra.mxu0 %v246
  %886 = vmatprep.subr.mxu0 0.0
  %887 = vmatpush1.msra.mxu0 %v247
  %888 = vmatprep.subr.mxu0 0.0
  %889 = vmatpush1.msra.mxu0 %v248
  %890 = vmatprep.subr.mxu0 0.0
  %891 = vmatpush1.msra.mxu0 %v249
  %892 = vmatprep.subr.mxu0 0.0
  %893 = vmatpush1.msra.mxu0 %v250
  %894 = vmatprep.subr.mxu0 0.0
  %895 = vmatpush1.msra.mxu0 %v251
  %896 = vmatprep.subr.mxu0 0.0
  %897 = vmatpush1.msra.mxu0 %v252
  %898 = vmatprep.subr.mxu0 0.0
  %899 = vmatpush1.msra.mxu0 %v253
  %900 = vmatprep.subr.mxu0 0.0
  %901 = vmatpush1.msra.mxu0 %v254
  %902 = vmatprep.subr.mxu0 0.0
  %903 = vmatpush1.msra.mxu0 %v255
  %904 = vmatprep.subr.mxu0 0.0
  %905 = vmatpush1.msra.mxu0 %v256
  %906 = vmatprep.subr.mxu0 0.0
  %907 = vmatpush1.msra.mxu0 %v257
  %908 = vmatprep.subr.mxu0 0.0
  %909 = vmatpush1.msra.mxu0 %v258
  %910 = vmatprep.subr.mxu0 0.0
  %911 = vmatpush1.msra.mxu0 %v259
  %912 = vmatprep.subr.mxu0 0.0
  %913 = vmatpush1.msra.mxu0 %v260
  %914 = vmatprep.subr.mxu0 0.0
  %915 = vmatpush1.msra.mxu0 %v261
  %916 = vmatprep.subr.mxu0 0.0
  %917 = vmatpush1.msra.mxu0 %v262
  %918 = vmatprep.subr.mxu0 0.0
  %919 = vmatpush1.msra.mxu0 %v263
  %920 = vmatprep.subr.mxu0 0.0
  %921 = vmatpush1.msra.mxu0 %v264
  %922 = vmatprep.subr.mxu0 0.0
  %923 = vmatpush1.msra.mxu0 %v265
  %924 = vmatprep.subr.mxu0 0.0
  %925 = vmatpush1.msra.mxu0 %v266
  %926 = vmatprep.subr.mxu0 0.0
  %927 = vmatpush1.msra.mxu0 %v267
  %928 = vmatprep.subr.mxu0 0.0
  %929 = vmatpush1.msra.mxu0 %v268
  %930 = vmatprep.subr.mxu0 0.0
  %931 = vmatpush1.msra.mxu0 %v269
  %932 = vmatprep.subr.mxu0 0.0
  %933 = vmatpush1.msra.mxu0 %v270
  %934 = vmatprep.mubr.f32.mxu0 %v35
  %935 = vmatmul.mubr.f32.gmra.mrb[0].mxu0 %v34
  %v936 = vpop.f32.mrb[0].mxu0
  %v937 = vadd.f32 %v867, %v936
  %v938 = vpop.f32.mrb[0].mxu0
  %939 = vdwg.mxu0
  %940 = vmatprep.subr.mxu0 0.0
  %941 = vmatpush1.msra.mxu0 %v271
  %942 = vmatprep.subr.mxu0 0.0
  %943 = vmatpush1.msra.mxu0 %v272
  %944 = vmatprep.subr.mxu0 0.0
  %945 = vmatpush1.msra.mxu0 %v273
  %946 = vmatprep.subr.mxu0 0.0
  %947 = vmatpush1.msra.mxu0 %v274
  %948 = vmatprep.subr.mxu0 0.0
  %949 = vmatpush1.msra.mxu0 %v275
  %950 = vmatprep.subr.mxu0 0.0
  %951 = vmatpush1.msra.mxu0 %v276
  %952 = vmatprep.subr.mxu0 0.0
  %953 = vmatpush1.msra.mxu0 %v277
  %954 = vmatprep.subr.mxu0 0.0
  %955 = vmatpush1.msra.mxu0 %v278
  %956 = vmatprep.subr.mxu0 0.0
  %957 = vmatpush1.msra.mxu0 %v279
  %958 = vmatprep.subr.mxu0 0.0
  %959 = vmatpush1.msra.mxu0 %v280
  %960 = vmatprep.subr.mxu0 0.0
  %961 = vmatpush1.msra.mxu0 %v281
  %962 = vmatprep.subr.mxu0 0.0
  %963 = vmatpush1.msra.mxu0 %v282
  %964 = vmatprep.subr.mxu0 0.0
  %965 = vmatpush1.msra.mxu0 %v283
  %966 = vmatprep.subr.mxu0 0.0
  %967 = vmatpush1.msra.mxu0 %v284
  %968 = vmatprep.subr.mxu0 0.0
  %969 = vmatpush1.msra.mxu0 %v285
  %970 = vmatprep.subr.mxu0 0.0
  %971 = vmatpush1.msra.mxu0 %v286
  %972 = vmatprep.subr.mxu0 0.0
  %973 = vmatpush1.msra.mxu0 %v287
  %974 = vmatprep.subr.mxu0 0.0
  %975 = vmatpush1.msra.mxu0 %v288
  %976 = vmatprep.subr.mxu0 0.0
  %977 = vmatpush1.msra.mxu0 %v289
  %978 = vmatprep.subr.mxu0 0.0
  %979 = vmatpush1.msra.mxu0 %v290
  %980 = vmatprep.subr.mxu0 0.0
  %981 = vmatpush1.msra.mxu0 %v291
  %982 = vmatprep.subr.mxu0 0.0
  %983 = vmatpush1.msra.mxu0 %v292
  %984 = vmatprep.subr.mxu0 0.0
  %985 = vmatpush1.msra.mxu0 %v293
  %986 = vmatprep.subr.mxu0 0.0
  %987 = vmatpush1.msra.mxu0 %v294
  %988 = vmatprep.subr.mxu0 0.0
  %989 = vmatpush1.msra.mxu0 %v295
  %990 = vmatprep.subr.mxu0 0.0
  %991 = vmatpush1.msra.mxu0 %v296
  %992 = vmatprep.subr.mxu0 0.0
  %993 = vmatpush1.msra.mxu0 %v297
  %994 = vmatprep.subr.mxu0 0.0
  %995 = vmatpush1.msra.mxu0 %v298
  %996 = vmatprep.subr.mxu0 0.0
  %997 = vmatpush1.msra.mxu0 %v299
  %998 = vmatprep.subr.mxu0 0.0
  %999 = vmatpush1.msra.mxu0 %v300
  %1000 = vmatprep.subr.mxu0 0.0
  %1001 = vmatpush1.msra.mxu0 %v301
  %1002 = vmatprep.subr.mxu0 0.0
  %1003 = vmatpush1.msra.mxu0 %v302
  %1004 = vmatprep.mubr.f32.mxu0 %v37
  %1005 = vmatmul.mubr.f32.gmra.mrb[0].mxu0 %v36
  %v1006 = vpop.f32.mrb[0].mxu0
  %v1007 = vadd.f32 %v937, %v1006
  %v1008 = vpop.f32.mrb[0].mxu0
  %1009 = vdwg.mxu0
  %1010 = vmatprep.subr.mxu0 0.0
  %1011 = vmatpush1.msra.mxu0 %v303
  %1012 = vmatprep.subr.mxu0 0.0
  %1013 = vmatpush1.msra.mxu0 %v304
  %1014 = vmatprep.subr.mxu0 0.0
  %1015 = vmatpush1.msra.mxu0 %v305
  %1016 = vmatprep.subr.mxu0 0.0
  %1017 = vmatpush1.msra.mxu0 %v306
  %1018 = vmatprep.subr.mxu0 0.0
  %1019 = vmatpush1.msra.mxu0 %v307
  %1020 = vmatprep.subr.mxu0 0.0
  %1021 = vmatpush1.msra.mxu0 %v308
  %1022 = vmatprep.subr.mxu0 0.0
  %1023 = vmatpush1.msra.mxu0 %v309
  %1024 = vmatprep.subr.mxu0 0.0
  %1025 = vmatpush1.msra.mxu0 %v310
  %1026 = vmatprep.subr.mxu0 0.0
  %1027 = vmatpush1.msra.mxu0 %v311
  %1028 = vmatprep.subr.mxu0 0.0
  %1029 = vmatpush1.msra.mxu0 %v312
  %1030 = vmatprep.subr.mxu0 0.0
  %1031 = vmatpush1.msra.mxu0 %v313
  %1032 = vmatprep.subr.mxu0 0.0
  %1033 = vmatpush1.msra.mxu0 %v314
  %1034 = vmatprep.subr.mxu0 0.0
  %1035 = vmatpush1.msra.mxu0 %v315
  %1036 = vmatprep.subr.mxu0 0.0
  %1037 = vmatpush1.msra.mxu0 %v316
  %1038 = vmatprep.subr.mxu0 0.0
  %1039 = vmatpush1.msra.mxu0 %v317
  %1040 = vmatprep.subr.mxu0 0.0
  %1041 = vmatpush1.msra.mxu0 %v318
  %1042 = vmatprep.subr.mxu0 0.0
  %1043 = vmatpush1.msra.mxu0 %v319
  %1044 = vmatprep.subr.mxu0 0.0
  %1045 = vmatpush1.msra.mxu0 %v320
  %1046 = vmatprep.subr.mxu0 0.0
  %1047 = vmatpush1.msra.mxu0 %v321
  %1048 = vmatprep.subr.mxu0 0.0
  %1049 = vmatpush1.msra.mxu0 %v322
  %1050 = vmatprep.subr.mxu0 0.0
  %1051 = vmatpush1.msra.mxu0 %v323
  %1052 = vmatprep.subr.mxu0 0.0
  %1053 = vmatpush1.msra.mxu0 %v324
  %1054 = vmatprep.subr.mxu0 0.0
  %1055 = vmatpush1.msra.mxu0 %v325
  %1056 = vmatprep.subr.mxu0 0.0
  %1057 = vmatpush1.msra.mxu0 %v326
  %1058 = vmatprep.subr.mxu0 0.0
  %1059 = vmatpush1.msra.mxu0 %v327
  %1060 = vmatprep.subr.mxu0 0.0
  %1061 = vmatpush1.msra.mxu0 %v328
  %1062 = vmatprep.subr.mxu0 0.0
  %1063 = vmatpush1.msra.mxu0 %v329
  %1064 = vmatprep.subr.mxu0 0.0
  %1065 = vmatpush1.msra.mxu0 %v330
  %1066 = vmatprep.subr.mxu0 0.0
  %1067 = vmatpush1.msra.mxu0 %v331
  %1068 = vmatprep.subr.mxu0 0.0
  %1069 = vmatpush1.msra.mxu0 %v332
  %1070 = vmatprep.subr.mxu0 0.0
  %1071 = vmatpush1.msra.mxu0 %v333
  %1072 = vmatprep.subr.mxu0 0.0
  %1073 = vmatpush1.msra.mxu0 %v334
  %1074 = vmatprep.mubr.f32.mxu0 %v39
  %1075 = vmatmul.mubr.f32.gmra.mrb[0].mxu0 %v38
  %v1076 = vpop.f32.mrb[0].mxu0
  %v1077 = vadd.f32 %v1007, %v1076
  %v1078 = vpop.f32.mrb[0].mxu0
  %1079 = vdwg.mxu0
  %1080 = vmatprep.subr.mxu0 0.0
  %1081 = vmatpush1.msra.mxu0 %v335
  %1082 = vmatprep.subr.mxu0 0.0
  %1083 = vmatpush1.msra.mxu0 %v336
  %1084 = vmatprep.subr.mxu0 0.0
  %1085 = vmatpush1.msra.mxu0 %v337
  %1086 = vmatprep.subr.mxu0 0.0
  %1087 = vmatpush1.msra.mxu0 %v338
  %1088 = vmatprep.subr.mxu0 0.0
  %1089 = vmatpush1.msra.mxu0 %v339
  %1090 = vmatprep.subr.mxu0 0.0
  %1091 = vmatpush1.msra.mxu0 %v340
  %1092 = vmatprep.subr.mxu0 0.0
  %1093 = vmatpush1.msra.mxu0 %v341
  %1094 = vmatprep.subr.mxu0 0.0
  %1095 = vmatpush1.msra.mxu0 %v342
  %1096 = vmatprep.subr.mxu0 0.0
  %1097 = vmatpush1.msra.mxu0 %v343
  %1098 = vmatprep.subr.mxu0 0.0
  %1099 = vmatpush1.msra.mxu0 %v344
  %1100 = vmatprep.subr.mxu0 0.0
  %1101 = vmatpush1.msra.mxu0 %v345
  %1102 = vmatprep.subr.mxu0 0.0
  %1103 = vmatpush1.msra.mxu0 %v346
  %1104 = vmatprep.subr.mxu0 0.0
  %1105 = vmatpush1.msra.mxu0 %v347
  %1106 = vmatprep.subr.mxu0 0.0
  %1107 = vmatpush1.msra.mxu0 %v348
  %1108 = vmatprep.subr.mxu0 0.0
  %1109 = vmatpush1.msra.mxu0 %v349
  %1110 = vmatprep.subr.mxu0 0.0
  %1111 = vmatpush1.msra.mxu0 %v350
  %1112 = vmatprep.subr.mxu0 0.0
  %1113 = vmatpush1.msra.mxu0 %v351
  %1114 = vmatprep.subr.mxu0 0.0
  %1115 = vmatpush1.msra.mxu0 %v352
  %1116 = vmatprep.subr.mxu0 0.0
  %1117 = vmatpush1.msra.mxu0 %v353
  %1118 = vmatprep.subr.mxu0 0.0
  %1119 = vmatpush1.msra.mxu0 %v354
  %1120 = vmatprep.subr.mxu0 0.0
  %1121 = vmatpush1.msra.mxu0 %v355
  %1122 = vmatprep.subr.mxu0 0.0
  %1123 = vmatpush1.msra.mxu0 %v356
  %1124 = vmatprep.subr.mxu0 0.0
  %1125 = vmatpush1.msra.mxu0 %v357
  %1126 = vmatprep.subr.mxu0 0.0
  %1127 = vmatpush1.msra.mxu0 %v358
  %1128 = vmatprep.subr.mxu0 0.0
  %1129 = vmatpush1.msra.mxu0 %v359
  %1130 = vmatprep.subr.mxu0 0.0
  %1131 = vmatpush1.msra.mxu0 %v360
  %1132 = vmatprep.subr.mxu0 0.0
  %1133 = vmatpush1.msra.mxu0 %v361
  %1134 = vmatprep.subr.mxu0 0.0
  %1135 = vmatpush1.msra.mxu0 %v362
  %1136 = vmatprep.subr.mxu0 0.0
  %1137 = vmatpush1.msra.mxu0 %v363
  %1138 = vmatprep.subr.mxu0 0.0
  %1139 = vmatpush1.msra.mxu0 %v364
  %1140 = vmatprep.subr.mxu0 0.0
  %1141 = vmatpush1.msra.mxu0 %v365
  %1142 = vmatprep.subr.mxu0 0.0
  %1143 = vmatpush1.msra.mxu0 %v366
  %1144 = vmatprep.mubr.f32.mxu0 %v41
  %1145 = vmatmul.mubr.f32.gmra.mrb[0].mxu0 %v40
  %v1146 = vpop.f32.mrb[0].mxu0
  %v1147 = vadd.f32 %v1077, %v1146
  %v1148 = vpop.f32.mrb[0].mxu0
  %1149 = vdwg.mxu0
  %1150 = vmatprep.subr.mxu0 0.0
  %1151 = vmatpush1.msra.mxu0 %v367
  %1152 = vmatprep.subr.mxu0 0.0
  %1153 = vmatpush1.msra.mxu0 %v368
  %1154 = vmatprep.subr.mxu0 0.0
  %1155 = vmatpush1.msra.mxu0 %v369
  %1156 = vmatprep.subr.mxu0 0.0
  %1157 = vmatpush1.msra.mxu0 %v370
  %1158 = vmatprep.subr.mxu0 0.0
  %1159 = vmatpush1.msra.mxu0 %v371
  %1160 = vmatprep.subr.mxu0 0.0
  %1161 = vmatpush1.msra.mxu0 %v372
  %1162 = vmatprep.subr.mxu0 0.0
  %1163 = vmatpush1.msra.mxu0 %v373
  %1164 = vmatprep.subr.mxu0 0.0
  %1165 = vmatpush1.msra.mxu0 %v374
  %1166 = vmatprep.subr.mxu0 0.0
  %1167 = vmatpush1.msra.mxu0 %v375
  %1168 = vmatprep.subr.mxu0 0.0
  %1169 = vmatpush1.msra.mxu0 %v376
  %1170 = vmatprep.subr.mxu0 0.0
  %1171 = vmatpush1.msra.mxu0 %v377
  %1172 = vmatprep.subr.mxu0 0.0
  %1173 = vmatpush1.msra.mxu0 %v378
  %1174 = vmatprep.subr.mxu0 0.0
  %1175 = vmatpush1.msra.mxu0 %v379
  %1176 = vmatprep.subr.mxu0 0.0
  %1177 = vmatpush1.msra.mxu0 %v380
  %1178 = vmatprep.subr.mxu0 0.0
  %1179 = vmatpush1.msra.mxu0 %v381
  %1180 = vmatprep.subr.mxu0 0.0
  %1181 = vmatpush1.msra.mxu0 %v382
  %1182 = vmatprep.subr.mxu0 0.0
  %1183 = vmatpush1.msra.mxu0 %v383
  %1184 = vmatprep.subr.mxu0 0.0
  %1185 = vmatpush1.msra.mxu0 %v384
  %1186 = vmatprep.subr.mxu0 0.0
  %1187 = vmatpush1.msra.mxu0 %v385
  %1188 = vmatprep.subr.mxu0 0.0
  %1189 = vmatpush1.msra.mxu0 %v386
  %1190 = vmatprep.subr.mxu0 0.0
  %1191 = vmatpush1.msra.mxu0 %v387
  %1192 = vmatprep.subr.mxu0 0.0
  %1193 = vmatpush1.msra.mxu0 %v388
  %1194 = vmatprep.subr.mxu0 0.0
  %1195 = vmatpush1.msra.mxu0 %v389
  %1196 = vmatprep.subr.mxu0 0.0
  %1197 = vmatpush1.msra.mxu0 %v390
  %1198 = vmatprep.subr.mxu0 0.0
  %1199 = vmatpush1.msra.mxu0 %v391
  %1200 = vmatprep.subr.mxu0 0.0
  %1201 = vmatpush1.msra.mxu0 %v392
  %1202 = vmatprep.subr.mxu0 0.0
  %1203 = vmatpush1.msra.mxu0 %v393
  %1204 = vmatprep.subr.mxu0 0.0
  %1205 = vmatpush1.msra.mxu0 %v394
  %1206 = vmatprep.subr.mxu0 0.0
  %1207 = vmatpush1.msra.mxu0 %v395
  %1208 = vmatprep.subr.mxu0 0.0
  %1209 = vmatpush1.msra.mxu0 %v396
  %1210 = vmatprep.subr.mxu0 0.0
  %1211 = vmatpush1.msra.mxu0 %v397
  %1212 = vmatprep.subr.mxu0 0.0
  %1213 = vmatpush1.msra.mxu0 %v398
  %1214 = vmatprep.mubr.f32.mxu0 %v43
  %1215 = vmatmul.mubr.f32.gmra.mrb[0].mxu0 %v42
  %v1216 = vpop.f32.mrb[0].mxu0
  %v1217 = vadd.f32 %v1147, %v1216
  %v1218 = vpop.f32.mrb[0].mxu0
  %1219 = vdwg.mxu0
  %1220 = vmatprep.subr.mxu0 0.0
  %1221 = vmatpush1.msra.mxu0 %v399
  %1222 = vmatprep.subr.mxu0 0.0
  %1223 = vmatpush1.msra.mxu0 %v400
  %1224 = vmatprep.subr.mxu0 0.0
  %1225 = vmatpush1.msra.mxu0 %v401
  %1226 = vmatprep.subr.mxu0 0.0
  %1227 = vmatpush1.msra.mxu0 %v402
  %1228 = vmatprep.subr.mxu0 0.0
  %1229 = vmatpush1.msra.mxu0 %v403
  %1230 = vmatprep.subr.mxu0 0.0
  %1231 = vmatpush1.msra.mxu0 %v404
  %1232 = vmatprep.subr.mxu0 0.0
  %1233 = vmatpush1.msra.mxu0 %v405
  %1234 = vmatprep.subr.mxu0 0.0
  %1235 = vmatpush1.msra.mxu0 %v406
  %1236 = vmatprep.subr.mxu0 0.0
  %1237 = vmatpush1.msra.mxu0 %v407
  %1238 = vmatprep.subr.mxu0 0.0
  %1239 = vmatpush1.msra.mxu0 %v408
  %1240 = vmatprep.subr.mxu0 0.0
  %1241 = vmatpush1.msra.mxu0 %v409
  %1242 = vmatprep.subr.mxu0 0.0
  %1243 = vmatpush1.msra.mxu0 %v410
  %1244 = vmatprep.subr.mxu0 0.0
  %1245 = vmatpush1.msra.mxu0 %v411
  %1246 = vmatprep.subr.mxu0 0.0
  %1247 = vmatpush1.msra.mxu0 %v412
  %1248 = vmatprep.subr.mxu0 0.0
  %1249 = vmatpush1.msra.mxu0 %v413
  %1250 = vmatprep.subr.mxu0 0.0
  %1251 = vmatpush1.msra.mxu0 %v414
  %1252 = vmatprep.subr.mxu0 0.0
  %1253 = vmatpush1.msra.mxu0 %v415
  %1254 = vmatprep.subr.mxu0 0.0
  %1255 = vmatpush1.msra.mxu0 %v416
  %1256 = vmatprep.subr.mxu0 0.0
  %1257 = vmatpush1.msra.mxu0 %v417
  %1258 = vmatprep.subr.mxu0 0.0
  %1259 = vmatpush1.msra.mxu0 %v418
  %1260 = vmatprep.subr.mxu0 0.0
  %1261 = vmatpush1.msra.mxu0 %v419
  %1262 = vmatprep.subr.mxu0 0.0
  %1263 = vmatpush1.msra.mxu0 %v420
  %1264 = vmatprep.subr.mxu0 0.0
  %1265 = vmatpush1.msra.mxu0 %v421
  %1266 = vmatprep.subr.mxu0 0.0
  %1267 = vmatpush1.msra.mxu0 %v422
  %1268 = vmatprep.subr.mxu0 0.0
  %1269 = vmatpush1.msra.mxu0 %v423
  %1270 = vmatprep.subr.mxu0 0.0
  %1271 = vmatpush1.msra.mxu0 %v424
  %1272 = vmatprep.subr.mxu0 0.0
  %1273 = vmatpush1.msra.mxu0 %v425
  %1274 = vmatprep.subr.mxu0 0.0
  %1275 = vmatpush1.msra.mxu0 %v426
  %1276 = vmatprep.subr.mxu0 0.0
  %1277 = vmatpush1.msra.mxu0 %v427
  %1278 = vmatprep.subr.mxu0 0.0
  %1279 = vmatpush1.msra.mxu0 %v428
  %1280 = vmatprep.subr.mxu0 0.0
  %1281 = vmatpush1.msra.mxu0 %v429
  %1282 = vmatprep.subr.mxu0 0.0
  %1283 = vmatpush1.msra.mxu0 %v430
  %1284 = vmatprep.mubr.f32.mxu0 %v45
  %1285 = vmatmul.mubr.f32.gmra.mrb[0].mxu0 %v44
  %v1286 = vpop.f32.mrb[0].mxu0
  %v1287 = vadd.f32 %v1217, %v1286
  %v1288 = vpop.f32.mrb[0].mxu0
  %1289 = vdwg.mxu0
  %1290 = vmatprep.subr.mxu0 0.0
  %1291 = vmatpush1.msra.mxu0 %v431
  %1292 = vmatprep.subr.mxu0 0.0
  %1293 = vmatpush1.msra.mxu0 %v432
  %1294 = vmatprep.subr.mxu0 0.0
  %1295 = vmatpush1.msra.mxu0 %v433
  %1296 = vmatprep.subr.mxu0 0.0
  %1297 = vmatpush1.msra.mxu0 %v434
  %1298 = vmatprep.subr.mxu0 0.0
  %1299 = vmatpush1.msra.mxu0 %v435
  %1300 = vmatprep.subr.mxu0 0.0
  %1301 = vmatpush1.msra.mxu0 %v436
  %1302 = vmatprep.subr.mxu0 0.0
  %1303 = vmatpush1.msra.mxu0 %v437
  %1304 = vmatprep.subr.mxu0 0.0
  %1305 = vmatpush1.msra.mxu0 %v438
  %1306 = vmatprep.subr.mxu0 0.0
  %1307 = vmatpush1.msra.mxu0 0.0
  %1308 = vmatprep.subr.mxu0 0.0
  %1309 = vmatpush1.msra.mxu0 0.0
  %1310 = vmatprep.subr.mxu0 0.0
  %1311 = vmatpush1.msra.mxu0 0.0
  %1312 = vmatprep.subr.mxu0 0.0
  %1313 = vmatpush1.msra.mxu0 0.0
  %1314 = vmatprep.subr.mxu0 0.0
  %1315 = vmatpush1.msra.mxu0 0.0
  %1316 = vmatprep.subr.mxu0 0.0
  %1317 = vmatpush1.msra.mxu0 0.0
  %1318 = vmatprep.subr.mxu0 0.0
  %1319 = vmatpush1.msra.mxu0 0.0
  %1320 = vmatprep.subr.mxu0 0.0
  %1321 = vmatpush1.msra.mxu0 0.0
  %1322 = vmatprep.subr.mxu0 0.0
  %1323 = vmatpush1.msra.mxu0 0.0
  %1324 = vmatprep.subr.mxu0 0.0
  %1325 = vmatpush1.msra.mxu0 0.0
  %1326 = vmatprep.subr.mxu0 0.0
  %1327 = vmatpush1.msra.mxu0 0.0
  %1328 = vmatprep.subr.mxu0 0.0
  %1329 = vmatpush1.msra.mxu0 0.0
  %1330 = vmatprep.subr.mxu0 0.0
  %1331 = vmatpush1.msra.mxu0 0.0
  %1332 = vmatprep.subr.mxu0 0.0
  %1333 = vmatpush1.msra.mxu0 0.0
  %1334 = vmatprep.subr.mxu0 0.0
  %1335 = vmatpush1.msra.mxu0 0.0
  %1336 = vmatprep.subr.mxu0 0.0
  %1337 = vmatpush1.msra.mxu0 0.0
  %1338 = vmatprep.subr.mxu0 0.0
  %1339 = vmatpush1.msra.mxu0 0.0
  %1340 = vmatprep.subr.mxu0 0.0
  %1341 = vmatpush1.msra.mxu0 0.0
  %1342 = vmatprep.subr.mxu0 0.0
  %1343 = vmatpush1.msra.mxu0 0.0
  %1344 = vmatprep.subr.mxu0 0.0
  %1345 = vmatpush1.msra.mxu0 0.0
  %1346 = vmatprep.subr.mxu0 0.0
  %1347 = vmatpush1.msra.mxu0 0.0
  %1348 = vmatprep.subr.mxu0 0.0
  %1349 = vmatpush1.msra.mxu0 0.0
  %1350 = vmatprep.subr.mxu0 0.0
  %1351 = vmatpush1.msra.mxu0 0.0
  %1352 = vmatprep.subr.mxu0 0.0
  %1353 = vmatpush1.msra.mxu0 0.0
  %1354 = vmatprep.mubr.f32.mxu0 0.0
  %1355 = vmatmul.mubr.f32.gmra.mrb[0].mxu0 %v448
  %v1356 = vpop.f32.mrb[0].mxu0
  %v1357 = vadd.f32 %v1287, %v1356
  %v1358 = vpop.f32.mrb[0].mxu0
  %1359 = vdwg.mxu0
  %v1360 = vmax.f32 %v1357, 0.0
  %1361 = vst.msk [vmem:[%s5] sm:$0xff] %vm446, %v1360
  %v1362 = vld [vmem:[%s3] sm:$0xff]
  %v1363 = vld [vmem:[%s3 + $0x8] sm:$0xff]
  %v1364 = vld [vmem:[%s3 + $0x10] sm:$0xff]
  %v1365 = vld [vmem:[%s3 + $0x18] sm:$0xff]
  %v1366 = vld [vmem:[%s3 + $0x20] sm:$0xff]
  %v1367 = vld [vmem:[%s3 + $0x28] sm:$0xff]
  %v1368 = vld [vmem:[%s3 + $0x30] sm:$0xff]
  %v1369 = vld [vmem:[%s3 + $0x38] sm:$0xff]
  %v1370 = vld [vmem:[%s4] sm:$0x1]
  %v1372 = vlaneseq
  %v1373 = vshrl.u32 %v1372, 7
  %v1374 = vsub.s32 0, %v1373
  %v1375 = vrot.slane %v1370, %v1374
  %v1378 = vsel %vm446, %v1360, 0
  %1380 = vmatprep.subr.mxu0 0.0
  %1381 = vmatpush1.msra.mxu0 %v1362
  %1382 = vmatprep.subr.mxu0 0.0
  %1383 = vmatpush1.msra.mxu0 %v1363
  %1384 = vmatprep.subr.mxu0 0.0
  %1385 = vmatpush1.msra.mxu0 %v1364
  %1386 = vmatprep.subr.mxu0 0.0
  %1387 = vmatpush1.msra.mxu0 %v1365
  %1388 = vmatprep.subr.mxu0 0.0
  %1389 = vmatpush1.msra.mxu0 %v1366
  %1390 = vmatprep.subr.mxu0 0.0
  %1391 = vmatpush1.msra.mxu0 %v1367
  %1392 = vmatprep.subr.mxu0 0.0
  %1393 = vmatpush1.msra.mxu0 %v1368
  %1394 = vmatprep.subr.mxu0 0.0
  %1395 = vmatpush1.msra.mxu0 %v1369
  %1396 = vmatprep.subr.mxu0 0.0
  %1397 = vmatpush1.msra.mxu0 0.0
  %1398 = vmatprep.subr.mxu0 0.0
  %1399 = vmatpush1.msra.mxu0 0.0
  %1400 = vmatprep.subr.mxu0 0.0
  %1401 = vmatpush1.msra.mxu0 0.0
  %1402 = vmatprep.subr.mxu0 0.0
  %1403 = vmatpush1.msra.mxu0 0.0
  %1404 = vmatprep.subr.mxu0 0.0
  %1405 = vmatpush1.msra.mxu0 0.0
  %1406 = vmatprep.subr.mxu0 0.0
  %1407 = vmatpush1.msra.mxu0 0.0
  %1408 = vmatprep.subr.mxu0 0.0
  %1409 = vmatpush1.msra.mxu0 0.0
  %1410 = vmatprep.subr.mxu0 0.0
  %1411 = vmatpush1.msra.mxu0 0.0
  %1412 = vmatprep.subr.mxu0 0.0
  %1413 = vmatpush1.msra.mxu0 0.0
  %1414 = vmatprep.subr.mxu0 0.0
  %1415 = vmatpush1.msra.mxu0 0.0
  %1416 = vmatprep.subr.mxu0 0.0
  %1417 = vmatpush1.msra.mxu0 0.0
  %1418 = vmatprep.subr.mxu0 0.0
  %1419 = vmatpush1.msra.mxu0 0.0
  %1420 = vmatprep.subr.mxu0 0.0
  %1421 = vmatpush1.msra.mxu0 0.0
  %1422 = vmatprep.subr.mxu0 0.0
  %1423 = vmatpush1.msra.mxu0 0.0
  %1424 = vmatprep.subr.mxu0 0.0
  %1425 = vmatpush1.msra.mxu0 0.0
  %1426 = vmatprep.subr.mxu0 0.0
  %1427 = vmatpush1.msra.mxu0 0.0
  %1428 = vmatprep.subr.mxu0 0.0
  %1429 = vmatpush1.msra.mxu0 0.0
  %1430 = vmatprep.subr.mxu0 0.0
  %1431 = vmatpush1.msra.mxu0 0.0
  %1432 = vmatprep.subr.mxu0 0.0
  %1433 = vmatpush1.msra.mxu0 0.0
  %1434 = vmatprep.subr.mxu0 0.0
  %1435 = vmatpush1.msra.mxu0 0.0
  %1436 = vmatprep.subr.mxu0 0.0
  %1437 = vmatpush1.msra.mxu0 0.0
  %1438 = vmatprep.subr.mxu0 0.0
  %1439 = vmatpush1.msra.mxu0 0.0
  %1440 = vmatprep.subr.mxu0 0.0
  %1441 = vmatpush1.msra.mxu0 0.0
  %1442 = vmatprep.subr.mxu0 0.0
  %1443 = vmatpush1.msra.mxu0 0.0
  %1444 = vmatprep.mubr.f32.mxu0 0.0
  %1445 = vmatmul.mubr.f32.gmra.mrb[0].mxu0 %v1378
  %v1446 = vpop.f32.mrb[0].mxu0
  %v1447 = vadd.f32 %v1375, %v1446
  %v1448 = vpop.f32.mrb[0].mxu0
  %1449 = vdwg.mxu0
  %vm1450 = vcmask 80896
  %1451 = vst.msk [vmem:[%s6] sm:$0xff] %vm1450, %v1447
  // Predicated region
  $region22: #{multicnn_forward.3} parent=0 // pred_check
    _
  $region23: #{multicnn_forward.3} parent=0 // pred_check_branch
    %1453 = sbr.rel (0) target = $region25
  $region24: #{multicnn_forward.3} parent=0 // pred_region
    _
  $region25: #{multicnn_forward.3} parent=0 // pred_fallthru
    _
  // Predicated region
  $region26: #{multicnn_forward.3} parent=0 // pred_check
    _
  $region27: #{multicnn_forward.3} parent=0 // pred_check_branch
    %1455 = sbr.rel (0) target = $region29
  $region28: #{multicnn_forward.3} parent=0 // pred_region
    _
  $region29: #{multicnn_forward.3} parent=0 // pred_fallthru
    _
  // Predicated region
  $region30: #{multicnn_forward.3} parent=0 // pred_check
    _
  $region31: #{multicnn_forward.3} parent=0 // pred_check_branch
    %1457 = sbr.rel (0) target = $region33
  $region32: #{multicnn_forward.3} parent=0 // pred_region
    _
  $region33: #{multicnn_forward.3} parent=0 // pred_fallthru
    _
  // Predicated region
  $region34: #{multicnn_forward.3} parent=0 // pred_check
    _
  $region35: #{multicnn_forward.3} parent=0 // pred_check_branch
    %1459 = sbr.rel (0) target = $region37
  $region36: #{multicnn_forward.3} parent=0 // pred_region
    _
  $region37: #{multicnn_forward.3} parent=0 // pred_fallthru
    _

// kernel: multicnn_forward.2
$region0: #{multicnn_forward.2}
  #allocation0 [shape = 'u32[]', space=smem, size = 0x4, offset = 0x4, fixed_abs, tag = 'smem constant byte address 0x4 - core index']
  #allocation1 [shape = 'u32[144,128]{1,0:T(1,128)}', space=vmem, size = 0x12000, scoped, tag = 'internal scratch']
  #allocation2 [shape = 'f32[258,128]{1,0:T(8,128)}', space=vmem, size = 0x21000, scoped, tag = 'scratch operand']
  #allocation3 [shape = 'f32[224,1152]{1,0:T(8,128)}', space=vmem, size = 0xfc000, scoped, tag = 'scratch operand']
  #allocation4 [shape = 'f32[224,256]{1,0:T(8,128)}', space=vmem, size = 0x38000, scoped, tag = 'scratch operand']
  %s0 = inlined_call_operand.vmem [shape: f32[1,968,128], index: 0, kind: input, shape index: {}]
  %s1 = inlined_call_operand.vmem [shape: f32[9,128], index: 1, kind: input, shape index: {}]
  %s2 = inlined_call_operand.vmem [shape: f32[1,128], index: 2, kind: input, shape index: {}]
  %s3 = inlined_call_operand.vmem [shape: f32[1152,256], index: 3, kind: input, shape index: {}]
  %s4 = inlined_call_operand.vmem [shape: f32[1,256], index: 4, kind: input, shape index: {}]
  %s5 = inlined_call_operand.vmem [shape: f32[32,96], index: 5, kind: input, shape index: {}]
  %s6 = inlined_call_operand.vmem [shape: f32[32,96], index: 6, kind: input, shape index: {}]
  %s7 = inlined_call_operand.vmem [shape: f32[49,208], index: 7, kind: input, shape index: {}]
  %s8 = inlined_call_operand.vmem [shape: f32[49,208], index: 8, kind: input, shape index: {}]
  %s9 = inlined_call_operand.vmem [shape: f32[1,49,256], index: 9, kind: output, shape index: {}]
  %s10 = sld [smem:[#allocation0]]
  $region46: #{multicnn_forward.2} parent=0
    _
  %s12 = ssub.s32 1, %s10
  %s13 = scalar_select 0, %s12, %s10
  // Predicated region
  $region2: #{multicnn_forward.2} parent=0 // pred_check
    _
  $region3: #{multicnn_forward.2} parent=0 // pred_check_branch
    %15 = sbr.rel (0) target = $region5
  $region4: #{multicnn_forward.2} parent=0 // pred_region
    _
  $region5: #{multicnn_forward.2} parent=0 // pred_fallthru
    _
  // Predicated region
  $region6: #{multicnn_forward.2} parent=0 // pred_check
    _
  $region7: #{multicnn_forward.2} parent=0 // pred_check_branch
    %17 = sbr.rel (0) target = $region9
  $region8: #{multicnn_forward.2} parent=0 // pred_region
    _
  $region9: #{multicnn_forward.2} parent=0 // pred_fallthru
    _
  // Predicated region
  $region10: #{multicnn_forward.2} parent=0 // pred_check
    _
  $region11: #{multicnn_forward.2} parent=0 // pred_check_branch
    %19 = sbr.rel (0) target = $region13
  $region12: #{multicnn_forward.2} parent=0 // pred_region
    _
  $region13: #{multicnn_forward.2} parent=0 // pred_fallthru
    _
  // Predicated region
  $region14: #{multicnn_forward.2} parent=0 // pred_check
    _
  $region15: #{multicnn_forward.2} parent=0 // pred_check_branch
    %21 = sbr.rel (0) target = $region17
  $region16: #{multicnn_forward.2} parent=0 // pred_region
    _
  $region17: #{multicnn_forward.2} parent=0 // pred_fallthru
    _
  // Predicated region
  $region18: #{multicnn_forward.2} parent=0 // pred_check
    _
  $region19: #{multicnn_forward.2} parent=0 // pred_check_branch
    %23 = sbr.rel (0) target = $region21
  $region20: #{multicnn_forward.2} parent=0 // pred_region
    _
  $region21: #{multicnn_forward.2} parent=0 // pred_fallthru
    _
  // Predicated region
  $region22: #{multicnn_forward.2} parent=0 // pred_check
    _
  $region23: #{multicnn_forward.2} parent=0 // pred_check_branch
    %25 = sbr.rel (0) target = $region25
  $region24: #{multicnn_forward.2} parent=0 // pred_region
    _
  $region25: #{multicnn_forward.2} parent=0 // pred_fallthru
    _
  // Predicated region
  $region26: #{multicnn_forward.2} parent=0 // pred_check
    _
  $region27: #{multicnn_forward.2} parent=0 // pred_check_branch
    %27 = sbr.rel (0) target = $region29
  $region28: #{multicnn_forward.2} parent=0 // pred_region
    _
  $region29: #{multicnn_forward.2} parent=0 // pred_fallthru
    _
  // Predicated region
  $region30: #{multicnn_forward.2} parent=0 // pred_check
    _
  $region31: #{multicnn_forward.2} parent=0 // pred_check_branch
    %29 = sbr.rel (0) target = $region33
  $region32: #{multicnn_forward.2} parent=0 // pred_region
    _
  $region33: #{multicnn_forward.2} parent=0 // pred_fallthru
    _
  // Predicated region
  $region34: #{multicnn_forward.2} parent=0 // pred_check
    _
  $region35: #{multicnn_forward.2} parent=0 // pred_check_branch
    %31 = sbr.rel (0) target = $region37
  $region36: #{multicnn_forward.2} parent=0 // pred_region
    _
  $region37: #{multicnn_forward.2} parent=0 // pred_fallthru
    _
  %32 = vst [vmem:[#allocation2] sm:$0xff] 0.0
  %33 = vst [vmem:[#allocation2 + $0x8] sm:$0xff] 0.0
  %34 = vst [vmem:[#allocation2 + $0x10] sm:$0xff] 0.0
  %35 = vst [vmem:[#allocation2 + $0x18] sm:$0xff] 0.0
  %36 = vst [vmem:[#allocation2 + $0x20] sm:$0xff] 0.0
  %37 = vst [vmem:[#allocation2 + $0x28] sm:$0xff] 0.0
  %38 = vst [vmem:[#allocation2 + $0x30] sm:$0xff] 0.0
  %39 = vst [vmem:[#allocation2 + $0x38] sm:$0xff] 0.0
  %40 = vst [vmem:[#allocation2 + $0x40] sm:$0xff] 0.0
  %41 = vst [vmem:[#allocation2 + $0x48] sm:$0xff] 0.0
  %42 = vst [vmem:[#allocation2 + $0x50] sm:$0xff] 0.0
  %43 = vst [vmem:[#allocation2 + $0x58] sm:$0xff] 0.0
  %44 = vst [vmem:[#allocation2 + $0x60] sm:$0xff] 0.0
  %45 = vst [vmem:[#allocation2 + $0x68] sm:$0xff] 0.0
  %46 = vst [vmem:[#allocation2 + $0x70] sm:$0xff] 0.0
  %47 = vst [vmem:[#allocation2 + $0x78] sm:$0xff] 0.0
  %48 = vst [vmem:[#allocation2 + $0x80] sm:$0xff] 0.0
  %49 = vst [vmem:[#allocation2 + $0x88] sm:$0xff] 0.0
  %50 = vst [vmem:[#allocation2 + $0x90] sm:$0xff] 0.0
  %51 = vst [vmem:[#allocation2 + $0x98] sm:$0xff] 0.0
  %52 = vst [vmem:[#allocation2 + $0xa0] sm:$0xff] 0.0
  %53 = vst [vmem:[#allocation2 + $0xa8] sm:$0xff] 0.0
  %54 = vst [vmem:[#allocation2 + $0xb0] sm:$0xff] 0.0
  %55 = vst [vmem:[#allocation2 + $0xb8] sm:$0xff] 0.0
  %56 = vst [vmem:[#allocation2 + $0xc0] sm:$0xff] 0.0
  %57 = vst [vmem:[#allocation2 + $0xc8] sm:$0xff] 0.0
  %58 = vst [vmem:[#allocation2 + $0xd0] sm:$0xff] 0.0
  %59 = vst [vmem:[#allocation2 + $0xd8] sm:$0xff] 0.0
  %60 = vst [vmem:[#allocation2 + $0xe0] sm:$0xff] 0.0
  %61 = vst [vmem:[#allocation2 + $0xe8] sm:$0xff] 0.0
  %62 = vst [vmem:[#allocation2 + $0xf0] sm:$0xff] 0.0
  %63 = vst [vmem:[#allocation2 + $0xf8] sm:$0xff] 0.0
  %64 = vst [vmem:[#allocation2 + $0x100] sm:$0x3] 0.0
  %v65 = vld [vmem:[%s1] sm:$0xff]
  %v66 = vld [vmem:[%s1 + $0x8] sm:$0x1]
  %v67 = vld [vmem:[%s2] sm:$0x1]
  %v68 = vld [vmem:[%s5] sm:$0xff]
  %v69 = vld [vmem:[%s5 + $0x8] sm:$0xff]
  %v70 = vld [vmem:[%s5 + $0x10] sm:$0xff]
  %v71 = vld [vmem:[%s5 + $0x18] sm:$0xff]
  %v72 = vld [vmem:[%s6] sm:$0xff]
  %v73 = vld [vmem:[%s6 + $0x8] sm:$0xff]
  %v74 = vld [vmem:[%s6 + $0x10] sm:$0xff]
  %v75 = vld [vmem:[%s6 + $0x18] sm:$0xff]
  %v76 = vld [vmem:[%s0] sm:$0xff]
  %v77 = vld [vmem:[%s0 + $0x8] sm:$0xff]
  %v78 = vld [vmem:[%s0 + $0x10] sm:$0xff]
  %v79 = vld [vmem:[%s0 + $0x18] sm:$0xff]
  %v80 = vld [vmem:[%s0 + $0x20] sm:$0xff]
  %v81 = vld [vmem:[%s0 + $0x28] sm:$0xff]
  %v82 = vld [vmem:[%s0 + $0x30] sm:$0xff]
  %v83 = vld [vmem:[%s0 + $0x38] sm:$0xff]
  %v84 = vld [vmem:[%s0 + $0x40] sm:$0xff]
  %v85 = vld [vmem:[%s0 + $0x48] sm:$0xff]
  %v86 = vld [vmem:[%s0 + $0x50] sm:$0xff]
  %v87 = vld [vmem:[%s0 + $0x58] sm:$0xff]
  %v88 = vld [vmem:[%s0 + $0x60] sm:$0xff]
  %v89 = vld [vmem:[%s0 + $0x68] sm:$0xff]
  %v90 = vld [vmem:[%s0 + $0x70] sm:$0xff]
  %v91 = vld [vmem:[%s0 + $0x78] sm:$0xff]
  %v92 = vlaneseq
  %v93 = vshrl.u32 %v92, 7
  %v94 = vsub.s32 0, %v93
  %v95 = vrot.slane %v65, %v94
  %v96 = vmul.f32 %v76, %v95
  %v97 = vmul.f32 %v77, %v95
  %v98 = vmul.f32 %v78, %v95
  %v99 = vmul.f32 %v79, %v95
  %v100 = vmul.f32 %v80, %v95
  %v101 = vmul.f32 %v81, %v95
  %v102 = vmul.f32 %v82, %v95
  %v103 = vmul.f32 %v83, %v95
  %v104 = vmul.f32 %v84, %v95
  %v105 = vmul.f32 %v85, %v95
  %v106 = vmul.f32 %v86, %v95
  %v107 = vmul.f32 %v87, %v95
  %v108 = vmul.f32 %v88, %v95
  %v109 = vmul.f32 %v89, %v95
  %v110 = vmul.f32 %v90, %v95
  %v111 = vmul.f32 %v91, %v95
  %v112 = vadd.f32 %v96, 0.0
  %v113 = vadd.f32 %v97, 0.0
  %v114 = vadd.f32 %v98, 0.0
  %v115 = vadd.f32 %v99, 0.0
  %v116 = vadd.f32 %v100, 0.0
  %v117 = vadd.f32 %v101, 0.0
  %v118 = vadd.f32 %v102, 0.0
  %v119 = vadd.f32 %v103, 0.0
  %v120 = vadd.f32 %v104, 0.0
  %v121 = vadd.f32 %v105, 0.0
  %v122 = vadd.f32 %v106, 0.0
  %v123 = vadd.f32 %v107, 0.0
  %v124 = vadd.f32 %v108, 0.0
  %v125 = vadd.f32 %v109, 0.0
  %v126 = vadd.f32 %v110, 0.0
  %v127 = vadd.f32 %v111, 0.0
  %v128 = vld [vmem:[%s0 + $0x1] sm:$0xff]
  %v129 = vld [vmem:[%s0 + $0x9] sm:$0xff]
  %v130 = vld [vmem:[%s0 + $0x11] sm:$0xff]
  %v131 = vld [vmem:[%s0 + $0x19] sm:$0xff]
  %v132 = vld [vmem:[%s0 + $0x21] sm:$0xff]
  %v133 = vld [vmem:[%s0 + $0x29] sm:$0xff]
  %v134 = vld [vmem:[%s0 + $0x31] sm:$0xff]
  %v135 = vld [vmem:[%s0 + $0x39] sm:$0xff]
  %v136 = vld [vmem:[%s0 + $0x41] sm:$0xff]
  %v137 = vld [vmem:[%s0 + $0x49] sm:$0xff]
  %v138 = vld [vmem:[%s0 + $0x51] sm:$0xff]
  %v139 = vld [vmem:[%s0 + $0x59] sm:$0xff]
  %v140 = vld [vmem:[%s0 + $0x61] sm:$0xff]
  %v141 = vld [vmem:[%s0 + $0x69] sm:$0xff]
  %v142 = vld [vmem:[%s0 + $0x71] sm:$0xff]
  %v143 = vld [vmem:[%s0 + $0x79] sm:$0xff]
  %v144 = vlaneseq
  %v145 = vshrl.u32 %v144, 7
  %v146 = vsub.s32 1, %v145
  %v147 = vrot.slane %v65, %v146
  %v148 = vmul.f32 %v128, %v147
  %v149 = vmul.f32 %v129, %v147
  %v150 = vmul.f32 %v130, %v147
  %v151 = vmul.f32 %v131, %v147
  %v152 = vmul.f32 %v132, %v147
  %v153 = vmul.f32 %v133, %v147
  %v154 = vmul.f32 %v134, %v147
  %v155 = vmul.f32 %v135, %v147
  %v156 = vmul.f32 %v136, %v147
  %v157 = vmul.f32 %v137, %v147
  %v158 = vmul.f32 %v138, %v147
  %v159 = vmul.f32 %v139, %v147
  %v160 = vmul.f32 %v140, %v147
  %v161 = vmul.f32 %v141, %v147
  %v162 = vmul.f32 %v142, %v147
  %v163 = vmul.f32 %v143, %v147
  %v164 = vadd.f32 %v112, %v148
  %v165 = vadd.f32 %v113, %v149
  %v166 = vadd.f32 %v114, %v150
  %v167 = vadd.f32 %v115, %v151
  %v168 = vadd.f32 %v116, %v152
  %v169 = vadd.f32 %v117, %v153
  %v170 = vadd.f32 %v118, %v154
  %v171 = vadd.f32 %v119, %v155
  %v172 = vadd.f32 %v120, %v156
  %v173 = vadd.f32 %v121, %v157
  %v174 = vadd.f32 %v122, %v158
  %v175 = vadd.f32 %v123, %v159
  %v176 = vadd.f32 %v124, %v160
  %v177 = vadd.f32 %v125, %v161
  %v178 = vadd.f32 %v126, %v162
  %v179 = vadd.f32 %v127, %v163
  %v180 = vld [vmem:[%s0 + $0x2] sm:$0xff]
  %v181 = vld [vmem:[%s0 + $0xa] sm:$0xff]
  %v182 = vld [vmem:[%s0 + $0x12] sm:$0xff]
  %v183 = vld [vmem:[%s0 + $0x1a] sm:$0xff]
  %v184 = vld [vmem:[%s0 + $0x22] sm:$0xff]
  %v185 = vld [vmem:[%s0 + $0x2a] sm:$0xff]
  %v186 = vld [vmem:[%s0 + $0x32] sm:$0xff]
  %v187 = vld [vmem:[%s0 + $0x3a] sm:$0xff]
  %v188 = vld [vmem:[%s0 + $0x42] sm:$0xff]
  %v189 = vld [vmem:[%s0 + $0x4a] sm:$0xff]
  %v190 = vld [vmem:[%s0 + $0x52] sm:$0xff]
  %v191 = vld [vmem:[%s0 + $0x5a] sm:$0xff]
  %v192 = vld [vmem:[%s0 + $0x62] sm:$0xff]
  %v193 = vld [vmem:[%s0 + $0x6a] sm:$0xff]
  %v194 = vld [vmem:[%s0 + $0x72] sm:$0xff]
  %v195 = vld [vmem:[%s0 + $0x7a] sm:$0xff]
  %v196 = vlaneseq
  %v197 = vshrl.u32 %v196, 7
  %v198 = vsub.s32 2, %v197
  %v199 = vrot.slane %v65, %v198
  %v200 = vmul.f32 %v180, %v199
  %v201 = vmul.f32 %v181, %v199
  %v202 = vmul.f32 %v182, %v199
  %v203 = vmul.f32 %v183, %v199
  %v204 = vmul.f32 %v184, %v199
  %v205 = vmul.f32 %v185, %v199
  %v206 = vmul.f32 %v186, %v199
  %v207 = vmul.f32 %v187, %v199
  %v208 = vmul.f32 %v188, %v199
  %v209 = vmul.f32 %v189, %v199
  %v210 = vmul.f32 %v190, %v199
  %v211 = vmul.f32 %v191, %v199
  %v212 = vmul.f32 %v192, %v199
  %v213 = vmul.f32 %v193, %v199
  %v214 = vmul.f32 %v194, %v199
  %v215 = vmul.f32 %v195, %v199
  %v216 = vadd.f32 %v164, %v200
  %v217 = vadd.f32 %v165, %v201
  %v218 = vadd.f32 %v166, %v202
  %v219 = vadd.f32 %v167, %v203
  %v220 = vadd.f32 %v168, %v204
  %v221 = vadd.f32 %v169, %v205
  %v222 = vadd.f32 %v170, %v206
  %v223 = vadd.f32 %v171, %v207
  %v224 = vadd.f32 %v172, %v208
  %v225 = vadd.f32 %v173, %v209
  %v226 = vadd.f32 %v174, %v210
  %v227 = vadd.f32 %v175, %v211
  %v228 = vadd.f32 %v176, %v212
  %v229 = vadd.f32 %v177, %v213
  %v230 = vadd.f32 %v178, %v214
  %v231 = vadd.f32 %v179, %v215
  %v232 = vld [vmem:[%s0 + $0x80] sm:$0xff]
  %v233 = vld [vmem:[%s0 + $0x88] sm:$0xff]
  %v234 = vld [vmem:[%s0 + $0x90] sm:$0xff]
  %v235 = vld [vmem:[%s0 + $0x98] sm:$0xff]
  %v236 = vlaneseq
  %v237 = vshrl.u32 %v236, 7
  %v238 = vsub.s32 3, %v237
  %v239 = vrot.slane %v65, %v238
  %v240 = vmul.f32 %v80, %v239
  %v241 = vmul.f32 %v81, %v239
  %v242 = vmul.f32 %v82, %v239
  %v243 = vmul.f32 %v83, %v239
  %v244 = vmul.f32 %v84, %v239
  %v245 = vmul.f32 %v85, %v239
  %v246 = vmul.f32 %v86, %v239
  %v247 = vmul.f32 %v87, %v239
  %v248 = vmul.f32 %v88, %v239
  %v249 = vmul.f32 %v89, %v239
  %v250 = vmul.f32 %v90, %v239
  %v251 = vmul.f32 %v91, %v239
  %v252 = vmul.f32 %v232, %v239
  %v253 = vmul.f32 %v233, %v239
  %v254 = vmul.f32 %v234, %v239
  %v255 = vmul.f32 %v235, %v239
  %v256 = vadd.f32 %v216, %v240
  %v257 = vadd.f32 %v217, %v241
  %v258 = vadd.f32 %v218, %v242
  %v259 = vadd.f32 %v219, %v243
  %v260 = vadd.f32 %v220, %v244
  %v261 = vadd.f32 %v221, %v245
  %v262 = vadd.f32 %v222, %v246
  %v263 = vadd.f32 %v223, %v247
  %v264 = vadd.f32 %v224, %v248
  %v265 = vadd.f32 %v225, %v249
  %v266 = vadd.f32 %v226, %v250
  %v267 = vadd.f32 %v227, %v251
  %v268 = vadd.f32 %v228, %v252
  %v269 = vadd.f32 %v229, %v253
  %v270 = vadd.f32 %v230, %v254
  %v271 = vadd.f32 %v231, %v255
  %v272 = vld [vmem:[%s0 + $0x81] sm:$0xff]
  %v273 = vld [vmem:[%s0 + $0x89] sm:$0xff]
  %v274 = vld [vmem:[%s0 + $0x91] sm:$0xff]
  %v275 = vld [vmem:[%s0 + $0x99] sm:$0xff]
  %v276 = vlaneseq
  %v277 = vshrl.u32 %v276, 7
  %v278 = vsub.s32 4, %v277
  %v279 = vrot.slane %v65, %v278
  %v280 = vmul.f32 %v132, %v279
  %v281 = vmul.f32 %v133, %v279
  %v282 = vmul.f32 %v134, %v279
  %v283 = vmul.f32 %v135, %v279
  %v284 = vmul.f32 %v136, %v279
  %v285 = vmul.f32 %v137, %v279
  %v286 = vmul.f32 %v138, %v279
  %v287 = vmul.f32 %v139, %v279
  %v288 = vmul.f32 %v140, %v279
  %v289 = vmul.f32 %v141, %v279
  %v290 = vmul.f32 %v142, %v279
  %v291 = vmul.f32 %v143, %v279
  %v292 = vmul.f32 %v272, %v279
  %v293 = vmul.f32 %v273, %v279
  %v294 = vmul.f32 %v274, %v279
  %v295 = vmul.f32 %v275, %v279
  %v296 = vadd.f32 %v256, %v280
  %v297 = vadd.f32 %v257, %v281
  %v298 = vadd.f32 %v258, %v282
  %v299 = vadd.f32 %v259, %v283
  %v300 = vadd.f32 %v260, %v284
  %v301 = vadd.f32 %v261, %v285
  %v302 = vadd.f32 %v262, %v286
  %v303 = vadd.f32 %v263, %v287
  %v304 = vadd.f32 %v264, %v288
  %v305 = vadd.f32 %v265, %v289
  %v306 = vadd.f32 %v266, %v290
  %v307 = vadd.f32 %v267, %v291
  %v308 = vadd.f32 %v268, %v292
  %v309 = vadd.f32 %v269, %v293
  %v310 = vadd.f32 %v270, %v294
  %v311 = vadd.f32 %v271, %v295
  %v312 = vld [vmem:[%s0 + $0x82] sm:$0xff]
  %v313 = vld [vmem:[%s0 + $0x8a] sm:$0xff]
  %v314 = vld [vmem:[%s0 + $0x92] sm:$0xff]
  %v315 = vld [vmem:[%s0 + $0x9a] sm:$0xff]
  %v316 = vlaneseq
  %v317 = vshrl.u32 %v316, 7
  %v318 = vsub.s32 5, %v317
  %v319 = vrot.slane %v65, %v318
  %v320 = vmul.f32 %v184, %v319
  %v321 = vmul.f32 %v185, %v319
  %v322 = vmul.f32 %v186, %v319
  %v323 = vmul.f32 %v187, %v319
  %v324 = vmul.f32 %v188, %v319
  %v325 = vmul.f32 %v189, %v319
  %v326 = vmul.f32 %v190, %v319
  %v327 = vmul.f32 %v191, %v319
  %v328 = vmul.f32 %v192, %v319
  %v329 = vmul.f32 %v193, %v319
  %v330 = vmul.f32 %v194, %v319
  %v331 = vmul.f32 %v195, %v319
  %v332 = vmul.f32 %v312, %v319
  %v333 = vmul.f32 %v313, %v319
  %v334 = vmul.f32 %v314, %v319
  %v335 = vmul.f32 %v315, %v319
  %v336 = vadd.f32 %v296, %v320
  %v337 = vadd.f32 %v297, %v321
  %v338 = vadd.f32 %v298, %v322
  %v339 = vadd.f32 %v299, %v323
  %v340 = vadd.f32 %v300, %v324
  %v341 = vadd.f32 %v301, %v325
  %v342 = vadd.f32 %v302, %v326
  %v343 = vadd.f32 %v303, %v327
  %v344 = vadd.f32 %v304, %v328
  %v345 = vadd.f32 %v305, %v329
  %v346 = vadd.f32 %v306, %v330
  %v347 = vadd.f32 %v307, %v331
  %v348 = vadd.f32 %v308, %v332
  %v349 = vadd.f32 %v309, %v333
  %v350 = vadd.f32 %v310, %v334
  %v351 = vadd.f32 %v311, %v335
  %v352 = vld [vmem:[%s0 + $0xa0] sm:$0xff]
  %v353 = vld [vmem:[%s0 + $0xa8] sm:$0xff]
  %v354 = vld [vmem:[%s0 + $0xb0] sm:$0xff]
  %v355 = vld [vmem:[%s0 + $0xb8] sm:$0xff]
  %v356 = vlaneseq
  %v357 = vshrl.u32 %v356, 7
  %v358 = vsub.s32 6, %v357
  %v359 = vrot.slane %v65, %v358
  %v360 = vmul.f32 %v84, %v359
  %v361 = vmul.f32 %v85, %v359
  %v362 = vmul.f32 %v86, %v359
  %v363 = vmul.f32 %v87, %v359
  %v364 = vmul.f32 %v88, %v359
  %v365 = vmul.f32 %v89, %v359
  %v366 = vmul.f32 %v90, %v359
  %v367 = vmul.f32 %v91, %v359
  %v368 = vmul.f32 %v232, %v359
  %v369 = vmul.f32 %v233, %v359
  %v370 = vmul.f32 %v234, %v359
  %v371 = vmul.f32 %v235, %v359
  %v372 = vmul.f32 %v352, %v359
  %v373 = vmul.f32 %v353, %v359
  %v374 = vmul.f32 %v354, %v359
  %v375 = vmul.f32 %v355, %v359
  %v376 = vadd.f32 %v336, %v360
  %v377 = vadd.f32 %v337, %v361
  %v378 = vadd.f32 %v338, %v362
  %v379 = vadd.f32 %v339, %v363
  %v380 = vadd.f32 %v340, %v364
  %v381 = vadd.f32 %v341, %v365
  %v382 = vadd.f32 %v342, %v366
  %v383 = vadd.f32 %v343, %v367
  %v384 = vadd.f32 %v344, %v368
  %v385 = vadd.f32 %v345, %v369
  %v386 = vadd.f32 %v346, %v370
  %v387 = vadd.f32 %v347, %v371
  %v388 = vadd.f32 %v348, %v372
  %v389 = vadd.f32 %v349, %v373
  %v390 = vadd.f32 %v350, %v374
  %v391 = vadd.f32 %v351, %v375
  %v392 = vld [vmem:[%s0 + $0xa1] sm:$0xff]
  %v393 = vld [vmem:[%s0 + $0xa9] sm:$0xff]
  %v394 = vld [vmem:[%s0 + $0xb1] sm:$0xff]
  %v395 = vld [vmem:[%s0 + $0xb9] sm:$0xff]
  %v396 = vlaneseq
  %v397 = vshrl.u32 %v396, 7
  %v398 = vsub.s32 7, %v397
  %v399 = vrot.slane %v65, %v398
  %v400 = vmul.f32 %v136, %v399
  %v401 = vmul.f32 %v137, %v399
  %v402 = vmul.f32 %v138, %v399
  %v403 = vmul.f32 %v139, %v399
  %v404 = vmul.f32 %v140, %v399
  %v405 = vmul.f32 %v141, %v399
  %v406 = vmul.f32 %v142, %v399
  %v407 = vmul.f32 %v143, %v399
  %v408 = vmul.f32 %v272, %v399
  %v409 = vmul.f32 %v273, %v399
  %v410 = vmul.f32 %v274, %v399
  %v411 = vmul.f32 %v275, %v399
  %v412 = vmul.f32 %v392, %v399
  %v413 = vmul.f32 %v393, %v399
  %v414 = vmul.f32 %v394, %v399
  %v415 = vmul.f32 %v395, %v399
  %v416 = vadd.f32 %v376, %v400
  %v417 = vadd.f32 %v377, %v401
  %v418 = vadd.f32 %v378, %v402
  %v419 = vadd.f32 %v379, %v403
  %v420 = vadd.f32 %v380, %v404
  %v421 = vadd.f32 %v381, %v405
  %v422 = vadd.f32 %v382, %v406
  %v423 = vadd.f32 %v383, %v407
  %v424 = vadd.f32 %v384, %v408
  %v425 = vadd.f32 %v385, %v409
  %v426 = vadd.f32 %v386, %v410
  %v427 = vadd.f32 %v387, %v411
  %v428 = vadd.f32 %v388, %v412
  %v429 = vadd.f32 %v389, %v413
  %v430 = vadd.f32 %v390, %v414
  %v431 = vadd.f32 %v391, %v415
  %v432 = vld [vmem:[%s0 + $0xa2] sm:$0xff]
  %v433 = vld [vmem:[%s0 + $0xaa] sm:$0xff]
  %v434 = vld [vmem:[%s0 + $0xb2] sm:$0xff]
  %v435 = vld [vmem:[%s0 + $0xba] sm:$0xff]
  %v436 = vlaneseq
  %v437 = vshrl.u32 %v436, 7
  %v438 = vsub.s32 0, %v437
  %v439 = vrot.slane %v66, %v438
  %v440 = vmul.f32 %v188, %v439
  %v441 = vmul.f32 %v189, %v439
  %v442 = vmul.f32 %v190, %v439
  %v443 = vmul.f32 %v191, %v439
  %v444 = vmul.f32 %v192, %v439
  %v445 = vmul.f32 %v193, %v439
  %v446 = vmul.f32 %v194, %v439
  %v447 = vmul.f32 %v195, %v439
  %v448 = vmul.f32 %v312, %v439
  %v449 = vmul.f32 %v313, %v439
  %v450 = vmul.f32 %v314, %v439
  %v451 = vmul.f32 %v315, %v439
  %v452 = vmul.f32 %v432, %v439
  %v453 = vmul.f32 %v433, %v439
  %v454 = vmul.f32 %v434, %v439
  %v455 = vmul.f32 %v435, %v439
  %v456 = vadd.f32 %v416, %v440
  %v457 = vadd.f32 %v417, %v441
  %v458 = vadd.f32 %v418, %v442
  %v459 = vadd.f32 %v419, %v443
  %v460 = vadd.f32 %v420, %v444
  %v461 = vadd.f32 %v421, %v445
  %v462 = vadd.f32 %v422, %v446
  %v463 = vadd.f32 %v423, %v447
  %v464 = vadd.f32 %v424, %v448
  %v465 = vadd.f32 %v425, %v449
  %v466 = vadd.f32 %v426, %v450
  %v467 = vadd.f32 %v427, %v451
  %v468 = vadd.f32 %v428, %v452
  %v469 = vadd.f32 %v429, %v453
  %v470 = vadd.f32 %v430, %v454
  %v471 = vadd.f32 %v431, %v455
  %v473 = vlaneseq
  %v474 = vshrl.u32 %v473, 7
  %v475 = vsub.s32 0, %v474
  %v476 = vrot.slane %v67, %v475
  %v478 = vadd.f32 %v456, %v476
  %v479 = vadd.f32 %v457, %v476
  %v480 = vadd.f32 %v458, %v476
  %v481 = vadd.f32 %v459, %v476
  %v482 = vadd.f32 %v460, %v476
  %v483 = vadd.f32 %v461, %v476
  %v484 = vadd.f32 %v462, %v476
  %v485 = vadd.f32 %v463, %v476
  %v486 = vadd.f32 %v464, %v476
  %v487 = vadd.f32 %v465, %v476
  %v488 = vadd.f32 %v466, %v476
  %v489 = vadd.f32 %v467, %v476
  %v490 = vadd.f32 %v468, %v476
  %v491 = vadd.f32 %v469, %v476
  %v492 = vadd.f32 %v470, %v476
  %v493 = vadd.f32 %v471, %v476
  %v494 = vmax.f32 %v478, 0.0
  %v495 = vmax.f32 %v479, 0.0
  %v496 = vmax.f32 %v480, 0.0
  %v497 = vmax.f32 %v481, 0.0
  %v498 = vmax.f32 %v482, 0.0
  %v499 = vmax.f32 %v483, 0.0
  %v500 = vmax.f32 %v484, 0.0
  %v501 = vmax.f32 %v485, 0.0
  %v502 = vmax.f32 %v486, 0.0
  %v503 = vmax.f32 %v487, 0.0
  %v504 = vmax.f32 %v488, 0.0
  %v505 = vmax.f32 %v489, 0.0
  %v506 = vmax.f32 %v490, 0.0
  %v507 = vmax.f32 %v491, 0.0
  %v508 = vmax.f32 %v492, 0.0
  %v509 = vmax.f32 %v493, 0.0
  %v510 = vmax.f32 %v494, %v498
  %v511 = vmax.f32 %v495, %v499
  %v512 = vmax.f32 %v496, %v500
  %v513 = vmax.f32 %v497, %v501
  %v514 = vmax.f32 %v498, %v502
  %v515 = vmax.f32 %v499, %v503
  %v516 = vmax.f32 %v500, %v504
  %v517 = vmax.f32 %v501, %v505
  %v518 = vmax.f32 %v502, %v506
  %v519 = vmax.f32 %v503, %v507
  %v520 = vmax.f32 %v504, %v508
  %v521 = vmax.f32 %v505, %v509
  %vm522 = vcmask 785408
  %v524 = vsel %vm522, %v68, 0
  %v527 = vsel %vm522, %v69, 0
  %v530 = vsel %vm522, %v70, 0
  %v533 = vsel %vm522, %v71, 0
  %535 = vmatprep.subr.mxu0 0.0
  %536 = vmatpush1.msra.mxu0 %v510
  %537 = vmatprep.subr.mxu0 0.0
  %538 = vmatpush1.msra.mxu0 %v511
  %539 = vmatprep.subr.mxu0 0.0
  %540 = vmatpush1.msra.mxu0 %v512
  %541 = vmatprep.subr.mxu0 0.0
  %542 = vmatpush1.msra.mxu0 %v513
  %543 = vmatprep.subr.mxu0 0.0
  %544 = vmatpush1.msra.mxu0 %v514
  %545 = vmatprep.subr.mxu0 0.0
  %546 = vmatpush1.msra.mxu0 %v515
  %547 = vmatprep.subr.mxu0 0.0
  %548 = vmatpush1.msra.mxu0 %v516
  %549 = vmatprep.subr.mxu0 0.0
  %550 = vmatpush1.msra.mxu0 %v517
  %551 = vmatprep.subr.mxu0 0.0
  %552 = vmatpush1.msra.mxu0 %v518
  %553 = vmatprep.subr.mxu0 0.0
  %554 = vmatpush1.msra.mxu0 %v519
  %555 = vmatprep.subr.mxu0 0.0
  %556 = vmatpush1.msra.mxu0 %v520
  %557 = vmatprep.subr.mxu0 0.0
  %558 = vmatpush1.msra.mxu0 %v521
  %559 = vmatprep.subr.mxu0 0.0
  %560 = vmatpush1.msra.mxu0 0.0
  %561 = vmatprep.subr.mxu0 0.0
  %562 = vmatpush1.msra.mxu0 0.0
  %563 = vmatprep.subr.mxu0 0.0
  %564 = vmatpush1.msra.mxu0 0.0
  %565 = vmatprep.subr.mxu0 0.0
  %566 = vmatpush1.msra.mxu0 0.0
  %567 = vmatprep.subr.mxu0 0.0
  %568 = vmatpush1.msra.mxu0 0.0
  %569 = vmatprep.subr.mxu0 0.0
  %570 = vmatpush1.msra.mxu0 0.0
  %571 = vmatprep.subr.mxu0 0.0
  %572 = vmatpush1.msra.mxu0 0.0
  %573 = vmatprep.subr.mxu0 0.0
  %574 = vmatpush1.msra.mxu0 0.0
  %575 = vmatprep.subr.mxu0 0.0
  %576 = vmatpush1.msra.mxu0 0.0
  %577 = vmatprep.subr.mxu0 0.0
  %578 = vmatpush1.msra.mxu0 0.0
  %579 = vmatprep.subr.mxu0 0.0
  %580 = vmatpush1.msra.mxu0 0.0
  %581 = vmatprep.subr.mxu0 0.0
  %582 = vmatpush1.msra.mxu0 0.0
  %583 = vmatprep.subr.mxu0 0.0
  %584 = vmatpush1.msra.mxu0 0.0
  %585 = vmatprep.subr.mxu0 0.0
  %586 = vmatpush1.msra.mxu0 0.0
  %587 = vmatprep.subr.mxu0 0.0
  %588 = vmatpush1.msra.mxu0 0.0
  %589 = vmatprep.subr.mxu0 0.0
  %590 = vmatpush1.msra.mxu0 0.0
  %591 = vmatprep.subr.mxu0 0.0
  %592 = vmatpush1.msra.mxu0 0.0
  %593 = vmatprep.subr.mxu0 0.0
  %594 = vmatpush1.msra.mxu0 0.0
  %595 = vmatprep.subr.mxu0 0.0
  %596 = vmatpush1.msra.mxu0 0.0
  %597 = vmatprep.subr.mxu0 0.0
  %598 = vmatpush1.msra.mxu0 0.0
  %599 = vmatprep.mubr.f32.mxu0 0.0
  %600 = vmatmul.mubr.f32.gmra.mrb[0].mxu0 %v524
  %v601 = vpop.f32.mrb[0].mxu0
  %v602 = vadd.f32 0.0, %v601
  %v603 = vpop.f32.mrb[0].mxu0
  %604 = vmatprep.mubr.f32.mxu0 0.0
  %605 = vmatmul.mubr.f32.gmra.mrb[0].mxu0 %v527
  %v606 = vpop.f32.mrb[0].mxu0
  %v607 = vadd.f32 0.0, %v606
  %v608 = vpop.f32.mrb[0].mxu0
  %609 = vmatprep.mubr.f32.mxu0 0.0
  %610 = vmatmul.mubr.f32.gmra.mrb[0].mxu0 %v530
  %v611 = vpop.f32.mrb[0].mxu0
  %v612 = vadd.f32 0.0, %v611
  %v613 = vpop.f32.mrb[0].mxu0
  %614 = vmatprep.mubr.f32.mxu0 0.0
  %615 = vmatmul.mubr.f32.gmra.mrb[0].mxu0 %v533
  %v616 = vpop.f32.mrb[0].mxu0
  %v617 = vadd.f32 0.0, %v616
  %v618 = vpop.f32.mrb[0].mxu0
  %619 = vdwg.mxu0
  %v621 = vsel %vm522, %v72, 0
  %v624 = vsel %vm522, %v73, 0
  %v627 = vsel %vm522, %v74, 0
  %v630 = vsel %vm522, %v75, 0
  %632 = vmatprep.subr.mxu0 0.0
  %633 = vmatpush1.msra.mxu0 %v510
  %634 = vmatprep.subr.mxu0 0.0
  %635 = vmatpush1.msra.mxu0 %v511
  %636 = vmatprep.subr.mxu0 0.0
  %637 = vmatpush1.msra.mxu0 %v512
  %638 = vmatprep.subr.mxu0 0.0
  %639 = vmatpush1.msra.mxu0 %v513
  %640 = vmatprep.subr.mxu0 0.0
  %641 = vmatpush1.msra.mxu0 %v514
  %642 = vmatprep.subr.mxu0 0.0
  %643 = vmatpush1.msra.mxu0 %v515
  %644 = vmatprep.subr.mxu0 0.0
  %645 = vmatpush1.msra.mxu0 %v516
  %646 = vmatprep.subr.mxu0 0.0
  %647 = vmatpush1.msra.mxu0 %v517
  %648 = vmatprep.subr.mxu0 0.0
  %649 = vmatpush1.msra.mxu0 %v518
  %650 = vmatprep.subr.mxu0 0.0
  %651 = vmatpush1.msra.mxu0 %v519
  %652 = vmatprep.subr.mxu0 0.0
  %653 = vmatpush1.msra.mxu0 %v520
  %654 = vmatprep.subr.mxu0 0.0
  %655 = vmatpush1.msra.mxu0 %v521
  %656 = vmatprep.subr.mxu0 0.0
  %657 = vmatpush1.msra.mxu0 0.0
  %658 = vmatprep.subr.mxu0 0.0
  %659 = vmatpush1.msra.mxu0 0.0
  %660 = vmatprep.subr.mxu0 0.0
  %661 = vmatpush1.msra.mxu0 0.0
  %662 = vmatprep.subr.mxu0 0.0
  %663 = vmatpush1.msra.mxu0 0.0
  %664 = vmatprep.subr.mxu0 0.0
  %665 = vmatpush1.msra.mxu0 0.0
  %666 = vmatprep.subr.mxu0 0.0
  %667 = vmatpush1.msra.mxu0 0.0
  %668 = vmatprep.subr.mxu0 0.0
  %669 = vmatpush1.msra.mxu0 0.0
  %670 = vmatprep.subr.mxu0 0.0
  %671 = vmatpush1.msra.mxu0 0.0
  %672 = vmatprep.subr.mxu0 0.0
  %673 = vmatpush1.msra.mxu0 0.0
  %674 = vmatprep.subr.mxu0 0.0
  %675 = vmatpush1.msra.mxu0 0.0
  %676 = vmatprep.subr.mxu0 0.0
  %677 = vmatpush1.msra.mxu0 0.0
  %678 = vmatprep.subr.mxu0 0.0
  %679 = vmatpush1.msra.mxu0 0.0
  %680 = vmatprep.subr.mxu0 0.0
  %681 = vmatpush1.msra.mxu0 0.0
  %682 = vmatprep.subr.mxu0 0.0
  %683 = vmatpush1.msra.mxu0 0.0
  %684 = vmatprep.subr.mxu0 0.0
  %685 = vmatpush1.msra.mxu0 0.0
  %686 = vmatprep.subr.mxu0 0.0
  %687 = vmatpush1.msra.mxu0 0.0
  %688 = vmatprep.subr.mxu0 0.0
  %689 = vmatpush1.msra.mxu0 0.0
  %690 = vmatprep.subr.mxu0 0.0
  %691 = vmatpush1.msra.mxu0 0.0
  %692 = vmatprep.subr.mxu0 0.0
  %693 = vmatpush1.msra.mxu0 0.0
  %694 = vmatprep.subr.mxu0 0.0
  %695 = vmatpush1.msra.mxu0 0.0
  %696 = vmatprep.mubr.f32.mxu0 0.0
  %697 = vmatmul.mubr.f32.gmra.mrb[0].mxu0 %v621
  %v698 = vpop.f32.mrb[0].mxu0
  %v699 = vadd.f32 0.0, %v698
  %v700 = vpop.f32.mrb[0].mxu0
  %701 = vmatprep.mubr.f32.mxu0 0.0
  %702 = vmatmul.mubr.f32.gmra.mrb[0].mxu0 %v624
  %v703 = vpop.f32.mrb[0].mxu0
  %v704 = vadd.f32 0.0, %v703
  %v705 = vpop.f32.mrb[0].mxu0
  %706 = vmatprep.mubr.f32.mxu0 0.0
  %707 = vmatmul.mubr.f32.gmra.mrb[0].mxu0 %v627
  %v708 = vpop.f32.mrb[0].mxu0
  %v709 = vadd.f32 0.0, %v708
  %v710 = vpop.f32.mrb[0].mxu0
  %711 = vmatprep.mubr.f32.mxu0 0.0
  %712 = vmatmul.mubr.f32.gmra.mrb[0].mxu0 %v630
  %v713 = vpop.f32.mrb[0].mxu0
  %v714 = vadd.f32 0.0, %v713
  %v715 = vpop.f32.mrb[0].mxu0
  %716 = vdwg.mxu0
  %v717 = vmax.f32 %v602, %v699
  %v718 = vmax.f32 %v607, %v704
  %v719 = vmax.f32 %v612, %v709
  %v720 = vmax.f32 %v617, %v714
  %721 = vst [vmem:[#allocation2 + $0x10] sm:$0xff] %v717
  %722 = vst [vmem:[#allocation2 + $0x18] sm:$0xff] %v718
  %723 = vst [vmem:[#allocation2 + $0x20] sm:$0xff] %v719
  %724 = vst [vmem:[#allocation2 + $0x28] sm:$0xff] %v720
  %v725 = vld [vmem:[%s0 + $0x80] sm:$0xff]
  %v726 = vld [vmem:[%s0 + $0x88] sm:$0xff]
  %v727 = vld [vmem:[%s0 + $0x90] sm:$0xff]
  %v728 = vld [vmem:[%s0 + $0x98] sm:$0xff]
  %v729 = vld [vmem:[%s0 + $0xa0] sm:$0xff]
  %v730 = vld [vmem:[%s0 + $0xa8] sm:$0xff]
  %v731 = vld [vmem:[%s0 + $0xb0] sm:$0xff]
  %v732 = vld [vmem:[%s0 + $0xb8] sm:$0xff]
  %v733 = vld [vmem:[%s0 + $0xc0] sm:$0xff]
  %v734 = vld [vmem:[%s0 + $0xc8] sm:$0xff]
  %v735 = vld [vmem:[%s0 + $0xd0] sm:$0xff]
  %v736 = vld [vmem:[%s0 + $0xd8] sm:$0xff]
  %v737 = vld [vmem:[%s0 + $0xe0] sm:$0xff]
  %v738 = vld [vmem:[%s0 + $0xe8] sm:$0xff]
  %v739 = vld [vmem:[%s0 + $0xf0] sm:$0xff]
  %v740 = vld [vmem:[%s0 + $0xf8] sm:$0xff]
  %v741 = vmul.f32 %v725, %v95
  %v742 = vmul.f32 %v726, %v95
  %v743 = vmul.f32 %v727, %v95
  %v744 = vmul.f32 %v728, %v95
  %v745 = vmul.f32 %v729, %v95
  %v746 = vmul.f32 %v730, %v95
  %v747 = vmul.f32 %v731, %v95
  %v748 = vmul.f32 %v732, %v95
  %v749 = vmul.f32 %v733, %v95
  %v750 = vmul.f32 %v734, %v95
  %v751 = vmul.f32 %v735, %v95
  %v752 = vmul.f32 %v736, %v95
  %v753 = vmul.f32 %v737, %v95
  %v754 = vmul.f32 %v738, %v95
  %v755 = vmul.f32 %v739, %v95
  %v756 = vmul.f32 %v740, %v95
  %v757 = vadd.f32 %v741, 0.0
  %v758 = vadd.f32 %v742, 0.0
  %v759 = vadd.f32 %v743, 0.0
  %v760 = vadd.f32 %v744, 0.0
  %v761 = vadd.f32 %v745, 0.0
  %v762 = vadd.f32 %v746, 0.0
  %v763 = vadd.f32 %v747, 0.0
  %v764 = vadd.f32 %v748, 0.0
  %v765 = vadd.f32 %v749, 0.0
  %v766 = vadd.f32 %v750, 0.0
  %v767 = vadd.f32 %v751, 0.0
  %v768 = vadd.f32 %v752, 0.0
  %v769 = vadd.f32 %v753, 0.0
  %v770 = vadd.f32 %v754, 0.0
  %v771 = vadd.f32 %v755, 0.0
  %v772 = vadd.f32 %v756, 0.0
  %v773 = vld [vmem:[%s0 + $0x81] sm:$0xff]
  %v774 = vld [vmem:[%s0 + $0x89] sm:$0xff]
  %v775 = vld [vmem:[%s0 + $0x91] sm:$0xff]
  %v776 = vld [vmem:[%s0 + $0x99] sm:$0xff]
  %v777 = vld [vmem:[%s0 + $0xa1] sm:$0xff]
  %v778 = vld [vmem:[%s0 + $0xa9] sm:$0xff]
  %v779 = vld [vmem:[%s0 + $0xb1] sm:$0xff]
  %v780 = vld [vmem:[%s0 + $0xb9] sm:$0xff]
  %v781 = vld [vmem:[%s0 + $0xc1] sm:$0xff]
  %v782 = vld [vmem:[%s0 + $0xc9] sm:$0xff]
  %v783 = vld [vmem:[%s0 + $0xd1] sm:$0xff]
  %v784 = vld [vmem:[%s0 + $0xd9] sm:$0xff]
  %v785 = vld [vmem:[%s0 + $0xe1] sm:$0xff]
  %v786 = vld [vmem:[%s0 + $0xe9] sm:$0xff]
  %v787 = vld [vmem:[%s0 + $0xf1] sm:$0xff]
  %v788 = vld [vmem:[%s0 + $0xf9] sm:$0xff]
  %v789 = vmul.f32 %v773, %v147
  %v790 = vmul.f32 %v774, %v147
  %v791 = vmul.f32 %v775, %v147
  %v792 = vmul.f32 %v776, %v147
  %v793 = vmul.f32 %v777, %v147
  %v794 = vmul.f32 %v778, %v147
  %v795 = vmul.f32 %v779, %v147
  %v796 = vmul.f32 %v780, %v147
  %v797 = vmul.f32 %v781, %v147
  %v798 = vmul.f32 %v782, %v147
  %v799 = vmul.f32 %v783, %v147
  %v800 = vmul.f32 %v784, %v147
  %v801 = vmul.f32 %v785, %v147
  %v802 = vmul.f32 %v786, %v147
  %v803 = vmul.f32 %v787, %v147
  %v804 = vmul.f32 %v788, %v147
  %v805 = vadd.f32 %v757, %v789
  %v806 = vadd.f32 %v758, %v790
  %v807 = vadd.f32 %v759, %v791
  %v808 = vadd.f32 %v760, %v792
  %v809 = vadd.f32 %v761, %v793
  %v810 = vadd.f32 %v762, %v794
  %v811 = vadd.f32 %v763, %v795
  %v812 = vadd.f32 %v764, %v796
  %v813 = vadd.f32 %v765, %v797
  %v814 = vadd.f32 %v766, %v798
  %v815 = vadd.f32 %v767, %v799
  %v816 = vadd.f32 %v768, %v800
  %v817 = vadd.f32 %v769, %v801
  %v818 = vadd.f32 %v770, %v802
  %v819 = vadd.f32 %v771, %v803
  %v820 = vadd.f32 %v772, %v804
  %v821 = vld [vmem:[%s0 + $0x82] sm:$0xff]
  %v822 = vld [vmem:[%s0 + $0x8a] sm:$0xff]
  %v823 = vld [vmem:[%s0 + $0x92] sm:$0xff]
  %v824 = vld [vmem:[%s0 + $0x9a] sm:$0xff]
  %v825 = vld [vmem:[%s0 + $0xa2] sm:$0xff]
  %v826 = vld [vmem:[%s0 + $0xaa] sm:$0xff]
  %v827 = vld [vmem:[%s0 + $0xb2] sm:$0xff]
  %v828 = vld [vmem:[%s0 + $0xba] sm:$0xff]
  %v829 = vld [vmem:[%s0 + $0xc2] sm:$0xff]
  %v830 = vld [vmem:[%s0 + $0xca] sm:$0xff]
  %v831 = vld [vmem:[%s0 + $0xd2] sm:$0xff]
  %v832 = vld [vmem:[%s0 + $0xda] sm:$0xff]
  %v833 = vld [vmem:[%s0 + $0xe2] sm:$0xff]
  %v834 = vld [vmem:[%s0 + $0xea] sm:$0xff]
  %v835 = vld [vmem:[%s0 + $0xf2] sm:$0xff]
  %v836 = vld [vmem:[%s0 + $0xfa] sm:$0xff]
  %v837 = vmul.f32 %v821, %v199
  %v838 = vmul.f32 %v822, %v199
  %v839 = vmul.f32 %v823, %v199
  %v840 = vmul.f32 %v824, %v199
  %v841 = vmul.f32 %v825, %v199
  %v842 = vmul.f32 %v826, %v199
  %v843 = vmul.f32 %v827, %v199
  %v844 = vmul.f32 %v828, %v199
  %v845 = vmul.f32 %v829, %v199
  %v846 = vmul.f32 %v830, %v199
  %v847 = vmul.f32 %v831, %v199
  %v848 = vmul.f32 %v832, %v199
  %v849 = vmul.f32 %v833, %v199
  %v850 = vmul.f32 %v834, %v199
  %v851 = vmul.f32 %v835, %v199
  %v852 = vmul.f32 %v836, %v199
  %v853 = vadd.f32 %v805, %v837
  %v854 = vadd.f32 %v806, %v838
  %v855 = vadd.f32 %v807, %v839
  %v856 = vadd.f32 %v808, %v840
  %v857 = vadd.f32 %v809, %v841
  %v858 = vadd.f32 %v810, %v842
  %v859 = vadd.f32 %v811, %v843
  %v860 = vadd.f32 %v812, %v844
  %v861 = vadd.f32 %v813, %v845
  %v862 = vadd.f32 %v814, %v846
  %v863 = vadd.f32 %v815, %v847
  %v864 = vadd.f32 %v816, %v848
  %v865 = vadd.f32 %v817, %v849
  %v866 = vadd.f32 %v818, %v850
  %v867 = vadd.f32 %v819, %v851
  %v868 = vadd.f32 %v820, %v852
  %v869 = vld [vmem:[%s0 + $0x100] sm:$0xff]
  %v870 = vld [vmem:[%s0 + $0x108] sm:$0xff]
  %v871 = vld [vmem:[%s0 + $0x110] sm:$0xff]
  %v872 = vld [vmem:[%s0 + $0x118] sm:$0xff]
  %v873 = vmul.f32 %v729, %v239
  %v874 = vmul.f32 %v730, %v239
  %v875 = vmul.f32 %v731, %v239
  %v876 = vmul.f32 %v732, %v239
  %v877 = vmul.f32 %v733, %v239
  %v878 = vmul.f32 %v734, %v239
  %v879 = vmul.f32 %v735, %v239
  %v880 = vmul.f32 %v736, %v239
  %v881 = vmul.f32 %v737, %v239
  %v882 = vmul.f32 %v738, %v239
  %v883 = vmul.f32 %v739, %v239
  %v884 = vmul.f32 %v740, %v239
  %v885 = vmul.f32 %v869, %v239
  %v886 = vmul.f32 %v870, %v239
  %v887 = vmul.f32 %v871, %v239
  %v888 = vmul.f32 %v872, %v239
  %v889 = vadd.f32 %v853, %v873
  %v890 = vadd.f32 %v854, %v874
  %v891 = vadd.f32 %v855, %v875
  %v892 = vadd.f32 %v856, %v876
  %v893 = vadd.f32 %v857, %v877
  %v894 = vadd.f32 %v858, %v878
  %v895 = vadd.f32 %v859, %v879
  %v896 = vadd.f32 %v860, %v880
  %v897 = vadd.f32 %v861, %v881
  %v898 = vadd.f32 %v862, %v882
  %v899 = vadd.f32 %v863, %v883
  %v900 = vadd.f32 %v864, %v884
  %v901 = vadd.f32 %v865, %v885
  %v902 = vadd.f32 %v866, %v886
  %v903 = vadd.f32 %v867, %v887
  %v904 = vadd.f32 %v868, %v888
  %v905 = vld [vmem:[%s0 + $0x101] sm:$0xff]
  %v906 = vld [vmem:[%s0 + $0x109] sm:$0xff]
  %v907 = vld [vmem:[%s0 + $0x111] sm:$0xff]
  %v908 = vld [vmem:[%s0 + $0x119] sm:$0xff]
  %v909 = vmul.f32 %v777, %v279
  %v910 = vmul.f32 %v778, %v279
  %v911 = vmul.f32 %v779, %v279
  %v912 = vmul.f32 %v780, %v279
  %v913 = vmul.f32 %v781, %v279
  %v914 = vmul.f32 %v782, %v279
  %v915 = vmul.f32 %v783, %v279
  %v916 = vmul.f32 %v784, %v279
  %v917 = vmul.f32 %v785, %v279
  %v918 = vmul.f32 %v786, %v279
  %v919 = vmul.f32 %v787, %v279
  %v920 = vmul.f32 %v788, %v279
  %v921 = vmul.f32 %v905, %v279
  %v922 = vmul.f32 %v906, %v279
  %v923 = vmul.f32 %v907, %v279
  %v924 = vmul.f32 %v908, %v279
  %v925 = vadd.f32 %v889, %v909
  %v926 = vadd.f32 %v890, %v910
  %v927 = vadd.f32 %v891, %v911
  %v928 = vadd.f32 %v892, %v912
  %v929 = vadd.f32 %v893, %v913
  %v930 = vadd.f32 %v894, %v914
  %v931 = vadd.f32 %v895, %v915
  %v932 = vadd.f32 %v896, %v916
  %v933 = vadd.f32 %v897, %v917
  %v934 = vadd.f32 %v898, %v918
  %v935 = vadd.f32 %v899, %v919
  %v936 = vadd.f32 %v900, %v920
  %v937 = vadd.f32 %v901, %v921
  %v938 = vadd.f32 %v902, %v922
  %v939 = vadd.f32 %v903, %v923
  %v940 = vadd.f32 %v904, %v924
  %v941 = vld [vmem:[%s0 + $0x102] sm:$0xff]
  %v942 = vld [vmem:[%s0 + $0x10a] sm:$0xff]
  %v943 = vld [vmem:[%s0 + $0x112] sm:$0xff]
  %v944 = vld [vmem:[%s0 + $0x11a] sm:$0xff]
  %v945 = vmul.f32 %v825, %v319
  %v946 = vmul.f32 %v826, %v319
  %v947 = vmul.f32 %v827, %v319
  %v948 = vmul.f32 %v828, %v319
  %v949 = vmul.f32 %v829, %v319
  %v950 = vmul.f32 %v830, %v319
  %v951 = vmul.f32 %v831, %v319
  %v952 = vmul.f32 %v832, %v319
  %v953 = vmul.f32 %v833, %v319
  %v954 = vmul.f32 %v834, %v319
  %v955 = vmul.f32 %v835, %v319
  %v956 = vmul.f32 %v836, %v319
  %v957 = vmul.f32 %v941, %v319
  %v958 = vmul.f32 %v942, %v319
  %v959 = vmul.f32 %v943, %v319
  %v960 = vmul.f32 %v944, %v319
  %v961 = vadd.f32 %v925, %v945
  %v962 = vadd.f32 %v926, %v946
  %v963 = vadd.f32 %v927, %v947
  %v964 = vadd.f32 %v928, %v948
  %v965 = vadd.f32 %v929, %v949
  %v966 = vadd.f32 %v930, %v950
  %v967 = vadd.f32 %v931, %v951
  %v968 = vadd.f32 %v932, %v952
  %v969 = vadd.f32 %v933, %v953
  %v970 = vadd.f32 %v934, %v954
  %v971 = vadd.f32 %v935, %v955
  %v972 = vadd.f32 %v936, %v956
  %v973 = vadd.f32 %v937, %v957
  %v974 = vadd.f32 %v938, %v958
  %v975 = vadd.f32 %v939, %v959
  %v976 = vadd.f32 %v940, %v960
  %v977 = vld [vmem:[%s0 + $0x120] sm:$0xff]
  %v978 = vld [vmem:[%s0 + $0x128] sm:$0xff]
  %v979 = vld [vmem:[%s0 + $0x130] sm:$0xff]
  %v980 = vld [vmem:[%s0 + $0x138] sm:$0xff]
  %v981 = vmul.f32 %v733, %v359
  %v982 = vmul.f32 %v734, %v359
  %v983 = vmul.f32 %v735, %v359
  %v984 = vmul.f32 %v736, %v359
  %v985 = vmul.f32 %v737, %v359
  %v986 = vmul.f32 %v738, %v359
  %v987 = vmul.f32 %v739, %v359
  %v988 = vmul.f32 %v740, %v359
  %v989 = vmul.f32 %v869, %v359
  %v990 = vmul.f32 %v870, %v359
  %v991 = vmul.f32 %v871, %v359
  %v992 = vmul.f32 %v872, %v359
  %v993 = vmul.f32 %v977, %v359
  %v994 = vmul.f32 %v978, %v359
  %v995 = vmul.f32 %v979, %v359
  %v996 = vmul.f32 %v980, %v359
  %v997 = vadd.f32 %v961, %v981
  %v998 = vadd.f32 %v962, %v982
  %v999 = vadd.f32 %v963, %v983
  %v1000 = vadd.f32 %v964, %v984
  %v1001 = vadd.f32 %v965, %v985
  %v1002 = vadd.f32 %v966, %v986
  %v1003 = vadd.f32 %v967, %v987
  %v1004 = vadd.f32 %v968, %v988
  %v1005 = vadd.f32 %v969, %v989
  %v1006 = vadd.f32 %v970, %v990
  %v1007 = vadd.f32 %v971, %v991
  %v1008 = vadd.f32 %v972, %v992
  %v1009 = vadd.f32 %v973, %v993
  %v1010 = vadd.f32 %v974, %v994
  %v1011 = vadd.f32 %v975, %v995
  %v1012 = vadd.f32 %v976, %v996
  %v1013 = vld [vmem:[%s0 + $0x121] sm:$0xff]
  %v1014 = vld [vmem:[%s0 + $0x129] sm:$0xff]
  %v1015 = vld [vmem:[%s0 + $0x131] sm:$0xff]
  %v1016 = vld [vmem:[%s0 + $0x139] sm:$0xff]
  %v1017 = vmul.f32 %v781, %v399
  %v1018 = vmul.f32 %v782, %v399
  %v1019 = vmul.f32 %v783, %v399
  %v1020 = vmul.f32 %v784, %v399
  %v1021 = vmul.f32 %v785, %v399
  %v1022 = vmul.f32 %v786, %v399
  %v1023 = vmul.f32 %v787, %v399
  %v1024 = vmul.f32 %v788, %v399
  %v1025 = vmul.f32 %v905, %v399
  %v1026 = vmul.f32 %v906, %v399
  %v1027 = vmul.f32 %v907, %v399
  %v1028 = vmul.f32 %v908, %v399
  %v1029 = vmul.f32 %v1013, %v399
  %v1030 = vmul.f32 %v1014, %v399
  %v1031 = vmul.f32 %v1015, %v399
  %v1032 = vmul.f32 %v1016, %v399
  %v1033 = vadd.f32 %v997, %v1017
  %v1034 = vadd.f32 %v998, %v1018
  %v1035 = vadd.f32 %v999, %v1019
  %v1036 = vadd.f32 %v1000, %v1020
  %v1037 = vadd.f32 %v1001, %v1021
  %v1038 = vadd.f32 %v1002, %v1022
  %v1039 = vadd.f32 %v1003, %v1023
  %v1040 = vadd.f32 %v1004, %v1024
  %v1041 = vadd.f32 %v1005, %v1025
  %v1042 = vadd.f32 %v1006, %v1026
  %v1043 = vadd.f32 %v1007, %v1027
  %v1044 = vadd.f32 %v1008, %v1028
  %v1045 = vadd.f32 %v1009, %v1029
  %v1046 = vadd.f32 %v1010, %v1030
  %v1047 = vadd.f32 %v1011, %v1031
  %v1048 = vadd.f32 %v1012, %v1032
  %v1049 = vld [vmem:[%s0 + $0x122] sm:$0xff]
  %v1050 = vld [vmem:[%s0 + $0x12a] sm:$0xff]
  %v1051 = vld [vmem:[%s0 + $0x132] sm:$0xff]
  %v1052 = vld [vmem:[%s0 + $0x13a] sm:$0xff]
  %v1053 = vmul.f32 %v829, %v439
  %v1054 = vmul.f32 %v830, %v439
  %v1055 = vmul.f32 %v831, %v439
  %v1056 = vmul.f32 %v832, %v439
  %v1057 = vmul.f32 %v833, %v439
  %v1058 = vmul.f32 %v834, %v439
  %v1059 = vmul.f32 %v835, %v439
  %v1060 = vmul.f32 %v836, %v439
  %v1061 = vmul.f32 %v941, %v439
  %v1062 = vmul.f32 %v942, %v439
  %v1063 = vmul.f32 %v943, %v439
  %v1064 = vmul.f32 %v944, %v439
  %v1065 = vmul.f32 %v1049, %v439
  %v1066 = vmul.f32 %v1050, %v439
  %v1067 = vmul.f32 %v1051, %v439
  %v1068 = vmul.f32 %v1052, %v439
  %v1069 = vadd.f32 %v1033, %v1053
  %v1070 = vadd.f32 %v1034, %v1054
  %v1071 = vadd.f32 %v1035, %v1055
  %v1072 = vadd.f32 %v1036, %v1056
  %v1073 = vadd.f32 %v1037, %v1057
  %v1074 = vadd.f32 %v1038, %v1058
  %v1075 = vadd.f32 %v1039, %v1059
  %v1076 = vadd.f32 %v1040, %v1060
  %v1077 = vadd.f32 %v1041, %v1061
  %v1078 = vadd.f32 %v1042, %v1062
  %v1079 = vadd.f32 %v1043, %v1063
  %v1080 = vadd.f32 %v1044, %v1064
  %v1081 = vadd.f32 %v1045, %v1065
  %v1082 = vadd.f32 %v1046, %v1066
  %v1083 = vadd.f32 %v1047, %v1067
  %v1084 = vadd.f32 %v1048, %v1068
  %v1085 = vadd.f32 %v1069, %v476
  %v1086 = vadd.f32 %v1070, %v476
  %v1087 = vadd.f32 %v1071, %v476
  %v1088 = vadd.f32 %v1072, %v476
  %v1089 = vadd.f32 %v1073, %v476
  %v1090 = vadd.f32 %v1074, %v476
  %v1091 = vadd.f32 %v1075, %v476
  %v1092 = vadd.f32 %v1076, %v476
  %v1093 = vadd.f32 %v1077, %v476
  %v1094 = vadd.f32 %v1078, %v476
  %v1095 = vadd.f32 %v1079, %v476
  %v1096 = vadd.f32 %v1080, %v476
  %v1097 = vadd.f32 %v1081, %v476
  %v1098 = vadd.f32 %v1082, %v476
  %v1099 = vadd.f32 %v1083, %v476
  %v1100 = vadd.f32 %v1084, %v476
  %v1101 = vmax.f32 %v1085, 0.0
  %v1102 = vmax.f32 %v1086, 0.0
  %v1103 = vmax.f32 %v1087, 0.0
  %v1104 = vmax.f32 %v1088, 0.0
  %v1105 = vmax.f32 %v1089, 0.0
  %v1106 = vmax.f32 %v1090, 0.0
  %v1107 = vmax.f32 %v1091, 0.0
  %v1108 = vmax.f32 %v1092, 0.0
  %v1109 = vmax.f32 %v1093, 0.0
  %v1110 = vmax.f32 %v1094, 0.0
  %v1111 = vmax.f32 %v1095, 0.0
  %v1112 = vmax.f32 %v1096, 0.0
  %v1113 = vmax.f32 %v1097, 0.0
  %v1114 = vmax.f32 %v1098, 0.0
  %v1115 = vmax.f32 %v1099, 0.0
  %v1116 = vmax.f32 %v1100, 0.0
  %v1117 = vmax.f32 %v1101, %v1105
  %v1118 = vmax.f32 %v1102, %v1106
  %v1119 = vmax.f32 %v1103, %v1107
  %v1120 = vmax.f32 %v1104, %v1108
  %v1121 = vmax.f32 %v1105, %v1109
  %v1122 = vmax.f32 %v1106, %v1110
  %v1123 = vmax.f32 %v1107, %v1111
  %v1124 = vmax.f32 %v1108, %v1112
  %v1125 = vmax.f32 %v1109, %v1113
  %v1126 = vmax.f32 %v1110, %v1114
  %v1127 = vmax.f32 %v1111, %v1115
  %v1128 = vmax.f32 %v1112, %v1116
  %1129 = vmatprep.subr.mxu0 0.0
  %1130 = vmatpush1.msra.mxu0 %v1117
  %1131 = vmatprep.subr.mxu0 0.0
  %1132 = vmatpush1.msra.mxu0 %v1118
  %1133 = vmatprep.subr.mxu0 0.0
  %1134 = vmatpush1.msra.mxu0 %v1119
  %1135 = vmatprep.subr.mxu0 0.0
  %1136 = vmatpush1.msra.mxu0 %v1120
  %1137 = vmatprep.subr.mxu0 0.0
  %1138 = vmatpush1.msra.mxu0 %v1121
  %1139 = vmatprep.subr.mxu0 0.0
  %1140 = vmatpush1.msra.mxu0 %v1122
  %1141 = vmatprep.subr.mxu0 0.0
  %1142 = vmatpush1.msra.mxu0 %v1123
  %1143 = vmatprep.subr.mxu0 0.0
  %1144 = vmatpush1.msra.mxu0 %v1124
  %1145 = vmatprep.subr.mxu0 0.0
  %1146 = vmatpush1.msra.mxu0 %v1125
  %1147 = vmatprep.subr.mxu0 0.0
  %1148 = vmatpush1.msra.mxu0 %v1126
  %1149 = vmatprep.subr.mxu0 0.0
  %1150 = vmatpush1.msra.mxu0 %v1127
  %1151 = vmatprep.subr.mxu0 0.0
  %1152 = vmatpush1.msra.mxu0 %v1128
  %1153 = vmatprep.subr.mxu0 0.0
  %1154 = vmatpush1.msra.mxu0 0.0
  %1155 = vmatprep.subr.mxu0 0.0
  %1156 = vmatpush1.msra.mxu0 0.0
  %1157 = vmatprep.subr.mxu0 0.0
  %1158 = vmatpush1.msra.mxu0 0.0
  %1159 = vmatprep.subr.mxu0 0.0
  %1160 = vmatpush1.msra.mxu0 0.0
  %1161 = vmatprep.subr.mxu0 0.0
  %1162 = vmatpush1.msra.mxu0 0.0
  %1163 = vmatprep.subr.mxu0 0.0
  %1164 = vmatpush1.msra.mxu0 0.0
  %1165 = vmatprep.subr.mxu0 0.0
  %1166 = vmatpush1.msra.mxu0 0.0
  %1167 = vmatprep.subr.mxu0 0.0
  %1168 = vmatpush1.msra.mxu0 0.0
  %1169 = vmatprep.subr.mxu0 0.0
  %1170 = vmatpush1.msra.mxu0 0.0
  %1171 = vmatprep.subr.mxu0 0.0
  %1172 = vmatpush1.msra.mxu0 0.0
  %1173 = vmatprep.subr.mxu0 0.0
  %1174 = vmatpush1.msra.mxu0 0.0
  %1175 = vmatprep.subr.mxu0 0.0
  %1176 = vmatpush1.msra.mxu0 0.0
  %1177 = vmatprep.subr.mxu0 0.0
  %1178 = vmatpush1.msra.mxu0 0.0
  %1179 = vmatprep.subr.mxu0 0.0
  %1180 = vmatpush1.msra.mxu0 0.0
  %1181 = vmatprep.subr.mxu0 0.0
  %1182 = vmatpush1.msra.mxu0 0.0
  %1183 = vmatprep.subr.mxu0 0.0
  %1184 = vmatpush1.msra.mxu0 0.0
  %1185 = vmatprep.subr.mxu0 0.0
  %1186 = vmatpush1.msra.mxu0 0.0
  %1187 = vmatprep.subr.mxu0 0.0
  %1188 = vmatpush1.msra.mxu0 0.0
  %1189 = vmatprep.subr.mxu0 0.0
  %1190 = vmatpush1.msra.mxu0 0.0
  %1191 = vmatprep.subr.mxu0 0.0
  %1192 = vmatpush1.msra.mxu0 0.0
  %1193 = vmatprep.mubr.f32.mxu0 0.0
  %1194 = vmatmul.mubr.f32.gmra.mrb[0].mxu0 %v524
  %v1195 = vpop.f32.mrb[0].mxu0
  %v1196 = vadd.f32 0.0, %v1195
  %v1197 = vpop.f32.mrb[0].mxu0
  %1198 = vmatprep.mubr.f32.mxu0 0.0
  %1199 = vmatmul.mubr.f32.gmra.mrb[0].mxu0 %v527
  %v1200 = vpop.f32.mrb[0].mxu0
  %v1201 = vadd.f32 0.0, %v1200
  %v1202 = vpop.f32.mrb[0].mxu0
  %1203 = vmatprep.mubr.f32.mxu0 0.0
  %1204 = vmatmul.mubr.f32.gmra.mrb[0].mxu0 %v530
  %v1205 = vpop.f32.mrb[0].mxu0
  %v1206 = vadd.f32 0.0, %v1205
  %v1207 = vpop.f32.mrb[0].mxu0
  %1208 = vmatprep.mubr.f32.mxu0 0.0
  %1209 = vmatmul.mubr.f32.gmra.mrb[0].mxu0 %v533
  %v1210 = vpop.f32.mrb[0].mxu0
  %v1211 = vadd.f32 0.0, %v1210
  %v1212 = vpop.f32.mrb[0].mxu0
  %1213 = vdwg.mxu0
  %1214 = vmatprep.subr.mxu0 0.0
  %1215 = vmatpush1.msra.mxu0 %v1117
  %1216 = vmatprep.subr.mxu0 0.0
  %1217 = vmatpush1.msra.mxu0 %v1118
  %1218 = vmatprep.subr.mxu0 0.0
  %1219 = vmatpush1.msra.mxu0 %v1119
  %1220 = vmatprep.subr.mxu0 0.0
  %1221 = vmatpush1.msra.mxu0 %v1120
  %1222 = vmatprep.subr.mxu0 0.0
  %1223 = vmatpush1.msra.mxu0 %v1121
  %1224 = vmatprep.subr.mxu0 0.0
  %1225 = vmatpush1.msra.mxu0 %v1122
  %1226 = vmatprep.subr.mxu0 0.0
  %1227 = vmatpush1.msra.mxu0 %v1123
  %1228 = vmatprep.subr.mxu0 0.0
  %1229 = vmatpush1.msra.mxu0 %v1124
  %1230 = vmatprep.subr.mxu0 0.0
  %1231 = vmatpush1.msra.mxu0 %v1125
  %1232 = vmatprep.subr.mxu0 0.0
  %1233 = vmatpush1.msra.mxu0 %v1126
  %1234 = vmatprep.subr.mxu0 0.0
  %1235 = vmatpush1.msra.mxu0 %v1127
  %1236 = vmatprep.subr.mxu0 0.0
  %1237 = vmatpush1.msra.mxu0 %v1128
  %1238 = vmatprep.subr.mxu0 0.0
  %1239 = vmatpush1.msra.mxu0 0.0
  %1240 = vmatprep.subr.mxu0 0.0
  %1241 = vmatpush1.msra.mxu0 0.0
  %1242 = vmatprep.subr.mxu0 0.0
  %1243 = vmatpush1.msra.mxu0 0.0
  %1244 = vmatprep.subr.mxu0 0.0
  %1245 = vmatpush1.msra.mxu0 0.0
  %1246 = vmatprep.subr.mxu0 0.0
  %1247 = vmatpush1.msra.mxu0 0.0
  %1248 = vmatprep.subr.mxu0 0.0
  %1249 = vmatpush1.msra.mxu0 0.0
  %1250 = vmatprep.subr.mxu0 0.0
  %1251 = vmatpush1.msra.mxu0 0.0
  %1252 = vmatprep.subr.mxu0 0.0
  %1253 = vmatpush1.msra.mxu0 0.0
  %1254 = vmatprep.subr.mxu0 0.0
  %1255 = vmatpush1.msra.mxu0 0.0
  %1256 = vmatprep.subr.mxu0 0.0
  %1257 = vmatpush1.msra.mxu0 0.0
  %1258 = vmatprep.subr.mxu0 0.0
  %1259 = vmatpush1.msra.mxu0 0.0
  %1260 = vmatprep.subr.mxu0 0.0
  %1261 = vmatpush1.msra.mxu0 0.0
  %1262 = vmatprep.subr.mxu0 0.0
  %1263 = vmatpush1.msra.mxu0 0.0
  %1264 = vmatprep.subr.mxu0 0.0
  %1265 = vmatpush1.msra.mxu0 0.0
  %1266 = vmatprep.subr.mxu0 0.0
  %1267 = vmatpush1.msra.mxu0 0.0
  %1268 = vmatprep.subr.mxu0 0.0
  %1269 = vmatpush1.msra.mxu0 0.0
  %1270 = vmatprep.subr.mxu0 0.0
  %1271 = vmatpush1.msra.mxu0 0.0
  %1272 = vmatprep.subr.mxu0 0.0
  %1273 = vmatpush1.msra.mxu0 0.0
  %1274 = vmatprep.subr.mxu0 0.0
  %1275 = vmatpush1.msra.mxu0 0.0
  %1276 = vmatprep.subr.mxu0 0.0
  %1277 = vmatpush1.msra.mxu0 0.0
  %1278 = vmatprep.mubr.f32.mxu0 0.0
  %1279 = vmatmul.mubr.f32.gmra.mrb[0].mxu0 %v621
  %v1280 = vpop.f32.mrb[0].mxu0
  %v1281 = vadd.f32 0.0, %v1280
  %v1282 = vpop.f32.mrb[0].mxu0
  %1283 = vmatprep.mubr.f32.mxu0 0.0
  %1284 = vmatmul.mubr.f32.gmra.mrb[0].mxu0 %v624
  %v1285 = vpop.f32.mrb[0].mxu0
  %v1286 = vadd.f32 0.0, %v1285
  %v1287 = vpop.f32.mrb[0].mxu0
  %1288 = vmatprep.mubr.f32.mxu0 0.0
  %1289 = vmatmul.mubr.f32.gmra.mrb[0].mxu0 %v627
  %v1290 = vpop.f32.mrb[0].mxu0
  %v1291 = vadd.f32 0.0, %v1290
  %v1292 = vpop.f32.mrb[0].mxu0
  %1293 = vmatprep.mubr.f32.mxu0 0.0
  %1294 = vmatmul.mubr.f32.gmra.mrb[0].mxu0 %v630
  %v1295 = vpop.f32.mrb[0].mxu0
  %v1296 = vadd.f32 0.0, %v1295
  %v1297 = vpop.f32.mrb[0].mxu0
  %1298 = vdwg.mxu0
  %v1299 = vmax.f32 %v1196, %v1281
  %v1300 = vmax.f32 %v1201, %v1286
  %v1301 = vmax.f32 %v1206, %v1291
  %v1302 = vmax.f32 %v1211, %v1296
  %1303 = vst [vmem:[#allocation2 + $0x30] sm:$0xff] %v1299
  %1304 = vst [vmem:[#allocation2 + $0x38] sm:$0xff] %v1300
  %1305 = vst [vmem:[#allocation2 + $0x40] sm:$0xff] %v1301
  %1306 = vst [vmem:[#allocation2 + $0x48] sm:$0xff] %v1302
  %v1307 = vld [vmem:[%s0 + $0x100] sm:$0xff]
  %v1308 = vld [vmem:[%s0 + $0x108] sm:$0xff]
  %v1309 = vld [vmem:[%s0 + $0x110] sm:$0xff]
  %v1310 = vld [vmem:[%s0 + $0x118] sm:$0xff]
  %v1311 = vld [vmem:[%s0 + $0x120] sm:$0xff]
  %v1312 = vld [vmem:[%s0 + $0x128] sm:$0xff]
  %v1313 = vld [vmem:[%s0 + $0x130] sm:$0xff]
  %v1314 = vld [vmem:[%s0 + $0x138] sm:$0xff]
  %v1315 = vld [vmem:[%s0 + $0x140] sm:$0xff]
  %v1316 = vld [vmem:[%s0 + $0x148] sm:$0xff]
  %v1317 = vld [vmem:[%s0 + $0x150] sm:$0xff]
  %v1318 = vld [vmem:[%s0 + $0x158] sm:$0xff]
  %v1319 = vld [vmem:[%s0 + $0x160] sm:$0xff]
  %v1320 = vld [vmem:[%s0 + $0x168] sm:$0xff]
  %v1321 = vld [vmem:[%s0 + $0x170] sm:$0xff]
  %v1322 = vld [vmem:[%s0 + $0x178] sm:$0xff]
  %v1323 = vmul.f32 %v1307, %v95
  %v1324 = vmul.f32 %v1308, %v95
  %v1325 = vmul.f32 %v1309, %v95
  %v1326 = vmul.f32 %v1310, %v95
  %v1327 = vmul.f32 %v1311, %v95
  %v1328 = vmul.f32 %v1312, %v95
  %v1329 = vmul.f32 %v1313, %v95
  %v1330 = vmul.f32 %v1314, %v95
  %v1331 = vmul.f32 %v1315, %v95
  %v1332 = vmul.f32 %v1316, %v95
  %v1333 = vmul.f32 %v1317, %v95
  %v1334 = vmul.f32 %v1318, %v95
  %v1335 = vmul.f32 %v1319, %v95
  %v1336 = vmul.f32 %v1320, %v95
  %v1337 = vmul.f32 %v1321, %v95
  %v1338 = vmul.f32 %v1322, %v95
  %v1339 = vadd.f32 %v1323, 0.0
  %v1340 = vadd.f32 %v1324, 0.0
  %v1341 = vadd.f32 %v1325, 0.0
  %v1342 = vadd.f32 %v1326, 0.0
  %v1343 = vadd.f32 %v1327, 0.0
  %v1344 = vadd.f32 %v1328, 0.0
  %v1345 = vadd.f32 %v1329, 0.0
  %v1346 = vadd.f32 %v1330, 0.0
  %v1347 = vadd.f32 %v1331, 0.0
  %v1348 = vadd.f32 %v1332, 0.0
  %v1349 = vadd.f32 %v1333, 0.0
  %v1350 = vadd.f32 %v1334, 0.0
  %v1351 = vadd.f32 %v1335, 0.0
  %v1352 = vadd.f32 %v1336, 0.0
  %v1353 = vadd.f32 %v1337, 0.0
  %v1354 = vadd.f32 %v1338, 0.0
  %v1355 = vld [vmem:[%s0 + $0x101] sm:$0xff]
  %v1356 = vld [vmem:[%s0 + $0x109] sm:$0xff]
  %v1357 = vld [vmem:[%s0 + $0x111] sm:$0xff]
  %v1358 = vld [vmem:[%s0 + $0x119] sm:$0xff]
  %v1359 = vld [vmem:[%s0 + $0x121] sm:$0xff]
  %v1360 = vld [vmem:[%s0 + $0x129] sm:$0xff]
  %v1361 = vld [vmem:[%s0 + $0x131] sm:$0xff]
  %v1362 = vld [vmem:[%s0 + $0x139] sm:$0xff]
  %v1363 = vld [vmem:[%s0 + $0x141] sm:$0xff]
  %v1364 = vld [vmem:[%s0 + $0x149] sm:$0xff]
  %v1365 = vld [vmem:[%s0 + $0x151] sm:$0xff]
  %v1366 = vld [vmem:[%s0 + $0x159] sm:$0xff]
  %v1367 = vld [vmem:[%s0 + $0x161] sm:$0xff]
  %v1368 = vld [vmem:[%s0 + $0x169] sm:$0xff]
  %v1369 = vld [vmem:[%s0 + $0x171] sm:$0xff]
  %v1370 = vld [vmem:[%s0 + $0x179] sm:$0xff]
  %v1371 = vmul.f32 %v1355, %v147
  %v1372 = vmul.f32 %v1356, %v147
  %v1373 = vmul.f32 %v1357, %v147
  %v1374 = vmul.f32 %v1358, %v147
  %v1375 = vmul.f32 %v1359, %v147
  %v1376 = vmul.f32 %v1360, %v147
  %v1377 = vmul.f32 %v1361, %v147
  %v1378 = vmul.f32 %v1362, %v147
  %v1379 = vmul.f32 %v1363, %v147
  %v1380 = vmul.f32 %v1364, %v147
  %v1381 = vmul.f32 %v1365, %v147
  %v1382 = vmul.f32 %v1366, %v147
  %v1383 = vmul.f32 %v1367, %v147
  %v1384 = vmul.f32 %v1368, %v147
  %v1385 = vmul.f32 %v1369, %v147
  %v1386 = vmul.f32 %v1370, %v147
  %v1387 = vadd.f32 %v1339, %v1371
  %v1388 = vadd.f32 %v1340, %v1372
  %v1389 = vadd.f32 %v1341, %v1373
  %v1390 = vadd.f32 %v1342, %v1374
  %v1391 = vadd.f32 %v1343, %v1375
  %v1392 = vadd.f32 %v1344, %v1376
  %v1393 = vadd.f32 %v1345, %v1377
  %v1394 = vadd.f32 %v1346, %v1378
  %v1395 = vadd.f32 %v1347, %v1379
  %v1396 = vadd.f32 %v1348, %v1380
  %v1397 = vadd.f32 %v1349, %v1381
  %v1398 = vadd.f32 %v1350, %v1382
  %v1399 = vadd.f32 %v1351, %v1383
  %v1400 = vadd.f32 %v1352, %v1384
  %v1401 = vadd.f32 %v1353, %v1385
  %v1402 = vadd.f32 %v1354, %v1386
  %v1403 = vld [vmem:[%s0 + $0x102] sm:$0xff]
  %v1404 = vld [vmem:[%s0 + $0x10a] sm:$0xff]
  %v1405 = vld [vmem:[%s0 + $0x112] sm:$0xff]
  %v1406 = vld [vmem:[%s0 + $0x11a] sm:$0xff]
  %v1407 = vld [vmem:[%s0 + $0x122] sm:$0xff]
  %v1408 = vld [vmem:[%s0 + $0x12a] sm:$0xff]
  %v1409 = vld [vmem:[%s0 + $0x132] sm:$0xff]
  %v1410 = vld [vmem:[%s0 + $0x13a] sm:$0xff]
  %v1411 = vld [vmem:[%s0 + $0x142] sm:$0xff]
  %v1412 = vld [vmem:[%s0 + $0x14a] sm:$0xff]
  %v1413 = vld [vmem:[%s0 + $0x152] sm:$0xff]
  %v1414 = vld [vmem:[%s0 + $0x15a] sm:$0xff]
  %v1415 = vld [vmem:[%s0 + $0x162] sm:$0xff]
  %v1416 = vld [vmem:[%s0 + $0x16a] sm:$0xff]
  %v1417 = vld [vmem:[%s0 + $0x172] sm:$0xff]
  %v1418 = vld [vmem:[%s0 + $0x17a] sm:$0xff]
  %v1419 = vmul.f32 %v1403, %v199
  %v1420 = vmul.f32 %v1404, %v199
  %v1421 = vmul.f32 %v1405, %v199
  %v1422 = vmul.f32 %v1406, %v199
  %v1423 = vmul.f32 %v1407, %v199
  %v1424 = vmul.f32 %v1408, %v199
  %v1425 = vmul.f32 %v1409, %v199
  %v1426 = vmul.f32 %v1410, %v199
  %v1427 = vmul.f32 %v1411, %v199
  %v1428 = vmul.f32 %v1412, %v199
  %v1429 = vmul.f32 %v1413, %v199
  %v1430 = vmul.f32 %v1414, %v199
  %v1431 = vmul.f32 %v1415, %v199
  %v1432 = vmul.f32 %v1416, %v199
  %v1433 = vmul.f32 %v1417, %v199
  %v1434 = vmul.f32 %v1418, %v199
  %v1435 = vadd.f32 %v1387, %v1419
  %v1436 = vadd.f32 %v1388, %v1420
  %v1437 = vadd.f32 %v1389, %v1421
  %v1438 = vadd.f32 %v1390, %v1422
  %v1439 = vadd.f32 %v1391, %v1423
  %v1440 = vadd.f32 %v1392, %v1424
  %v1441 = vadd.f32 %v1393, %v1425
  %v1442 = vadd.f32 %v1394, %v1426
  %v1443 = vadd.f32 %v1395, %v1427
  %v1444 = vadd.f32 %v1396, %v1428
  %v1445 = vadd.f32 %v1397, %v1429
  %v1446 = vadd.f32 %v1398, %v1430
  %v1447 = vadd.f32 %v1399, %v1431
  %v1448 = vadd.f32 %v1400, %v1432
  %v1449 = vadd.f32 %v1401, %v1433
  %v1450 = vadd.f32 %v1402, %v1434
  %v1451 = vld [vmem:[%s0 + $0x180] sm:$0xff]
  %v1452 = vld [vmem:[%s0 + $0x188] sm:$0xff]
  %v1453 = vld [vmem:[%s0 + $0x190] sm:$0xff]
  %v1454 = vld [vmem:[%s0 + $0x198] sm:$0xff]
  %v1455 = vmul.f32 %v1311, %v239
  %v1456 = vmul.f32 %v1312, %v239
  %v1457 = vmul.f32 %v1313, %v239
  %v1458 = vmul.f32 %v1314, %v239
  %v1459 = vmul.f32 %v1315, %v239
  %v1460 = vmul.f32 %v1316, %v239
  %v1461 = vmul.f32 %v1317, %v239
  %v1462 = vmul.f32 %v1318, %v239
  %v1463 = vmul.f32 %v1319, %v239
  %v1464 = vmul.f32 %v1320, %v239
  %v1465 = vmul.f32 %v1321, %v239
  %v1466 = vmul.f32 %v1322, %v239
  %v1467 = vmul.f32 %v1451, %v239
  %v1468 = vmul.f32 %v1452, %v239
  %v1469 = vmul.f32 %v1453, %v239
  %v1470 = vmul.f32 %v1454, %v239
  %v1471 = vadd.f32 %v1435, %v1455
  %v1472 = vadd.f32 %v1436, %v1456
  %v1473 = vadd.f32 %v1437, %v1457
  %v1474 = vadd.f32 %v1438, %v1458
  %v1475 = vadd.f32 %v1439, %v1459
  %v1476 = vadd.f32 %v1440, %v1460
  %v1477 = vadd.f32 %v1441, %v1461
  %v1478 = vadd.f32 %v1442, %v1462
  %v1479 = vadd.f32 %v1443, %v1463
  %v1480 = vadd.f32 %v1444, %v1464
  %v1481 = vadd.f32 %v1445, %v1465
  %v1482 = vadd.f32 %v1446, %v1466
  %v1483 = vadd.f32 %v1447, %v1467
  %v1484 = vadd.f32 %v1448, %v1468
  %v1485 = vadd.f32 %v1449, %v1469
  %v1486 = vadd.f32 %v1450, %v1470
  %v1487 = vld [vmem:[%s0 + $0x181] sm:$0xff]
  %v1488 = vld [vmem:[%s0 + $0x189] sm:$0xff]
  %v1489 = vld [vmem:[%s0 + $0x191] sm:$0xff]
  %v1490 = vld [vmem:[%s0 + $0x199] sm:$0xff]
  %v1491 = vmul.f32 %v1359, %v279
  %v1492 = vmul.f32 %v1360, %v279
  %v1493 = vmul.f32 %v1361, %v279
  %v1494 = vmul.f32 %v1362, %v279
  %v1495 = vmul.f32 %v1363, %v279
  %v1496 = vmul.f32 %v1364, %v279
  %v1497 = vmul.f32 %v1365, %v279
  %v1498 = vmul.f32 %v1366, %v279
  %v1499 = vmul.f32 %v1367, %v279
  %v1500 = vmul.f32 %v1368, %v279
  %v1501 = vmul.f32 %v1369, %v279
  %v1502 = vmul.f32 %v1370, %v279
  %v1503 = vmul.f32 %v1487, %v279
  %v1504 = vmul.f32 %v1488, %v279
  %v1505 = vmul.f32 %v1489, %v279
  %v1506 = vmul.f32 %v1490, %v279
  %v1507 = vadd.f32 %v1471, %v1491
  %v1508 = vadd.f32 %v1472, %v1492
  %v1509 = vadd.f32 %v1473, %v1493
  %v1510 = vadd.f32 %v1474, %v1494
  %v1511 = vadd.f32 %v1475, %v1495
  %v1512 = vadd.f32 %v1476, %v1496
  %v1513 = vadd.f32 %v1477, %v1497
  %v1514 = vadd.f32 %v1478, %v1498
  %v1515 = vadd.f32 %v1479, %v1499
  %v1516 = vadd.f32 %v1480, %v1500
  %v1517 = vadd.f32 %v1481, %v1501
  %v1518 = vadd.f32 %v1482, %v1502
  %v1519 = vadd.f32 %v1483, %v1503
  %v1520 = vadd.f32 %v1484, %v1504
  %v1521 = vadd.f32 %v1485, %v1505
  %v1522 = vadd.f32 %v1486, %v1506
  %v1523 = vld [vmem:[%s0 + $0x182] sm:$0xff]
  %v1524 = vld [vmem:[%s0 + $0x18a] sm:$0xff]
  %v1525 = vld [vmem:[%s0 + $0x192] sm:$0xff]
  %v1526 = vld [vmem:[%s0 + $0x19a] sm:$0xff]
  %v1527 = vmul.f32 %v1407, %v319
  %v1528 = vmul.f32 %v1408, %v319
  %v1529 = vmul.f32 %v1409, %v319
  %v1530 = vmul.f32 %v1410, %v319
  %v1531 = vmul.f32 %v1411, %v319
  %v1532 = vmul.f32 %v1412, %v319
  %v1533 = vmul.f32 %v1413, %v319
  %v1534 = vmul.f32 %v1414, %v319
  %v1535 = vmul.f32 %v1415, %v319
  %v1536 = vmul.f32 %v1416, %v319
  %v1537 = vmul.f32 %v1417, %v319
  %v1538 = vmul.f32 %v1418, %v319
  %v1539 = vmul.f32 %v1523, %v319
  %v1540 = vmul.f32 %v1524, %v319
  %v1541 = vmul.f32 %v1525, %v319
  %v1542 = vmul.f32 %v1526, %v319
  %v1543 = vadd.f32 %v1507, %v1527
  %v1544 = vadd.f32 %v1508, %v1528
  %v1545 = vadd.f32 %v1509, %v1529
  %v1546 = vadd.f32 %v1510, %v1530
  %v1547 = vadd.f32 %v1511, %v1531
  %v1548 = vadd.f32 %v1512, %v1532
  %v1549 = vadd.f32 %v1513, %v1533
  %v1550 = vadd.f32 %v1514, %v1534
  %v1551 = vadd.f32 %v1515, %v1535
  %v1552 = vadd.f32 %v1516, %v1536
  %v1553 = vadd.f32 %v1517, %v1537
  %v1554 = vadd.f32 %v1518, %v1538
  %v1555 = vadd.f32 %v1519, %v1539
  %v1556 = vadd.f32 %v1520, %v1540
  %v1557 = vadd.f32 %v1521, %v1541
  %v1558 = vadd.f32 %v1522, %v1542
  %v1559 = vld [vmem:[%s0 + $0x1a0] sm:$0xff]
  %v1560 = vld [vmem:[%s0 + $0x1a8] sm:$0xff]
  %v1561 = vld [vmem:[%s0 + $0x1b0] sm:$0xff]
  %v1562 = vld [vmem:[%s0 + $0x1b8] sm:$0xff]
  %v1563 = vmul.f32 %v1315, %v359
  %v1564 = vmul.f32 %v1316, %v359
  %v1565 = vmul.f32 %v1317, %v359
  %v1566 = vmul.f32 %v1318, %v359
  %v1567 = vmul.f32 %v1319, %v359
  %v1568 = vmul.f32 %v1320, %v359
  %v1569 = vmul.f32 %v1321, %v359
  %v1570 = vmul.f32 %v1322, %v359
  %v1571 = vmul.f32 %v1451, %v359
  %v1572 = vmul.f32 %v1452, %v359
  %v1573 = vmul.f32 %v1453, %v359
  %v1574 = vmul.f32 %v1454, %v359
  %v1575 = vmul.f32 %v1559, %v359
  %v1576 = vmul.f32 %v1560, %v359
  %v1577 = vmul.f32 %v1561, %v359
  %v1578 = vmul.f32 %v1562, %v359
  %v1579 = vadd.f32 %v1543, %v1563
  %v1580 = vadd.f32 %v1544, %v1564
  %v1581 = vadd.f32 %v1545, %v1565
  %v1582 = vadd.f32 %v1546, %v1566
  %v1583 = vadd.f32 %v1547, %v1567
  %v1584 = vadd.f32 %v1548, %v1568
  %v1585 = vadd.f32 %v1549, %v1569
  %v1586 = vadd.f32 %v1550, %v1570
  %v1587 = vadd.f32 %v1551, %v1571
  %v1588 = vadd.f32 %v1552, %v1572
  %v1589 = vadd.f32 %v1553, %v1573
  %v1590 = vadd.f32 %v1554, %v1574
  %v1591 = vadd.f32 %v1555, %v1575
  %v1592 = vadd.f32 %v1556, %v1576
  %v1593 = vadd.f32 %v1557, %v1577
  %v1594 = vadd.f32 %v1558, %v1578
  %v1595 = vld [vmem:[%s0 + $0x1a1] sm:$0xff]
  %v1596 = vld [vmem:[%s0 + $0x1a9] sm:$0xff]
  %v1597 = vld [vmem:[%s0 + $0x1b1] sm:$0xff]
  %v1598 = vld [vmem:[%s0 + $0x1b9] sm:$0xff]
  %v1599 = vmul.f32 %v1363, %v399
  %v1600 = vmul.f32 %v1364, %v399
  %v1601 = vmul.f32 %v1365, %v399
  %v1602 = vmul.f32 %v1366, %v399
  %v1603 = vmul.f32 %v1367, %v399
  %v1604 = vmul.f32 %v1368, %v399
  %v1605 = vmul.f32 %v1369, %v399
  %v1606 = vmul.f32 %v1370, %v399
  %v1607 = vmul.f32 %v1487, %v399
  %v1608 = vmul.f32 %v1488, %v399
  %v1609 = vmul.f32 %v1489, %v399
  %v1610 = vmul.f32 %v1490, %v399
  %v1611 = vmul.f32 %v1595, %v399
  %v1612 = vmul.f32 %v1596, %v399
  %v1613 = vmul.f32 %v1597, %v399
  %v1614 = vmul.f32 %v1598, %v399
  %v1615 = vadd.f32 %v1579, %v1599
  %v1616 = vadd.f32 %v1580, %v1600
  %v1617 = vadd.f32 %v1581, %v1601
  %v1618 = vadd.f32 %v1582, %v1602
  %v1619 = vadd.f32 %v1583, %v1603
  %v1620 = vadd.f32 %v1584, %v1604
  %v1621 = vadd.f32 %v1585, %v1605
  %v1622 = vadd.f32 %v1586, %v1606
  %v1623 = vadd.f32 %v1587, %v1607
  %v1624 = vadd.f32 %v1588, %v1608
  %v1625 = vadd.f32 %v1589, %v1609
  %v1626 = vadd.f32 %v1590, %v1610
  %v1627 = vadd.f32 %v1591, %v1611
  %v1628 = vadd.f32 %v1592, %v1612
  %v1629 = vadd.f32 %v1593, %v1613
  %v1630 = vadd.f32 %v1594, %v1614
  %v1631 = vld [vmem:[%s0 + $0x1a2] sm:$0xff]
  %v1632 = vld [vmem:[%s0 + $0x1aa] sm:$0xff]
  %v1633 = vld [vmem:[%s0 + $0x1b2] sm:$0xff]
  %v1634 = vld [vmem:[%s0 + $0x1ba] sm:$0xff]
  %v1635 = vmul.f32 %v1411, %v439
  %v1636 = vmul.f32 %v1412, %v439
  %v1637 = vmul.f32 %v1413, %v439
  %v1638 = vmul.f32 %v1414, %v439
  %v1639 = vmul.f32 %v1415, %v439
  %v1640 = vmul.f32 %v1416, %v439
  %v1641 = vmul.f32 %v1417, %v439
  %v1642 = vmul.f32 %v1418, %v439
  %v1643 = vmul.f32 %v1523, %v439
  %v1644 = vmul.f32 %v1524, %v439
  %v1645 = vmul.f32 %v1525, %v439
  %v1646 = vmul.f32 %v1526, %v439
  %v1647 = vmul.f32 %v1631, %v439
  %v1648 = vmul.f32 %v1632, %v439
  %v1649 = vmul.f32 %v1633, %v439
  %v1650 = vmul.f32 %v1634, %v439
  %v1651 = vadd.f32 %v1615, %v1635
  %v1652 = vadd.f32 %v1616, %v1636
  %v1653 = vadd.f32 %v1617, %v1637
  %v1654 = vadd.f32 %v1618, %v1638
  %v1655 = vadd.f32 %v1619, %v1639
  %v1656 = vadd.f32 %v1620, %v1640
  %v1657 = vadd.f32 %v1621, %v1641
  %v1658 = vadd.f32 %v1622, %v1642
  %v1659 = vadd.f32 %v1623, %v1643
  %v1660 = vadd.f32 %v1624, %v1644
  %v1661 = vadd.f32 %v1625, %v1645
  %v1662 = vadd.f32 %v1626, %v1646
  %v1663 = vadd.f32 %v1627, %v1647
  %v1664 = vadd.f32 %v1628, %v1648
  %v1665 = vadd.f32 %v1629, %v1649
  %v1666 = vadd.f32 %v1630, %v1650
  %v1667 = vadd.f32 %v1651, %v476
  %v1668 = vadd.f32 %v1652, %v476
  %v1669 = vadd.f32 %v1653, %v476
  %v1670 = vadd.f32 %v1654, %v476
  %v1671 = vadd.f32 %v1655, %v476
  %v1672 = vadd.f32 %v1656, %v476
  %v1673 = vadd.f32 %v1657, %v476
  %v1674 = vadd.f32 %v1658, %v476
  %v1675 = vadd.f32 %v1659, %v476
  %v1676 = vadd.f32 %v1660, %v476
  %v1677 = vadd.f32 %v1661, %v476
  %v1678 = vadd.f32 %v1662, %v476
  %v1679 = vadd.f32 %v1663, %v476
  %v1680 = vadd.f32 %v1664, %v476
  %v1681 = vadd.f32 %v1665, %v476
  %v1682 = vadd.f32 %v1666, %v476
  %v1683 = vmax.f32 %v1667, 0.0
  %v1684 = vmax.f32 %v1668, 0.0
  %v1685 = vmax.f32 %v1669, 0.0
  %v1686 = vmax.f32 %v1670, 0.0
  %v1687 = vmax.f32 %v1671, 0.0
  %v1688 = vmax.f32 %v1672, 0.0
  %v1689 = vmax.f32 %v1673, 0.0
  %v1690 = vmax.f32 %v1674, 0.0
  %v1691 = vmax.f32 %v1675, 0.0
  %v1692 = vmax.f32 %v1676, 0.0
  %v1693 = vmax.f32 %v1677, 0.0
  %v1694 = vmax.f32 %v1678, 0.0
  %v1695 = vmax.f32 %v1679, 0.0
  %v1696 = vmax.f32 %v1680, 0.0
  %v1697 = vmax.f32 %v1681, 0.0
  %v1698 = vmax.f32 %v1682, 0.0
  %v1699 = vmax.f32 %v1683, %v1687
  %v1700 = vmax.f32 %v1684, %v1688
  %v1701 = vmax.f32 %v1685, %v1689
  %v1702 = vmax.f32 %v1686, %v1690
  %v1703 = vmax.f32 %v1687, %v1691
  %v1704 = vmax.f32 %v1688, %v1692
  %v1705 = vmax.f32 %v1689, %v1693
  %v1706 = vmax.f32 %v1690, %v1694
  %v1707 = vmax.f32 %v1691, %v1695
  %v1708 = vmax.f32 %v1692, %v1696
  %v1709 = vmax.f32 %v1693, %v1697
  %v1710 = vmax.f32 %v1694, %v1698
  %1711 = vmatprep.subr.mxu0 0.0
  %1712 = vmatpush1.msra.mxu0 %v1699
  %1713 = vmatprep.subr.mxu0 0.0
  %1714 = vmatpush1.msra.mxu0 %v1700
  %1715 = vmatprep.subr.mxu0 0.0
  %1716 = vmatpush1.msra.mxu0 %v1701
  %1717 = vmatprep.subr.mxu0 0.0
  %1718 = vmatpush1.msra.mxu0 %v1702
  %1719 = vmatprep.subr.mxu0 0.0
  %1720 = vmatpush1.msra.mxu0 %v1703
  %1721 = vmatprep.subr.mxu0 0.0
  %1722 = vmatpush1.msra.mxu0 %v1704
  %1723 = vmatprep.subr.mxu0 0.0
  %1724 = vmatpush1.msra.mxu0 %v1705
  %1725 = vmatprep.subr.mxu0 0.0
  %1726 = vmatpush1.msra.mxu0 %v1706
  %1727 = vmatprep.subr.mxu0 0.0
  %1728 = vmatpush1.msra.mxu0 %v1707
  %1729 = vmatprep.subr.mxu0 0.0
  %1730 = vmatpush1.msra.mxu0 %v1708
  %1731 = vmatprep.subr.mxu0 0.0
  %1732 = vmatpush1.msra.mxu0 %v1709
  %1733 = vmatprep.subr.mxu0 0.0
  %1734 = vmatpush1.msra.mxu0 %v1710
  %1735 = vmatprep.subr.mxu0 0.0
  %1736 = vmatpush1.msra.mxu0 0.0
  %1737 = vmatprep.subr.mxu0 0.0
  %1738 = vmatpush1.msra.mxu0 0.0
  %1739 = vmatprep.subr.mxu0 0.0
  %1740 = vmatpush1.msra.mxu0 0.0
  %1741 = vmatprep.subr.mxu0 0.0
  %1742 = vmatpush1.msra.mxu0 0.0
  %1743 = vmatprep.subr.mxu0 0.0
  %1744 = vmatpush1.msra.mxu0 0.0
  %1745 = vmatprep.subr.mxu0 0.0
  %1746 = vmatpush1.msra.mxu0 0.0
  %1747 = vmatprep.subr.mxu0 0.0
  %1748 = vmatpush1.msra.mxu0 0.0
  %1749 = vmatprep.subr.mxu0 0.0
  %1750 = vmatpush1.msra.mxu0 0.0
  %1751 = vmatprep.subr.mxu0 0.0
  %1752 = vmatpush1.msra.mxu0 0.0
  %1753 = vmatprep.subr.mxu0 0.0
  %1754 = vmatpush1.msra.mxu0 0.0
  %1755 = vmatprep.subr.mxu0 0.0
  %1756 = vmatpush1.msra.mxu0 0.0
  %1757 = vmatprep.subr.mxu0 0.0
  %1758 = vmatpush1.msra.mxu0 0.0
  %1759 = vmatprep.subr.mxu0 0.0
  %1760 = vmatpush1.msra.mxu0 0.0
  %1761 = vmatprep.subr.mxu0 0.0
  %1762 = vmatpush1.msra.mxu0 0.0
  %1763 = vmatprep.subr.mxu0 0.0
  %1764 = vmatpush1.msra.mxu0 0.0
  %1765 = vmatprep.subr.mxu0 0.0
  %1766 = vmatpush1.msra.mxu0 0.0
  %1767 = vmatprep.subr.mxu0 0.0
  %1768 = vmatpush1.msra.mxu0 0.0
  %1769 = vmatprep.subr.mxu0 0.0
  %1770 = vmatpush1.msra.mxu0 0.0
  %1771 = vmatprep.subr.mxu0 0.0
  %1772 = vmatpush1.msra.mxu0 0.0
  %1773 = vmatprep.subr.mxu0 0.0
  %1774 = vmatpush1.msra.mxu0 0.0
  %1775 = vmatprep.mubr.f32.mxu0 0.0
  %1776 = vmatmul.mubr.f32.gmra.mrb[0].mxu0 %v524
  %v1777 = vpop.f32.mrb[0].mxu0
  %v1778 = vadd.f32 0.0, %v1777
  %v1779 = vpop.f32.mrb[0].mxu0
  %1780 = vmatprep.mubr.f32.mxu0 0.0
  %1781 = vmatmul.mubr.f32.gmra.mrb[0].mxu0 %v527
  %v1782 = vpop.f32.mrb[0].mxu0
  %v1783 = vadd.f32 0.0, %v1782
  %v1784 = vpop.f32.mrb[0].mxu0
  %1785 = vmatprep.mubr.f32.mxu0 0.0
  %1786 = vmatmul.mubr.f32.gmra.mrb[0].mxu0 %v530
  %v1787 = vpop.f32.mrb[0].mxu0
  %v1788 = vadd.f32 0.0, %v1787
  %v1789 = vpop.f32.mrb[0].mxu0
  %1790 = vmatprep.mubr.f32.mxu0 0.0
  %1791 = vmatmul.mubr.f32.gmra.mrb[0].mxu0 %v533
  %v1792 = vpop.f32.mrb[0].mxu0
  %v1793 = vadd.f32 0.0, %v1792
  %v1794 = vpop.f32.mrb[0].mxu0
  %1795 = vdwg.mxu0
  %1796 = vmatprep.subr.mxu0 0.0
  %1797 = vmatpush1.msra.mxu0 %v1699
  %1798 = vmatprep.subr.mxu0 0.0
  %1799 = vmatpush1.msra.mxu0 %v1700
  %1800 = vmatprep.subr.mxu0 0.0
  %1801 = vmatpush1.msra.mxu0 %v1701
  %1802 = vmatprep.subr.mxu0 0.0
  %1803 = vmatpush1.msra.mxu0 %v1702
  %1804 = vmatprep.subr.mxu0 0.0
  %1805 = vmatpush1.msra.mxu0 %v1703
  %1806 = vmatprep.subr.mxu0 0.0
  %1807 = vmatpush1.msra.mxu0 %v1704
  %1808 = vmatprep.subr.mxu0 0.0
  %1809 = vmatpush1.msra.mxu0 %v1705
  %1810 = vmatprep.subr.mxu0 0.0
  %1811 = vmatpush1.msra.mxu0 %v1706
  %1812 = vmatprep.subr.mxu0 0.0
  %1813 = vmatpush1.msra.mxu0 %v1707
  %1814 = vmatprep.subr.mxu0 0.0
  %1815 = vmatpush1.msra.mxu0 %v1708
  %1816 = vmatprep.subr.mxu0 0.0
  %1817 = vmatpush1.msra.mxu0 %v1709
  %1818 = vmatprep.subr.mxu0 0.0
  %1819 = vmatpush1.msra.mxu0 %v1710
  %1820 = vmatprep.subr.mxu0 0.0
  %1821 = vmatpush1.msra.mxu0 0.0
  %1822 = vmatprep.subr.mxu0 0.0
  %1823 = vmatpush1.msra.mxu0 0.0
  %1824 = vmatprep.subr.mxu0 0.0
  %1825 = vmatpush1.msra.mxu0 0.0
  %1826 = vmatprep.subr.mxu0 0.0
  %1827 = vmatpush1.msra.mxu0 0.0
  %1828 = vmatprep.subr.mxu0 0.0
  %1829 = vmatpush1.msra.mxu0 0.0
  %1830 = vmatprep.subr.mxu0 0.0
  %1831 = vmatpush1.msra.mxu0 0.0
  %1832 = vmatprep.subr.mxu0 0.0
  %1833 = vmatpush1.msra.mxu0 0.0
  %1834 = vmatprep.subr.mxu0 0.0
  %1835 = vmatpush1.msra.mxu0 0.0
  %1836 = vmatprep.subr.mxu0 0.0
  %1837 = vmatpush1.msra.mxu0 0.0
  %1838 = vmatprep.subr.mxu0 0.0
  %1839 = vmatpush1.msra.mxu0 0.0
  %1840 = vmatprep.subr.mxu0 0.0
  %1841 = vmatpush1.msra.mxu0 0.0
  %1842 = vmatprep.subr.mxu0 0.0
  %1843 = vmatpush1.msra.mxu0 0.0
  %1844 = vmatprep.subr.mxu0 0.0
  %1845 = vmatpush1.msra.mxu0 0.0
  %1846 = vmatprep.subr.mxu0 0.0
  %1847 = vmatpush1.msra.mxu0 0.0
  %1848 = vmatprep.subr.mxu0 0.0
  %1849 = vmatpush1.msra.mxu0 0.0
  %1850 = vmatprep.subr.mxu0 0.0
  %1851 = vmatpush1.msra.mxu0 0.0
  %1852 = vmatprep.subr.mxu0 0.0
  %1853 = vmatpush1.msra.mxu0 0.0
  %1854 = vmatprep.subr.mxu0 0.0
  %1855 = vmatpush1.msra.mxu0 0.0
  %1856 = vmatprep.subr.mxu0 0.0
  %1857 = vmatpush1.msra.mxu0 0.0
  %1858 = vmatprep.subr.mxu0 0.0
  %1859 = vmatpush1.msra.mxu0 0.0
  %1860 = vmatprep.mubr.f32.mxu0 0.0
  %1861 = vmatmul.mubr.f32.gmra.mrb[0].mxu0 %v621
  %v1862 = vpop.f32.mrb[0].mxu0
  %v1863 = vadd.f32 0.0, %v1862
  %v1864 = vpop.f32.mrb[0].mxu0
  %1865 = vmatprep.mubr.f32.mxu0 0.0
  %1866 = vmatmul.mubr.f32.gmra.mrb[0].mxu0 %v624
  %v1867 = vpop.f32.mrb[0].mxu0
  %v1868 = vadd.f32 0.0, %v1867
  %v1869 = vpop.f32.mrb[0].mxu0
  %1870 = vmatprep.mubr.f32.mxu0 0.0
  %1871 = vmatmul.mubr.f32.gmra.mrb[0].mxu0 %v627
  %v1872 = vpop.f32.mrb[0].mxu0
  %v1873 = vadd.f32 0.0, %v1872
  %v1874 = vpop.f32.mrb[0].mxu0
  %1875 = vmatprep.mubr.f32.mxu0 0.0
  %1876 = vmatmul.mubr.f32.gmra.mrb[0].mxu0 %v630
  %v1877 = vpop.f32.mrb[0].mxu0
  %v1878 = vadd.f32 0.0, %v1877
  %v1879 = vpop.f32.mrb[0].mxu0
  %1880 = vdwg.mxu0
  %v1881 = vmax.f32 %v1778, %v1863
  %v1882 = vmax.f32 %v1783, %v1868
  %v1883 = vmax.f32 %v1788, %v1873
  %v1884 = vmax.f32 %v1793, %v1878
  %1885 = vst [vmem:[#allocation2 + $0x50] sm:$0xff] %v1881
  %1886 = vst [vmem:[#allocation2 + $0x58] sm:$0xff] %v1882
  %1887 = vst [vmem:[#allocation2 + $0x60] sm:$0xff] %v1883
  %1888 = vst [vmem:[#allocation2 + $0x68] sm:$0xff] %v1884
  %v1889 = vld [vmem:[%s0 + $0x180] sm:$0xff]
  %v1890 = vld [vmem:[%s0 + $0x188] sm:$0xff]
  %v1891 = vld [vmem:[%s0 + $0x190] sm:$0xff]
  %v1892 = vld [vmem:[%s0 + $0x198] sm:$0xff]
  %v1893 = vld [vmem:[%s0 + $0x1a0] sm:$0xff]
  %v1894 = vld [vmem:[%s0 + $0x1a8] sm:$0xff]
  %v1895 = vld [vmem:[%s0 + $0x1b0] sm:$0xff]
  %v1896 = vld [vmem:[%s0 + $0x1b8] sm:$0xff]
  %v1897 = vld [vmem:[%s0 + $0x1c0] sm:$0xff]
  %v1898 = vld [vmem:[%s0 + $0x1c8] sm:$0xff]
  %v1899 = vld [vmem:[%s0 + $0x1d0] sm:$0xff]
  %v1900 = vld [vmem:[%s0 + $0x1d8] sm:$0xff]
  %v1901 = vld [vmem:[%s0 + $0x1e0] sm:$0xff]
  %v1902 = vld [vmem:[%s0 + $0x1e8] sm:$0xff]
  %v1903 = vld [vmem:[%s0 + $0x1f0] sm:$0xff]
  %v1904 = vld [vmem:[%s0 + $0x1f8] sm:$0xff]
  %v1905 = vmul.f32 %v1889, %v95
  %v1906 = vmul.f32 %v1890, %v95
  %v1907 = vmul.f32 %v1891, %v95
  %v1908 = vmul.f32 %v1892, %v95
  %v1909 = vmul.f32 %v1893, %v95
  %v1910 = vmul.f32 %v1894, %v95
  %v1911 = vmul.f32 %v1895, %v95
  %v1912 = vmul.f32 %v1896, %v95
  %v1913 = vmul.f32 %v1897, %v95
  %v1914 = vmul.f32 %v1898, %v95
  %v1915 = vmul.f32 %v1899, %v95
  %v1916 = vmul.f32 %v1900, %v95
  %v1917 = vmul.f32 %v1901, %v95
  %v1918 = vmul.f32 %v1902, %v95
  %v1919 = vmul.f32 %v1903, %v95
  %v1920 = vmul.f32 %v1904, %v95
  %v1921 = vadd.f32 %v1905, 0.0
  %v1922 = vadd.f32 %v1906, 0.0
  %v1923 = vadd.f32 %v1907, 0.0
  %v1924 = vadd.f32 %v1908, 0.0
  %v1925 = vadd.f32 %v1909, 0.0
  %v1926 = vadd.f32 %v1910, 0.0
  %v1927 = vadd.f32 %v1911, 0.0
  %v1928 = vadd.f32 %v1912, 0.0
  %v1929 = vadd.f32 %v1913, 0.0
  %v1930 = vadd.f32 %v1914, 0.0
  %v1931 = vadd.f32 %v1915, 0.0
  %v1932 = vadd.f32 %v1916, 0.0
  %v1933 = vadd.f32 %v1917, 0.0
  %v1934 = vadd.f32 %v1918, 0.0
  %v1935 = vadd.f32 %v1919, 0.0
  %v1936 = vadd.f32 %v1920, 0.0
  %v1937 = vld [vmem:[%s0 + $0x181] sm:$0xff]
  %v1938 = vld [vmem:[%s0 + $0x189] sm:$0xff]
  %v1939 = vld [vmem:[%s0 + $0x191] sm:$0xff]
  %v1940 = vld [vmem:[%s0 + $0x199] sm:$0xff]
  %v1941 = vld [vmem:[%s0 + $0x1a1] sm:$0xff]
  %v1942 = vld [vmem:[%s0 + $0x1a9] sm:$0xff]
  %v1943 = vld [vmem:[%s0 + $0x1b1] sm:$0xff]
  %v1944 = vld [vmem:[%s0 + $0x1b9] sm:$0xff]
  %v1945 = vld [vmem:[%s0 + $0x1c1] sm:$0xff]
  %v1946 = vld [vmem:[%s0 + $0x1c9] sm:$0xff]
  %v1947 = vld [vmem:[%s0 + $0x1d1] sm:$0xff]
  %v1948 = vld [vmem:[%s0 + $0x1d9] sm:$0xff]
  %v1949 = vld [vmem:[%s0 + $0x1e1] sm:$0xff]
  %v1950 = vld [vmem:[%s0 + $0x1e9] sm:$0xff]
  %v1951 = vld [vmem:[%s0 + $0x1f1] sm:$0xff]
  %v1952 = vld [vmem:[%s0 + $0x1f9] sm:$0xff]
  %v1953 = vmul.f32 %v1937, %v147
  %v1954 = vmul.f32 %v1938, %v147
  %v1955 = vmul.f32 %v1939, %v147
  %v1956 = vmul.f32 %v1940, %v147
  %v1957 = vmul.f32 %v1941, %v147
  %v1958 = vmul.f32 %v1942, %v147
  %v1959 = vmul.f32 %v1943, %v147
  %v1960 = vmul.f32 %v1944, %v147
  %v1961 = vmul.f32 %v1945, %v147
  %v1962 = vmul.f32 %v1946, %v147
  %v1963 = vmul.f32 %v1947, %v147
  %v1964 = vmul.f32 %v1948, %v147
  %v1965 = vmul.f32 %v1949, %v147
  %v1966 = vmul.f32 %v1950, %v147
  %v1967 = vmul.f32 %v1951, %v147
  %v1968 = vmul.f32 %v1952, %v147
  %v1969 = vadd.f32 %v1921, %v1953
  %v1970 = vadd.f32 %v1922, %v1954
  %v1971 = vadd.f32 %v1923, %v1955
  %v1972 = vadd.f32 %v1924, %v1956
  %v1973 = vadd.f32 %v1925, %v1957
  %v1974 = vadd.f32 %v1926, %v1958
  %v1975 = vadd.f32 %v1927, %v1959
  %v1976 = vadd.f32 %v1928, %v1960
  %v1977 = vadd.f32 %v1929, %v1961
  %v1978 = vadd.f32 %v1930, %v1962
  %v1979 = vadd.f32 %v1931, %v1963
  %v1980 = vadd.f32 %v1932, %v1964
  %v1981 = vadd.f32 %v1933, %v1965
  %v1982 = vadd.f32 %v1934, %v1966
  %v1983 = vadd.f32 %v1935, %v1967
  %v1984 = vadd.f32 %v1936, %v1968
  %v1985 = vld [vmem:[%s0 + $0x182] sm:$0xff]
  %v1986 = vld [vmem:[%s0 + $0x18a] sm:$0xff]
  %v1987 = vld [vmem:[%s0 + $0x192] sm:$0xff]
  %v1988 = vld [vmem:[%s0 + $0x19a] sm:$0xff]
  %v1989 = vld [vmem:[%s0 + $0x1a2] sm:$0xff]
  %v1990 = vld [vmem:[%s0 + $0x1aa] sm:$0xff]
  %v1991 = vld [vmem:[%s0 + $0x1b2] sm:$0xff]
  %v1992 = vld [vmem:[%s0 + $0x1ba] sm:$0xff]
  %v1993 = vld [vmem:[%s0 + $0x1c2] sm:$0xff]
  %v1994 = vld [vmem:[%s0 + $0x1ca] sm:$0xff]
  %v1995 = vld [vmem:[%s0 + $0x1d2] sm:$0xff]
  %v1996 = vld [vmem:[%s0 + $0x1da] sm:$0xff]
  %v1997 = vld [vmem:[%s0 + $0x1e2] sm:$0xff]
  %v1998 = vld [vmem:[%s0 + $0x1ea] sm:$0xff]
  %v1999 = vld [vmem:[%s0 + $0x1f2] sm:$0xff]
  %v2000 = vld [vmem:[%s0 + $0x1fa] sm:$0xff]
  %v2001 = vmul.f32 %v1985, %v199
  %v2002 = vmul.f32 %v1986, %v199
  %v2003 = vmul.f32 %v1987, %v199
  %v2004 = vmul.f32 %v1988, %v199
  %v2005 = vmul.f32 %v1989, %v199
  %v2006 = vmul.f32 %v1990, %v199
  %v2007 = vmul.f32 %v1991, %v199
  %v2008 = vmul.f32 %v1992, %v199
  %v2009 = vmul.f32 %v1993, %v199
  %v2010 = vmul.f32 %v1994, %v199
  %v2011 = vmul.f32 %v1995, %v199
  %v2012 = vmul.f32 %v1996, %v199
  %v2013 = vmul.f32 %v1997, %v199
  %v2014 = vmul.f32 %v1998, %v199
  %v2015 = vmul.f32 %v1999, %v199
  %v2016 = vmul.f32 %v2000, %v199
  %v2017 = vadd.f32 %v1969, %v2001
  %v2018 = vadd.f32 %v1970, %v2002
  %v2019 = vadd.f32 %v1971, %v2003
  %v2020 = vadd.f32 %v1972, %v2004
  %v2021 = vadd.f32 %v1973, %v2005
  %v2022 = vadd.f32 %v1974, %v2006
  %v2023 = vadd.f32 %v1975, %v2007
  %v2024 = vadd.f32 %v1976, %v2008
  %v2025 = vadd.f32 %v1977, %v2009
  %v2026 = vadd.f32 %v1978, %v2010
  %v2027 = vadd.f32 %v1979, %v2011
  %v2028 = vadd.f32 %v1980, %v2012
  %v2029 = vadd.f32 %v1981, %v2013
  %v2030 = vadd.f32 %v1982, %v2014
  %v2031 = vadd.f32 %v1983, %v2015
  %v2032 = vadd.f32 %v1984, %v2016
  %v2033 = vld [vmem:[%s0 + $0x200] sm:$0xff]
  %v2034 = vld [vmem:[%s0 + $0x208] sm:$0xff]
  %v2035 = vld [vmem:[%s0 + $0x210] sm:$0xff]
  %v2036 = vld [vmem:[%s0 + $0x218] sm:$0xff]
  %v2037 = vmul.f32 %v1893, %v239
  %v2038 = vmul.f32 %v1894, %v239
  %v2039 = vmul.f32 %v1895, %v239
  %v2040 = vmul.f32 %v1896, %v239
  %v2041 = vmul.f32 %v1897, %v239
  %v2042 = vmul.f32 %v1898, %v239
  %v2043 = vmul.f32 %v1899, %v239
  %v2044 = vmul.f32 %v1900, %v239
  %v2045 = vmul.f32 %v1901, %v239
  %v2046 = vmul.f32 %v1902, %v239
  %v2047 = vmul.f32 %v1903, %v239
  %v2048 = vmul.f32 %v1904, %v239
  %v2049 = vmul.f32 %v2033, %v239
  %v2050 = vmul.f32 %v2034, %v239
  %v2051 = vmul.f32 %v2035, %v239
  %v2052 = vmul.f32 %v2036, %v239
  %v2053 = vadd.f32 %v2017, %v2037
  %v2054 = vadd.f32 %v2018, %v2038
  %v2055 = vadd.f32 %v2019, %v2039
  %v2056 = vadd.f32 %v2020, %v2040
  %v2057 = vadd.f32 %v2021, %v2041
  %v2058 = vadd.f32 %v2022, %v2042
  %v2059 = vadd.f32 %v2023, %v2043
  %v2060 = vadd.f32 %v2024, %v2044
  %v2061 = vadd.f32 %v2025, %v2045
  %v2062 = vadd.f32 %v2026, %v2046
  %v2063 = vadd.f32 %v2027, %v2047
  %v2064 = vadd.f32 %v2028, %v2048
  %v2065 = vadd.f32 %v2029, %v2049
  %v2066 = vadd.f32 %v2030, %v2050
  %v2067 = vadd.f32 %v2031, %v2051
  %v2068 = vadd.f32 %v2032, %v2052
  %v2069 = vld [vmem:[%s0 + $0x201] sm:$0xff]
  %v2070 = vld [vmem:[%s0 + $0x209] sm:$0xff]
  %v2071 = vld [vmem:[%s0 + $0x211] sm:$0xff]
  %v2072 = vld [vmem:[%s0 + $0x219] sm:$0xff]
  %v2073 = vmul.f32 %v1941, %v279
  %v2074 = vmul.f32 %v1942, %v279
  %v2075 = vmul.f32 %v1943, %v279
  %v2076 = vmul.f32 %v1944, %v279
  %v2077 = vmul.f32 %v1945, %v279
  %v2078 = vmul.f32 %v1946, %v279
  %v2079 = vmul.f32 %v1947, %v279
  %v2080 = vmul.f32 %v1948, %v279
  %v2081 = vmul.f32 %v1949, %v279
  %v2082 = vmul.f32 %v1950, %v279
  %v2083 = vmul.f32 %v1951, %v279
  %v2084 = vmul.f32 %v1952, %v279
  %v2085 = vmul.f32 %v2069, %v279
  %v2086 = vmul.f32 %v2070, %v279
  %v2087 = vmul.f32 %v2071, %v279
  %v2088 = vmul.f32 %v2072, %v279
  %v2089 = vadd.f32 %v2053, %v2073
  %v2090 = vadd.f32 %v2054, %v2074
  %v2091 = vadd.f32 %v2055, %v2075
  %v2092 = vadd.f32 %v2056, %v2076
  %v2093 = vadd.f32 %v2057, %v2077
  %v2094 = vadd.f32 %v2058, %v2078
  %v2095 = vadd.f32 %v2059, %v2079
  %v2096 = vadd.f32 %v2060, %v2080
  %v2097 = vadd.f32 %v2061, %v2081
  %v2098 = vadd.f32 %v2062, %v2082
  %v2099 = vadd.f32 %v2063, %v2083
  %v2100 = vadd.f32 %v2064, %v2084
  %v2101 = vadd.f32 %v2065, %v2085
  %v2102 = vadd.f32 %v2066, %v2086
  %v2103 = vadd.f32 %v2067, %v2087
  %v2104 = vadd.f32 %v2068, %v2088
  %v2105 = vld [vmem:[%s0 + $0x202] sm:$0xff]
  %v2106 = vld [vmem:[%s0 + $0x20a] sm:$0xff]
  %v2107 = vld [vmem:[%s0 + $0x212] sm:$0xff]
  %v2108 = vld [vmem:[%s0 + $0x21a] sm:$0xff]
  %v2109 = vmul.f32 %v1989, %v319
  %v2110 = vmul.f32 %v1990, %v319
  %v2111 = vmul.f32 %v1991, %v319
  %v2112 = vmul.f32 %v1992, %v319
  %v2113 = vmul.f32 %v1993, %v319
  %v2114 = vmul.f32 %v1994, %v319
  %v2115 = vmul.f32 %v1995, %v319
  %v2116 = vmul.f32 %v1996, %v319
  %v2117 = vmul.f32 %v1997, %v319
  %v2118 = vmul.f32 %v1998, %v319
  %v2119 = vmul.f32 %v1999, %v319
  %v2120 = vmul.f32 %v2000, %v319
  %v2121 = vmul.f32 %v2105, %v319
  %v2122 = vmul.f32 %v2106, %v319
  %v2123 = vmul.f32 %v2107, %v319
  %v2124 = vmul.f32 %v2108, %v319
  %v2125 = vadd.f32 %v2089, %v2109
  %v2126 = vadd.f32 %v2090, %v2110
  %v2127 = vadd.f32 %v2091, %v2111
  %v2128 = vadd.f32 %v2092, %v2112
  %v2129 = vadd.f32 %v2093, %v2113
  %v2130 = vadd.f32 %v2094, %v2114
  %v2131 = vadd.f32 %v2095, %v2115
  %v2132 = vadd.f32 %v2096, %v2116
  %v2133 = vadd.f32 %v2097, %v2117
  %v2134 = vadd.f32 %v2098, %v2118
  %v2135 = vadd.f32 %v2099, %v2119
  %v2136 = vadd.f32 %v2100, %v2120
  %v2137 = vadd.f32 %v2101, %v2121
  %v2138 = vadd.f32 %v2102, %v2122
  %v2139 = vadd.f32 %v2103, %v2123
  %v2140 = vadd.f32 %v2104, %v2124
  %v2141 = vld [vmem:[%s0 + $0x220] sm:$0xff]
  %v2142 = vld [vmem:[%s0 + $0x228] sm:$0xff]
  %v2143 = vld [vmem:[%s0 + $0x230] sm:$0xff]
  %v2144 = vld [vmem:[%s0 + $0x238] sm:$0xff]
  %v2145 = vmul.f32 %v1897, %v359
  %v2146 = vmul.f32 %v1898, %v359
  %v2147 = vmul.f32 %v1899, %v359
  %v2148 = vmul.f32 %v1900, %v359
  %v2149 = vmul.f32 %v1901, %v359
  %v2150 = vmul.f32 %v1902, %v359
  %v2151 = vmul.f32 %v1903, %v359
  %v2152 = vmul.f32 %v1904, %v359
  %v2153 = vmul.f32 %v2033, %v359
  %v2154 = vmul.f32 %v2034, %v359
  %v2155 = vmul.f32 %v2035, %v359
  %v2156 = vmul.f32 %v2036, %v359
  %v2157 = vmul.f32 %v2141, %v359
  %v2158 = vmul.f32 %v2142, %v359
  %v2159 = vmul.f32 %v2143, %v359
  %v2160 = vmul.f32 %v2144, %v359
  %v2161 = vadd.f32 %v2125, %v2145
  %v2162 = vadd.f32 %v2126, %v2146
  %v2163 = vadd.f32 %v2127, %v2147
  %v2164 = vadd.f32 %v2128, %v2148
  %v2165 = vadd.f32 %v2129, %v2149
  %v2166 = vadd.f32 %v2130, %v2150
  %v2167 = vadd.f32 %v2131, %v2151
  %v2168 = vadd.f32 %v2132, %v2152
  %v2169 = vadd.f32 %v2133, %v2153
  %v2170 = vadd.f32 %v2134, %v2154
  %v2171 = vadd.f32 %v2135, %v2155
  %v2172 = vadd.f32 %v2136, %v2156
  %v2173 = vadd.f32 %v2137, %v2157
  %v2174 = vadd.f32 %v2138, %v2158
  %v2175 = vadd.f32 %v2139, %v2159
  %v2176 = vadd.f32 %v2140, %v2160
  %v2177 = vld [vmem:[%s0 + $0x221] sm:$0xff]
  %v2178 = vld [vmem:[%s0 + $0x229] sm:$0xff]
  %v2179 = vld [vmem:[%s0 + $0x231] sm:$0xff]
  %v2180 = vld [vmem:[%s0 + $0x239] sm:$0xff]
  %v2181 = vmul.f32 %v1945, %v399
  %v2182 = vmul.f32 %v1946, %v399
  %v2183 = vmul.f32 %v1947, %v399
  %v2184 = vmul.f32 %v1948, %v399
  %v2185 = vmul.f32 %v1949, %v399
  %v2186 = vmul.f32 %v1950, %v399
  %v2187 = vmul.f32 %v1951, %v399
  %v2188 = vmul.f32 %v1952, %v399
  %v2189 = vmul.f32 %v2069, %v399
  %v2190 = vmul.f32 %v2070, %v399
  %v2191 = vmul.f32 %v2071, %v399
  %v2192 = vmul.f32 %v2072, %v399
  %v2193 = vmul.f32 %v2177, %v399
  %v2194 = vmul.f32 %v2178, %v399
  %v2195 = vmul.f32 %v2179, %v399
  %v2196 = vmul.f32 %v2180, %v399
  %v2197 = vadd.f32 %v2161, %v2181
  %v2198 = vadd.f32 %v2162, %v2182
  %v2199 = vadd.f32 %v2163, %v2183
  %v2200 = vadd.f32 %v2164, %v2184
  %v2201 = vadd.f32 %v2165, %v2185
  %v2202 = vadd.f32 %v2166, %v2186
  %v2203 = vadd.f32 %v2167, %v2187
  %v2204 = vadd.f32 %v2168, %v2188
  %v2205 = vadd.f32 %v2169, %v2189
  %v2206 = vadd.f32 %v2170, %v2190
  %v2207 = vadd.f32 %v2171, %v2191
  %v2208 = vadd.f32 %v2172, %v2192
  %v2209 = vadd.f32 %v2173, %v2193
  %v2210 = vadd.f32 %v2174, %v2194
  %v2211 = vadd.f32 %v2175, %v2195
  %v2212 = vadd.f32 %v2176, %v2196
  %v2213 = vld [vmem:[%s0 + $0x222] sm:$0xff]
  %v2214 = vld [vmem:[%s0 + $0x22a] sm:$0xff]
  %v2215 = vld [vmem:[%s0 + $0x232] sm:$0xff]
  %v2216 = vld [vmem:[%s0 + $0x23a] sm:$0xff]
  %v2217 = vmul.f32 %v1993, %v439
  %v2218 = vmul.f32 %v1994, %v439
  %v2219 = vmul.f32 %v1995, %v439
  %v2220 = vmul.f32 %v1996, %v439
  %v2221 = vmul.f32 %v1997, %v439
  %v2222 = vmul.f32 %v1998, %v439
  %v2223 = vmul.f32 %v1999, %v439
  %v2224 = vmul.f32 %v2000, %v439
  %v2225 = vmul.f32 %v2105, %v439
  %v2226 = vmul.f32 %v2106, %v439
  %v2227 = vmul.f32 %v2107, %v439
  %v2228 = vmul.f32 %v2108, %v439
  %v2229 = vmul.f32 %v2213, %v439
  %v2230 = vmul.f32 %v2214, %v439
  %v2231 = vmul.f32 %v2215, %v439
  %v2232 = vmul.f32 %v2216, %v439
  %v2233 = vadd.f32 %v2197, %v2217
  %v2234 = vadd.f32 %v2198, %v2218
  %v2235 = vadd.f32 %v2199, %v2219
  %v2236 = vadd.f32 %v2200, %v2220
  %v2237 = vadd.f32 %v2201, %v2221
  %v2238 = vadd.f32 %v2202, %v2222
  %v2239 = vadd.f32 %v2203, %v2223
  %v2240 = vadd.f32 %v2204, %v2224
  %v2241 = vadd.f32 %v2205, %v2225
  %v2242 = vadd.f32 %v2206, %v2226
  %v2243 = vadd.f32 %v2207, %v2227
  %v2244 = vadd.f32 %v2208, %v2228
  %v2245 = vadd.f32 %v2209, %v2229
  %v2246 = vadd.f32 %v2210, %v2230
  %v2247 = vadd.f32 %v2211, %v2231
  %v2248 = vadd.f32 %v2212, %v2232
  %v2249 = vadd.f32 %v2233, %v476
  %v2250 = vadd.f32 %v2234, %v476
  %v2251 = vadd.f32 %v2235, %v476
  %v2252 = vadd.f32 %v2236, %v476
  %v2253 = vadd.f32 %v2237, %v476
  %v2254 = vadd.f32 %v2238, %v476
  %v2255 = vadd.f32 %v2239, %v476
  %v2256 = vadd.f32 %v2240, %v476
  %v2257 = vadd.f32 %v2241, %v476
  %v2258 = vadd.f32 %v2242, %v476
  %v2259 = vadd.f32 %v2243, %v476
  %v2260 = vadd.f32 %v2244, %v476
  %v2261 = vadd.f32 %v2245, %v476
  %v2262 = vadd.f32 %v2246, %v476
  %v2263 = vadd.f32 %v2247, %v476
  %v2264 = vadd.f32 %v2248, %v476
  %v2265 = vmax.f32 %v2249, 0.0
  %v2266 = vmax.f32 %v2250, 0.0
  %v2267 = vmax.f32 %v2251, 0.0
  %v2268 = vmax.f32 %v2252, 0.0
  %v2269 = vmax.f32 %v2253, 0.0
  %v2270 = vmax.f32 %v2254, 0.0
  %v2271 = vmax.f32 %v2255, 0.0
  %v2272 = vmax.f32 %v2256, 0.0
  %v2273 = vmax.f32 %v2257, 0.0
  %v2274 = vmax.f32 %v2258, 0.0
  %v2275 = vmax.f32 %v2259, 0.0
  %v2276 = vmax.f32 %v2260, 0.0
  %v2277 = vmax.f32 %v2261, 0.0
  %v2278 = vmax.f32 %v2262, 0.0
  %v2279 = vmax.f32 %v2263, 0.0
  %v2280 = vmax.f32 %v2264, 0.0
  %v2281 = vmax.f32 %v2265, %v2269
  %v2282 = vmax.f32 %v2266, %v2270
  %v2283 = vmax.f32 %v2267, %v2271
  %v2284 = vmax.f32 %v2268, %v2272
  %v2285 = vmax.f32 %v2269, %v2273
  %v2286 = vmax.f32 %v2270, %v2274
  %v2287 = vmax.f32 %v2271, %v2275
  %v2288 = vmax.f32 %v2272, %v2276
  %v2289 = vmax.f32 %v2273, %v2277
  %v2290 = vmax.f32 %v2274, %v2278
  %v2291 = vmax.f32 %v2275, %v2279
  %v2292 = vmax.f32 %v2276, %v2280
  %2293 = vmatprep.subr.mxu0 0.0
  %2294 = vmatpush1.msra.mxu0 %v2281
  %2295 = vmatprep.subr.mxu0 0.0
  %2296 = vmatpush1.msra.mxu0 %v2282
  %2297 = vmatprep.subr.mxu0 0.0
  %2298 = vmatpush1.msra.mxu0 %v2283
  %2299 = vmatprep.subr.mxu0 0.0
  %2300 = vmatpush1.msra.mxu0 %v2284
  %2301 = vmatprep.subr.mxu0 0.0
  %2302 = vmatpush1.msra.mxu0 %v2285
  %2303 = vmatprep.subr.mxu0 0.0
  %2304 = vmatpush1.msra.mxu0 %v2286
  %2305 = vmatprep.subr.mxu0 0.0
  %2306 = vmatpush1.msra.mxu0 %v2287
  %2307 = vmatprep.subr.mxu0 0.0
  %2308 = vmatpush1.msra.mxu0 %v2288
  %2309 = vmatprep.subr.mxu0 0.0
  %2310 = vmatpush1.msra.mxu0 %v2289
  %2311 = vmatprep.subr.mxu0 0.0
  %2312 = vmatpush1.msra.mxu0 %v2290
  %2313 = vmatprep.subr.mxu0 0.0
  %2314 = vmatpush1.msra.mxu0 %v2291
  %2315 = vmatprep.subr.mxu0 0.0
  %2316 = vmatpush1.msra.mxu0 %v2292
  %2317 = vmatprep.subr.mxu0 0.0
  %2318 = vmatpush1.msra.mxu0 0.0
  %2319 = vmatprep.subr.mxu0 0.0
  %2320 = vmatpush1.msra.mxu0 0.0
  %2321 = vmatprep.subr.mxu0 0.0
  %2322 = vmatpush1.msra.mxu0 0.0
  %2323 = vmatprep.subr.mxu0 0.0
  %2324 = vmatpush1.msra.mxu0 0.0
  %2325 = vmatprep.subr.mxu0 0.0
  %2326 = vmatpush1.msra.mxu0 0.0
  %2327 = vmatprep.subr.mxu0 0.0
  %2328 = vmatpush1.msra.mxu0 0.0
  %2329 = vmatprep.subr.mxu0 0.0
  %2330 = vmatpush1.msra.mxu0 0.0
  %2331 = vmatprep.subr.mxu0 0.0
  %2332 = vmatpush1.msra.mxu0 0.0
  %2333 = vmatprep.subr.mxu0 0.0
  %2334 = vmatpush1.msra.mxu0 0.0
  %2335 = vmatprep.subr.mxu0 0.0
  %2336 = vmatpush1.msra.mxu0 0.0
  %2337 = vmatprep.subr.mxu0 0.0
  %2338 = vmatpush1.msra.mxu0 0.0
  %2339 = vmatprep.subr.mxu0 0.0
  %2340 = vmatpush1.msra.mxu0 0.0
  %2341 = vmatprep.subr.mxu0 0.0
  %2342 = vmatpush1.msra.mxu0 0.0
  %2343 = vmatprep.subr.mxu0 0.0
  %2344 = vmatpush1.msra.mxu0 0.0
  %2345 = vmatprep.subr.mxu0 0.0
  %2346 = vmatpush1.msra.mxu0 0.0
  %2347 = vmatprep.subr.mxu0 0.0
  %2348 = vmatpush1.msra.mxu0 0.0
  %2349 = vmatprep.subr.mxu0 0.0
  %2350 = vmatpush1.msra.mxu0 0.0
  %2351 = vmatprep.subr.mxu0 0.0
  %2352 = vmatpush1.msra.mxu0 0.0
  %2353 = vmatprep.subr.mxu0 0.0
  %2354 = vmatpush1.msra.mxu0 0.0
  %2355 = vmatprep.subr.mxu0 0.0
  %2356 = vmatpush1.msra.mxu0 0.0
  %2357 = vmatprep.mubr.f32.mxu0 0.0
  %2358 = vmatmul.mubr.f32.gmra.mrb[0].mxu0 %v524
  %v2359 = vpop.f32.mrb[0].mxu0
  %v2360 = vadd.f32 0.0, %v2359
  %v2361 = vpop.f32.mrb[0].mxu0
  %2362 = vmatprep.mubr.f32.mxu0 0.0
  %2363 = vmatmul.mubr.f32.gmra.mrb[0].mxu0 %v527
  %v2364 = vpop.f32.mrb[0].mxu0
  %v2365 = vadd.f32 0.0, %v2364
  %v2366 = vpop.f32.mrb[0].mxu0
  %2367 = vmatprep.mubr.f32.mxu0 0.0
  %2368 = vmatmul.mubr.f32.gmra.mrb[0].mxu0 %v530
  %v2369 = vpop.f32.mrb[0].mxu0
  %v2370 = vadd.f32 0.0, %v2369
  %v2371 = vpop.f32.mrb[0].mxu0
  %2372 = vmatprep.mubr.f32.mxu0 0.0
  %2373 = vmatmul.mubr.f32.gmra.mrb[0].mxu0 %v533
  %v2374 = vpop.f32.mrb[0].mxu0
  %v2375 = vadd.f32 0.0, %v2374
  %v2376 = vpop.f32.mrb[0].mxu0
  %2377 = vdwg.mxu0
  %2378 = vmatprep.subr.mxu0 0.0
  %2379 = vmatpush1.msra.mxu0 %v2281
  %2380 = vmatprep.subr.mxu0 0.0
  %2381 = vmatpush1.msra.mxu0 %v2282
  %2382 = vmatprep.subr.mxu0 0.0
  %2383 = vmatpush1.msra.mxu0 %v2283
  %2384 = vmatprep.subr.mxu0 0.0
  %2385 = vmatpush1.msra.mxu0 %v2284
  %2386 = vmatprep.subr.mxu0 0.0
  %2387 = vmatpush1.msra.mxu0 %v2285
  %2388 = vmatprep.subr.mxu0 0.0
  %2389 = vmatpush1.msra.mxu0 %v2286
  %2390 = vmatprep.subr.mxu0 0.0
  %2391 = vmatpush1.msra.mxu0 %v2287
  %2392 = vmatprep.subr.mxu0 0.0
  %2393 = vmatpush1.msra.mxu0 %v2288
  %2394 = vmatprep.subr.mxu0 0.0
  %2395 = vmatpush1.msra.mxu0 %v2289
  %2396 = vmatprep.subr.mxu0 0.0
  %2397 = vmatpush1.msra.mxu0 %v2290
  %2398 = vmatprep.subr.mxu0 0.0
  %2399 = vmatpush1.msra.mxu0 %v2291
  %2400 = vmatprep.subr.mxu0 0.0
  %2401 = vmatpush1.msra.mxu0 %v2292
  %2402 = vmatprep.subr.mxu0 0.0
  %2403 = vmatpush1.msra.mxu0 0.0
  %2404 = vmatprep.subr.mxu0 0.0
  %2405 = vmatpush1.msra.mxu0 0.0
  %2406 = vmatprep.subr.mxu0 0.0
  %2407 = vmatpush1.msra.mxu0 0.0
  %2408 = vmatprep.subr.mxu0 0.0
  %2409 = vmatpush1.msra.mxu0 0.0
  %2410 = vmatprep.subr.mxu0 0.0
  %2411 = vmatpush1.msra.mxu0 0.0
  %2412 = vmatprep.subr.mxu0 0.0
  %2413 = vmatpush1.msra.mxu0 0.0
  %2414 = vmatprep.subr.mxu0 0.0
  %2415 = vmatpush1.msra.mxu0 0.0
  %2416 = vmatprep.subr.mxu0 0.0
  %2417 = vmatpush1.msra.mxu0 0.0
  %2418 = vmatprep.subr.mxu0 0.0
  %2419 = vmatpush1.msra.mxu0 0.0
  %2420 = vmatprep.subr.mxu0 0.0
  %2421 = vmatpush1.msra.mxu0 0.0
  %2422 = vmatprep.subr.mxu0 0.0
  %2423 = vmatpush1.msra.mxu0 0.0
  %2424 = vmatprep.subr.mxu0 0.0
  %2425 = vmatpush1.msra.mxu0 0.0
  %2426 = vmatprep.subr.mxu0 0.0
  %2427 = vmatpush1.msra.mxu0 0.0
  %2428 = vmatprep.subr.mxu0 0.0
  %2429 = vmatpush1.msra.mxu0 0.0
  %2430 = vmatprep.subr.mxu0 0.0
  %2431 = vmatpush1.msra.mxu0 0.0
  %2432 = vmatprep.subr.mxu0 0.0
  %2433 = vmatpush1.msra.mxu0 0.0
  %2434 = vmatprep.subr.mxu0 0.0
  %2435 = vmatpush1.msra.mxu0 0.0
  %2436 = vmatprep.subr.mxu0 0.0
  %2437 = vmatpush1.msra.mxu0 0.0
  %2438 = vmatprep.subr.mxu0 0.0
  %2439 = vmatpush1.msra.mxu0 0.0
  %2440 = vmatprep.subr.mxu0 0.0
  %2441 = vmatpush1.msra.mxu0 0.0
  %2442 = vmatprep.mubr.f32.mxu0 0.0
  %2443 = vmatmul.mubr.f32.gmra.mrb[0].mxu0 %v621
  %v2444 = vpop.f32.mrb[0].mxu0
  %v2445 = vadd.f32 0.0, %v2444
  %v2446 = vpop.f32.mrb[0].mxu0
  %2447 = vmatprep.mubr.f32.mxu0 0.0
  %2448 = vmatmul.mubr.f32.gmra.mrb[0].mxu0 %v624
  %v2449 = vpop.f32.mrb[0].mxu0
  %v2450 = vadd.f32 0.0, %v2449
  %v2451 = vpop.f32.mrb[0].mxu0
  %2452 = vmatprep.mubr.f32.mxu0 0.0
  %2453 = vmatmul.mubr.f32.gmra.mrb[0].mxu0 %v627
  %v2454 = vpop.f32.mrb[0].mxu0
  %v2455 = vadd.f32 0.0, %v2454
  %v2456 = vpop.f32.mrb[0].mxu0
  %2457 = vmatprep.mubr.f32.mxu0 0.0
  %2458 = vmatmul.mubr.f32.gmra.mrb[0].mxu0 %v630
  %v2459 = vpop.f32.mrb[0].mxu0
  %v2460 = vadd.f32 0.0, %v2459
  %v2461 = vpop.f32.mrb[0].mxu0
  %2462 = vdwg.mxu0
  %v2463 = vmax.f32 %v2360, %v2445
  %v2464 = vmax.f32 %v2365, %v2450
  %v2465 = vmax.f32 %v2370, %v2455
  %v2466 = vmax.f32 %v2375, %v2460
  %2467 = vst [vmem:[#allocation2 + $0x70] sm:$0xff] %v2463
  %2468 = vst [vmem:[#allocation2 + $0x78] sm:$0xff] %v2464
  %2469 = vst [vmem:[#allocation2 + $0x80] sm:$0xff] %v2465
  %2470 = vst [vmem:[#allocation2 + $0x88] sm:$0xff] %v2466
  %v2471 = vld [vmem:[%s0 + $0x200] sm:$0xff]
  %v2472 = vld [vmem:[%s0 + $0x208] sm:$0xff]
  %v2473 = vld [vmem:[%s0 + $0x210] sm:$0xff]
  %v2474 = vld [vmem:[%s0 + $0x218] sm:$0xff]
  %v2475 = vld [vmem:[%s0 + $0x220] sm:$0xff]
  %v2476 = vld [vmem:[%s0 + $0x228] sm:$0xff]
  %v2477 = vld [vmem:[%s0 + $0x230] sm:$0xff]
  %v2478 = vld [vmem:[%s0 + $0x238] sm:$0xff]
  %v2479 = vld [vmem:[%s0 + $0x240] sm:$0xff]
  %v2480 = vld [vmem:[%s0 + $0x248] sm:$0xff]
  %v2481 = vld [vmem:[%s0 + $0x250] sm:$0xff]
  %v2482 = vld [vmem:[%s0 + $0x258] sm:$0xff]
  %v2483 = vld [vmem:[%s0 + $0x260] sm:$0xff]
  %v2484 = vld [vmem:[%s0 + $0x268] sm:$0xff]
  %v2485 = vld [vmem:[%s0 + $0x270] sm:$0xff]
  %v2486 = vld [vmem:[%s0 + $0x278] sm:$0xff]
  %v2487 = vmul.f32 %v2471, %v95
  %v2488 = vmul.f32 %v2472, %v95
  %v2489 = vmul.f32 %v2473, %v95
  %v2490 = vmul.f32 %v2474, %v95
  %v2491 = vmul.f32 %v2475, %v95
  %v2492 = vmul.f32 %v2476, %v95
  %v2493 = vmul.f32 %v2477, %v95
  %v2494 = vmul.f32 %v2478, %v95
  %v2495 = vmul.f32 %v2479, %v95
  %v2496 = vmul.f32 %v2480, %v95
  %v2497 = vmul.f32 %v2481, %v95
  %v2498 = vmul.f32 %v2482, %v95
  %v2499 = vmul.f32 %v2483, %v95
  %v2500 = vmul.f32 %v2484, %v95
  %v2501 = vmul.f32 %v2485, %v95
  %v2502 = vmul.f32 %v2486, %v95
  %v2503 = vadd.f32 %v2487, 0.0
  %v2504 = vadd.f32 %v2488, 0.0
  %v2505 = vadd.f32 %v2489, 0.0
  %v2506 = vadd.f32 %v2490, 0.0
  %v2507 = vadd.f32 %v2491, 0.0
  %v2508 = vadd.f32 %v2492, 0.0
  %v2509 = vadd.f32 %v2493, 0.0
  %v2510 = vadd.f32 %v2494, 0.0
  %v2511 = vadd.f32 %v2495, 0.0
  %v2512 = vadd.f32 %v2496, 0.0
  %v2513 = vadd.f32 %v2497, 0.0
  %v2514 = vadd.f32 %v2498, 0.0
  %v2515 = vadd.f32 %v2499, 0.0
  %v2516 = vadd.f32 %v2500, 0.0
  %v2517 = vadd.f32 %v2501, 0.0
  %v2518 = vadd.f32 %v2502, 0.0
  %v2519 = vld [vmem:[%s0 + $0x201] sm:$0xff]
  %v2520 = vld [vmem:[%s0 + $0x209] sm:$0xff]
  %v2521 = vld [vmem:[%s0 + $0x211] sm:$0xff]
  %v2522 = vld [vmem:[%s0 + $0x219] sm:$0xff]
  %v2523 = vld [vmem:[%s0 + $0x221] sm:$0xff]
  %v2524 = vld [vmem:[%s0 + $0x229] sm:$0xff]
  %v2525 = vld [vmem:[%s0 + $0x231] sm:$0xff]
  %v2526 = vld [vmem:[%s0 + $0x239] sm:$0xff]
  %v2527 = vld [vmem:[%s0 + $0x241] sm:$0xff]
  %v2528 = vld [vmem:[%s0 + $0x249] sm:$0xff]
  %v2529 = vld [vmem:[%s0 + $0x251] sm:$0xff]
  %v2530 = vld [vmem:[%s0 + $0x259] sm:$0xff]
  %v2531 = vld [vmem:[%s0 + $0x261] sm:$0xff]
  %v2532 = vld [vmem:[%s0 + $0x269] sm:$0xff]
  %v2533 = vld [vmem:[%s0 + $0x271] sm:$0xff]
  %v2534 = vld [vmem:[%s0 + $0x279] sm:$0xff]
  %v2535 = vmul.f32 %v2519, %v147
  %v2536 = vmul.f32 %v2520, %v147
  %v2537 = vmul.f32 %v2521, %v147
  %v2538 = vmul.f32 %v2522, %v147
  %v2539 = vmul.f32 %v2523, %v147
  %v2540 = vmul.f32 %v2524, %v147
  %v2541 = vmul.f32 %v2525, %v147
  %v2542 = vmul.f32 %v2526, %v147
  %v2543 = vmul.f32 %v2527, %v147
  %v2544 = vmul.f32 %v2528, %v147
  %v2545 = vmul.f32 %v2529, %v147
  %v2546 = vmul.f32 %v2530, %v147
  %v2547 = vmul.f32 %v2531, %v147
  %v2548 = vmul.f32 %v2532, %v147
  %v2549 = vmul.f32 %v2533, %v147
  %v2550 = vmul.f32 %v2534, %v147
  %v2551 = vadd.f32 %v2503, %v2535
  %v2552 = vadd.f32 %v2504, %v2536
  %v2553 = vadd.f32 %v2505, %v2537
  %v2554 = vadd.f32 %v2506, %v2538
  %v2555 = vadd.f32 %v2507, %v2539
  %v2556 = vadd.f32 %v2508, %v2540
  %v2557 = vadd.f32 %v2509, %v2541
  %v2558 = vadd.f32 %v2510, %v2542
  %v2559 = vadd.f32 %v2511, %v2543
  %v2560 = vadd.f32 %v2512, %v2544
  %v2561 = vadd.f32 %v2513, %v2545
  %v2562 = vadd.f32 %v2514, %v2546
  %v2563 = vadd.f32 %v2515, %v2547
  %v2564 = vadd.f32 %v2516, %v2548
  %v2565 = vadd.f32 %v2517, %v2549
  %v2566 = vadd.f32 %v2518, %v2550
  %v2567 = vld [vmem:[%s0 + $0x202] sm:$0xff]
  %v2568 = vld [vmem:[%s0 + $0x20a] sm:$0xff]
  %v2569 = vld [vmem:[%s0 + $0x212] sm:$0xff]
  %v2570 = vld [vmem:[%s0 + $0x21a] sm:$0xff]
  %v2571 = vld [vmem:[%s0 + $0x222] sm:$0xff]
  %v2572 = vld [vmem:[%s0 + $0x22a] sm:$0xff]
  %v2573 = vld [vmem:[%s0 + $0x232] sm:$0xff]
  %v2574 = vld [vmem:[%s0 + $0x23a] sm:$0xff]
  %v2575 = vld [vmem:[%s0 + $0x242] sm:$0xff]
  %v2576 = vld [vmem:[%s0 + $0x24a] sm:$0xff]
  %v2577 = vld [vmem:[%s0 + $0x252] sm:$0xff]
  %v2578 = vld [vmem:[%s0 + $0x25a] sm:$0xff]
  %v2579 = vld [vmem:[%s0 + $0x262] sm:$0xff]
  %v2580 = vld [vmem:[%s0 + $0x26a] sm:$0xff]
  %v2581 = vld [vmem:[%s0 + $0x272] sm:$0xff]
  %v2582 = vld [vmem:[%s0 + $0x27a] sm:$0xff]
  %v2583 = vmul.f32 %v2567, %v199
  %v2584 = vmul.f32 %v2568, %v199
  %v2585 = vmul.f32 %v2569, %v199
  %v2586 = vmul.f32 %v2570, %v199
  %v2587 = vmul.f32 %v2571, %v199
  %v2588 = vmul.f32 %v2572, %v199
  %v2589 = vmul.f32 %v2573, %v199
  %v2590 = vmul.f32 %v2574, %v199
  %v2591 = vmul.f32 %v2575, %v199
  %v2592 = vmul.f32 %v2576, %v199
  %v2593 = vmul.f32 %v2577, %v199
  %v2594 = vmul.f32 %v2578, %v199
  %v2595 = vmul.f32 %v2579, %v199
  %v2596 = vmul.f32 %v2580, %v199
  %v2597 = vmul.f32 %v2581, %v199
  %v2598 = vmul.f32 %v2582, %v199
  %v2599 = vadd.f32 %v2551, %v2583
  %v2600 = vadd.f32 %v2552, %v2584
  %v2601 = vadd.f32 %v2553, %v2585
  %v2602 = vadd.f32 %v2554, %v2586
  %v2603 = vadd.f32 %v2555, %v2587
  %v2604 = vadd.f32 %v2556, %v2588
  %v2605 = vadd.f32 %v2557, %v2589
  %v2606 = vadd.f32 %v2558, %v2590
  %v2607 = vadd.f32 %v2559, %v2591
  %v2608 = vadd.f32 %v2560, %v2592
  %v2609 = vadd.f32 %v2561, %v2593
  %v2610 = vadd.f32 %v2562, %v2594
  %v2611 = vadd.f32 %v2563, %v2595
  %v2612 = vadd.f32 %v2564, %v2596
  %v2613 = vadd.f32 %v2565, %v2597
  %v2614 = vadd.f32 %v2566, %v2598
  %v2615 = vld [vmem:[%s0 + $0x280] sm:$0xff]
  %v2616 = vld [vmem:[%s0 + $0x288] sm:$0xff]
  %v2617 = vld [vmem:[%s0 + $0x290] sm:$0xff]
  %v2618 = vld [vmem:[%s0 + $0x298] sm:$0xff]
  %v2619 = vmul.f32 %v2475, %v239
  %v2620 = vmul.f32 %v2476, %v239
  %v2621 = vmul.f32 %v2477, %v239
  %v2622 = vmul.f32 %v2478, %v239
  %v2623 = vmul.f32 %v2479, %v239
  %v2624 = vmul.f32 %v2480, %v239
  %v2625 = vmul.f32 %v2481, %v239
  %v2626 = vmul.f32 %v2482, %v239
  %v2627 = vmul.f32 %v2483, %v239
  %v2628 = vmul.f32 %v2484, %v239
  %v2629 = vmul.f32 %v2485, %v239
  %v2630 = vmul.f32 %v2486, %v239
  %v2631 = vmul.f32 %v2615, %v239
  %v2632 = vmul.f32 %v2616, %v239
  %v2633 = vmul.f32 %v2617, %v239
  %v2634 = vmul.f32 %v2618, %v239
  %v2635 = vadd.f32 %v2599, %v2619
  %v2636 = vadd.f32 %v2600, %v2620
  %v2637 = vadd.f32 %v2601, %v2621
  %v2638 = vadd.f32 %v2602, %v2622
  %v2639 = vadd.f32 %v2603, %v2623
  %v2640 = vadd.f32 %v2604, %v2624
  %v2641 = vadd.f32 %v2605, %v2625
  %v2642 = vadd.f32 %v2606, %v2626
  %v2643 = vadd.f32 %v2607, %v2627
  %v2644 = vadd.f32 %v2608, %v2628
  %v2645 = vadd.f32 %v2609, %v2629
  %v2646 = vadd.f32 %v2610, %v2630
  %v2647 = vadd.f32 %v2611, %v2631
  %v2648 = vadd.f32 %v2612, %v2632
  %v2649 = vadd.f32 %v2613, %v2633
  %v2650 = vadd.f32 %v2614, %v2634
  %v2651 = vld [vmem:[%s0 + $0x281] sm:$0xff]
  %v2652 = vld [vmem:[%s0 + $0x289] sm:$0xff]
  %v2653 = vld [vmem:[%s0 + $0x291] sm:$0xff]
  %v2654 = vld [vmem:[%s0 + $0x299] sm:$0xff]
  %v2655 = vmul.f32 %v2523, %v279
  %v2656 = vmul.f32 %v2524, %v279
  %v2657 = vmul.f32 %v2525, %v279
  %v2658 = vmul.f32 %v2526, %v279
  %v2659 = vmul.f32 %v2527, %v279
  %v2660 = vmul.f32 %v2528, %v279
  %v2661 = vmul.f32 %v2529, %v279
  %v2662 = vmul.f32 %v2530, %v279
  %v2663 = vmul.f32 %v2531, %v279
  %v2664 = vmul.f32 %v2532, %v279
  %v2665 = vmul.f32 %v2533, %v279
  %v2666 = vmul.f32 %v2534, %v279
  %v2667 = vmul.f32 %v2651, %v279
  %v2668 = vmul.f32 %v2652, %v279
  %v2669 = vmul.f32 %v2653, %v279
  %v2670 = vmul.f32 %v2654, %v279
  %v2671 = vadd.f32 %v2635, %v2655
  %v2672 = vadd.f32 %v2636, %v2656
  %v2673 = vadd.f32 %v2637, %v2657
  %v2674 = vadd.f32 %v2638, %v2658
  %v2675 = vadd.f32 %v2639, %v2659
  %v2676 = vadd.f32 %v2640, %v2660
  %v2677 = vadd.f32 %v2641, %v2661
  %v2678 = vadd.f32 %v2642, %v2662
  %v2679 = vadd.f32 %v2643, %v2663
  %v2680 = vadd.f32 %v2644, %v2664
  %v2681 = vadd.f32 %v2645, %v2665
  %v2682 = vadd.f32 %v2646, %v2666
  %v2683 = vadd.f32 %v2647, %v2667
  %v2684 = vadd.f32 %v2648, %v2668
  %v2685 = vadd.f32 %v2649, %v2669
  %v2686 = vadd.f32 %v2650, %v2670
  %v2687 = vld [vmem:[%s0 + $0x282] sm:$0xff]
  %v2688 = vld [vmem:[%s0 + $0x28a] sm:$0xff]
  %v2689 = vld [vmem:[%s0 + $0x292] sm:$0xff]
  %v2690 = vld [vmem:[%s0 + $0x29a] sm:$0xff]
  %v2691 = vmul.f32 %v2571, %v319
  %v2692 = vmul.f32 %v2572, %v319
  %v2693 = vmul.f32 %v2573, %v319
  %v2694 = vmul.f32 %v2574, %v319
  %v2695 = vmul.f32 %v2575, %v319
  %v2696 = vmul.f32 %v2576, %v319
  %v2697 = vmul.f32 %v2577, %v319
  %v2698 = vmul.f32 %v2578, %v319
  %v2699 = vmul.f32 %v2579, %v319
  %v2700 = vmul.f32 %v2580, %v319
  %v2701 = vmul.f32 %v2581, %v319
  %v2702 = vmul.f32 %v2582, %v319
  %v2703 = vmul.f32 %v2687, %v319
  %v2704 = vmul.f32 %v2688, %v319
  %v2705 = vmul.f32 %v2689, %v319
  %v2706 = vmul.f32 %v2690, %v319
  %v2707 = vadd.f32 %v2671, %v2691
  %v2708 = vadd.f32 %v2672, %v2692
  %v2709 = vadd.f32 %v2673, %v2693
  %v2710 = vadd.f32 %v2674, %v2694
  %v2711 = vadd.f32 %v2675, %v2695
  %v2712 = vadd.f32 %v2676, %v2696
  %v2713 = vadd.f32 %v2677, %v2697
  %v2714 = vadd.f32 %v2678, %v2698
  %v2715 = vadd.f32 %v2679, %v2699
  %v2716 = vadd.f32 %v2680, %v2700
  %v2717 = vadd.f32 %v2681, %v2701
  %v2718 = vadd.f32 %v2682, %v2702
  %v2719 = vadd.f32 %v2683, %v2703
  %v2720 = vadd.f32 %v2684, %v2704
  %v2721 = vadd.f32 %v2685, %v2705
  %v2722 = vadd.f32 %v2686, %v2706
  %v2723 = vld [vmem:[%s0 + $0x2a0] sm:$0xff]
  %v2724 = vld [vmem:[%s0 + $0x2a8] sm:$0xff]
  %v2725 = vld [vmem:[%s0 + $0x2b0] sm:$0xff]
  %v2726 = vld [vmem:[%s0 + $0x2b8] sm:$0xff]
  %v2727 = vmul.f32 %v2479, %v359
  %v2728 = vmul.f32 %v2480, %v359
  %v2729 = vmul.f32 %v2481, %v359
  %v2730 = vmul.f32 %v2482, %v359
  %v2731 = vmul.f32 %v2483, %v359
  %v2732 = vmul.f32 %v2484, %v359
  %v2733 = vmul.f32 %v2485, %v359
  %v2734 = vmul.f32 %v2486, %v359
  %v2735 = vmul.f32 %v2615, %v359
  %v2736 = vmul.f32 %v2616, %v359
  %v2737 = vmul.f32 %v2617, %v359
  %v2738 = vmul.f32 %v2618, %v359
  %v2739 = vmul.f32 %v2723, %v359
  %v2740 = vmul.f32 %v2724, %v359
  %v2741 = vmul.f32 %v2725, %v359
  %v2742 = vmul.f32 %v2726, %v359
  %v2743 = vadd.f32 %v2707, %v2727
  %v2744 = vadd.f32 %v2708, %v2728
  %v2745 = vadd.f32 %v2709, %v2729
  %v2746 = vadd.f32 %v2710, %v2730
  %v2747 = vadd.f32 %v2711, %v2731
  %v2748 = vadd.f32 %v2712, %v2732
  %v2749 = vadd.f32 %v2713, %v2733
  %v2750 = vadd.f32 %v2714, %v2734
  %v2751 = vadd.f32 %v2715, %v2735
  %v2752 = vadd.f32 %v2716, %v2736
  %v2753 = vadd.f32 %v2717, %v2737
  %v2754 = vadd.f32 %v2718, %v2738
  %v2755 = vadd.f32 %v2719, %v2739
  %v2756 = vadd.f32 %v2720, %v2740
  %v2757 = vadd.f32 %v2721, %v2741
  %v2758 = vadd.f32 %v2722, %v2742
  %v2759 = vld [vmem:[%s0 + $0x2a1] sm:$0xff]
  %v2760 = vld [vmem:[%s0 + $0x2a9] sm:$0xff]
  %v2761 = vld [vmem:[%s0 + $0x2b1] sm:$0xff]
  %v2762 = vld [vmem:[%s0 + $0x2b9] sm:$0xff]
  %v2763 = vmul.f32 %v2527, %v399
  %v2764 = vmul.f32 %v2528, %v399
  %v2765 = vmul.f32 %v2529, %v399
  %v2766 = vmul.f32 %v2530, %v399
  %v2767 = vmul.f32 %v2531, %v399
  %v2768 = vmul.f32 %v2532, %v399
  %v2769 = vmul.f32 %v2533, %v399
  %v2770 = vmul.f32 %v2534, %v399
  %v2771 = vmul.f32 %v2651, %v399
  %v2772 = vmul.f32 %v2652, %v399
  %v2773 = vmul.f32 %v2653, %v399
  %v2774 = vmul.f32 %v2654, %v399
  %v2775 = vmul.f32 %v2759, %v399
  %v2776 = vmul.f32 %v2760, %v399
  %v2777 = vmul.f32 %v2761, %v399
  %v2778 = vmul.f32 %v2762, %v399
  %v2779 = vadd.f32 %v2743, %v2763
  %v2780 = vadd.f32 %v2744, %v2764
  %v2781 = vadd.f32 %v2745, %v2765
  %v2782 = vadd.f32 %v2746, %v2766
  %v2783 = vadd.f32 %v2747, %v2767
  %v2784 = vadd.f32 %v2748, %v2768
  %v2785 = vadd.f32 %v2749, %v2769
  %v2786 = vadd.f32 %v2750, %v2770
  %v2787 = vadd.f32 %v2751, %v2771
  %v2788 = vadd.f32 %v2752, %v2772
  %v2789 = vadd.f32 %v2753, %v2773
  %v2790 = vadd.f32 %v2754, %v2774
  %v2791 = vadd.f32 %v2755, %v2775
  %v2792 = vadd.f32 %v2756, %v2776
  %v2793 = vadd.f32 %v2757, %v2777
  %v2794 = vadd.f32 %v2758, %v2778
  %v2795 = vld [vmem:[%s0 + $0x2a2] sm:$0xff]
  %v2796 = vld [vmem:[%s0 + $0x2aa] sm:$0xff]
  %v2797 = vld [vmem:[%s0 + $0x2b2] sm:$0xff]
  %v2798 = vld [vmem:[%s0 + $0x2ba] sm:$0xff]
  %v2799 = vmul.f32 %v2575, %v439
  %v2800 = vmul.f32 %v2576, %v439
  %v2801 = vmul.f32 %v2577, %v439
  %v2802 = vmul.f32 %v2578, %v439
  %v2803 = vmul.f32 %v2579, %v439
  %v2804 = vmul.f32 %v2580, %v439
  %v2805 = vmul.f32 %v2581, %v439
  %v2806 = vmul.f32 %v2582, %v439
  %v2807 = vmul.f32 %v2687, %v439
  %v2808 = vmul.f32 %v2688, %v439
  %v2809 = vmul.f32 %v2689, %v439
  %v2810 = vmul.f32 %v2690, %v439
  %v2811 = vmul.f32 %v2795, %v439
  %v2812 = vmul.f32 %v2796, %v439
  %v2813 = vmul.f32 %v2797, %v439
  %v2814 = vmul.f32 %v2798, %v439
  %v2815 = vadd.f32 %v2779, %v2799
  %v2816 = vadd.f32 %v2780, %v2800
  %v2817 = vadd.f32 %v2781, %v2801
  %v2818 = vadd.f32 %v2782, %v2802
  %v2819 = vadd.f32 %v2783, %v2803
  %v2820 = vadd.f32 %v2784, %v2804
  %v2821 = vadd.f32 %v2785, %v2805
  %v2822 = vadd.f32 %v2786, %v2806
  %v2823 = vadd.f32 %v2787, %v2807
  %v2824 = vadd.f32 %v2788, %v2808
  %v2825 = vadd.f32 %v2789, %v2809
  %v2826 = vadd.f32 %v2790, %v2810
  %v2827 = vadd.f32 %v2791, %v2811
  %v2828 = vadd.f32 %v2792, %v2812
  %v2829 = vadd.f32 %v2793, %v2813
  %v2830 = vadd.f32 %v2794, %v2814
  %v2831 = vadd.f32 %v2815, %v476
  %v2832 = vadd.f32 %v2816, %v476
  %v2833 = vadd.f32 %v2817, %v476
  %v2834 = vadd.f32 %v2818, %v476
  %v2835 = vadd.f32 %v2819, %v476
  %v2836 = vadd.f32 %v2820, %v476
  %v2837 = vadd.f32 %v2821, %v476
  %v2838 = vadd.f32 %v2822, %v476
  %v2839 = vadd.f32 %v2823, %v476
  %v2840 = vadd.f32 %v2824, %v476
  %v2841 = vadd.f32 %v2825, %v476
  %v2842 = vadd.f32 %v2826, %v476
  %v2843 = vadd.f32 %v2827, %v476
  %v2844 = vadd.f32 %v2828, %v476
  %v2845 = vadd.f32 %v2829, %v476
  %v2846 = vadd.f32 %v2830, %v476
  %v2847 = vmax.f32 %v2831, 0.0
  %v2848 = vmax.f32 %v2832, 0.0
  %v2849 = vmax.f32 %v2833, 0.0
  %v2850 = vmax.f32 %v2834, 0.0
  %v2851 = vmax.f32 %v2835, 0.0
  %v2852 = vmax.f32 %v2836, 0.0
  %v2853 = vmax.f32 %v2837, 0.0
  %v2854 = vmax.f32 %v2838, 0.0
  %v2855 = vmax.f32 %v2839, 0.0
  %v2856 = vmax.f32 %v2840, 0.0
  %v2857 = vmax.f32 %v2841, 0.0
  %v2858 = vmax.f32 %v2842, 0.0
  %v2859 = vmax.f32 %v2843, 0.0
  %v2860 = vmax.f32 %v2844, 0.0
  %v2861 = vmax.f32 %v2845, 0.0
  %v2862 = vmax.f32 %v2846, 0.0
  %v2863 = vmax.f32 %v2847, %v2851
  %v2864 = vmax.f32 %v2848, %v2852
  %v2865 = vmax.f32 %v2849, %v2853
  %v2866 = vmax.f32 %v2850, %v2854
  %v2867 = vmax.f32 %v2851, %v2855
  %v2868 = vmax.f32 %v2852, %v2856
  %v2869 = vmax.f32 %v2853, %v2857
  %v2870 = vmax.f32 %v2854, %v2858
  %v2871 = vmax.f32 %v2855, %v2859
  %v2872 = vmax.f32 %v2856, %v2860
  %v2873 = vmax.f32 %v2857, %v2861
  %v2874 = vmax.f32 %v2858, %v2862
  %2875 = vmatprep.subr.mxu0 0.0
  %2876 = vmatpush1.msra.mxu0 %v2863
  %2877 = vmatprep.subr.mxu0 0.0
  %2878 = vmatpush1.msra.mxu0 %v2864
  %2879 = vmatprep.subr.mxu0 0.0
  %2880 = vmatpush1.msra.mxu0 %v2865
  %2881 = vmatprep.subr.mxu0 0.0
  %2882 = vmatpush1.msra.mxu0 %v2866
  %2883 = vmatprep.subr.mxu0 0.0
  %2884 = vmatpush1.msra.mxu0 %v2867
  %2885 = vmatprep.subr.mxu0 0.0
  %2886 = vmatpush1.msra.mxu0 %v2868
  %2887 = vmatprep.subr.mxu0 0.0
  %2888 = vmatpush1.msra.mxu0 %v2869
  %2889 = vmatprep.subr.mxu0 0.0
  %2890 = vmatpush1.msra.mxu0 %v2870
  %2891 = vmatprep.subr.mxu0 0.0
  %2892 = vmatpush1.msra.mxu0 %v2871
  %2893 = vmatprep.subr.mxu0 0.0
  %2894 = vmatpush1.msra.mxu0 %v2872
  %2895 = vmatprep.subr.mxu0 0.0
  %2896 = vmatpush1.msra.mxu0 %v2873
  %2897 = vmatprep.subr.mxu0 0.0
  %2898 = vmatpush1.msra.mxu0 %v2874
  %2899 = vmatprep.subr.mxu0 0.0
  %2900 = vmatpush1.msra.mxu0 0.0
  %2901 = vmatprep.subr.mxu0 0.0
  %2902 = vmatpush1.msra.mxu0 0.0
  %2903 = vmatprep.subr.mxu0 0.0
  %2904 = vmatpush1.msra.mxu0 0.0
  %2905 = vmatprep.subr.mxu0 0.0
  %2906 = vmatpush1.msra.mxu0 0.0
  %2907 = vmatprep.subr.mxu0 0.0
  %2908 = vmatpush1.msra.mxu0 0.0
  %2909 = vmatprep.subr.mxu0 0.0
  %2910 = vmatpush1.msra.mxu0 0.0
  %2911 = vmatprep.subr.mxu0 0.0
  %2912 = vmatpush1.msra.mxu0 0.0
  %2913 = vmatprep.subr.mxu0 0.0
  %2914 = vmatpush1.msra.mxu0 0.0
  %2915 = vmatprep.subr.mxu0 0.0
  %2916 = vmatpush1.msra.mxu0 0.0
  %2917 = vmatprep.subr.mxu0 0.0
  %2918 = vmatpush1.msra.mxu0 0.0
  %2919 = vmatprep.subr.mxu0 0.0
  %2920 = vmatpush1.msra.mxu0 0.0
  %2921 = vmatprep.subr.mxu0 0.0
  %2922 = vmatpush1.msra.mxu0 0.0
  %2923 = vmatprep.subr.mxu0 0.0
  %2924 = vmatpush1.msra.mxu0 0.0
  %2925 = vmatprep.subr.mxu0 0.0
  %2926 = vmatpush1.msra.mxu0 0.0
  %2927 = vmatprep.subr.mxu0 0.0
  %2928 = vmatpush1.msra.mxu0 0.0
  %2929 = vmatprep.subr.mxu0 0.0
  %2930 = vmatpush1.msra.mxu0 0.0
  %2931 = vmatprep.subr.mxu0 0.0
  %2932 = vmatpush1.msra.mxu0 0.0
  %2933 = vmatprep.subr.mxu0 0.0
  %2934 = vmatpush1.msra.mxu0 0.0
  %2935 = vmatprep.subr.mxu0 0.0
  %2936 = vmatpush1.msra.mxu0 0.0
  %2937 = vmatprep.subr.mxu0 0.0
  %2938 = vmatpush1.msra.mxu0 0.0
  %2939 = vmatprep.mubr.f32.mxu0 0.0
  %2940 = vmatmul.mubr.f32.gmra.mrb[0].mxu0 %v524
  %v2941 = vpop.f32.mrb[0].mxu0
  %v2942 = vadd.f32 0.0, %v2941
  %v2943 = vpop.f32.mrb[0].mxu0
  %2944 = vmatprep.mubr.f32.mxu0 0.0
  %2945 = vmatmul.mubr.f32.gmra.mrb[0].mxu0 %v527
  %v2946 = vpop.f32.mrb[0].mxu0
  %v2947 = vadd.f32 0.0, %v2946
  %v2948 = vpop.f32.mrb[0].mxu0
  %2949 = vmatprep.mubr.f32.mxu0 0.0
  %2950 = vmatmul.mubr.f32.gmra.mrb[0].mxu0 %v530
  %v2951 = vpop.f32.mrb[0].mxu0
  %v2952 = vadd.f32 0.0, %v2951
  %v2953 = vpop.f32.mrb[0].mxu0
  %2954 = vmatprep.mubr.f32.mxu0 0.0
  %2955 = vmatmul.mubr.f32.gmra.mrb[0].mxu0 %v533
  %v2956 = vpop.f32.mrb[0].mxu0
  %v2957 = vadd.f32 0.0, %v2956
  %v2958 = vpop.f32.mrb[0].mxu0
  %2959 = vdwg.mxu0
  %2960 = vmatprep.subr.mxu0 0.0
  %2961 = vmatpush1.msra.mxu0 %v2863
  %2962 = vmatprep.subr.mxu0 0.0
  %2963 = vmatpush1.msra.mxu0 %v2864
  %2964 = vmatprep.subr.mxu0 0.0
  %2965 = vmatpush1.msra.mxu0 %v2865
  %2966 = vmatprep.subr.mxu0 0.0
  %2967 = vmatpush1.msra.mxu0 %v2866
  %2968 = vmatprep.subr.mxu0 0.0
  %2969 = vmatpush1.msra.mxu0 %v2867
  %2970 = vmatprep.subr.mxu0 0.0
  %2971 = vmatpush1.msra.mxu0 %v2868
  %2972 = vmatprep.subr.mxu0 0.0
  %2973 = vmatpush1.msra.mxu0 %v2869
  %2974 = vmatprep.subr.mxu0 0.0
  %2975 = vmatpush1.msra.mxu0 %v2870
  %2976 = vmatprep.subr.mxu0 0.0
  %2977 = vmatpush1.msra.mxu0 %v2871
  %2978 = vmatprep.subr.mxu0 0.0
  %2979 = vmatpush1.msra.mxu0 %v2872
  %2980 = vmatprep.subr.mxu0 0.0
  %2981 = vmatpush1.msra.mxu0 %v2873
  %2982 = vmatprep.subr.mxu0 0.0
  %2983 = vmatpush1.msra.mxu0 %v2874
  %2984 = vmatprep.subr.mxu0 0.0
  %2985 = vmatpush1.msra.mxu0 0.0
  %2986 = vmatprep.subr.mxu0 0.0
  %2987 = vmatpush1.msra.mxu0 0.0
  %2988 = vmatprep.subr.mxu0 0.0
  %2989 = vmatpush1.msra.mxu0 0.0
  %2990 = vmatprep.subr.mxu0 0.0
  %2991 = vmatpush1.msra.mxu0 0.0
  %2992 = vmatprep.subr.mxu0 0.0
  %2993 = vmatpush1.msra.mxu0 0.0
  %2994 = vmatprep.subr.mxu0 0.0
  %2995 = vmatpush1.msra.mxu0 0.0
  %2996 = vmatprep.subr.mxu0 0.0
  %2997 = vmatpush1.msra.mxu0 0.0
  %2998 = vmatprep.subr.mxu0 0.0
  %2999 = vmatpush1.msra.mxu0 0.0
  %3000 = vmatprep.subr.mxu0 0.0
  %3001 = vmatpush1.msra.mxu0 0.0
  %3002 = vmatprep.subr.mxu0 0.0
  %3003 = vmatpush1.msra.mxu0 0.0
  %3004 = vmatprep.subr.mxu0 0.0
  %3005 = vmatpush1.msra.mxu0 0.0
  %3006 = vmatprep.subr.mxu0 0.0
  %3007 = vmatpush1.msra.mxu0 0.0
  %3008 = vmatprep.subr.mxu0 0.0
  %3009 = vmatpush1.msra.mxu0 0.0
  %3010 = vmatprep.subr.mxu0 0.0
  %3011 = vmatpush1.msra.mxu0 0.0
  %3012 = vmatprep.subr.mxu0 0.0
  %3013 = vmatpush1.msra.mxu0 0.0
  %3014 = vmatprep.subr.mxu0 0.0
  %3015 = vmatpush1.msra.mxu0 0.0
  %3016 = vmatprep.subr.mxu0 0.0
  %3017 = vmatpush1.msra.mxu0 0.0
  %3018 = vmatprep.subr.mxu0 0.0
  %3019 = vmatpush1.msra.mxu0 0.0
  %3020 = vmatprep.subr.mxu0 0.0
  %3021 = vmatpush1.msra.mxu0 0.0
  %3022 = vmatprep.subr.mxu0 0.0
  %3023 = vmatpush1.msra.mxu0 0.0
  %3024 = vmatprep.mubr.f32.mxu0 0.0
  %3025 = vmatmul.mubr.f32.gmra.mrb[0].mxu0 %v621
  %v3026 = vpop.f32.mrb[0].mxu0
  %v3027 = vadd.f32 0.0, %v3026
  %v3028 = vpop.f32.mrb[0].mxu0
  %3029 = vmatprep.mubr.f32.mxu0 0.0
  %3030 = vmatmul.mubr.f32.gmra.mrb[0].mxu0 %v624
  %v3031 = vpop.f32.mrb[0].mxu0
  %v3032 = vadd.f32 0.0, %v3031
  %v3033 = vpop.f32.mrb[0].mxu0
  %3034 = vmatprep.mubr.f32.mxu0 0.0
  %3035 = vmatmul.mubr.f32.gmra.mrb[0].mxu0 %v627
  %v3036 = vpop.f32.mrb[0].mxu0
  %v3037 = vadd.f32 0.0, %v3036
  %v3038 = vpop.f32.mrb[0].mxu0
  %3039 = vmatprep.mubr.f32.mxu0 0.0
  %3040 = vmatmul.mubr.f32.gmra.mrb[0].mxu0 %v630
  %v3041 = vpop.f32.mrb[0].mxu0
  %v3042 = vadd.f32 0.0, %v3041
  %v3043 = vpop.f32.mrb[0].mxu0
  %3044 = vdwg.mxu0
  %v3045 = vmax.f32 %v2942, %v3027
  %v3046 = vmax.f32 %v2947, %v3032
  %v3047 = vmax.f32 %v2952, %v3037
  %v3048 = vmax.f32 %v2957, %v3042
  %3049 = vst [vmem:[#allocation2 + $0x90] sm:$0xff] %v3045
  %3050 = vst [vmem:[#allocation2 + $0x98] sm:$0xff] %v3046
  %3051 = vst [vmem:[#allocation2 + $0xa0] sm:$0xff] %v3047
  %3052 = vst [vmem:[#allocation2 + $0xa8] sm:$0xff] %v3048
  %v3053 = vld [vmem:[%s0 + $0x280] sm:$0xff]
  %v3054 = vld [vmem:[%s0 + $0x288] sm:$0xff]
  %v3055 = vld [vmem:[%s0 + $0x290] sm:$0xff]
  %v3056 = vld [vmem:[%s0 + $0x298] sm:$0xff]
  %v3057 = vld [vmem:[%s0 + $0x2a0] sm:$0xff]
  %v3058 = vld [vmem:[%s0 + $0x2a8] sm:$0xff]
  %v3059 = vld [vmem:[%s0 + $0x2b0] sm:$0xff]
  %v3060 = vld [vmem:[%s0 + $0x2b8] sm:$0xff]
  %v3061 = vld [vmem:[%s0 + $0x2c0] sm:$0xff]
  %v3062 = vld [vmem:[%s0 + $0x2c8] sm:$0xff]
  %v3063 = vld [vmem:[%s0 + $0x2d0] sm:$0xff]
  %v3064 = vld [vmem:[%s0 + $0x2d8] sm:$0xff]
  %v3065 = vld [vmem:[%s0 + $0x2e0] sm:$0xff]
  %v3066 = vld [vmem:[%s0 + $0x2e8] sm:$0xff]
  %v3067 = vld [vmem:[%s0 + $0x2f0] sm:$0xff]
  %v3068 = vld [vmem:[%s0 + $0x2f8] sm:$0xff]
  %v3069 = vmul.f32 %v3053, %v95
  %v3070 = vmul.f32 %v3054, %v95
  %v3071 = vmul.f32 %v3055, %v95
  %v3072 = vmul.f32 %v3056, %v95
  %v3073 = vmul.f32 %v3057, %v95
  %v3074 = vmul.f32 %v3058, %v95
  %v3075 = vmul.f32 %v3059, %v95
  %v3076 = vmul.f32 %v3060, %v95
  %v3077 = vmul.f32 %v3061, %v95
  %v3078 = vmul.f32 %v3062, %v95
  %v3079 = vmul.f32 %v3063, %v95
  %v3080 = vmul.f32 %v3064, %v95
  %v3081 = vmul.f32 %v3065, %v95
  %v3082 = vmul.f32 %v3066, %v95
  %v3083 = vmul.f32 %v3067, %v95
  %v3084 = vmul.f32 %v3068, %v95
  %v3085 = vadd.f32 %v3069, 0.0
  %v3086 = vadd.f32 %v3070, 0.0
  %v3087 = vadd.f32 %v3071, 0.0
  %v3088 = vadd.f32 %v3072, 0.0
  %v3089 = vadd.f32 %v3073, 0.0
  %v3090 = vadd.f32 %v3074, 0.0
  %v3091 = vadd.f32 %v3075, 0.0
  %v3092 = vadd.f32 %v3076, 0.0
  %v3093 = vadd.f32 %v3077, 0.0
  %v3094 = vadd.f32 %v3078, 0.0
  %v3095 = vadd.f32 %v3079, 0.0
  %v3096 = vadd.f32 %v3080, 0.0
  %v3097 = vadd.f32 %v3081, 0.0
  %v3098 = vadd.f32 %v3082, 0.0
  %v3099 = vadd.f32 %v3083, 0.0
  %v3100 = vadd.f32 %v3084, 0.0
  %v3101 = vld [vmem:[%s0 + $0x281] sm:$0xff]
  %v3102 = vld [vmem:[%s0 + $0x289] sm:$0xff]
  %v3103 = vld [vmem:[%s0 + $0x291] sm:$0xff]
  %v3104 = vld [vmem:[%s0 + $0x299] sm:$0xff]
  %v3105 = vld [vmem:[%s0 + $0x2a1] sm:$0xff]
  %v3106 = vld [vmem:[%s0 + $0x2a9] sm:$0xff]
  %v3107 = vld [vmem:[%s0 + $0x2b1] sm:$0xff]
  %v3108 = vld [vmem:[%s0 + $0x2b9] sm:$0xff]
  %v3109 = vld [vmem:[%s0 + $0x2c1] sm:$0xff]
  %v3110 = vld [vmem:[%s0 + $0x2c9] sm:$0xff]
  %v3111 = vld [vmem:[%s0 + $0x2d1] sm:$0xff]
  %v3112 = vld [vmem:[%s0 + $0x2d9] sm:$0xff]
  %v3113 = vld [vmem:[%s0 + $0x2e1] sm:$0xff]
  %v3114 = vld [vmem:[%s0 + $0x2e9] sm:$0xff]
  %v3115 = vld [vmem:[%s0 + $0x2f1] sm:$0xff]
  %v3116 = vld [vmem:[%s0 + $0x2f9] sm:$0xff]
  %v3117 = vmul.f32 %v3101, %v147
  %v3118 = vmul.f32 %v3102, %v147
  %v3119 = vmul.f32 %v3103, %v147
  %v3120 = vmul.f32 %v3104, %v147
  %v3121 = vmul.f32 %v3105, %v147
  %v3122 = vmul.f32 %v3106, %v147
  %v3123 = vmul.f32 %v3107, %v147
  %v3124 = vmul.f32 %v3108, %v147
  %v3125 = vmul.f32 %v3109, %v147
  %v3126 = vmul.f32 %v3110, %v147
  %v3127 = vmul.f32 %v3111, %v147
  %v3128 = vmul.f32 %v3112, %v147
  %v3129 = vmul.f32 %v3113, %v147
  %v3130 = vmul.f32 %v3114, %v147
  %v3131 = vmul.f32 %v3115, %v147
  %v3132 = vmul.f32 %v3116, %v147
  %v3133 = vadd.f32 %v3085, %v3117
  %v3134 = vadd.f32 %v3086, %v3118
  %v3135 = vadd.f32 %v3087, %v3119
  %v3136 = vadd.f32 %v3088, %v3120
  %v3137 = vadd.f32 %v3089, %v3121
  %v3138 = vadd.f32 %v3090, %v3122
  %v3139 = vadd.f32 %v3091, %v3123
  %v3140 = vadd.f32 %v3092, %v3124
  %v3141 = vadd.f32 %v3093, %v3125
  %v3142 = vadd.f32 %v3094, %v3126
  %v3143 = vadd.f32 %v3095, %v3127
  %v3144 = vadd.f32 %v3096, %v3128
  %v3145 = vadd.f32 %v3097, %v3129
  %v3146 = vadd.f32 %v3098, %v3130
  %v3147 = vadd.f32 %v3099, %v3131
  %v3148 = vadd.f32 %v3100, %v3132
  %v3149 = vld [vmem:[%s0 + $0x282] sm:$0xff]
  %v3150 = vld [vmem:[%s0 + $0x28a] sm:$0xff]
  %v3151 = vld [vmem:[%s0 + $0x292] sm:$0xff]
  %v3152 = vld [vmem:[%s0 + $0x29a] sm:$0xff]
  %v3153 = vld [vmem:[%s0 + $0x2a2] sm:$0xff]
  %v3154 = vld [vmem:[%s0 + $0x2aa] sm:$0xff]
  %v3155 = vld [vmem:[%s0 + $0x2b2] sm:$0xff]
  %v3156 = vld [vmem:[%s0 + $0x2ba] sm:$0xff]
  %v3157 = vld [vmem:[%s0 + $0x2c2] sm:$0xff]
  %v3158 = vld [vmem:[%s0 + $0x2ca] sm:$0xff]
  %v3159 = vld [vmem:[%s0 + $0x2d2] sm:$0xff]
  %v3160 = vld [vmem:[%s0 + $0x2da] sm:$0xff]
  %v3161 = vld [vmem:[%s0 + $0x2e2] sm:$0xff]
  %v3162 = vld [vmem:[%s0 + $0x2ea] sm:$0xff]
  %v3163 = vld [vmem:[%s0 + $0x2f2] sm:$0xff]
  %v3164 = vld [vmem:[%s0 + $0x2fa] sm:$0xff]
  %v3165 = vmul.f32 %v3149, %v199
  %v3166 = vmul.f32 %v3150, %v199
  %v3167 = vmul.f32 %v3151, %v199
  %v3168 = vmul.f32 %v3152, %v199
  %v3169 = vmul.f32 %v3153, %v199
  %v3170 = vmul.f32 %v3154, %v199
  %v3171 = vmul.f32 %v3155, %v199
  %v3172 = vmul.f32 %v3156, %v199
  %v3173 = vmul.f32 %v3157, %v199
  %v3174 = vmul.f32 %v3158, %v199
  %v3175 = vmul.f32 %v3159, %v199
  %v3176 = vmul.f32 %v3160, %v199
  %v3177 = vmul.f32 %v3161, %v199
  %v3178 = vmul.f32 %v3162, %v199
  %v3179 = vmul.f32 %v3163, %v199
  %v3180 = vmul.f32 %v3164, %v199
  %v3181 = vadd.f32 %v3133, %v3165
  %v3182 = vadd.f32 %v3134, %v3166
  %v3183 = vadd.f32 %v3135, %v3167
  %v3184 = vadd.f32 %v3136, %v3168
  %v3185 = vadd.f32 %v3137, %v3169
  %v3186 = vadd.f32 %v3138, %v3170
  %v3187 = vadd.f32 %v3139, %v3171
  %v3188 = vadd.f32 %v3140, %v3172
  %v3189 = vadd.f32 %v3141, %v3173
  %v3190 = vadd.f32 %v3142, %v3174
  %v3191 = vadd.f32 %v3143, %v3175
  %v3192 = vadd.f32 %v3144, %v3176
  %v3193 = vadd.f32 %v3145, %v3177
  %v3194 = vadd.f32 %v3146, %v3178
  %v3195 = vadd.f32 %v3147, %v3179
  %v3196 = vadd.f32 %v3148, %v3180
  %v3197 = vld [vmem:[%s0 + $0x300] sm:$0xff]
  %v3198 = vld [vmem:[%s0 + $0x308] sm:$0xff]
  %v3199 = vld [vmem:[%s0 + $0x310] sm:$0xff]
  %v3200 = vld [vmem:[%s0 + $0x318] sm:$0xff]
  %v3201 = vmul.f32 %v3057, %v239
  %v3202 = vmul.f32 %v3058, %v239
  %v3203 = vmul.f32 %v3059, %v239
  %v3204 = vmul.f32 %v3060, %v239
  %v3205 = vmul.f32 %v3061, %v239
  %v3206 = vmul.f32 %v3062, %v239
  %v3207 = vmul.f32 %v3063, %v239
  %v3208 = vmul.f32 %v3064, %v239
  %v3209 = vmul.f32 %v3065, %v239
  %v3210 = vmul.f32 %v3066, %v239
  %v3211 = vmul.f32 %v3067, %v239
  %v3212 = vmul.f32 %v3068, %v239
  %v3213 = vmul.f32 %v3197, %v239
  %v3214 = vmul.f32 %v3198, %v239
  %v3215 = vmul.f32 %v3199, %v239
  %v3216 = vmul.f32 %v3200, %v239
  %v3217 = vadd.f32 %v3181, %v3201
  %v3218 = vadd.f32 %v3182, %v3202
  %v3219 = vadd.f32 %v3183, %v3203
  %v3220 = vadd.f32 %v3184, %v3204
  %v3221 = vadd.f32 %v3185, %v3205
  %v3222 = vadd.f32 %v3186, %v3206
  %v3223 = vadd.f32 %v3187, %v3207
  %v3224 = vadd.f32 %v3188, %v3208
  %v3225 = vadd.f32 %v3189, %v3209
  %v3226 = vadd.f32 %v3190, %v3210
  %v3227 = vadd.f32 %v3191, %v3211
  %v3228 = vadd.f32 %v3192, %v3212
  %v3229 = vadd.f32 %v3193, %v3213
  %v3230 = vadd.f32 %v3194, %v3214
  %v3231 = vadd.f32 %v3195, %v3215
  %v3232 = vadd.f32 %v3196, %v3216
  %v3233 = vld [vmem:[%s0 + $0x301] sm:$0xff]
  %v3234 = vld [vmem:[%s0 + $0x309] sm:$0xff]
  %v3235 = vld [vmem:[%s0 + $0x311] sm:$0xff]
  %v3236 = vld [vmem:[%s0 + $0x319] sm:$0xff]
  %v3237 = vmul.f32 %v3105, %v279
  %v3238 = vmul.f32 %v3106, %v279
  %v3239 = vmul.f32 %v3107, %v279
  %v3240 = vmul.f32 %v3108, %v279
  %v3241 = vmul.f32 %v3109, %v279
  %v3242 = vmul.f32 %v3110, %v279
  %v3243 = vmul.f32 %v3111, %v279
  %v3244 = vmul.f32 %v3112, %v279
  %v3245 = vmul.f32 %v3113, %v279
  %v3246 = vmul.f32 %v3114, %v279
  %v3247 = vmul.f32 %v3115, %v279
  %v3248 = vmul.f32 %v3116, %v279
  %v3249 = vmul.f32 %v3233, %v279
  %v3250 = vmul.f32 %v3234, %v279
  %v3251 = vmul.f32 %v3235, %v279
  %v3252 = vmul.f32 %v3236, %v279
  %v3253 = vadd.f32 %v3217, %v3237
  %v3254 = vadd.f32 %v3218, %v3238
  %v3255 = vadd.f32 %v3219, %v3239
  %v3256 = vadd.f32 %v3220, %v3240
  %v3257 = vadd.f32 %v3221, %v3241
  %v3258 = vadd.f32 %v3222, %v3242
  %v3259 = vadd.f32 %v3223, %v3243
  %v3260 = vadd.f32 %v3224, %v3244
  %v3261 = vadd.f32 %v3225, %v3245
  %v3262 = vadd.f32 %v3226, %v3246
  %v3263 = vadd.f32 %v3227, %v3247
  %v3264 = vadd.f32 %v3228, %v3248
  %v3265 = vadd.f32 %v3229, %v3249
  %v3266 = vadd.f32 %v3230, %v3250
  %v3267 = vadd.f32 %v3231, %v3251
  %v3268 = vadd.f32 %v3232, %v3252
  %v3269 = vld [vmem:[%s0 + $0x302] sm:$0xff]
  %v3270 = vld [vmem:[%s0 + $0x30a] sm:$0xff]
  %v3271 = vld [vmem:[%s0 + $0x312] sm:$0xff]
  %v3272 = vld [vmem:[%s0 + $0x31a] sm:$0xff]
  %v3273 = vmul.f32 %v3153, %v319
  %v3274 = vmul.f32 %v3154, %v319
  %v3275 = vmul.f32 %v3155, %v319
  %v3276 = vmul.f32 %v3156, %v319
  %v3277 = vmul.f32 %v3157, %v319
  %v3278 = vmul.f32 %v3158, %v319
  %v3279 = vmul.f32 %v3159, %v319
  %v3280 = vmul.f32 %v3160, %v319
  %v3281 = vmul.f32 %v3161, %v319
  %v3282 = vmul.f32 %v3162, %v319
  %v3283 = vmul.f32 %v3163, %v319
  %v3284 = vmul.f32 %v3164, %v319
  %v3285 = vmul.f32 %v3269, %v319
  %v3286 = vmul.f32 %v3270, %v319
  %v3287 = vmul.f32 %v3271, %v319
  %v3288 = vmul.f32 %v3272, %v319
  %v3289 = vadd.f32 %v3253, %v3273
  %v3290 = vadd.f32 %v3254, %v3274
  %v3291 = vadd.f32 %v3255, %v3275
  %v3292 = vadd.f32 %v3256, %v3276
  %v3293 = vadd.f32 %v3257, %v3277
  %v3294 = vadd.f32 %v3258, %v3278
  %v3295 = vadd.f32 %v3259, %v3279
  %v3296 = vadd.f32 %v3260, %v3280
  %v3297 = vadd.f32 %v3261, %v3281
  %v3298 = vadd.f32 %v3262, %v3282
  %v3299 = vadd.f32 %v3263, %v3283
  %v3300 = vadd.f32 %v3264, %v3284
  %v3301 = vadd.f32 %v3265, %v3285
  %v3302 = vadd.f32 %v3266, %v3286
  %v3303 = vadd.f32 %v3267, %v3287
  %v3304 = vadd.f32 %v3268, %v3288
  %v3305 = vld [vmem:[%s0 + $0x320] sm:$0xff]
  %v3306 = vld [vmem:[%s0 + $0x328] sm:$0xff]
  %v3307 = vld [vmem:[%s0 + $0x330] sm:$0xff]
  %v3308 = vld [vmem:[%s0 + $0x338] sm:$0xff]
  %v3309 = vmul.f32 %v3061, %v359
  %v3310 = vmul.f32 %v3062, %v359
  %v3311 = vmul.f32 %v3063, %v359
  %v3312 = vmul.f32 %v3064, %v359
  %v3313 = vmul.f32 %v3065, %v359
  %v3314 = vmul.f32 %v3066, %v359
  %v3315 = vmul.f32 %v3067, %v359
  %v3316 = vmul.f32 %v3068, %v359
  %v3317 = vmul.f32 %v3197, %v359
  %v3318 = vmul.f32 %v3198, %v359
  %v3319 = vmul.f32 %v3199, %v359
  %v3320 = vmul.f32 %v3200, %v359
  %v3321 = vmul.f32 %v3305, %v359
  %v3322 = vmul.f32 %v3306, %v359
  %v3323 = vmul.f32 %v3307, %v359
  %v3324 = vmul.f32 %v3308, %v359
  %v3325 = vadd.f32 %v3289, %v3309
  %v3326 = vadd.f32 %v3290, %v3310
  %v3327 = vadd.f32 %v3291, %v3311
  %v3328 = vadd.f32 %v3292, %v3312
  %v3329 = vadd.f32 %v3293, %v3313
  %v3330 = vadd.f32 %v3294, %v3314
  %v3331 = vadd.f32 %v3295, %v3315
  %v3332 = vadd.f32 %v3296, %v3316
  %v3333 = vadd.f32 %v3297, %v3317
  %v3334 = vadd.f32 %v3298, %v3318
  %v3335 = vadd.f32 %v3299, %v3319
  %v3336 = vadd.f32 %v3300, %v3320
  %v3337 = vadd.f32 %v3301, %v3321
  %v3338 = vadd.f32 %v3302, %v3322
  %v3339 = vadd.f32 %v3303, %v3323
  %v3340 = vadd.f32 %v3304, %v3324
  %v3341 = vld [vmem:[%s0 + $0x321] sm:$0xff]
  %v3342 = vld [vmem:[%s0 + $0x329] sm:$0xff]
  %v3343 = vld [vmem:[%s0 + $0x331] sm:$0xff]
  %v3344 = vld [vmem:[%s0 + $0x339] sm:$0xff]
  %v3345 = vmul.f32 %v3109, %v399
  %v3346 = vmul.f32 %v3110, %v399
  %v3347 = vmul.f32 %v3111, %v399
  %v3348 = vmul.f32 %v3112, %v399
  %v3349 = vmul.f32 %v3113, %v399
  %v3350 = vmul.f32 %v3114, %v399
  %v3351 = vmul.f32 %v3115, %v399
  %v3352 = vmul.f32 %v3116, %v399
  %v3353 = vmul.f32 %v3233, %v399
  %v3354 = vmul.f32 %v3234, %v399
  %v3355 = vmul.f32 %v3235, %v399
  %v3356 = vmul.f32 %v3236, %v399
  %v3357 = vmul.f32 %v3341, %v399
  %v3358 = vmul.f32 %v3342, %v399
  %v3359 = vmul.f32 %v3343, %v399
  %v3360 = vmul.f32 %v3344, %v399
  %v3361 = vadd.f32 %v3325, %v3345
  %v3362 = vadd.f32 %v3326, %v3346
  %v3363 = vadd.f32 %v3327, %v3347
  %v3364 = vadd.f32 %v3328, %v3348
  %v3365 = vadd.f32 %v3329, %v3349
  %v3366 = vadd.f32 %v3330, %v3350
  %v3367 = vadd.f32 %v3331, %v3351
  %v3368 = vadd.f32 %v3332, %v3352
  %v3369 = vadd.f32 %v3333, %v3353
  %v3370 = vadd.f32 %v3334, %v3354
  %v3371 = vadd.f32 %v3335, %v3355
  %v3372 = vadd.f32 %v3336, %v3356
  %v3373 = vadd.f32 %v3337, %v3357
  %v3374 = vadd.f32 %v3338, %v3358
  %v3375 = vadd.f32 %v3339, %v3359
  %v3376 = vadd.f32 %v3340, %v3360
  %v3377 = vld [vmem:[%s0 + $0x322] sm:$0xff]
  %v3378 = vld [vmem:[%s0 + $0x32a] sm:$0xff]
  %v3379 = vld [vmem:[%s0 + $0x332] sm:$0xff]
  %v3380 = vld [vmem:[%s0 + $0x33a] sm:$0xff]
  %v3381 = vmul.f32 %v3157, %v439
  %v3382 = vmul.f32 %v3158, %v439
  %v3383 = vmul.f32 %v3159, %v439
  %v3384 = vmul.f32 %v3160, %v439
  %v3385 = vmul.f32 %v3161, %v439
  %v3386 = vmul.f32 %v3162, %v439
  %v3387 = vmul.f32 %v3163, %v439
  %v3388 = vmul.f32 %v3164, %v439
  %v3389 = vmul.f32 %v3269, %v439
  %v3390 = vmul.f32 %v3270, %v439
  %v3391 = vmul.f32 %v3271, %v439
  %v3392 = vmul.f32 %v3272, %v439
  %v3393 = vmul.f32 %v3377, %v439
  %v3394 = vmul.f32 %v3378, %v439
  %v3395 = vmul.f32 %v3379, %v439
  %v3396 = vmul.f32 %v3380, %v439
  %v3397 = vadd.f32 %v3361, %v3381
  %v3398 = vadd.f32 %v3362, %v3382
  %v3399 = vadd.f32 %v3363, %v3383
  %v3400 = vadd.f32 %v3364, %v3384
  %v3401 = vadd.f32 %v3365, %v3385
  %v3402 = vadd.f32 %v3366, %v3386
  %v3403 = vadd.f32 %v3367, %v3387
  %v3404 = vadd.f32 %v3368, %v3388
  %v3405 = vadd.f32 %v3369, %v3389
  %v3406 = vadd.f32 %v3370, %v3390
  %v3407 = vadd.f32 %v3371, %v3391
  %v3408 = vadd.f32 %v3372, %v3392
  %v3409 = vadd.f32 %v3373, %v3393
  %v3410 = vadd.f32 %v3374, %v3394
  %v3411 = vadd.f32 %v3375, %v3395
  %v3412 = vadd.f32 %v3376, %v3396
  %v3413 = vadd.f32 %v3397, %v476
  %v3414 = vadd.f32 %v3398, %v476
  %v3415 = vadd.f32 %v3399, %v476
  %v3416 = vadd.f32 %v3400, %v476
  %v3417 = vadd.f32 %v3401, %v476
  %v3418 = vadd.f32 %v3402, %v476
  %v3419 = vadd.f32 %v3403, %v476
  %v3420 = vadd.f32 %v3404, %v476
  %v3421 = vadd.f32 %v3405, %v476
  %v3422 = vadd.f32 %v3406, %v476
  %v3423 = vadd.f32 %v3407, %v476
  %v3424 = vadd.f32 %v3408, %v476
  %v3425 = vadd.f32 %v3409, %v476
  %v3426 = vadd.f32 %v3410, %v476
  %v3427 = vadd.f32 %v3411, %v476
  %v3428 = vadd.f32 %v3412, %v476
  %v3429 = vmax.f32 %v3413, 0.0
  %v3430 = vmax.f32 %v3414, 0.0
  %v3431 = vmax.f32 %v3415, 0.0
  %v3432 = vmax.f32 %v3416, 0.0
  %v3433 = vmax.f32 %v3417, 0.0
  %v3434 = vmax.f32 %v3418, 0.0
  %v3435 = vmax.f32 %v3419, 0.0
  %v3436 = vmax.f32 %v3420, 0.0
  %v3437 = vmax.f32 %v3421, 0.0
  %v3438 = vmax.f32 %v3422, 0.0
  %v3439 = vmax.f32 %v3423, 0.0
  %v3440 = vmax.f32 %v3424, 0.0
  %v3441 = vmax.f32 %v3425, 0.0
  %v3442 = vmax.f32 %v3426, 0.0
  %v3443 = vmax.f32 %v3427, 0.0
  %v3444 = vmax.f32 %v3428, 0.0
  %v3445 = vmax.f32 %v3429, %v3433
  %v3446 = vmax.f32 %v3430, %v3434
  %v3447 = vmax.f32 %v3431, %v3435
  %v3448 = vmax.f32 %v3432, %v3436
  %v3449 = vmax.f32 %v3433, %v3437
  %v3450 = vmax.f32 %v3434, %v3438
  %v3451 = vmax.f32 %v3435, %v3439
  %v3452 = vmax.f32 %v3436, %v3440
  %v3453 = vmax.f32 %v3437, %v3441
  %v3454 = vmax.f32 %v3438, %v3442
  %v3455 = vmax.f32 %v3439, %v3443
  %v3456 = vmax.f32 %v3440, %v3444
  %3457 = vmatprep.subr.mxu0 0.0
  %3458 = vmatpush1.msra.mxu0 %v3445
  %3459 = vmatprep.subr.mxu0 0.0
  %3460 = vmatpush1.msra.mxu0 %v3446
  %3461 = vmatprep.subr.mxu0 0.0
  %3462 = vmatpush1.msra.mxu0 %v3447
  %3463 = vmatprep.subr.mxu0 0.0
  %3464 = vmatpush1.msra.mxu0 %v3448
  %3465 = vmatprep.subr.mxu0 0.0
  %3466 = vmatpush1.msra.mxu0 %v3449
  %3467 = vmatprep.subr.mxu0 0.0
  %3468 = vmatpush1.msra.mxu0 %v3450
  %3469 = vmatprep.subr.mxu0 0.0
  %3470 = vmatpush1.msra.mxu0 %v3451
  %3471 = vmatprep.subr.mxu0 0.0
  %3472 = vmatpush1.msra.mxu0 %v3452
  %3473 = vmatprep.subr.mxu0 0.0
  %3474 = vmatpush1.msra.mxu0 %v3453
  %3475 = vmatprep.subr.mxu0 0.0
  %3476 = vmatpush1.msra.mxu0 %v3454
  %3477 = vmatprep.subr.mxu0 0.0
  %3478 = vmatpush1.msra.mxu0 %v3455
  %3479 = vmatprep.subr.mxu0 0.0
  %3480 = vmatpush1.msra.mxu0 %v3456
  %3481 = vmatprep.subr.mxu0 0.0
  %3482 = vmatpush1.msra.mxu0 0.0
  %3483 = vmatprep.subr.mxu0 0.0
  %3484 = vmatpush1.msra.mxu0 0.0
  %3485 = vmatprep.subr.mxu0 0.0
  %3486 = vmatpush1.msra.mxu0 0.0
  %3487 = vmatprep.subr.mxu0 0.0
  %3488 = vmatpush1.msra.mxu0 0.0
  %3489 = vmatprep.subr.mxu0 0.0
  %3490 = vmatpush1.msra.mxu0 0.0
  %3491 = vmatprep.subr.mxu0 0.0
  %3492 = vmatpush1.msra.mxu0 0.0
  %3493 = vmatprep.subr.mxu0 0.0
  %3494 = vmatpush1.msra.mxu0 0.0
  %3495 = vmatprep.subr.mxu0 0.0
  %3496 = vmatpush1.msra.mxu0 0.0
  %3497 = vmatprep.subr.mxu0 0.0
  %3498 = vmatpush1.msra.mxu0 0.0
  %3499 = vmatprep.subr.mxu0 0.0
  %3500 = vmatpush1.msra.mxu0 0.0
  %3501 = vmatprep.subr.mxu0 0.0
  %3502 = vmatpush1.msra.mxu0 0.0
  %3503 = vmatprep.subr.mxu0 0.0
  %3504 = vmatpush1.msra.mxu0 0.0
  %3505 = vmatprep.subr.mxu0 0.0
  %3506 = vmatpush1.msra.mxu0 0.0
  %3507 = vmatprep.subr.mxu0 0.0
  %3508 = vmatpush1.msra.mxu0 0.0
  %3509 = vmatprep.subr.mxu0 0.0
  %3510 = vmatpush1.msra.mxu0 0.0
  %3511 = vmatprep.subr.mxu0 0.0
  %3512 = vmatpush1.msra.mxu0 0.0
  %3513 = vmatprep.subr.mxu0 0.0
  %3514 = vmatpush1.msra.mxu0 0.0
  %3515 = vmatprep.subr.mxu0 0.0
  %3516 = vmatpush1.msra.mxu0 0.0
  %3517 = vmatprep.subr.mxu0 0.0
  %3518 = vmatpush1.msra.mxu0 0.0
  %3519 = vmatprep.subr.mxu0 0.0
  %3520 = vmatpush1.msra.mxu0 0.0
  %3521 = vmatprep.mubr.f32.mxu0 0.0
  %3522 = vmatmul.mubr.f32.gmra.mrb[0].mxu0 %v524
  %v3523 = vpop.f32.mrb[0].mxu0
  %v3524 = vadd.f32 0.0, %v3523
  %v3525 = vpop.f32.mrb[0].mxu0
  %3526 = vmatprep.mubr.f32.mxu0 0.0
  %3527 = vmatmul.mubr.f32.gmra.mrb[0].mxu0 %v527
  %v3528 = vpop.f32.mrb[0].mxu0
  %v3529 = vadd.f32 0.0, %v3528
  %v3530 = vpop.f32.mrb[0].mxu0
  %3531 = vmatprep.mubr.f32.mxu0 0.0
  %3532 = vmatmul.mubr.f32.gmra.mrb[0].mxu0 %v530
  %v3533 = vpop.f32.mrb[0].mxu0
  %v3534 = vadd.f32 0.0, %v3533
  %v3535 = vpop.f32.mrb[0].mxu0
  %3536 = vmatprep.mubr.f32.mxu0 0.0
  %3537 = vmatmul.mubr.f32.gmra.mrb[0].mxu0 %v533
  %v3538 = vpop.f32.mrb[0].mxu0
  %v3539 = vadd.f32 0.0, %v3538
  %v3540 = vpop.f32.mrb[0].mxu0
  %3541 = vdwg.mxu0
  %3542 = vmatprep.subr.mxu0 0.0
  %3543 = vmatpush1.msra.mxu0 %v3445
  %3544 = vmatprep.subr.mxu0 0.0
  %3545 = vmatpush1.msra.mxu0 %v3446
  %3546 = vmatprep.subr.mxu0 0.0
  %3547 = vmatpush1.msra.mxu0 %v3447
  %3548 = vmatprep.subr.mxu0 0.0
  %3549 = vmatpush1.msra.mxu0 %v3448
  %3550 = vmatprep.subr.mxu0 0.0
  %3551 = vmatpush1.msra.mxu0 %v3449
  %3552 = vmatprep.subr.mxu0 0.0
  %3553 = vmatpush1.msra.mxu0 %v3450
  %3554 = vmatprep.subr.mxu0 0.0
  %3555 = vmatpush1.msra.mxu0 %v3451
  %3556 = vmatprep.subr.mxu0 0.0
  %3557 = vmatpush1.msra.mxu0 %v3452
  %3558 = vmatprep.subr.mxu0 0.0
  %3559 = vmatpush1.msra.mxu0 %v3453
  %3560 = vmatprep.subr.mxu0 0.0
  %3561 = vmatpush1.msra.mxu0 %v3454
  %3562 = vmatprep.subr.mxu0 0.0
  %3563 = vmatpush1.msra.mxu0 %v3455
  %3564 = vmatprep.subr.mxu0 0.0
  %3565 = vmatpush1.msra.mxu0 %v3456
  %3566 = vmatprep.subr.mxu0 0.0
  %3567 = vmatpush1.msra.mxu0 0.0
  %3568 = vmatprep.subr.mxu0 0.0
  %3569 = vmatpush1.msra.mxu0 0.0
  %3570 = vmatprep.subr.mxu0 0.0
  %3571 = vmatpush1.msra.mxu0 0.0
  %3572 = vmatprep.subr.mxu0 0.0
  %3573 = vmatpush1.msra.mxu0 0.0
  %3574 = vmatprep.subr.mxu0 0.0
  %3575 = vmatpush1.msra.mxu0 0.0
  %3576 = vmatprep.subr.mxu0 0.0
  %3577 = vmatpush1.msra.mxu0 0.0
  %3578 = vmatprep.subr.mxu0 0.0
  %3579 = vmatpush1.msra.mxu0 0.0
  %3580 = vmatprep.subr.mxu0 0.0
  %3581 = vmatpush1.msra.mxu0 0.0
  %3582 = vmatprep.subr.mxu0 0.0
  %3583 = vmatpush1.msra.mxu0 0.0
  %3584 = vmatprep.subr.mxu0 0.0
  %3585 = vmatpush1.msra.mxu0 0.0
  %3586 = vmatprep.subr.mxu0 0.0
  %3587 = vmatpush1.msra.mxu0 0.0
  %3588 = vmatprep.subr.mxu0 0.0
  %3589 = vmatpush1.msra.mxu0 0.0
  %3590 = vmatprep.subr.mxu0 0.0
  %3591 = vmatpush1.msra.mxu0 0.0
  %3592 = vmatprep.subr.mxu0 0.0
  %3593 = vmatpush1.msra.mxu0 0.0
  %3594 = vmatprep.subr.mxu0 0.0
  %3595 = vmatpush1.msra.mxu0 0.0
  %3596 = vmatprep.subr.mxu0 0.0
  %3597 = vmatpush1.msra.mxu0 0.0
  %3598 = vmatprep.subr.mxu0 0.0
  %3599 = vmatpush1.msra.mxu0 0.0
  %3600 = vmatprep.subr.mxu0 0.0
  %3601 = vmatpush1.msra.mxu0 0.0
  %3602 = vmatprep.subr.mxu0 0.0
  %3603 = vmatpush1.msra.mxu0 0.0
  %3604 = vmatprep.subr.mxu0 0.0
  %3605 = vmatpush1.msra.mxu0 0.0
  %3606 = vmatprep.mubr.f32.mxu0 0.0
  %3607 = vmatmul.mubr.f32.gmra.mrb[0].mxu0 %v621
  %v3608 = vpop.f32.mrb[0].mxu0
  %v3609 = vadd.f32 0.0, %v3608
  %v3610 = vpop.f32.mrb[0].mxu0
  %3611 = vmatprep.mubr.f32.mxu0 0.0
  %3612 = vmatmul.mubr.f32.gmra.mrb[0].mxu0 %v624
  %v3613 = vpop.f32.mrb[0].mxu0
  %v3614 = vadd.f32 0.0, %v3613
  %v3615 = vpop.f32.mrb[0].mxu0
  %3616 = vmatprep.mubr.f32.mxu0 0.0
  %3617 = vmatmul.mubr.f32.gmra.mrb[0].mxu0 %v627
  %v3618 = vpop.f32.mrb[0].mxu0
  %v3619 = vadd.f32 0.0, %v3618
  %v3620 = vpop.f32.mrb[0].mxu0
  %3621 = vmatprep.mubr.f32.mxu0 0.0
  %3622 = vmatmul.mubr.f32.gmra.mrb[0].mxu0 %v630
  %v3623 = vpop.f32.mrb[0].mxu0
  %v3624 = vadd.f32 0.0, %v3623
  %v3625 = vpop.f32.mrb[0].mxu0
  %3626 = vdwg.mxu0
  %v3627 = vmax.f32 %v3524, %v3609
  %v3628 = vmax.f32 %v3529, %v3614
  %v3629 = vmax.f32 %v3534, %v3619
  %v3630 = vmax.f32 %v3539, %v3624
  %3631 = vst [vmem:[#allocation2 + $0xb0] sm:$0xff] %v3627
  %3632 = vst [vmem:[#allocation2 + $0xb8] sm:$0xff] %v3628
  %3633 = vst [vmem:[#allocation2 + $0xc0] sm:$0xff] %v3629
  %3634 = vst [vmem:[#allocation2 + $0xc8] sm:$0xff] %v3630
  %v3635 = vld [vmem:[%s0 + $0x300] sm:$0xff]
  %v3636 = vld [vmem:[%s0 + $0x308] sm:$0xff]
  %v3637 = vld [vmem:[%s0 + $0x310] sm:$0xff]
  %v3638 = vld [vmem:[%s0 + $0x318] sm:$0xff]
  %v3639 = vld [vmem:[%s0 + $0x320] sm:$0xff]
  %v3640 = vld [vmem:[%s0 + $0x328] sm:$0xff]
  %v3641 = vld [vmem:[%s0 + $0x330] sm:$0xff]
  %v3642 = vld [vmem:[%s0 + $0x338] sm:$0xff]
  %v3643 = vld [vmem:[%s0 + $0x340] sm:$0xff]
  %v3644 = vld [vmem:[%s0 + $0x348] sm:$0xff]
  %v3645 = vld [vmem:[%s0 + $0x350] sm:$0xff]
  %v3646 = vld [vmem:[%s0 + $0x358] sm:$0xff]
  %v3647 = vld [vmem:[%s0 + $0x360] sm:$0xff]
  %v3648 = vld [vmem:[%s0 + $0x368] sm:$0xff]
  %v3649 = vld [vmem:[%s0 + $0x370] sm:$0xff]
  %v3650 = vld [vmem:[%s0 + $0x378] sm:$0xff]
  %v3651 = vmul.f32 %v3635, %v95
  %v3652 = vmul.f32 %v3636, %v95
  %v3653 = vmul.f32 %v3637, %v95
  %v3654 = vmul.f32 %v3638, %v95
  %v3655 = vmul.f32 %v3639, %v95
  %v3656 = vmul.f32 %v3640, %v95
  %v3657 = vmul.f32 %v3641, %v95
  %v3658 = vmul.f32 %v3642, %v95
  %v3659 = vmul.f32 %v3643, %v95
  %v3660 = vmul.f32 %v3644, %v95
  %v3661 = vmul.f32 %v3645, %v95
  %v3662 = vmul.f32 %v3646, %v95
  %v3663 = vmul.f32 %v3647, %v95
  %v3664 = vmul.f32 %v3648, %v95
  %v3665 = vmul.f32 %v3649, %v95
  %v3666 = vmul.f32 %v3650, %v95
  %v3667 = vadd.f32 %v3651, 0.0
  %v3668 = vadd.f32 %v3652, 0.0
  %v3669 = vadd.f32 %v3653, 0.0
  %v3670 = vadd.f32 %v3654, 0.0
  %v3671 = vadd.f32 %v3655, 0.0
  %v3672 = vadd.f32 %v3656, 0.0
  %v3673 = vadd.f32 %v3657, 0.0
  %v3674 = vadd.f32 %v3658, 0.0
  %v3675 = vadd.f32 %v3659, 0.0
  %v3676 = vadd.f32 %v3660, 0.0
  %v3677 = vadd.f32 %v3661, 0.0
  %v3678 = vadd.f32 %v3662, 0.0
  %v3679 = vadd.f32 %v3663, 0.0
  %v3680 = vadd.f32 %v3664, 0.0
  %v3681 = vadd.f32 %v3665, 0.0
  %v3682 = vadd.f32 %v3666, 0.0
  %v3683 = vld [vmem:[%s0 + $0x301] sm:$0xff]
  %v3684 = vld [vmem:[%s0 + $0x309] sm:$0xff]
  %v3685 = vld [vmem:[%s0 + $0x311] sm:$0xff]
  %v3686 = vld [vmem:[%s0 + $0x319] sm:$0xff]
  %v3687 = vld [vmem:[%s0 + $0x321] sm:$0xff]
  %v3688 = vld [vmem:[%s0 + $0x329] sm:$0xff]
  %v3689 = vld [vmem:[%s0 + $0x331] sm:$0xff]
  %v3690 = vld [vmem:[%s0 + $0x339] sm:$0xff]
  %v3691 = vld [vmem:[%s0 + $0x341] sm:$0xff]
  %v3692 = vld [vmem:[%s0 + $0x349] sm:$0xff]
  %v3693 = vld [vmem:[%s0 + $0x351] sm:$0xff]
  %v3694 = vld [vmem:[%s0 + $0x359] sm:$0xff]
  %v3695 = vld [vmem:[%s0 + $0x361] sm:$0xff]
  %v3696 = vld [vmem:[%s0 + $0x369] sm:$0xff]
  %v3697 = vld [vmem:[%s0 + $0x371] sm:$0xff]
  %v3698 = vld [vmem:[%s0 + $0x379] sm:$0xff]
  %v3699 = vmul.f32 %v3683, %v147
  %v3700 = vmul.f32 %v3684, %v147
  %v3701 = vmul.f32 %v3685, %v147
  %v3702 = vmul.f32 %v3686, %v147
  %v3703 = vmul.f32 %v3687, %v147
  %v3704 = vmul.f32 %v3688, %v147
  %v3705 = vmul.f32 %v3689, %v147
  %v3706 = vmul.f32 %v3690, %v147
  %v3707 = vmul.f32 %v3691, %v147
  %v3708 = vmul.f32 %v3692, %v147
  %v3709 = vmul.f32 %v3693, %v147
  %v3710 = vmul.f32 %v3694, %v147
  %v3711 = vmul.f32 %v3695, %v147
  %v3712 = vmul.f32 %v3696, %v147
  %v3713 = vmul.f32 %v3697, %v147
  %v3714 = vmul.f32 %v3698, %v147
  %v3715 = vadd.f32 %v3667, %v3699
  %v3716 = vadd.f32 %v3668, %v3700
  %v3717 = vadd.f32 %v3669, %v3701
  %v3718 = vadd.f32 %v3670, %v3702
  %v3719 = vadd.f32 %v3671, %v3703
  %v3720 = vadd.f32 %v3672, %v3704
  %v3721 = vadd.f32 %v3673, %v3705
  %v3722 = vadd.f32 %v3674, %v3706
  %v3723 = vadd.f32 %v3675, %v3707
  %v3724 = vadd.f32 %v3676, %v3708
  %v3725 = vadd.f32 %v3677, %v3709
  %v3726 = vadd.f32 %v3678, %v3710
  %v3727 = vadd.f32 %v3679, %v3711
  %v3728 = vadd.f32 %v3680, %v3712
  %v3729 = vadd.f32 %v3681, %v3713
  %v3730 = vadd.f32 %v3682, %v3714
  %v3731 = vld [vmem:[%s0 + $0x302] sm:$0xff]
  %v3732 = vld [vmem:[%s0 + $0x30a] sm:$0xff]
  %v3733 = vld [vmem:[%s0 + $0x312] sm:$0xff]
  %v3734 = vld [vmem:[%s0 + $0x31a] sm:$0xff]
  %v3735 = vld [vmem:[%s0 + $0x322] sm:$0xff]
  %v3736 = vld [vmem:[%s0 + $0x32a] sm:$0xff]
  %v3737 = vld [vmem:[%s0 + $0x332] sm:$0xff]
  %v3738 = vld [vmem:[%s0 + $0x33a] sm:$0xff]
  %v3739 = vld [vmem:[%s0 + $0x342] sm:$0xff]
  %v3740 = vld [vmem:[%s0 + $0x34a] sm:$0xff]
  %v3741 = vld [vmem:[%s0 + $0x352] sm:$0xff]
  %v3742 = vld [vmem:[%s0 + $0x35a] sm:$0xff]
  %v3743 = vld [vmem:[%s0 + $0x362] sm:$0xff]
  %v3744 = vld [vmem:[%s0 + $0x36a] sm:$0xff]
  %v3745 = vld [vmem:[%s0 + $0x372] sm:$0xff]
  %v3746 = vld [vmem:[%s0 + $0x37a] sm:$0xff]
  %v3747 = vmul.f32 %v3731, %v199
  %v3748 = vmul.f32 %v3732, %v199
  %v3749 = vmul.f32 %v3733, %v199
  %v3750 = vmul.f32 %v3734, %v199
  %v3751 = vmul.f32 %v3735, %v199
  %v3752 = vmul.f32 %v3736, %v199
  %v3753 = vmul.f32 %v3737, %v199
  %v3754 = vmul.f32 %v3738, %v199
  %v3755 = vmul.f32 %v3739, %v199
  %v3756 = vmul.f32 %v3740, %v199
  %v3757 = vmul.f32 %v3741, %v199
  %v3758 = vmul.f32 %v3742, %v199
  %v3759 = vmul.f32 %v3743, %v199
  %v3760 = vmul.f32 %v3744, %v199
  %v3761 = vmul.f32 %v3745, %v199
  %v3762 = vmul.f32 %v3746, %v199
  %v3763 = vadd.f32 %v3715, %v3747
  %v3764 = vadd.f32 %v3716, %v3748
  %v3765 = vadd.f32 %v3717, %v3749
  %v3766 = vadd.f32 %v3718, %v3750
  %v3767 = vadd.f32 %v3719, %v3751
  %v3768 = vadd.f32 %v3720, %v3752
  %v3769 = vadd.f32 %v3721, %v3753
  %v3770 = vadd.f32 %v3722, %v3754
  %v3771 = vadd.f32 %v3723, %v3755
  %v3772 = vadd.f32 %v3724, %v3756
  %v3773 = vadd.f32 %v3725, %v3757
  %v3774 = vadd.f32 %v3726, %v3758
  %v3775 = vadd.f32 %v3727, %v3759
  %v3776 = vadd.f32 %v3728, %v3760
  %v3777 = vadd.f32 %v3729, %v3761
  %v3778 = vadd.f32 %v3730, %v3762
  %v3779 = vld [vmem:[%s0 + $0x380] sm:$0xff]
  %v3780 = vld [vmem:[%s0 + $0x388] sm:$0xff]
  %v3781 = vld [vmem:[%s0 + $0x390] sm:$0xff]
  %v3782 = vld [vmem:[%s0 + $0x398] sm:$0xff]
  %v3783 = vmul.f32 %v3639, %v239
  %v3784 = vmul.f32 %v3640, %v239
  %v3785 = vmul.f32 %v3641, %v239
  %v3786 = vmul.f32 %v3642, %v239
  %v3787 = vmul.f32 %v3643, %v239
  %v3788 = vmul.f32 %v3644, %v239
  %v3789 = vmul.f32 %v3645, %v239
  %v3790 = vmul.f32 %v3646, %v239
  %v3791 = vmul.f32 %v3647, %v239
  %v3792 = vmul.f32 %v3648, %v239
  %v3793 = vmul.f32 %v3649, %v239
  %v3794 = vmul.f32 %v3650, %v239
  %v3795 = vmul.f32 %v3779, %v239
  %v3796 = vmul.f32 %v3780, %v239
  %v3797 = vmul.f32 %v3781, %v239
  %v3798 = vmul.f32 %v3782, %v239
  %v3799 = vadd.f32 %v3763, %v3783
  %v3800 = vadd.f32 %v3764, %v3784
  %v3801 = vadd.f32 %v3765, %v3785
  %v3802 = vadd.f32 %v3766, %v3786
  %v3803 = vadd.f32 %v3767, %v3787
  %v3804 = vadd.f32 %v3768, %v3788
  %v3805 = vadd.f32 %v3769, %v3789
  %v3806 = vadd.f32 %v3770, %v3790
  %v3807 = vadd.f32 %v3771, %v3791
  %v3808 = vadd.f32 %v3772, %v3792
  %v3809 = vadd.f32 %v3773, %v3793
  %v3810 = vadd.f32 %v3774, %v3794
  %v3811 = vadd.f32 %v3775, %v3795
  %v3812 = vadd.f32 %v3776, %v3796
  %v3813 = vadd.f32 %v3777, %v3797
  %v3814 = vadd.f32 %v3778, %v3798
  %v3815 = vld [vmem:[%s0 + $0x381] sm:$0xff]
  %v3816 = vld [vmem:[%s0 + $0x389] sm:$0xff]
  %v3817 = vld [vmem:[%s0 + $0x391] sm:$0xff]
  %v3818 = vld [vmem:[%s0 + $0x399] sm:$0xff]
  %v3819 = vmul.f32 %v3687, %v279
  %v3820 = vmul.f32 %v3688, %v279
  %v3821 = vmul.f32 %v3689, %v279
  %v3822 = vmul.f32 %v3690, %v279
  %v3823 = vmul.f32 %v3691, %v279
  %v3824 = vmul.f32 %v3692, %v279
  %v3825 = vmul.f32 %v3693, %v279
  %v3826 = vmul.f32 %v3694, %v279
  %v3827 = vmul.f32 %v3695, %v279
  %v3828 = vmul.f32 %v3696, %v279
  %v3829 = vmul.f32 %v3697, %v279
  %v3830 = vmul.f32 %v3698, %v279
  %v3831 = vmul.f32 %v3815, %v279
  %v3832 = vmul.f32 %v3816, %v279
  %v3833 = vmul.f32 %v3817, %v279
  %v3834 = vmul.f32 %v3818, %v279
  %v3835 = vadd.f32 %v3799, %v3819
  %v3836 = vadd.f32 %v3800, %v3820
  %v3837 = vadd.f32 %v3801, %v3821
  %v3838 = vadd.f32 %v3802, %v3822
  %v3839 = vadd.f32 %v3803, %v3823
  %v3840 = vadd.f32 %v3804, %v3824
  %v3841 = vadd.f32 %v3805, %v3825
  %v3842 = vadd.f32 %v3806, %v3826
  %v3843 = vadd.f32 %v3807, %v3827
  %v3844 = vadd.f32 %v3808, %v3828
  %v3845 = vadd.f32 %v3809, %v3829
  %v3846 = vadd.f32 %v3810, %v3830
  %v3847 = vadd.f32 %v3811, %v3831
  %v3848 = vadd.f32 %v3812, %v3832
  %v3849 = vadd.f32 %v3813, %v3833
  %v3850 = vadd.f32 %v3814, %v3834
  %v3851 = vld [vmem:[%s0 + $0x382] sm:$0xff]
  %v3852 = vld [vmem:[%s0 + $0x38a] sm:$0xff]
  %v3853 = vld [vmem:[%s0 + $0x392] sm:$0xff]
  %v3854 = vld [vmem:[%s0 + $0x39a] sm:$0xff]
  %v3855 = vmul.f32 %v3735, %v319
  %v3856 = vmul.f32 %v3736, %v319
  %v3857 = vmul.f32 %v3737, %v319
  %v3858 = vmul.f32 %v3738, %v319
  %v3859 = vmul.f32 %v3739, %v319
  %v3860 = vmul.f32 %v3740, %v319
  %v3861 = vmul.f32 %v3741, %v319
  %v3862 = vmul.f32 %v3742, %v319
  %v3863 = vmul.f32 %v3743, %v319
  %v3864 = vmul.f32 %v3744, %v319
  %v3865 = vmul.f32 %v3745, %v319
  %v3866 = vmul.f32 %v3746, %v319
  %v3867 = vmul.f32 %v3851, %v319
  %v3868 = vmul.f32 %v3852, %v319
  %v3869 = vmul.f32 %v3853, %v319
  %v3870 = vmul.f32 %v3854, %v319
  %v3871 = vadd.f32 %v3835, %v3855
  %v3872 = vadd.f32 %v3836, %v3856
  %v3873 = vadd.f32 %v3837, %v3857
  %v3874 = vadd.f32 %v3838, %v3858
  %v3875 = vadd.f32 %v3839, %v3859
  %v3876 = vadd.f32 %v3840, %v3860
  %v3877 = vadd.f32 %v3841, %v3861
  %v3878 = vadd.f32 %v3842, %v3862
  %v3879 = vadd.f32 %v3843, %v3863
  %v3880 = vadd.f32 %v3844, %v3864
  %v3881 = vadd.f32 %v3845, %v3865
  %v3882 = vadd.f32 %v3846, %v3866
  %v3883 = vadd.f32 %v3847, %v3867
  %v3884 = vadd.f32 %v3848, %v3868
  %v3885 = vadd.f32 %v3849, %v3869
  %v3886 = vadd.f32 %v3850, %v3870
  %v3887 = vld [vmem:[%s0 + $0x3a0] sm:$0xff]
  %v3888 = vld [vmem:[%s0 + $0x3a8] sm:$0xff]
  %v3889 = vld [vmem:[%s0 + $0x3b0] sm:$0xff]
  %v3890 = vld [vmem:[%s0 + $0x3b8] sm:$0xff]
  %v3891 = vmul.f32 %v3643, %v359
  %v3892 = vmul.f32 %v3644, %v359
  %v3893 = vmul.f32 %v3645, %v359
  %v3894 = vmul.f32 %v3646, %v359
  %v3895 = vmul.f32 %v3647, %v359
  %v3896 = vmul.f32 %v3648, %v359
  %v3897 = vmul.f32 %v3649, %v359
  %v3898 = vmul.f32 %v3650, %v359
  %v3899 = vmul.f32 %v3779, %v359
  %v3900 = vmul.f32 %v3780, %v359
  %v3901 = vmul.f32 %v3781, %v359
  %v3902 = vmul.f32 %v3782, %v359
  %v3903 = vmul.f32 %v3887, %v359
  %v3904 = vmul.f32 %v3888, %v359
  %v3905 = vmul.f32 %v3889, %v359
  %v3906 = vmul.f32 %v3890, %v359
  %v3907 = vadd.f32 %v3871, %v3891
  %v3908 = vadd.f32 %v3872, %v3892
  %v3909 = vadd.f32 %v3873, %v3893
  %v3910 = vadd.f32 %v3874, %v3894
  %v3911 = vadd.f32 %v3875, %v3895
  %v3912 = vadd.f32 %v3876, %v3896
  %v3913 = vadd.f32 %v3877, %v3897
  %v3914 = vadd.f32 %v3878, %v3898
  %v3915 = vadd.f32 %v3879, %v3899
  %v3916 = vadd.f32 %v3880, %v3900
  %v3917 = vadd.f32 %v3881, %v3901
  %v3918 = vadd.f32 %v3882, %v3902
  %v3919 = vadd.f32 %v3883, %v3903
  %v3920 = vadd.f32 %v3884, %v3904
  %v3921 = vadd.f32 %v3885, %v3905
  %v3922 = vadd.f32 %v3886, %v3906
  %v3923 = vld [vmem:[%s0 + $0x3a1] sm:$0xff]
  %v3924 = vld [vmem:[%s0 + $0x3a9] sm:$0xff]
  %v3925 = vld [vmem:[%s0 + $0x3b1] sm:$0xff]
  %v3926 = vld [vmem:[%s0 + $0x3b9] sm:$0xff]
  %v3927 = vmul.f32 %v3691, %v399
  %v3928 = vmul.f32 %v3692, %v399
  %v3929 = vmul.f32 %v3693, %v399
  %v3930 = vmul.f32 %v3694, %v399
  %v3931 = vmul.f32 %v3695, %v399
  %v3932 = vmul.f32 %v3696, %v399
  %v3933 = vmul.f32 %v3697, %v399
  %v3934 = vmul.f32 %v3698, %v399
  %v3935 = vmul.f32 %v3815, %v399
  %v3936 = vmul.f32 %v3816, %v399
  %v3937 = vmul.f32 %v3817, %v399
  %v3938 = vmul.f32 %v3818, %v399
  %v3939 = vmul.f32 %v3923, %v399
  %v3940 = vmul.f32 %v3924, %v399
  %v3941 = vmul.f32 %v3925, %v399
  %v3942 = vmul.f32 %v3926, %v399
  %v3943 = vadd.f32 %v3907, %v3927
  %v3944 = vadd.f32 %v3908, %v3928
  %v3945 = vadd.f32 %v3909, %v3929
  %v3946 = vadd.f32 %v3910, %v3930
  %v3947 = vadd.f32 %v3911, %v3931
  %v3948 = vadd.f32 %v3912, %v3932
  %v3949 = vadd.f32 %v3913, %v3933
  %v3950 = vadd.f32 %v3914, %v3934
  %v3951 = vadd.f32 %v3915, %v3935
  %v3952 = vadd.f32 %v3916, %v3936
  %v3953 = vadd.f32 %v3917, %v3937
  %v3954 = vadd.f32 %v3918, %v3938
  %v3955 = vadd.f32 %v3919, %v3939
  %v3956 = vadd.f32 %v3920, %v3940
  %v3957 = vadd.f32 %v3921, %v3941
  %v3958 = vadd.f32 %v3922, %v3942
  %v3959 = vld [vmem:[%s0 + $0x3a2] sm:$0xff]
  %v3960 = vld [vmem:[%s0 + $0x3aa] sm:$0xff]
  %v3961 = vld [vmem:[%s0 + $0x3b2] sm:$0xff]
  %v3962 = vld [vmem:[%s0 + $0x3ba] sm:$0xff]
  %v3963 = vmul.f32 %v3739, %v439
  %v3964 = vmul.f32 %v3740, %v439
  %v3965 = vmul.f32 %v3741, %v439
  %v3966 = vmul.f32 %v3742, %v439
  %v3967 = vmul.f32 %v3743, %v439
  %v3968 = vmul.f32 %v3744, %v439
  %v3969 = vmul.f32 %v3745, %v439
  %v3970 = vmul.f32 %v3746, %v439
  %v3971 = vmul.f32 %v3851, %v439
  %v3972 = vmul.f32 %v3852, %v439
  %v3973 = vmul.f32 %v3853, %v439
  %v3974 = vmul.f32 %v3854, %v439
  %v3975 = vmul.f32 %v3959, %v439
  %v3976 = vmul.f32 %v3960, %v439
  %v3977 = vmul.f32 %v3961, %v439
  %v3978 = vmul.f32 %v3962, %v439
  %v3979 = vadd.f32 %v3943, %v3963
  %v3980 = vadd.f32 %v3944, %v3964
  %v3981 = vadd.f32 %v3945, %v3965
  %v3982 = vadd.f32 %v3946, %v3966
  %v3983 = vadd.f32 %v3947, %v3967
  %v3984 = vadd.f32 %v3948, %v3968
  %v3985 = vadd.f32 %v3949, %v3969
  %v3986 = vadd.f32 %v3950, %v3970
  %v3987 = vadd.f32 %v3951, %v3971
  %v3988 = vadd.f32 %v3952, %v3972
  %v3989 = vadd.f32 %v3953, %v3973
  %v3990 = vadd.f32 %v3954, %v3974
  %v3991 = vadd.f32 %v3955, %v3975
  %v3992 = vadd.f32 %v3956, %v3976
  %v3993 = vadd.f32 %v3957, %v3977
  %v3994 = vadd.f32 %v3958, %v3978
  %v3995 = vadd.f32 %v3979, %v476
  %v3996 = vadd.f32 %v3980, %v476
  %v3997 = vadd.f32 %v3981, %v476
  %v3998 = vadd.f32 %v3982, %v476
  %v3999 = vadd.f32 %v3983, %v476
  %v4000 = vadd.f32 %v3984, %v476
  %v4001 = vadd.f32 %v3985, %v476
  %v4002 = vadd.f32 %v3986, %v476
  %v4003 = vadd.f32 %v3987, %v476
  %v4004 = vadd.f32 %v3988, %v476
  %v4005 = vadd.f32 %v3989, %v476
  %v4006 = vadd.f32 %v3990, %v476
  %v4007 = vadd.f32 %v3991, %v476
  %v4008 = vadd.f32 %v3992, %v476
  %v4009 = vadd.f32 %v3993, %v476
  %v4010 = vadd.f32 %v3994, %v476
  %v4011 = vmax.f32 %v3995, 0.0
  %v4012 = vmax.f32 %v3996, 0.0
  %v4013 = vmax.f32 %v3997, 0.0
  %v4014 = vmax.f32 %v3998, 0.0
  %v4015 = vmax.f32 %v3999, 0.0
  %v4016 = vmax.f32 %v4000, 0.0
  %v4017 = vmax.f32 %v4001, 0.0
  %v4018 = vmax.f32 %v4002, 0.0
  %v4019 = vmax.f32 %v4003, 0.0
  %v4020 = vmax.f32 %v4004, 0.0
  %v4021 = vmax.f32 %v4005, 0.0
  %v4022 = vmax.f32 %v4006, 0.0
  %v4023 = vmax.f32 %v4007, 0.0
  %v4024 = vmax.f32 %v4008, 0.0
  %v4025 = vmax.f32 %v4009, 0.0
  %v4026 = vmax.f32 %v4010, 0.0
  %v4027 = vmax.f32 %v4011, %v4015
  %v4028 = vmax.f32 %v4012, %v4016
  %v4029 = vmax.f32 %v4013, %v4017
  %v4030 = vmax.f32 %v4014, %v4018
  %v4031 = vmax.f32 %v4015, %v4019
  %v4032 = vmax.f32 %v4016, %v4020
  %v4033 = vmax.f32 %v4017, %v4021
  %v4034 = vmax.f32 %v4018, %v4022
  %v4035 = vmax.f32 %v4019, %v4023
  %v4036 = vmax.f32 %v4020, %v4024
  %v4037 = vmax.f32 %v4021, %v4025
  %v4038 = vmax.f32 %v4022, %v4026
  %4039 = vmatprep.subr.mxu0 0.0
  %4040 = vmatpush1.msra.mxu0 %v4027
  %4041 = vmatprep.subr.mxu0 0.0
  %4042 = vmatpush1.msra.mxu0 %v4028
  %4043 = vmatprep.subr.mxu0 0.0
  %4044 = vmatpush1.msra.mxu0 %v4029
  %4045 = vmatprep.subr.mxu0 0.0
  %4046 = vmatpush1.msra.mxu0 %v4030
  %4047 = vmatprep.subr.mxu0 0.0
  %4048 = vmatpush1.msra.mxu0 %v4031
  %4049 = vmatprep.subr.mxu0 0.0
  %4050 = vmatpush1.msra.mxu0 %v4032
  %4051 = vmatprep.subr.mxu0 0.0
  %4052 = vmatpush1.msra.mxu0 %v4033
  %4053 = vmatprep.subr.mxu0 0.0
  %4054 = vmatpush1.msra.mxu0 %v4034
  %4055 = vmatprep.subr.mxu0 0.0
  %4056 = vmatpush1.msra.mxu0 %v4035
  %4057 = vmatprep.subr.mxu0 0.0
  %4058 = vmatpush1.msra.mxu0 %v4036
  %4059 = vmatprep.subr.mxu0 0.0
  %4060 = vmatpush1.msra.mxu0 %v4037
  %4061 = vmatprep.subr.mxu0 0.0
  %4062 = vmatpush1.msra.mxu0 %v4038
  %4063 = vmatprep.subr.mxu0 0.0
  %4064 = vmatpush1.msra.mxu0 0.0
  %4065 = vmatprep.subr.mxu0 0.0
  %4066 = vmatpush1.msra.mxu0 0.0
  %4067 = vmatprep.subr.mxu0 0.0
  %4068 = vmatpush1.msra.mxu0 0.0
  %4069 = vmatprep.subr.mxu0 0.0
  %4070 = vmatpush1.msra.mxu0 0.0
  %4071 = vmatprep.subr.mxu0 0.0
  %4072 = vmatpush1.msra.mxu0 0.0
  %4073 = vmatprep.subr.mxu0 0.0
  %4074 = vmatpush1.msra.mxu0 0.0
  %4075 = vmatprep.subr.mxu0 0.0
  %4076 = vmatpush1.msra.mxu0 0.0
  %4077 = vmatprep.subr.mxu0 0.0
  %4078 = vmatpush1.msra.mxu0 0.0
  %4079 = vmatprep.subr.mxu0 0.0
  %4080 = vmatpush1.msra.mxu0 0.0
  %4081 = vmatprep.subr.mxu0 0.0
  %4082 = vmatpush1.msra.mxu0 0.0
  %4083 = vmatprep.subr.mxu0 0.0
  %4084 = vmatpush1.msra.mxu0 0.0
  %4085 = vmatprep.subr.mxu0 0.0
  %4086 = vmatpush1.msra.mxu0 0.0
  %4087 = vmatprep.subr.mxu0 0.0
  %4088 = vmatpush1.msra.mxu0 0.0
  %4089 = vmatprep.subr.mxu0 0.0
  %4090 = vmatpush1.msra.mxu0 0.0
  %4091 = vmatprep.subr.mxu0 0.0
  %4092 = vmatpush1.msra.mxu0 0.0
  %4093 = vmatprep.subr.mxu0 0.0
  %4094 = vmatpush1.msra.mxu0 0.0
  %4095 = vmatprep.subr.mxu0 0.0
  %4096 = vmatpush1.msra.mxu0 0.0
  %4097 = vmatprep.subr.mxu0 0.0
  %4098 = vmatpush1.msra.mxu0 0.0
  %4099 = vmatprep.subr.mxu0 0.0
  %4100 = vmatpush1.msra.mxu0 0.0
  %4101 = vmatprep.subr.mxu0 0.0
  %4102 = vmatpush1.msra.mxu0 0.0
  %4103 = vmatprep.mubr.f32.mxu0 0.0
  %4104 = vmatmul.mubr.f32.gmra.mrb[0].mxu0 %v524
  %v4105 = vpop.f32.mrb[0].mxu0
  %v4106 = vadd.f32 0.0, %v4105
  %v4107 = vpop.f32.mrb[0].mxu0
  %4108 = vmatprep.mubr.f32.mxu0 0.0
  %4109 = vmatmul.mubr.f32.gmra.mrb[0].mxu0 %v527
  %v4110 = vpop.f32.mrb[0].mxu0
  %v4111 = vadd.f32 0.0, %v4110
  %v4112 = vpop.f32.mrb[0].mxu0
  %4113 = vmatprep.mubr.f32.mxu0 0.0
  %4114 = vmatmul.mubr.f32.gmra.mrb[0].mxu0 %v530
  %v4115 = vpop.f32.mrb[0].mxu0
  %v4116 = vadd.f32 0.0, %v4115
  %v4117 = vpop.f32.mrb[0].mxu0
  %4118 = vmatprep.mubr.f32.mxu0 0.0
  %4119 = vmatmul.mubr.f32.gmra.mrb[0].mxu0 %v533
  %v4120 = vpop.f32.mrb[0].mxu0
  %v4121 = vadd.f32 0.0, %v4120
  %v4122 = vpop.f32.mrb[0].mxu0
  %4123 = vdwg.mxu0
  %4124 = vmatprep.subr.mxu0 0.0
  %4125 = vmatpush1.msra.mxu0 %v4027
  %4126 = vmatprep.subr.mxu0 0.0
  %4127 = vmatpush1.msra.mxu0 %v4028
  %4128 = vmatprep.subr.mxu0 0.0
  %4129 = vmatpush1.msra.mxu0 %v4029
  %4130 = vmatprep.subr.mxu0 0.0
  %4131 = vmatpush1.msra.mxu0 %v4030
  %4132 = vmatprep.subr.mxu0 0.0
  %4133 = vmatpush1.msra.mxu0 %v4031
  %4134 = vmatprep.subr.mxu0 0.0
  %4135 = vmatpush1.msra.mxu0 %v4032
  %4136 = vmatprep.subr.mxu0 0.0
  %4137 = vmatpush1.msra.mxu0 %v4033
  %4138 = vmatprep.subr.mxu0 0.0
  %4139 = vmatpush1.msra.mxu0 %v4034
  %4140 = vmatprep.subr.mxu0 0.0
  %4141 = vmatpush1.msra.mxu0 %v4035
  %4142 = vmatprep.subr.mxu0 0.0
  %4143 = vmatpush1.msra.mxu0 %v4036
  %4144 = vmatprep.subr.mxu0 0.0
  %4145 = vmatpush1.msra.mxu0 %v4037
  %4146 = vmatprep.subr.mxu0 0.0
  %4147 = vmatpush1.msra.mxu0 %v4038
  %4148 = vmatprep.subr.mxu0 0.0
  %4149 = vmatpush1.msra.mxu0 0.0
  %4150 = vmatprep.subr.mxu0 0.0
  %4151 = vmatpush1.msra.mxu0 0.0
  %4152 = vmatprep.subr.mxu0 0.0
  %4153 = vmatpush1.msra.mxu0 0.0
  %4154 = vmatprep.subr.mxu0 0.0
  %4155 = vmatpush1.msra.mxu0 0.0
  %4156 = vmatprep.subr.mxu0 0.0
  %4157 = vmatpush1.msra.mxu0 0.0
  %4158 = vmatprep.subr.mxu0 0.0
  %4159 = vmatpush1.msra.mxu0 0.0
  %4160 = vmatprep.subr.mxu0 0.0
  %4161 = vmatpush1.msra.mxu0 0.0
  %4162 = vmatprep.subr.mxu0 0.0
  %4163 = vmatpush1.msra.mxu0 0.0
  %4164 = vmatprep.subr.mxu0 0.0
  %4165 = vmatpush1.msra.mxu0 0.0
  %4166 = vmatprep.subr.mxu0 0.0
  %4167 = vmatpush1.msra.mxu0 0.0
  %4168 = vmatprep.subr.mxu0 0.0
  %4169 = vmatpush1.msra.mxu0 0.0
  %4170 = vmatprep.subr.mxu0 0.0
  %4171 = vmatpush1.msra.mxu0 0.0
  %4172 = vmatprep.subr.mxu0 0.0
  %4173 = vmatpush1.msra.mxu0 0.0
  %4174 = vmatprep.subr.mxu0 0.0
  %4175 = vmatpush1.msra.mxu0 0.0
  %4176 = vmatprep.subr.mxu0 0.0
  %4177 = vmatpush1.msra.mxu0 0.0
  %4178 = vmatprep.subr.mxu0 0.0
  %4179 = vmatpush1.msra.mxu0 0.0
  %4180 = vmatprep.subr.mxu0 0.0
  %4181 = vmatpush1.msra.mxu0 0.0
  %4182 = vmatprep.subr.mxu0 0.0
  %4183 = vmatpush1.msra.mxu0 0.0
  %4184 = vmatprep.subr.mxu0 0.0
  %4185 = vmatpush1.msra.mxu0 0.0
  %4186 = vmatprep.subr.mxu0 0.0
  %4187 = vmatpush1.msra.mxu0 0.0
  %4188 = vmatprep.mubr.f32.mxu0 0.0
  %4189 = vmatmul.mubr.f32.gmra.mrb[0].mxu0 %v621
  %v4190 = vpop.f32.mrb[0].mxu0
  %v4191 = vadd.f32 0.0, %v4190
  %v4192 = vpop.f32.mrb[0].mxu0
  %4193 = vmatprep.mubr.f32.mxu0 0.0
  %4194 = vmatmul.mubr.f32.gmra.mrb[0].mxu0 %v624
  %v4195 = vpop.f32.mrb[0].mxu0
  %v4196 = vadd.f32 0.0, %v4195
  %v4197 = vpop.f32.mrb[0].mxu0
  %4198 = vmatprep.mubr.f32.mxu0 0.0
  %4199 = vmatmul.mubr.f32.gmra.mrb[0].mxu0 %v627
  %v4200 = vpop.f32.mrb[0].mxu0
  %v4201 = vadd.f32 0.0, %v4200
  %v4202 = vpop.f32.mrb[0].mxu0
  %4203 = vmatprep.mubr.f32.mxu0 0.0
  %4204 = vmatmul.mubr.f32.gmra.mrb[0].mxu0 %v630
  %v4205 = vpop.f32.mrb[0].mxu0
  %v4206 = vadd.f32 0.0, %v4205
  %v4207 = vpop.f32.mrb[0].mxu0
  %4208 = vdwg.mxu0
  %v4209 = vmax.f32 %v4106, %v4191
  %v4210 = vmax.f32 %v4111, %v4196
  %v4211 = vmax.f32 %v4116, %v4201
  %v4212 = vmax.f32 %v4121, %v4206
  %4213 = vst [vmem:[#allocation2 + $0xd0] sm:$0xff] %v4209
  %4214 = vst [vmem:[#allocation2 + $0xd8] sm:$0xff] %v4210
  %4215 = vst [vmem:[#allocation2 + $0xe0] sm:$0xff] %v4211
  %4216 = vst [vmem:[#allocation2 + $0xe8] sm:$0xff] %v4212
  %v4217 = vld [vmem:[#allocation2] sm:$0xff]
  %v4218 = vld [vmem:[#allocation2 + $0x8] sm:$0xff]
  %v4219 = vld [vmem:[#allocation2 + $0x10] sm:$0xff]
  %v4220 = vld [vmem:[#allocation2 + $0x18] sm:$0xff]
  %v4221 = vld [vmem:[#allocation2 + $0x20] sm:$0xff]
  %v4222 = vld [vmem:[#allocation2 + $0x28] sm:$0xff]
  %v4223 = vld [vmem:[#allocation2 + $0x30] sm:$0xff]
  %v4224 = vld [vmem:[#allocation2 + $0x38] sm:$0xff]
  %v4225 = vld [vmem:[#allocation2 + $0x40] sm:$0xff]
  %v4226 = vld [vmem:[#allocation2 + $0x48] sm:$0xff]
  %v4227 = vld [vmem:[#allocation2 + $0x50] sm:$0xff]
  %v4228 = vld [vmem:[#allocation2 + $0x58] sm:$0xff]
  %v4229 = vld [vmem:[#allocation2 + $0x60] sm:$0xff]
  %v4230 = vld [vmem:[#allocation2 + $0x68] sm:$0xff]
  %v4231 = vld [vmem:[#allocation2 + $0x70] sm:$0xff]
  %v4232 = vld [vmem:[#allocation2 + $0x78] sm:$0xff]
  %v4233 = vld [vmem:[#allocation2 + $0x80] sm:$0xff]
  %v4234 = vld [vmem:[#allocation2 + $0x88] sm:$0xff]
  %v4235 = vld [vmem:[#allocation2 + $0x90] sm:$0xff]
  %v4236 = vld [vmem:[#allocation2 + $0x98] sm:$0xff]
  %v4237 = vld [vmem:[#allocation2 + $0xa0] sm:$0xff]
  %v4238 = vld [vmem:[#allocation2 + $0xa8] sm:$0xff]
  %v4239 = vld [vmem:[#allocation2 + $0xb0] sm:$0xff]
  %v4240 = vld [vmem:[#allocation2 + $0xb8] sm:$0xff]
  %v4241 = vld [vmem:[#allocation2 + $0xc0] sm:$0xff]
  %v4242 = vld [vmem:[#allocation2 + $0xc8] sm:$0xff]
  %v4243 = vld [vmem:[#allocation2 + $0xd0] sm:$0xff]
  %v4244 = vld [vmem:[#allocation2 + $0xd8] sm:$0xff]
  %4245 = vst [vmem:[#allocation3] sm:$0xff] %v4217
  %4246 = vst [vmem:[#allocation3 + $0x48] sm:$0xff] %v4218
  %4247 = vst [vmem:[#allocation3 + $0x90] sm:$0xff] %v4219
  %4248 = vst [vmem:[#allocation3 + $0xd8] sm:$0xff] %v4220
  %4249 = vst [vmem:[#allocation3 + $0x120] sm:$0xff] %v4221
  %4250 = vst [vmem:[#allocation3 + $0x168] sm:$0xff] %v4222
  %4251 = vst [vmem:[#allocation3 + $0x1b0] sm:$0xff] %v4223
  %4252 = vst [vmem:[#allocation3 + $0x1f8] sm:$0xff] %v4224
  %4253 = vst [vmem:[#allocation3 + $0x240] sm:$0xff] %v4225
  %4254 = vst [vmem:[#allocation3 + $0x288] sm:$0xff] %v4226
  %4255 = vst [vmem:[#allocation3 + $0x2d0] sm:$0xff] %v4227
  %4256 = vst [vmem:[#allocation3 + $0x318] sm:$0xff] %v4228
  %4257 = vst [vmem:[#allocation3 + $0x360] sm:$0xff] %v4229
  %4258 = vst [vmem:[#allocation3 + $0x3a8] sm:$0xff] %v4230
  %4259 = vst [vmem:[#allocation3 + $0x3f0] sm:$0xff] %v4231
  %4260 = vst [vmem:[#allocation3 + $0x438] sm:$0xff] %v4232
  %4261 = vst [vmem:[#allocation3 + $0x480] sm:$0xff] %v4233
  %4262 = vst [vmem:[#allocation3 + $0x4c8] sm:$0xff] %v4234
  %4263 = vst [vmem:[#allocation3 + $0x510] sm:$0xff] %v4235
  %4264 = vst [vmem:[#allocation3 + $0x558] sm:$0xff] %v4236
  %4265 = vst [vmem:[#allocation3 + $0x5a0] sm:$0xff] %v4237
  %4266 = vst [vmem:[#allocation3 + $0x5e8] sm:$0xff] %v4238
  %4267 = vst [vmem:[#allocation3 + $0x630] sm:$0xff] %v4239
  %4268 = vst [vmem:[#allocation3 + $0x678] sm:$0xff] %v4240
  %4269 = vst [vmem:[#allocation3 + $0x6c0] sm:$0xff] %v4241
  %4270 = vst [vmem:[#allocation3 + $0x708] sm:$0xff] %v4242
  %4271 = vst [vmem:[#allocation3 + $0x750] sm:$0xff] %v4243
  %4272 = vst [vmem:[#allocation3 + $0x798] sm:$0xff] %v4244
  %v4273 = vld [vmem:[#allocation2 + $0x1] sm:$0xff]
  %v4274 = vld [vmem:[#allocation2 + $0x9] sm:$0xff]
  %v4275 = vld [vmem:[#allocation2 + $0x11] sm:$0xff]
  %v4276 = vld [vmem:[#allocation2 + $0x19] sm:$0xff]
  %v4277 = vld [vmem:[#allocation2 + $0x21] sm:$0xff]
  %v4278 = vld [vmem:[#allocation2 + $0x29] sm:$0xff]
  %v4279 = vld [vmem:[#allocation2 + $0x31] sm:$0xff]
  %v4280 = vld [vmem:[#allocation2 + $0x39] sm:$0xff]
  %v4281 = vld [vmem:[#allocation2 + $0x41] sm:$0xff]
  %v4282 = vld [vmem:[#allocation2 + $0x49] sm:$0xff]
  %v4283 = vld [vmem:[#allocation2 + $0x51] sm:$0xff]
  %v4284 = vld [vmem:[#allocation2 + $0x59] sm:$0xff]
  %v4285 = vld [vmem:[#allocation2 + $0x61] sm:$0xff]
  %v4286 = vld [vmem:[#allocation2 + $0x69] sm:$0xff]
  %v4287 = vld [vmem:[#allocation2 + $0x71] sm:$0xff]
  %v4288 = vld [vmem:[#allocation2 + $0x79] sm:$0xff]
  %v4289 = vld [vmem:[#allocation2 + $0x81] sm:$0xff]
  %v4290 = vld [vmem:[#allocation2 + $0x89] sm:$0xff]
  %v4291 = vld [vmem:[#allocation2 + $0x91] sm:$0xff]
  %v4292 = vld [vmem:[#allocation2 + $0x99] sm:$0xff]
  %v4293 = vld [vmem:[#allocation2 + $0xa1] sm:$0xff]
  %v4294 = vld [vmem:[#allocation2 + $0xa9] sm:$0xff]
  %v4295 = vld [vmem:[#allocation2 + $0xb1] sm:$0xff]
  %v4296 = vld [vmem:[#allocation2 + $0xb9] sm:$0xff]
  %v4297 = vld [vmem:[#allocation2 + $0xc1] sm:$0xff]
  %v4298 = vld [vmem:[#allocation2 + $0xc9] sm:$0xff]
  %v4299 = vld [vmem:[#allocation2 + $0xd1] sm:$0xff]
  %v4300 = vld [vmem:[#allocation2 + $0xd9] sm:$0xff]
  %4301 = vst [vmem:[#allocation3 + $0x8] sm:$0xff] %v4273
  %4302 = vst [vmem:[#allocation3 + $0x50] sm:$0xff] %v4274
  %4303 = vst [vmem:[#allocation3 + $0x98] sm:$0xff] %v4275
  %4304 = vst [vmem:[#allocation3 + $0xe0] sm:$0xff] %v4276
  %4305 = vst [vmem:[#allocation3 + $0x128] sm:$0xff] %v4277
  %4306 = vst [vmem:[#allocation3 + $0x170] sm:$0xff] %v4278
  %4307 = vst [vmem:[#allocation3 + $0x1b8] sm:$0xff] %v4279
  %4308 = vst [vmem:[#allocation3 + $0x200] sm:$0xff] %v4280
  %4309 = vst [vmem:[#allocation3 + $0x248] sm:$0xff] %v4281
  %4310 = vst [vmem:[#allocation3 + $0x290] sm:$0xff] %v4282
  %4311 = vst [vmem:[#allocation3 + $0x2d8] sm:$0xff] %v4283
  %4312 = vst [vmem:[#allocation3 + $0x320] sm:$0xff] %v4284
  %4313 = vst [vmem:[#allocation3 + $0x368] sm:$0xff] %v4285
  %4314 = vst [vmem:[#allocation3 + $0x3b0] sm:$0xff] %v4286
  %4315 = vst [vmem:[#allocation3 + $0x3f8] sm:$0xff] %v4287
  %4316 = vst [vmem:[#allocation3 + $0x440] sm:$0xff] %v4288
  %4317 = vst [vmem:[#allocation3 + $0x488] sm:$0xff] %v4289
  %4318 = vst [vmem:[#allocation3 + $0x4d0] sm:$0xff] %v4290
  %4319 = vst [vmem:[#allocation3 + $0x518] sm:$0xff] %v4291
  %4320 = vst [vmem:[#allocation3 + $0x560] sm:$0xff] %v4292
  %4321 = vst [vmem:[#allocation3 + $0x5a8] sm:$0xff] %v4293
  %4322 = vst [vmem:[#allocation3 + $0x5f0] sm:$0xff] %v4294
  %4323 = vst [vmem:[#allocation3 + $0x638] sm:$0xff] %v4295
  %4324 = vst [vmem:[#allocation3 + $0x680] sm:$0xff] %v4296
  %4325 = vst [vmem:[#allocation3 + $0x6c8] sm:$0xff] %v4297
  %4326 = vst [vmem:[#allocation3 + $0x710] sm:$0xff] %v4298
  %4327 = vst [vmem:[#allocation3 + $0x758] sm:$0xff] %v4299
  %4328 = vst [vmem:[#allocation3 + $0x7a0] sm:$0xff] %v4300
  %v4329 = vld [vmem:[#allocation2 + $0x2] sm:$0xff]
  %v4330 = vld [vmem:[#allocation2 + $0xa] sm:$0xff]
  %v4331 = vld [vmem:[#allocation2 + $0x12] sm:$0xff]
  %v4332 = vld [vmem:[#allocation2 + $0x1a] sm:$0xff]
  %v4333 = vld [vmem:[#allocation2 + $0x22] sm:$0xff]
  %v4334 = vld [vmem:[#allocation2 + $0x2a] sm:$0xff]
  %v4335 = vld [vmem:[#allocation2 + $0x32] sm:$0xff]
  %v4336 = vld [vmem:[#allocation2 + $0x3a] sm:$0xff]
  %v4337 = vld [vmem:[#allocation2 + $0x42] sm:$0xff]
  %v4338 = vld [vmem:[#allocation2 + $0x4a] sm:$0xff]
  %v4339 = vld [vmem:[#allocation2 + $0x52] sm:$0xff]
  %v4340 = vld [vmem:[#allocation2 + $0x5a] sm:$0xff]
  %v4341 = vld [vmem:[#allocation2 + $0x62] sm:$0xff]
  %v4342 = vld [vmem:[#allocation2 + $0x6a] sm:$0xff]
  %v4343 = vld [vmem:[#allocation2 + $0x72] sm:$0xff]
  %v4344 = vld [vmem:[#allocation2 + $0x7a] sm:$0xff]
  %v4345 = vld [vmem:[#allocation2 + $0x82] sm:$0xff]
  %v4346 = vld [vmem:[#allocation2 + $0x8a] sm:$0xff]
  %v4347 = vld [vmem:[#allocation2 + $0x92] sm:$0xff]
  %v4348 = vld [vmem:[#allocation2 + $0x9a] sm:$0xff]
  %v4349 = vld [vmem:[#allocation2 + $0xa2] sm:$0xff]
  %v4350 = vld [vmem:[#allocation2 + $0xaa] sm:$0xff]
  %v4351 = vld [vmem:[#allocation2 + $0xb2] sm:$0xff]
  %v4352 = vld [vmem:[#allocation2 + $0xba] sm:$0xff]
  %v4353 = vld [vmem:[#allocation2 + $0xc2] sm:$0xff]
  %v4354 = vld [vmem:[#allocation2 + $0xca] sm:$0xff]
  %v4355 = vld [vmem:[#allocation2 + $0xd2] sm:$0xff]
  %v4356 = vld [vmem:[#allocation2 + $0xda] sm:$0xff]
  %4357 = vst [vmem:[#allocation3 + $0x10] sm:$0xff] %v4329
  %4358 = vst [vmem:[#allocation3 + $0x58] sm:$0xff] %v4330
  %4359 = vst [vmem:[#allocation3 + $0xa0] sm:$0xff] %v4331
  %4360 = vst [vmem:[#allocation3 + $0xe8] sm:$0xff] %v4332
  %4361 = vst [vmem:[#allocation3 + $0x130] sm:$0xff] %v4333
  %4362 = vst [vmem:[#allocation3 + $0x178] sm:$0xff] %v4334
  %4363 = vst [vmem:[#allocation3 + $0x1c0] sm:$0xff] %v4335
  %4364 = vst [vmem:[#allocation3 + $0x208] sm:$0xff] %v4336
  %4365 = vst [vmem:[#allocation3 + $0x250] sm:$0xff] %v4337
  %4366 = vst [vmem:[#allocation3 + $0x298] sm:$0xff] %v4338
  %4367 = vst [vmem:[#allocation3 + $0x2e0] sm:$0xff] %v4339
  %4368 = vst [vmem:[#allocation3 + $0x328] sm:$0xff] %v4340
  %4369 = vst [vmem:[#allocation3 + $0x370] sm:$0xff] %v4341
  %4370 = vst [vmem:[#allocation3 + $0x3b8] sm:$0xff] %v4342
  %4371 = vst [vmem:[#allocation3 + $0x400] sm:$0xff] %v4343
  %4372 = vst [vmem:[#allocation3 + $0x448] sm:$0xff] %v4344
  %4373 = vst [vmem:[#allocation3 + $0x490] sm:$0xff] %v4345
  %4374 = vst [vmem:[#allocation3 + $0x4d8] sm:$0xff] %v4346
  %4375 = vst [vmem:[#allocation3 + $0x520] sm:$0xff] %v4347
  %4376 = vst [vmem:[#allocation3 + $0x568] sm:$0xff] %v4348
  %4377 = vst [vmem:[#allocation3 + $0x5b0] sm:$0xff] %v4349
  %4378 = vst [vmem:[#allocation3 + $0x5f8] sm:$0xff] %v4350
  %4379 = vst [vmem:[#allocation3 + $0x640] sm:$0xff] %v4351
  %4380 = vst [vmem:[#allocation3 + $0x688] sm:$0xff] %v4352
  %4381 = vst [vmem:[#allocation3 + $0x6d0] sm:$0xff] %v4353
  %4382 = vst [vmem:[#allocation3 + $0x718] sm:$0xff] %v4354
  %4383 = vst [vmem:[#allocation3 + $0x760] sm:$0xff] %v4355
  %4384 = vst [vmem:[#allocation3 + $0x7a8] sm:$0xff] %v4356
  %v4385 = vld [vmem:[#allocation2 + $0x10] sm:$0xff]
  %v4386 = vld [vmem:[#allocation2 + $0x18] sm:$0xff]
  %v4387 = vld [vmem:[#allocation2 + $0x20] sm:$0xff]
  %v4388 = vld [vmem:[#allocation2 + $0x28] sm:$0xff]
  %v4389 = vld [vmem:[#allocation2 + $0x30] sm:$0xff]
  %v4390 = vld [vmem:[#allocation2 + $0x38] sm:$0xff]
  %v4391 = vld [vmem:[#allocation2 + $0x40] sm:$0xff]
  %v4392 = vld [vmem:[#allocation2 + $0x48] sm:$0xff]
  %v4393 = vld [vmem:[#allocation2 + $0x50] sm:$0xff]
  %v4394 = vld [vmem:[#allocation2 + $0x58] sm:$0xff]
  %v4395 = vld [vmem:[#allocation2 + $0x60] sm:$0xff]
  %v4396 = vld [vmem:[#allocation2 + $0x68] sm:$0xff]
  %v4397 = vld [vmem:[#allocation2 + $0x70] sm:$0xff]
  %v4398 = vld [vmem:[#allocation2 + $0x78] sm:$0xff]
  %v4399 = vld [vmem:[#allocation2 + $0x80] sm:$0xff]
  %v4400 = vld [vmem:[#allocation2 + $0x88] sm:$0xff]
  %v4401 = vld [vmem:[#allocation2 + $0x90] sm:$0xff]
  %v4402 = vld [vmem:[#allocation2 + $0x98] sm:$0xff]
  %v4403 = vld [vmem:[#allocation2 + $0xa0] sm:$0xff]
  %v4404 = vld [vmem:[#allocation2 + $0xa8] sm:$0xff]
  %v4405 = vld [vmem:[#allocation2 + $0xb0] sm:$0xff]
  %v4406 = vld [vmem:[#allocation2 + $0xb8] sm:$0xff]
  %v4407 = vld [vmem:[#allocation2 + $0xc0] sm:$0xff]
  %v4408 = vld [vmem:[#allocation2 + $0xc8] sm:$0xff]
  %v4409 = vld [vmem:[#allocation2 + $0xd0] sm:$0xff]
  %v4410 = vld [vmem:[#allocation2 + $0xd8] sm:$0xff]
  %v4411 = vld [vmem:[#allocation2 + $0xe0] sm:$0xff]
  %v4412 = vld [vmem:[#allocation2 + $0xe8] sm:$0xff]
  %4413 = vst [vmem:[#allocation3 + $0x18] sm:$0xff] %v4385
  %4414 = vst [vmem:[#allocation3 + $0x60] sm:$0xff] %v4386
  %4415 = vst [vmem:[#allocation3 + $0xa8] sm:$0xff] %v4387
  %4416 = vst [vmem:[#allocation3 + $0xf0] sm:$0xff] %v4388
  %4417 = vst [vmem:[#allocation3 + $0x138] sm:$0xff] %v4389
  %4418 = vst [vmem:[#allocation3 + $0x180] sm:$0xff] %v4390
  %4419 = vst [vmem:[#allocation3 + $0x1c8] sm:$0xff] %v4391
  %4420 = vst [vmem:[#allocation3 + $0x210] sm:$0xff] %v4392
  %4421 = vst [vmem:[#allocation3 + $0x258] sm:$0xff] %v4393
  %4422 = vst [vmem:[#allocation3 + $0x2a0] sm:$0xff] %v4394
  %4423 = vst [vmem:[#allocation3 + $0x2e8] sm:$0xff] %v4395
  %4424 = vst [vmem:[#allocation3 + $0x330] sm:$0xff] %v4396
  %4425 = vst [vmem:[#allocation3 + $0x378] sm:$0xff] %v4397
  %4426 = vst [vmem:[#allocation3 + $0x3c0] sm:$0xff] %v4398
  %4427 = vst [vmem:[#allocation3 + $0x408] sm:$0xff] %v4399
  %4428 = vst [vmem:[#allocation3 + $0x450] sm:$0xff] %v4400
  %4429 = vst [vmem:[#allocation3 + $0x498] sm:$0xff] %v4401
  %4430 = vst [vmem:[#allocation3 + $0x4e0] sm:$0xff] %v4402
  %4431 = vst [vmem:[#allocation3 + $0x528] sm:$0xff] %v4403
  %4432 = vst [vmem:[#allocation3 + $0x570] sm:$0xff] %v4404
  %4433 = vst [vmem:[#allocation3 + $0x5b8] sm:$0xff] %v4405
  %4434 = vst [vmem:[#allocation3 + $0x600] sm:$0xff] %v4406
  %4435 = vst [vmem:[#allocation3 + $0x648] sm:$0xff] %v4407
  %4436 = vst [vmem:[#allocation3 + $0x690] sm:$0xff] %v4408
  %4437 = vst [vmem:[#allocation3 + $0x6d8] sm:$0xff] %v4409
  %4438 = vst [vmem:[#allocation3 + $0x720] sm:$0xff] %v4410
  %4439 = vst [vmem:[#allocation3 + $0x768] sm:$0xff] %v4411
  %4440 = vst [vmem:[#allocation3 + $0x7b0] sm:$0xff] %v4412
  %v4441 = vld [vmem:[#allocation2 + $0x11] sm:$0xff]
  %v4442 = vld [vmem:[#allocation2 + $0x19] sm:$0xff]
  %v4443 = vld [vmem:[#allocation2 + $0x21] sm:$0xff]
  %v4444 = vld [vmem:[#allocation2 + $0x29] sm:$0xff]
  %v4445 = vld [vmem:[#allocation2 + $0x31] sm:$0xff]
  %v4446 = vld [vmem:[#allocation2 + $0x39] sm:$0xff]
  %v4447 = vld [vmem:[#allocation2 + $0x41] sm:$0xff]
  %v4448 = vld [vmem:[#allocation2 + $0x49] sm:$0xff]
  %v4449 = vld [vmem:[#allocation2 + $0x51] sm:$0xff]
  %v4450 = vld [vmem:[#allocation2 + $0x59] sm:$0xff]
  %v4451 = vld [vmem:[#allocation2 + $0x61] sm:$0xff]
  %v4452 = vld [vmem:[#allocation2 + $0x69] sm:$0xff]
  %v4453 = vld [vmem:[#allocation2 + $0x71] sm:$0xff]
  %v4454 = vld [vmem:[#allocation2 + $0x79] sm:$0xff]
  %v4455 = vld [vmem:[#allocation2 + $0x81] sm:$0xff]
  %v4456 = vld [vmem:[#allocation2 + $0x89] sm:$0xff]
  %v4457 = vld [vmem:[#allocation2 + $0x91] sm:$0xff]
  %v4458 = vld [vmem:[#allocation2 + $0x99] sm:$0xff]
  %v4459 = vld [vmem:[#allocation2 + $0xa1] sm:$0xff]
  %v4460 = vld [vmem:[#allocation2 + $0xa9] sm:$0xff]
  %v4461 = vld [vmem:[#allocation2 + $0xb1] sm:$0xff]
  %v4462 = vld [vmem:[#allocation2 + $0xb9] sm:$0xff]
  %v4463 = vld [vmem:[#allocation2 + $0xc1] sm:$0xff]
  %v4464 = vld [vmem:[#allocation2 + $0xc9] sm:$0xff]
  %v4465 = vld [vmem:[#allocation2 + $0xd1] sm:$0xff]
  %v4466 = vld [vmem:[#allocation2 + $0xd9] sm:$0xff]
  %v4467 = vld [vmem:[#allocation2 + $0xe1] sm:$0xff]
  %v4468 = vld [vmem:[#allocation2 + $0xe9] sm:$0xff]
  %4469 = vst [vmem:[#allocation3 + $0x20] sm:$0xff] %v4441
  %4470 = vst [vmem:[#allocation3 + $0x68] sm:$0xff] %v4442
  %4471 = vst [vmem:[#allocation3 + $0xb0] sm:$0xff] %v4443
  %4472 = vst [vmem:[#allocation3 + $0xf8] sm:$0xff] %v4444
  %4473 = vst [vmem:[#allocation3 + $0x140] sm:$0xff] %v4445
  %4474 = vst [vmem:[#allocation3 + $0x188] sm:$0xff] %v4446
  %4475 = vst [vmem:[#allocation3 + $0x1d0] sm:$0xff] %v4447
  %4476 = vst [vmem:[#allocation3 + $0x218] sm:$0xff] %v4448
  %4477 = vst [vmem:[#allocation3 + $0x260] sm:$0xff] %v4449
  %4478 = vst [vmem:[#allocation3 + $0x2a8] sm:$0xff] %v4450
  %4479 = vst [vmem:[#allocation3 + $0x2f0] sm:$0xff] %v4451
  %4480 = vst [vmem:[#allocation3 + $0x338] sm:$0xff] %v4452
  %4481 = vst [vmem:[#allocation3 + $0x380] sm:$0xff] %v4453
  %4482 = vst [vmem:[#allocation3 + $0x3c8] sm:$0xff] %v4454
  %4483 = vst [vmem:[#allocation3 + $0x410] sm:$0xff] %v4455
  %4484 = vst [vmem:[#allocation3 + $0x458] sm:$0xff] %v4456
  %4485 = vst [vmem:[#allocation3 + $0x4a0] sm:$0xff] %v4457
  %4486 = vst [vmem:[#allocation3 + $0x4e8] sm:$0xff] %v4458
  %4487 = vst [vmem:[#allocation3 + $0x530] sm:$0xff] %v4459
  %4488 = vst [vmem:[#allocation3 + $0x578] sm:$0xff] %v4460
  %4489 = vst [vmem:[#allocation3 + $0x5c0] sm:$0xff] %v4461
  %4490 = vst [vmem:[#allocation3 + $0x608] sm:$0xff] %v4462
  %4491 = vst [vmem:[#allocation3 + $0x650] sm:$0xff] %v4463
  %4492 = vst [vmem:[#allocation3 + $0x698] sm:$0xff] %v4464
  %4493 = vst [vmem:[#allocation3 + $0x6e0] sm:$0xff] %v4465
  %4494 = vst [vmem:[#allocation3 + $0x728] sm:$0xff] %v4466
  %4495 = vst [vmem:[#allocation3 + $0x770] sm:$0xff] %v4467
  %4496 = vst [vmem:[#allocation3 + $0x7b8] sm:$0xff] %v4468
  %v4497 = vld [vmem:[#allocation2 + $0x12] sm:$0xff]
  %v4498 = vld [vmem:[#allocation2 + $0x1a] sm:$0xff]
  %v4499 = vld [vmem:[#allocation2 + $0x22] sm:$0xff]
  %v4500 = vld [vmem:[#allocation2 + $0x2a] sm:$0xff]
  %v4501 = vld [vmem:[#allocation2 + $0x32] sm:$0xff]
  %v4502 = vld [vmem:[#allocation2 + $0x3a] sm:$0xff]
  %v4503 = vld [vmem:[#allocation2 + $0x42] sm:$0xff]
  %v4504 = vld [vmem:[#allocation2 + $0x4a] sm:$0xff]
  %v4505 = vld [vmem:[#allocation2 + $0x52] sm:$0xff]
  %v4506 = vld [vmem:[#allocation2 + $0x5a] sm:$0xff]
  %v4507 = vld [vmem:[#allocation2 + $0x62] sm:$0xff]
  %v4508 = vld [vmem:[#allocation2 + $0x6a] sm:$0xff]
  %v4509 = vld [vmem:[#allocation2 + $0x72] sm:$0xff]
  %v4510 = vld [vmem:[#allocation2 + $0x7a] sm:$0xff]
  %v4511 = vld [vmem:[#allocation2 + $0x82] sm:$0xff]
  %v4512 = vld [vmem:[#allocation2 + $0x8a] sm:$0xff]
  %v4513 = vld [vmem:[#allocation2 + $0x92] sm:$0xff]
  %v4514 = vld [vmem:[#allocation2 + $0x9a] sm:$0xff]
  %v4515 = vld [vmem:[#allocation2 + $0xa2] sm:$0xff]
  %v4516 = vld [vmem:[#allocation2 + $0xaa] sm:$0xff]
  %v4517 = vld [vmem:[#allocation2 + $0xb2] sm:$0xff]
  %v4518 = vld [vmem:[#allocation2 + $0xba] sm:$0xff]
  %v4519 = vld [vmem:[#allocation2 + $0xc2] sm:$0xff]
  %v4520 = vld [vmem:[#allocation2 + $0xca] sm:$0xff]
  %v4521 = vld [vmem:[#allocation2 + $0xd2] sm:$0xff]
  %v4522 = vld [vmem:[#allocation2 + $0xda] sm:$0xff]
  %v4523 = vld [vmem:[#allocation2 + $0xe2] sm:$0xff]
  %v4524 = vld [vmem:[#allocation2 + $0xea] sm:$0xff]
  %4525 = vst [vmem:[#allocation3 + $0x28] sm:$0xff] %v4497
  %4526 = vst [vmem:[#allocation3 + $0x70] sm:$0xff] %v4498
  %4527 = vst [vmem:[#allocation3 + $0xb8] sm:$0xff] %v4499
  %4528 = vst [vmem:[#allocation3 + $0x100] sm:$0xff] %v4500
  %4529 = vst [vmem:[#allocation3 + $0x148] sm:$0xff] %v4501
  %4530 = vst [vmem:[#allocation3 + $0x190] sm:$0xff] %v4502
  %4531 = vst [vmem:[#allocation3 + $0x1d8] sm:$0xff] %v4503
  %4532 = vst [vmem:[#allocation3 + $0x220] sm:$0xff] %v4504
  %4533 = vst [vmem:[#allocation3 + $0x268] sm:$0xff] %v4505
  %4534 = vst [vmem:[#allocation3 + $0x2b0] sm:$0xff] %v4506
  %4535 = vst [vmem:[#allocation3 + $0x2f8] sm:$0xff] %v4507
  %4536 = vst [vmem:[#allocation3 + $0x340] sm:$0xff] %v4508
  %4537 = vst [vmem:[#allocation3 + $0x388] sm:$0xff] %v4509
  %4538 = vst [vmem:[#allocation3 + $0x3d0] sm:$0xff] %v4510
  %4539 = vst [vmem:[#allocation3 + $0x418] sm:$0xff] %v4511
  %4540 = vst [vmem:[#allocation3 + $0x460] sm:$0xff] %v4512
  %4541 = vst [vmem:[#allocation3 + $0x4a8] sm:$0xff] %v4513
  %4542 = vst [vmem:[#allocation3 + $0x4f0] sm:$0xff] %v4514
  %4543 = vst [vmem:[#allocation3 + $0x538] sm:$0xff] %v4515
  %4544 = vst [vmem:[#allocation3 + $0x580] sm:$0xff] %v4516
  %4545 = vst [vmem:[#allocation3 + $0x5c8] sm:$0xff] %v4517
  %4546 = vst [vmem:[#allocation3 + $0x610] sm:$0xff] %v4518
  %4547 = vst [vmem:[#allocation3 + $0x658] sm:$0xff] %v4519
  %4548 = vst [vmem:[#allocation3 + $0x6a0] sm:$0xff] %v4520
  %4549 = vst [vmem:[#allocation3 + $0x6e8] sm:$0xff] %v4521
  %4550 = vst [vmem:[#allocation3 + $0x730] sm:$0xff] %v4522
  %4551 = vst [vmem:[#allocation3 + $0x778] sm:$0xff] %v4523
  %4552 = vst [vmem:[#allocation3 + $0x7c0] sm:$0xff] %v4524
  %v4553 = vld [vmem:[#allocation2 + $0x20] sm:$0xff]
  %v4554 = vld [vmem:[#allocation2 + $0x28] sm:$0xff]
  %v4555 = vld [vmem:[#allocation2 + $0x30] sm:$0xff]
  %v4556 = vld [vmem:[#allocation2 + $0x38] sm:$0xff]
  %v4557 = vld [vmem:[#allocation2 + $0x40] sm:$0xff]
  %v4558 = vld [vmem:[#allocation2 + $0x48] sm:$0xff]
  %v4559 = vld [vmem:[#allocation2 + $0x50] sm:$0xff]
  %v4560 = vld [vmem:[#allocation2 + $0x58] sm:$0xff]
  %v4561 = vld [vmem:[#allocation2 + $0x60] sm:$0xff]
  %v4562 = vld [vmem:[#allocation2 + $0x68] sm:$0xff]
  %v4563 = vld [vmem:[#allocation2 + $0x70] sm:$0xff]
  %v4564 = vld [vmem:[#allocation2 + $0x78] sm:$0xff]
  %v4565 = vld [vmem:[#allocation2 + $0x80] sm:$0xff]
  %v4566 = vld [vmem:[#allocation2 + $0x88] sm:$0xff]
  %v4567 = vld [vmem:[#allocation2 + $0x90] sm:$0xff]
  %v4568 = vld [vmem:[#allocation2 + $0x98] sm:$0xff]
  %v4569 = vld [vmem:[#allocation2 + $0xa0] sm:$0xff]
  %v4570 = vld [vmem:[#allocation2 + $0xa8] sm:$0xff]
  %v4571 = vld [vmem:[#allocation2 + $0xb0] sm:$0xff]
  %v4572 = vld [vmem:[#allocation2 + $0xb8] sm:$0xff]
  %v4573 = vld [vmem:[#allocation2 + $0xc0] sm:$0xff]
  %v4574 = vld [vmem:[#allocation2 + $0xc8] sm:$0xff]
  %v4575 = vld [vmem:[#allocation2 + $0xd0] sm:$0xff]
  %v4576 = vld [vmem:[#allocation2 + $0xd8] sm:$0xff]
  %v4577 = vld [vmem:[#allocation2 + $0xe0] sm:$0xff]
  %v4578 = vld [vmem:[#allocation2 + $0xe8] sm:$0xff]
  %v4579 = vld [vmem:[#allocation2 + $0xf0] sm:$0xff]
  %v4580 = vld [vmem:[#allocation2 + $0xf8] sm:$0xff]
  %4581 = vst [vmem:[#allocation3 + $0x30] sm:$0xff] %v4553
  %4582 = vst [vmem:[#allocation3 + $0x78] sm:$0xff] %v4554
  %4583 = vst [vmem:[#allocation3 + $0xc0] sm:$0xff] %v4555
  %4584 = vst [vmem:[#allocation3 + $0x108] sm:$0xff] %v4556
  %4585 = vst [vmem:[#allocation3 + $0x150] sm:$0xff] %v4557
  %4586 = vst [vmem:[#allocation3 + $0x198] sm:$0xff] %v4558
  %4587 = vst [vmem:[#allocation3 + $0x1e0] sm:$0xff] %v4559
  %4588 = vst [vmem:[#allocation3 + $0x228] sm:$0xff] %v4560
  %4589 = vst [vmem:[#allocation3 + $0x270] sm:$0xff] %v4561
  %4590 = vst [vmem:[#allocation3 + $0x2b8] sm:$0xff] %v4562
  %4591 = vst [vmem:[#allocation3 + $0x300] sm:$0xff] %v4563
  %4592 = vst [vmem:[#allocation3 + $0x348] sm:$0xff] %v4564
  %4593 = vst [vmem:[#allocation3 + $0x390] sm:$0xff] %v4565
  %4594 = vst [vmem:[#allocation3 + $0x3d8] sm:$0xff] %v4566
  %4595 = vst [vmem:[#allocation3 + $0x420] sm:$0xff] %v4567
  %4596 = vst [vmem:[#allocation3 + $0x468] sm:$0xff] %v4568
  %4597 = vst [vmem:[#allocation3 + $0x4b0] sm:$0xff] %v4569
  %4598 = vst [vmem:[#allocation3 + $0x4f8] sm:$0xff] %v4570
  %4599 = vst [vmem:[#allocation3 + $0x540] sm:$0xff] %v4571
  %4600 = vst [vmem:[#allocation3 + $0x588] sm:$0xff] %v4572
  %4601 = vst [vmem:[#allocation3 + $0x5d0] sm:$0xff] %v4573
  %4602 = vst [vmem:[#allocation3 + $0x618] sm:$0xff] %v4574
  %4603 = vst [vmem:[#allocation3 + $0x660] sm:$0xff] %v4575
  %4604 = vst [vmem:[#allocation3 + $0x6a8] sm:$0xff] %v4576
  %4605 = vst [vmem:[#allocation3 + $0x6f0] sm:$0xff] %v4577
  %4606 = vst [vmem:[#allocation3 + $0x738] sm:$0xff] %v4578
  %4607 = vst [vmem:[#allocation3 + $0x780] sm:$0xff] %v4579
  %4608 = vst [vmem:[#allocation3 + $0x7c8] sm:$0xff] %v4580
  %v4609 = vld [vmem:[#allocation2 + $0x21] sm:$0xff]
  %v4610 = vld [vmem:[#allocation2 + $0x29] sm:$0xff]
  %v4611 = vld [vmem:[#allocation2 + $0x31] sm:$0xff]
  %v4612 = vld [vmem:[#allocation2 + $0x39] sm:$0xff]
  %v4613 = vld [vmem:[#allocation2 + $0x41] sm:$0xff]
  %v4614 = vld [vmem:[#allocation2 + $0x49] sm:$0xff]
  %v4615 = vld [vmem:[#allocation2 + $0x51] sm:$0xff]
  %v4616 = vld [vmem:[#allocation2 + $0x59] sm:$0xff]
  %v4617 = vld [vmem:[#allocation2 + $0x61] sm:$0xff]
  %v4618 = vld [vmem:[#allocation2 + $0x69] sm:$0xff]
  %v4619 = vld [vmem:[#allocation2 + $0x71] sm:$0xff]
  %v4620 = vld [vmem:[#allocation2 + $0x79] sm:$0xff]
  %v4621 = vld [vmem:[#allocation2 + $0x81] sm:$0xff]
  %v4622 = vld [vmem:[#allocation2 + $0x89] sm:$0xff]
  %v4623 = vld [vmem:[#allocation2 + $0x91] sm:$0xff]
  %v4624 = vld [vmem:[#allocation2 + $0x99] sm:$0xff]
  %v4625 = vld [vmem:[#allocation2 + $0xa1] sm:$0xff]
  %v4626 = vld [vmem:[#allocation2 + $0xa9] sm:$0xff]
  %v4627 = vld [vmem:[#allocation2 + $0xb1] sm:$0xff]
  %v4628 = vld [vmem:[#allocation2 + $0xb9] sm:$0xff]
  %v4629 = vld [vmem:[#allocation2 + $0xc1] sm:$0xff]
  %v4630 = vld [vmem:[#allocation2 + $0xc9] sm:$0xff]
  %v4631 = vld [vmem:[#allocation2 + $0xd1] sm:$0xff]
  %v4632 = vld [vmem:[#allocation2 + $0xd9] sm:$0xff]
  %v4633 = vld [vmem:[#allocation2 + $0xe1] sm:$0xff]
  %v4634 = vld [vmem:[#allocation2 + $0xe9] sm:$0xff]
  %v4635 = vld [vmem:[#allocation2 + $0xf1] sm:$0xff]
  %v4636 = vld [vmem:[#allocation2 + $0xf9] sm:$0xff]
  %4637 = vst [vmem:[#allocation3 + $0x38] sm:$0xff] %v4609
  %4638 = vst [vmem:[#allocation3 + $0x80] sm:$0xff] %v4610
  %4639 = vst [vmem:[#allocation3 + $0xc8] sm:$0xff] %v4611
  %4640 = vst [vmem:[#allocation3 + $0x110] sm:$0xff] %v4612
  %4641 = vst [vmem:[#allocation3 + $0x158] sm:$0xff] %v4613
  %4642 = vst [vmem:[#allocation3 + $0x1a0] sm:$0xff] %v4614
  %4643 = vst [vmem:[#allocation3 + $0x1e8] sm:$0xff] %v4615
  %4644 = vst [vmem:[#allocation3 + $0x230] sm:$0xff] %v4616
  %4645 = vst [vmem:[#allocation3 + $0x278] sm:$0xff] %v4617
  %4646 = vst [vmem:[#allocation3 + $0x2c0] sm:$0xff] %v4618
  %4647 = vst [vmem:[#allocation3 + $0x308] sm:$0xff] %v4619
  %4648 = vst [vmem:[#allocation3 + $0x350] sm:$0xff] %v4620
  %4649 = vst [vmem:[#allocation3 + $0x398] sm:$0xff] %v4621
  %4650 = vst [vmem:[#allocation3 + $0x3e0] sm:$0xff] %v4622
  %4651 = vst [vmem:[#allocation3 + $0x428] sm:$0xff] %v4623
  %4652 = vst [vmem:[#allocation3 + $0x470] sm:$0xff] %v4624
  %4653 = vst [vmem:[#allocation3 + $0x4b8] sm:$0xff] %v4625
  %4654 = vst [vmem:[#allocation3 + $0x500] sm:$0xff] %v4626
  %4655 = vst [vmem:[#allocation3 + $0x548] sm:$0xff] %v4627
  %4656 = vst [vmem:[#allocation3 + $0x590] sm:$0xff] %v4628
  %4657 = vst [vmem:[#allocation3 + $0x5d8] sm:$0xff] %v4629
  %4658 = vst [vmem:[#allocation3 + $0x620] sm:$0xff] %v4630
  %4659 = vst [vmem:[#allocation3 + $0x668] sm:$0xff] %v4631
  %4660 = vst [vmem:[#allocation3 + $0x6b0] sm:$0xff] %v4632
  %4661 = vst [vmem:[#allocation3 + $0x6f8] sm:$0xff] %v4633
  %4662 = vst [vmem:[#allocation3 + $0x740] sm:$0xff] %v4634
  %4663 = vst [vmem:[#allocation3 + $0x788] sm:$0xff] %v4635
  %4664 = vst [vmem:[#allocation3 + $0x7d0] sm:$0xff] %v4636
  %v4665 = vld [vmem:[#allocation2 + $0x22] sm:$0xff]
  %v4666 = vld [vmem:[#allocation2 + $0x2a] sm:$0xff]
  %v4667 = vld [vmem:[#allocation2 + $0x32] sm:$0xff]
  %v4668 = vld [vmem:[#allocation2 + $0x3a] sm:$0xff]
  %v4669 = vld [vmem:[#allocation2 + $0x42] sm:$0xff]
  %v4670 = vld [vmem:[#allocation2 + $0x4a] sm:$0xff]
  %v4671 = vld [vmem:[#allocation2 + $0x52] sm:$0xff]
  %v4672 = vld [vmem:[#allocation2 + $0x5a] sm:$0xff]
  %v4673 = vld [vmem:[#allocation2 + $0x62] sm:$0xff]
  %v4674 = vld [vmem:[#allocation2 + $0x6a] sm:$0xff]
  %v4675 = vld [vmem:[#allocation2 + $0x72] sm:$0xff]
  %v4676 = vld [vmem:[#allocation2 + $0x7a] sm:$0xff]
  %v4677 = vld [vmem:[#allocation2 + $0x82] sm:$0xff]
  %v4678 = vld [vmem:[#allocation2 + $0x8a] sm:$0xff]
  %v4679 = vld [vmem:[#allocation2 + $0x92] sm:$0xff]
  %v4680 = vld [vmem:[#allocation2 + $0x9a] sm:$0xff]
  %v4681 = vld [vmem:[#allocation2 + $0xa2] sm:$0xff]
  %v4682 = vld [vmem:[#allocation2 + $0xaa] sm:$0xff]
  %v4683 = vld [vmem:[#allocation2 + $0xb2] sm:$0xff]
  %v4684 = vld [vmem:[#allocation2 + $0xba] sm:$0xff]
  %v4685 = vld [vmem:[#allocation2 + $0xc2] sm:$0xff]
  %v4686 = vld [vmem:[#allocation2 + $0xca] sm:$0xff]
  %v4687 = vld [vmem:[#allocation2 + $0xd2] sm:$0xff]
  %v4688 = vld [vmem:[#allocation2 + $0xda] sm:$0xff]
  %v4689 = vld [vmem:[#allocation2 + $0xe2] sm:$0xff]
  %v4690 = vld [vmem:[#allocation2 + $0xea] sm:$0xff]
  %v4691 = vld [vmem:[#allocation2 + $0xf2] sm:$0xff]
  %v4692 = vld [vmem:[#allocation2 + $0xfa] sm:$0xff]
  %4693 = vst [vmem:[#allocation3 + $0x40] sm:$0xff] %v4665
  %4694 = vst [vmem:[#allocation3 + $0x88] sm:$0xff] %v4666
  %4695 = vst [vmem:[#allocation3 + $0xd0] sm:$0xff] %v4667
  %4696 = vst [vmem:[#allocation3 + $0x118] sm:$0xff] %v4668
  %4697 = vst [vmem:[#allocation3 + $0x160] sm:$0xff] %v4669
  %4698 = vst [vmem:[#allocation3 + $0x1a8] sm:$0xff] %v4670
  %4699 = vst [vmem:[#allocation3 + $0x1f0] sm:$0xff] %v4671
  %4700 = vst [vmem:[#allocation3 + $0x238] sm:$0xff] %v4672
  %4701 = vst [vmem:[#allocation3 + $0x280] sm:$0xff] %v4673
  %4702 = vst [vmem:[#allocation3 + $0x2c8] sm:$0xff] %v4674
  %4703 = vst [vmem:[#allocation3 + $0x310] sm:$0xff] %v4675
  %4704 = vst [vmem:[#allocation3 + $0x358] sm:$0xff] %v4676
  %4705 = vst [vmem:[#allocation3 + $0x3a0] sm:$0xff] %v4677
  %4706 = vst [vmem:[#allocation3 + $0x3e8] sm:$0xff] %v4678
  %4707 = vst [vmem:[#allocation3 + $0x430] sm:$0xff] %v4679
  %4708 = vst [vmem:[#allocation3 + $0x478] sm:$0xff] %v4680
  %4709 = vst [vmem:[#allocation3 + $0x4c0] sm:$0xff] %v4681
  %4710 = vst [vmem:[#allocation3 + $0x508] sm:$0xff] %v4682
  %4711 = vst [vmem:[#allocation3 + $0x550] sm:$0xff] %v4683
  %4712 = vst [vmem:[#allocation3 + $0x598] sm:$0xff] %v4684
  %4713 = vst [vmem:[#allocation3 + $0x5e0] sm:$0xff] %v4685
  %4714 = vst [vmem:[#allocation3 + $0x628] sm:$0xff] %v4686
  %4715 = vst [vmem:[#allocation3 + $0x670] sm:$0xff] %v4687
  %4716 = vst [vmem:[#allocation3 + $0x6b8] sm:$0xff] %v4688
  %4717 = vst [vmem:[#allocation3 + $0x700] sm:$0xff] %v4689
  %4718 = vst [vmem:[#allocation3 + $0x748] sm:$0xff] %v4690
  %4719 = vst [vmem:[#allocation3 + $0x790] sm:$0xff] %v4691
  %4720 = vst [vmem:[#allocation3 + $0x7d8] sm:$0xff] %v4692
  %v4721 = vld [vmem:[%s4] sm:$0x3]
  %v4722 = vld [vmem:[#allocation3] sm:$0xff]
  %v4723 = vld [vmem:[#allocation3 + $0x8] sm:$0xff]
  %v4724 = vld [vmem:[#allocation3 + $0x10] sm:$0xff]
  %v4725 = vld [vmem:[#allocation3 + $0x18] sm:$0xff]
  %v4726 = vld [vmem:[#allocation3 + $0x20] sm:$0xff]
  %v4727 = vld [vmem:[#allocation3 + $0x28] sm:$0xff]
  %v4728 = vld [vmem:[#allocation3 + $0x30] sm:$0xff]
  %v4729 = vld [vmem:[#allocation3 + $0x38] sm:$0xff]
  %v4730 = vld [vmem:[#allocation3 + $0x40] sm:$0xff]
  %v4731 = vld [vmem:[#allocation3 + $0x48] sm:$0xff]
  %v4732 = vld [vmem:[#allocation3 + $0x50] sm:$0xff]
  %v4733 = vld [vmem:[#allocation3 + $0x58] sm:$0xff]
  %v4734 = vld [vmem:[#allocation3 + $0x60] sm:$0xff]
  %v4735 = vld [vmem:[#allocation3 + $0x68] sm:$0xff]
  %v4736 = vld [vmem:[#allocation3 + $0x70] sm:$0xff]
  %v4737 = vld [vmem:[#allocation3 + $0x78] sm:$0xff]
  %v4738 = vld [vmem:[#allocation3 + $0x80] sm:$0xff]
  %v4739 = vld [vmem:[#allocation3 + $0x88] sm:$0xff]
  %v4740 = vld [vmem:[#allocation3 + $0x90] sm:$0xff]
  %v4741 = vld [vmem:[#allocation3 + $0x98] sm:$0xff]
  %v4742 = vld [vmem:[#allocation3 + $0xa0] sm:$0xff]
  %v4743 = vld [vmem:[#allocation3 + $0xa8] sm:$0xff]
  %v4744 = vld [vmem:[#allocation3 + $0xb0] sm:$0xff]
  %v4745 = vld [vmem:[#allocation3 + $0xb8] sm:$0xff]
  %v4746 = vld [vmem:[#allocation3 + $0xc0] sm:$0xff]
  %v4747 = vld [vmem:[#allocation3 + $0xc8] sm:$0xff]
  %v4748 = vld [vmem:[#allocation3 + $0xd0] sm:$0xff]
  %v4749 = vld [vmem:[#allocation3 + $0xd8] sm:$0xff]
  %v4750 = vld [vmem:[#allocation3 + $0xe0] sm:$0xff]
  %v4751 = vld [vmem:[#allocation3 + $0xe8] sm:$0xff]
  %v4752 = vld [vmem:[#allocation3 + $0xf0] sm:$0xff]
  %v4753 = vld [vmem:[#allocation3 + $0xf8] sm:$0xff]
  %v4754 = vld [vmem:[#allocation3 + $0x100] sm:$0xff]
  %v4755 = vld [vmem:[#allocation3 + $0x108] sm:$0xff]
  %v4756 = vld [vmem:[#allocation3 + $0x110] sm:$0xff]
  %v4757 = vld [vmem:[#allocation3 + $0x118] sm:$0xff]
  %v4758 = vld [vmem:[#allocation3 + $0x120] sm:$0xff]
  %v4759 = vld [vmem:[#allocation3 + $0x128] sm:$0xff]
  %v4760 = vld [vmem:[#allocation3 + $0x130] sm:$0xff]
  %v4761 = vld [vmem:[#allocation3 + $0x138] sm:$0xff]
  %v4762 = vld [vmem:[#allocation3 + $0x140] sm:$0xff]
  %v4763 = vld [vmem:[#allocation3 + $0x148] sm:$0xff]
  %v4764 = vld [vmem:[#allocation3 + $0x150] sm:$0xff]
  %v4765 = vld [vmem:[#allocation3 + $0x158] sm:$0xff]
  %v4766 = vld [vmem:[#allocation3 + $0x160] sm:$0xff]
  %v4767 = vld [vmem:[#allocation3 + $0x168] sm:$0xff]
  %v4768 = vld [vmem:[#allocation3 + $0x170] sm:$0xff]
  %v4769 = vld [vmem:[#allocation3 + $0x178] sm:$0xff]
  %v4770 = vld [vmem:[#allocation3 + $0x180] sm:$0xff]
  %v4771 = vld [vmem:[#allocation3 + $0x188] sm:$0xff]
  %v4772 = vld [vmem:[#allocation3 + $0x190] sm:$0xff]
  %v4773 = vld [vmem:[#allocation3 + $0x198] sm:$0xff]
  %v4774 = vld [vmem:[#allocation3 + $0x1a0] sm:$0xff]
  %v4775 = vld [vmem:[#allocation3 + $0x1a8] sm:$0xff]
  %v4776 = vld [vmem:[#allocation3 + $0x1b0] sm:$0xff]
  %v4777 = vld [vmem:[#allocation3 + $0x1b8] sm:$0xff]
  %v4778 = vld [vmem:[#allocation3 + $0x1c0] sm:$0xff]
  %v4779 = vld [vmem:[#allocation3 + $0x1c8] sm:$0xff]
  %v4780 = vld [vmem:[#allocation3 + $0x1d0] sm:$0xff]
  %v4781 = vld [vmem:[#allocation3 + $0x1d8] sm:$0xff]
  %v4782 = vld [vmem:[#allocation3 + $0x1e0] sm:$0xff]
  %v4783 = vld [vmem:[#allocation3 + $0x1e8] sm:$0xff]
  %v4784 = vld [vmem:[#allocation3 + $0x1f0] sm:$0xff]
  %v4785 = vld [vmem:[#allocation3 + $0x1f8] sm:$0xff]
  %v4786 = vld [vmem:[#allocation3 + $0x200] sm:$0xff]
  %v4787 = vld [vmem:[#allocation3 + $0x208] sm:$0xff]
  %v4788 = vld [vmem:[#allocation3 + $0x210] sm:$0xff]
  %v4789 = vld [vmem:[#allocation3 + $0x218] sm:$0xff]
  %v4790 = vld [vmem:[#allocation3 + $0x220] sm:$0xff]
  %v4791 = vld [vmem:[#allocation3 + $0x228] sm:$0xff]
  %v4792 = vld [vmem:[#allocation3 + $0x230] sm:$0xff]
  %v4793 = vld [vmem:[#allocation3 + $0x238] sm:$0xff]
  %v4794 = vld [vmem:[#allocation3 + $0x240] sm:$0xff]
  %v4795 = vld [vmem:[#allocation3 + $0x248] sm:$0xff]
  %v4796 = vld [vmem:[#allocation3 + $0x250] sm:$0xff]
  %v4797 = vld [vmem:[#allocation3 + $0x258] sm:$0xff]
  %v4798 = vld [vmem:[#allocation3 + $0x260] sm:$0xff]
  %v4799 = vld [vmem:[#allocation3 + $0x268] sm:$0xff]
  %v4800 = vld [vmem:[#allocation3 + $0x270] sm:$0xff]
  %v4801 = vld [vmem:[#allocation3 + $0x278] sm:$0xff]
  %v4802 = vld [vmem:[#allocation3 + $0x280] sm:$0xff]
  %v4803 = vld [vmem:[#allocation3 + $0x288] sm:$0xff]
  %v4804 = vld [vmem:[#allocation3 + $0x290] sm:$0xff]
  %v4805 = vld [vmem:[#allocation3 + $0x298] sm:$0xff]
  %v4806 = vld [vmem:[#allocation3 + $0x2a0] sm:$0xff]
  %v4807 = vld [vmem:[#allocation3 + $0x2a8] sm:$0xff]
  %v4808 = vld [vmem:[#allocation3 + $0x2b0] sm:$0xff]
  %v4809 = vld [vmem:[#allocation3 + $0x2b8] sm:$0xff]
  %v4810 = vld [vmem:[#allocation3 + $0x2c0] sm:$0xff]
  %v4811 = vld [vmem:[#allocation3 + $0x2c8] sm:$0xff]
  %v4812 = vld [vmem:[#allocation3 + $0x2d0] sm:$0xff]
  %v4813 = vld [vmem:[#allocation3 + $0x2d8] sm:$0xff]
  %v4814 = vld [vmem:[#allocation3 + $0x2e0] sm:$0xff]
  %v4815 = vld [vmem:[#allocation3 + $0x2e8] sm:$0xff]
  %v4816 = vld [vmem:[#allocation3 + $0x2f0] sm:$0xff]
  %v4817 = vld [vmem:[#allocation3 + $0x2f8] sm:$0xff]
  %v4818 = vld [vmem:[#allocation3 + $0x300] sm:$0xff]
  %v4819 = vld [vmem:[#allocation3 + $0x308] sm:$0xff]
  %v4820 = vld [vmem:[#allocation3 + $0x310] sm:$0xff]
  %v4821 = vld [vmem:[#allocation3 + $0x318] sm:$0xff]
  %v4822 = vld [vmem:[#allocation3 + $0x320] sm:$0xff]
  %v4823 = vld [vmem:[#allocation3 + $0x328] sm:$0xff]
  %v4824 = vld [vmem:[#allocation3 + $0x330] sm:$0xff]
  %v4825 = vld [vmem:[#allocation3 + $0x338] sm:$0xff]
  %v4826 = vld [vmem:[#allocation3 + $0x340] sm:$0xff]
  %v4827 = vld [vmem:[#allocation3 + $0x348] sm:$0xff]
  %v4828 = vld [vmem:[#allocation3 + $0x350] sm:$0xff]
  %v4829 = vld [vmem:[#allocation3 + $0x358] sm:$0xff]
  %v4830 = vld [vmem:[#allocation3 + $0x360] sm:$0xff]
  %v4831 = vld [vmem:[#allocation3 + $0x368] sm:$0xff]
  %v4832 = vld [vmem:[#allocation3 + $0x370] sm:$0xff]
  %v4833 = vld [vmem:[#allocation3 + $0x378] sm:$0xff]
  %v4834 = vld [vmem:[#allocation3 + $0x380] sm:$0xff]
  %v4835 = vld [vmem:[#allocation3 + $0x388] sm:$0xff]
  %v4836 = vld [vmem:[#allocation3 + $0x390] sm:$0xff]
  %v4837 = vld [vmem:[#allocation3 + $0x398] sm:$0xff]
  %v4838 = vld [vmem:[#allocation3 + $0x3a0] sm:$0xff]
  %v4839 = vld [vmem:[#allocation3 + $0x3a8] sm:$0xff]
  %v4840 = vld [vmem:[#allocation3 + $0x3b0] sm:$0xff]
  %v4841 = vld [vmem:[#allocation3 + $0x3b8] sm:$0xff]
  %v4842 = vld [vmem:[#allocation3 + $0x3c0] sm:$0xff]
  %v4843 = vld [vmem:[#allocation3 + $0x3c8] sm:$0xff]
  %v4844 = vld [vmem:[#allocation3 + $0x3d0] sm:$0xff]
  %v4845 = vld [vmem:[#allocation3 + $0x3d8] sm:$0xff]
  %v4846 = vld [vmem:[#allocation3 + $0x3e0] sm:$0xff]
  %v4847 = vld [vmem:[#allocation3 + $0x3e8] sm:$0xff]
  %v4848 = vld [vmem:[%s3] sm:$0xff]
  %v4849 = vld [vmem:[%s3 + $0x8] sm:$0xff]
  %v4850 = vld [vmem:[%s3 + $0x10] sm:$0xff]
  %v4851 = vld [vmem:[%s3 + $0x18] sm:$0xff]
  %v4852 = vld [vmem:[%s3 + $0x20] sm:$0xff]
  %v4853 = vld [vmem:[%s3 + $0x28] sm:$0xff]
  %v4854 = vld [vmem:[%s3 + $0x30] sm:$0xff]
  %v4855 = vld [vmem:[%s3 + $0x38] sm:$0xff]
  %v4856 = vld [vmem:[%s3 + $0x40] sm:$0xff]
  %v4857 = vld [vmem:[%s3 + $0x48] sm:$0xff]
  %v4858 = vld [vmem:[%s3 + $0x50] sm:$0xff]
  %v4859 = vld [vmem:[%s3 + $0x58] sm:$0xff]
  %v4860 = vld [vmem:[%s3 + $0x60] sm:$0xff]
  %v4861 = vld [vmem:[%s3 + $0x68] sm:$0xff]
  %v4862 = vld [vmem:[%s3 + $0x70] sm:$0xff]
  %v4863 = vld [vmem:[%s3 + $0x78] sm:$0xff]
  %v4864 = vld [vmem:[%s3 + $0x80] sm:$0xff]
  %v4865 = vld [vmem:[%s3 + $0x88] sm:$0xff]
  %v4866 = vld [vmem:[%s3 + $0x90] sm:$0xff]
  %v4867 = vld [vmem:[%s3 + $0x98] sm:$0xff]
  %v4868 = vld [vmem:[%s3 + $0xa0] sm:$0xff]
  %v4869 = vld [vmem:[%s3 + $0xa8] sm:$0xff]
  %v4870 = vld [vmem:[%s3 + $0xb0] sm:$0xff]
  %v4871 = vld [vmem:[%s3 + $0xb8] sm:$0xff]
  %v4872 = vld [vmem:[%s3 + $0xc0] sm:$0xff]
  %v4873 = vld [vmem:[%s3 + $0xc8] sm:$0xff]
  %v4874 = vld [vmem:[%s3 + $0xd0] sm:$0xff]
  %v4875 = vld [vmem:[%s3 + $0xd8] sm:$0xff]
  %v4876 = vld [vmem:[%s3 + $0xe0] sm:$0xff]
  %v4877 = vld [vmem:[%s3 + $0xe8] sm:$0xff]
  %v4878 = vld [vmem:[%s3 + $0xf0] sm:$0xff]
  %v4879 = vld [vmem:[%s3 + $0xf8] sm:$0xff]
  %v4880 = vld [vmem:[%s3 + $0x100] sm:$0xff]
  %v4881 = vld [vmem:[%s3 + $0x108] sm:$0xff]
  %v4882 = vld [vmem:[%s3 + $0x110] sm:$0xff]
  %v4883 = vld [vmem:[%s3 + $0x118] sm:$0xff]
  %v4884 = vld [vmem:[%s3 + $0x120] sm:$0xff]
  %v4885 = vld [vmem:[%s3 + $0x128] sm:$0xff]
  %v4886 = vld [vmem:[%s3 + $0x130] sm:$0xff]
  %v4887 = vld [vmem:[%s3 + $0x138] sm:$0xff]
  %v4888 = vld [vmem:[%s3 + $0x140] sm:$0xff]
  %v4889 = vld [vmem:[%s3 + $0x148] sm:$0xff]
  %v4890 = vld [vmem:[%s3 + $0x150] sm:$0xff]
  %v4891 = vld [vmem:[%s3 + $0x158] sm:$0xff]
  %v4892 = vld [vmem:[%s3 + $0x160] sm:$0xff]
  %v4893 = vld [vmem:[%s3 + $0x168] sm:$0xff]
  %v4894 = vld [vmem:[%s3 + $0x170] sm:$0xff]
  %v4895 = vld [vmem:[%s3 + $0x178] sm:$0xff]
  %v4896 = vld [vmem:[%s3 + $0x180] sm:$0xff]
  %v4897 = vld [vmem:[%s3 + $0x188] sm:$0xff]
  %v4898 = vld [vmem:[%s3 + $0x190] sm:$0xff]
  %v4899 = vld [vmem:[%s3 + $0x198] sm:$0xff]
  %v4900 = vld [vmem:[%s3 + $0x1a0] sm:$0xff]
  %v4901 = vld [vmem:[%s3 + $0x1a8] sm:$0xff]
  %v4902 = vld [vmem:[%s3 + $0x1b0] sm:$0xff]
  %v4903 = vld [vmem:[%s3 + $0x1b8] sm:$0xff]
  %v4904 = vld [vmem:[%s3 + $0x1c0] sm:$0xff]
  %v4905 = vld [vmem:[%s3 + $0x1c8] sm:$0xff]
  %v4906 = vld [vmem:[%s3 + $0x1d0] sm:$0xff]
  %v4907 = vld [vmem:[%s3 + $0x1d8] sm:$0xff]
  %v4908 = vld [vmem:[%s3 + $0x1e0] sm:$0xff]
  %v4909 = vld [vmem:[%s3 + $0x1e8] sm:$0xff]
  %v4910 = vld [vmem:[%s3 + $0x1f0] sm:$0xff]
  %v4911 = vld [vmem:[%s3 + $0x1f8] sm:$0xff]
  %v4912 = vld [vmem:[%s3 + $0x200] sm:$0xff]
  %v4913 = vld [vmem:[%s3 + $0x208] sm:$0xff]
  %v4914 = vld [vmem:[%s3 + $0x210] sm:$0xff]
  %v4915 = vld [vmem:[%s3 + $0x218] sm:$0xff]
  %v4916 = vld [vmem:[%s3 + $0x220] sm:$0xff]
  %v4917 = vld [vmem:[%s3 + $0x228] sm:$0xff]
  %v4918 = vld [vmem:[%s3 + $0x230] sm:$0xff]
  %v4919 = vld [vmem:[%s3 + $0x238] sm:$0xff]
  %v4920 = vld [vmem:[%s3 + $0x240] sm:$0xff]
  %v4921 = vld [vmem:[%s3 + $0x248] sm:$0xff]
  %v4922 = vld [vmem:[%s3 + $0x250] sm:$0xff]
  %v4923 = vld [vmem:[%s3 + $0x258] sm:$0xff]
  %v4924 = vld [vmem:[%s3 + $0x260] sm:$0xff]
  %v4925 = vld [vmem:[%s3 + $0x268] sm:$0xff]
  %v4926 = vld [vmem:[%s3 + $0x270] sm:$0xff]
  %v4927 = vld [vmem:[%s3 + $0x278] sm:$0xff]
  %v4928 = vld [vmem:[%s3 + $0x280] sm:$0xff]
  %v4929 = vld [vmem:[%s3 + $0x288] sm:$0xff]
  %v4930 = vld [vmem:[%s3 + $0x290] sm:$0xff]
  %v4931 = vld [vmem:[%s3 + $0x298] sm:$0xff]
  %v4932 = vld [vmem:[%s3 + $0x2a0] sm:$0xff]
  %v4933 = vld [vmem:[%s3 + $0x2a8] sm:$0xff]
  %v4934 = vld [vmem:[%s3 + $0x2b0] sm:$0xff]
  %v4935 = vld [vmem:[%s3 + $0x2b8] sm:$0xff]
  %v4936 = vld [vmem:[%s3 + $0x2c0] sm:$0xff]
  %v4937 = vld [vmem:[%s3 + $0x2c8] sm:$0xff]
  %v4938 = vld [vmem:[%s3 + $0x2d0] sm:$0xff]
  %v4939 = vld [vmem:[%s3 + $0x2d8] sm:$0xff]
  %v4940 = vld [vmem:[%s3 + $0x2e0] sm:$0xff]
  %v4941 = vld [vmem:[%s3 + $0x2e8] sm:$0xff]
  %v4942 = vld [vmem:[%s3 + $0x2f0] sm:$0xff]
  %v4943 = vld [vmem:[%s3 + $0x2f8] sm:$0xff]
  %v4944 = vld [vmem:[%s3 + $0x300] sm:$0xff]
  %v4945 = vld [vmem:[%s3 + $0x308] sm:$0xff]
  %v4946 = vld [vmem:[%s3 + $0x310] sm:$0xff]
  %v4947 = vld [vmem:[%s3 + $0x318] sm:$0xff]
  %v4948 = vld [vmem:[%s3 + $0x320] sm:$0xff]
  %v4949 = vld [vmem:[%s3 + $0x328] sm:$0xff]
  %v4950 = vld [vmem:[%s3 + $0x330] sm:$0xff]
  %v4951 = vld [vmem:[%s3 + $0x338] sm:$0xff]
  %v4952 = vld [vmem:[%s3 + $0x340] sm:$0xff]
  %v4953 = vld [vmem:[%s3 + $0x348] sm:$0xff]
  %v4954 = vld [vmem:[%s3 + $0x350] sm:$0xff]
  %v4955 = vld [vmem:[%s3 + $0x358] sm:$0xff]
  %v4956 = vld [vmem:[%s3 + $0x360] sm:$0xff]
  %v4957 = vld [vmem:[%s3 + $0x368] sm:$0xff]
  %v4958 = vld [vmem:[%s3 + $0x370] sm:$0xff]
  %v4959 = vld [vmem:[%s3 + $0x378] sm:$0xff]
  %v4960 = vld [vmem:[%s3 + $0x380] sm:$0xff]
  %v4961 = vld [vmem:[%s3 + $0x388] sm:$0xff]
  %v4962 = vld [vmem:[%s3 + $0x390] sm:$0xff]
  %v4963 = vld [vmem:[%s3 + $0x398] sm:$0xff]
  %v4964 = vld [vmem:[%s3 + $0x3a0] sm:$0xff]
  %v4965 = vld [vmem:[%s3 + $0x3a8] sm:$0xff]
  %v4966 = vld [vmem:[%s3 + $0x3b0] sm:$0xff]
  %v4967 = vld [vmem:[%s3 + $0x3b8] sm:$0xff]
  %v4968 = vld [vmem:[%s3 + $0x3c0] sm:$0xff]
  %v4969 = vld [vmem:[%s3 + $0x3c8] sm:$0xff]
  %v4970 = vld [vmem:[%s3 + $0x3d0] sm:$0xff]
  %v4971 = vld [vmem:[%s3 + $0x3d8] sm:$0xff]
  %v4972 = vld [vmem:[%s3 + $0x3e0] sm:$0xff]
  %v4973 = vld [vmem:[%s3 + $0x3e8] sm:$0xff]
  %v4974 = vld [vmem:[%s3 + $0x3f0] sm:$0xff]
  %v4975 = vld [vmem:[%s3 + $0x3f8] sm:$0xff]
  %v4976 = vld [vmem:[%s3 + $0x400] sm:$0xff]
  %v4977 = vld [vmem:[%s3 + $0x408] sm:$0xff]
  %v4978 = vld [vmem:[%s3 + $0x410] sm:$0xff]
  %v4979 = vld [vmem:[%s3 + $0x418] sm:$0xff]
  %v4980 = vld [vmem:[%s3 + $0x420] sm:$0xff]
  %v4981 = vld [vmem:[%s3 + $0x428] sm:$0xff]
  %v4982 = vld [vmem:[%s3 + $0x430] sm:$0xff]
  %v4983 = vld [vmem:[%s3 + $0x438] sm:$0xff]
  %v4984 = vld [vmem:[%s3 + $0x440] sm:$0xff]
  %v4985 = vld [vmem:[%s3 + $0x448] sm:$0xff]
  %v4986 = vld [vmem:[%s3 + $0x450] sm:$0xff]
  %v4987 = vld [vmem:[%s3 + $0x458] sm:$0xff]
  %v4988 = vld [vmem:[%s3 + $0x460] sm:$0xff]
  %v4989 = vld [vmem:[%s3 + $0x468] sm:$0xff]
  %v4990 = vld [vmem:[%s3 + $0x470] sm:$0xff]
  %v4991 = vld [vmem:[%s3 + $0x478] sm:$0xff]
  %v4992 = vld [vmem:[%s3 + $0x480] sm:$0xff]
  %v4993 = vld [vmem:[%s3 + $0x488] sm:$0xff]
  %v4994 = vld [vmem:[%s3 + $0x490] sm:$0xff]
  %v4995 = vld [vmem:[%s3 + $0x498] sm:$0xff]
  %v4996 = vld [vmem:[%s3 + $0x4a0] sm:$0xff]
  %v4997 = vld [vmem:[%s3 + $0x4a8] sm:$0xff]
  %v4998 = vld [vmem:[%s3 + $0x4b0] sm:$0xff]
  %v4999 = vld [vmem:[%s3 + $0x4b8] sm:$0xff]
  %v5000 = vld [vmem:[%s3 + $0x4c0] sm:$0xff]
  %v5001 = vld [vmem:[%s3 + $0x4c8] sm:$0xff]
  %v5002 = vld [vmem:[%s3 + $0x4d0] sm:$0xff]
  %v5003 = vld [vmem:[%s3 + $0x4d8] sm:$0xff]
  %v5004 = vld [vmem:[%s3 + $0x4e0] sm:$0xff]
  %v5005 = vld [vmem:[%s3 + $0x4e8] sm:$0xff]
  %v5006 = vld [vmem:[%s3 + $0x4f0] sm:$0xff]
  %v5007 = vld [vmem:[%s3 + $0x4f8] sm:$0xff]
  %v5008 = vld [vmem:[%s3 + $0x500] sm:$0xff]
  %v5009 = vld [vmem:[%s3 + $0x508] sm:$0xff]
  %v5010 = vld [vmem:[%s3 + $0x510] sm:$0xff]
  %v5011 = vld [vmem:[%s3 + $0x518] sm:$0xff]
  %v5012 = vld [vmem:[%s3 + $0x520] sm:$0xff]
  %v5013 = vld [vmem:[%s3 + $0x528] sm:$0xff]
  %v5014 = vld [vmem:[%s3 + $0x530] sm:$0xff]
  %v5015 = vld [vmem:[%s3 + $0x538] sm:$0xff]
  %v5016 = vld [vmem:[%s3 + $0x540] sm:$0xff]
  %v5017 = vld [vmem:[%s3 + $0x548] sm:$0xff]
  %v5018 = vld [vmem:[%s3 + $0x550] sm:$0xff]
  %v5019 = vld [vmem:[%s3 + $0x558] sm:$0xff]
  %v5020 = vld [vmem:[%s3 + $0x560] sm:$0xff]
  %v5021 = vld [vmem:[%s3 + $0x568] sm:$0xff]
  %v5022 = vld [vmem:[%s3 + $0x570] sm:$0xff]
  %v5023 = vld [vmem:[%s3 + $0x578] sm:$0xff]
  %v5024 = vld [vmem:[%s3 + $0x580] sm:$0xff]
  %v5025 = vld [vmem:[%s3 + $0x588] sm:$0xff]
  %v5026 = vld [vmem:[%s3 + $0x590] sm:$0xff]
  %v5027 = vld [vmem:[%s3 + $0x598] sm:$0xff]
  %v5028 = vld [vmem:[%s3 + $0x5a0] sm:$0xff]
  %v5029 = vld [vmem:[%s3 + $0x5a8] sm:$0xff]
  %v5030 = vld [vmem:[%s3 + $0x5b0] sm:$0xff]
  %v5031 = vld [vmem:[%s3 + $0x5b8] sm:$0xff]
  %v5032 = vld [vmem:[%s3 + $0x5c0] sm:$0xff]
  %v5033 = vld [vmem:[%s3 + $0x5c8] sm:$0xff]
  %v5034 = vld [vmem:[%s3 + $0x5d0] sm:$0xff]
  %v5035 = vld [vmem:[%s3 + $0x5d8] sm:$0xff]
  %v5036 = vld [vmem:[%s3 + $0x5e0] sm:$0xff]
  %v5037 = vld [vmem:[%s3 + $0x5e8] sm:$0xff]
  %v5038 = vld [vmem:[%s3 + $0x5f0] sm:$0xff]
  %v5039 = vld [vmem:[%s3 + $0x5f8] sm:$0xff]
  %v5040 = vld [vmem:[%s3 + $0x600] sm:$0xff]
  %v5041 = vld [vmem:[%s3 + $0x608] sm:$0xff]
  %v5042 = vld [vmem:[%s3 + $0x610] sm:$0xff]
  %v5043 = vld [vmem:[%s3 + $0x618] sm:$0xff]
  %v5044 = vld [vmem:[%s3 + $0x620] sm:$0xff]
  %v5045 = vld [vmem:[%s3 + $0x628] sm:$0xff]
  %v5046 = vld [vmem:[%s3 + $0x630] sm:$0xff]
  %v5047 = vld [vmem:[%s3 + $0x638] sm:$0xff]
  %v5048 = vld [vmem:[%s3 + $0x640] sm:$0xff]
  %v5049 = vld [vmem:[%s3 + $0x648] sm:$0xff]
  %v5050 = vld [vmem:[%s3 + $0x650] sm:$0xff]
  %v5051 = vld [vmem:[%s3 + $0x658] sm:$0xff]
  %v5052 = vld [vmem:[%s3 + $0x660] sm:$0xff]
  %v5053 = vld [vmem:[%s3 + $0x668] sm:$0xff]
  %v5054 = vld [vmem:[%s3 + $0x670] sm:$0xff]
  %v5055 = vld [vmem:[%s3 + $0x678] sm:$0xff]
  %v5056 = vld [vmem:[%s3 + $0x680] sm:$0xff]
  %v5057 = vld [vmem:[%s3 + $0x688] sm:$0xff]
  %v5058 = vld [vmem:[%s3 + $0x690] sm:$0xff]
  %v5059 = vld [vmem:[%s3 + $0x698] sm:$0xff]
  %v5060 = vld [vmem:[%s3 + $0x6a0] sm:$0xff]
  %v5061 = vld [vmem:[%s3 + $0x6a8] sm:$0xff]
  %v5062 = vld [vmem:[%s3 + $0x6b0] sm:$0xff]
  %v5063 = vld [vmem:[%s3 + $0x6b8] sm:$0xff]
  %v5064 = vld [vmem:[%s3 + $0x6c0] sm:$0xff]
  %v5065 = vld [vmem:[%s3 + $0x6c8] sm:$0xff]
  %v5066 = vld [vmem:[%s3 + $0x6d0] sm:$0xff]
  %v5067 = vld [vmem:[%s3 + $0x6d8] sm:$0xff]
  %v5068 = vld [vmem:[%s3 + $0x6e0] sm:$0xff]
  %v5069 = vld [vmem:[%s3 + $0x6e8] sm:$0xff]
  %v5070 = vld [vmem:[%s3 + $0x6f0] sm:$0xff]
  %v5071 = vld [vmem:[%s3 + $0x6f8] sm:$0xff]
  %v5072 = vld [vmem:[%s3 + $0x700] sm:$0xff]
  %v5073 = vld [vmem:[%s3 + $0x708] sm:$0xff]
  %v5074 = vld [vmem:[%s3 + $0x710] sm:$0xff]
  %v5075 = vld [vmem:[%s3 + $0x718] sm:$0xff]
  %v5076 = vld [vmem:[%s3 + $0x720] sm:$0xff]
  %v5077 = vld [vmem:[%s3 + $0x728] sm:$0xff]
  %v5078 = vld [vmem:[%s3 + $0x730] sm:$0xff]
  %v5079 = vld [vmem:[%s3 + $0x738] sm:$0xff]
  %v5080 = vld [vmem:[%s3 + $0x740] sm:$0xff]
  %v5081 = vld [vmem:[%s3 + $0x748] sm:$0xff]
  %v5082 = vld [vmem:[%s3 + $0x750] sm:$0xff]
  %v5083 = vld [vmem:[%s3 + $0x758] sm:$0xff]
  %v5084 = vld [vmem:[%s3 + $0x760] sm:$0xff]
  %v5085 = vld [vmem:[%s3 + $0x768] sm:$0xff]
  %v5086 = vld [vmem:[%s3 + $0x770] sm:$0xff]
  %v5087 = vld [vmem:[%s3 + $0x778] sm:$0xff]
  %v5088 = vld [vmem:[%s3 + $0x780] sm:$0xff]
  %v5089 = vld [vmem:[%s3 + $0x788] sm:$0xff]
  %v5090 = vld [vmem:[%s3 + $0x790] sm:$0xff]
  %v5091 = vld [vmem:[%s3 + $0x798] sm:$0xff]
  %v5092 = vld [vmem:[%s3 + $0x7a0] sm:$0xff]
  %v5093 = vld [vmem:[%s3 + $0x7a8] sm:$0xff]
  %v5094 = vld [vmem:[%s3 + $0x7b0] sm:$0xff]
  %v5095 = vld [vmem:[%s3 + $0x7b8] sm:$0xff]
  %v5096 = vld [vmem:[%s3 + $0x7c0] sm:$0xff]
  %v5097 = vld [vmem:[%s3 + $0x7c8] sm:$0xff]
  %v5098 = vld [vmem:[%s3 + $0x7d0] sm:$0xff]
  %v5099 = vld [vmem:[%s3 + $0x7d8] sm:$0xff]
  %v5100 = vld [vmem:[%s3 + $0x7e0] sm:$0xff]
  %v5101 = vld [vmem:[%s3 + $0x7e8] sm:$0xff]
  %v5102 = vld [vmem:[%s3 + $0x7f0] sm:$0xff]
  %v5103 = vld [vmem:[%s3 + $0x7f8] sm:$0xff]
  %v5104 = vld [vmem:[%s3 + $0x800] sm:$0xff]
  %v5105 = vld [vmem:[%s3 + $0x808] sm:$0xff]
  %v5106 = vld [vmem:[%s3 + $0x810] sm:$0xff]
  %v5107 = vld [vmem:[%s3 + $0x818] sm:$0xff]
  %v5108 = vld [vmem:[%s3 + $0x820] sm:$0xff]
  %v5109 = vld [vmem:[%s3 + $0x828] sm:$0xff]
  %v5110 = vld [vmem:[%s3 + $0x830] sm:$0xff]
  %v5111 = vld [vmem:[%s3 + $0x838] sm:$0xff]
  %v5112 = vld [vmem:[%s3 + $0x840] sm:$0xff]
  %v5113 = vld [vmem:[%s3 + $0x848] sm:$0xff]
  %v5114 = vld [vmem:[%s3 + $0x850] sm:$0xff]
  %v5115 = vld [vmem:[%s3 + $0x858] sm:$0xff]
  %v5116 = vld [vmem:[%s3 + $0x860] sm:$0xff]
  %v5117 = vld [vmem:[%s3 + $0x868] sm:$0xff]
  %v5118 = vld [vmem:[%s3 + $0x870] sm:$0xff]
  %v5119 = vld [vmem:[%s3 + $0x878] sm:$0xff]
  %v5120 = vld [vmem:[%s3 + $0x880] sm:$0xff]
  %v5121 = vld [vmem:[%s3 + $0x888] sm:$0xff]
  %v5122 = vld [vmem:[%s3 + $0x890] sm:$0xff]
  %v5123 = vld [vmem:[%s3 + $0x898] sm:$0xff]
  %v5124 = vld [vmem:[%s3 + $0x8a0] sm:$0xff]
  %v5125 = vld [vmem:[%s3 + $0x8a8] sm:$0xff]
  %v5126 = vld [vmem:[%s3 + $0x8b0] sm:$0xff]
  %v5127 = vld [vmem:[%s3 + $0x8b8] sm:$0xff]
  %v5128 = vld [vmem:[%s3 + $0x8c0] sm:$0xff]
  %v5129 = vld [vmem:[%s3 + $0x8c8] sm:$0xff]
  %v5130 = vld [vmem:[%s3 + $0x8d0] sm:$0xff]
  %v5131 = vld [vmem:[%s3 + $0x8d8] sm:$0xff]
  %v5132 = vld [vmem:[%s3 + $0x8e0] sm:$0xff]
  %v5133 = vld [vmem:[%s3 + $0x8e8] sm:$0xff]
  %v5134 = vld [vmem:[%s3 + $0x8f0] sm:$0xff]
  %v5135 = vld [vmem:[%s3 + $0x8f8] sm:$0xff]
  %v5137 = vlaneseq
  %v5138 = vshrl.u32 %v5137, 7
  %v5139 = vsub.s32 0, %v5138
  %v5140 = vrot.slane %v4721, %v5139
  %v5141 = vlaneseq
  %v5142 = vshrl.u32 %v5141, 7
  %v5143 = vsub.s32 1, %v5142
  %v5144 = vrot.slane %v4721, %v5143
  %5147 = vmatprep.subr.mxu0 %v4849
  %5148 = vmatpush1.msra.mxu0 %v4848
  %5149 = vmatprep.subr.mxu0 %v4851
  %5150 = vmatpush1.msra.mxu0 %v4850
  %5151 = vmatprep.subr.mxu0 %v4853
  %5152 = vmatpush1.msra.mxu0 %v4852
  %5153 = vmatprep.subr.mxu0 %v4855
  %5154 = vmatpush1.msra.mxu0 %v4854
  %5155 = vmatprep.subr.mxu0 %v4857
  %5156 = vmatpush1.msra.mxu0 %v4856
  %5157 = vmatprep.subr.mxu0 %v4859
  %5158 = vmatpush1.msra.mxu0 %v4858
  %5159 = vmatprep.subr.mxu0 %v4861
  %5160 = vmatpush1.msra.mxu0 %v4860
  %5161 = vmatprep.subr.mxu0 %v4863
  %5162 = vmatpush1.msra.mxu0 %v4862
  %5163 = vmatprep.subr.mxu0 %v4865
  %5164 = vmatpush1.msra.mxu0 %v4864
  %5165 = vmatprep.subr.mxu0 %v4867
  %5166 = vmatpush1.msra.mxu0 %v4866
  %5167 = vmatprep.subr.mxu0 %v4869
  %5168 = vmatpush1.msra.mxu0 %v4868
  %5169 = vmatprep.subr.mxu0 %v4871
  %5170 = vmatpush1.msra.mxu0 %v4870
  %5171 = vmatprep.subr.mxu0 %v4873
  %5172 = vmatpush1.msra.mxu0 %v4872
  %5173 = vmatprep.subr.mxu0 %v4875
  %5174 = vmatpush1.msra.mxu0 %v4874
  %5175 = vmatprep.subr.mxu0 %v4877
  %5176 = vmatpush1.msra.mxu0 %v4876
  %5177 = vmatprep.subr.mxu0 %v4879
  %5178 = vmatpush1.msra.mxu0 %v4878
  %5179 = vmatprep.subr.mxu0 %v4881
  %5180 = vmatpush1.msra.mxu0 %v4880
  %5181 = vmatprep.subr.mxu0 %v4883
  %5182 = vmatpush1.msra.mxu0 %v4882
  %5183 = vmatprep.subr.mxu0 %v4885
  %5184 = vmatpush1.msra.mxu0 %v4884
  %5185 = vmatprep.subr.mxu0 %v4887
  %5186 = vmatpush1.msra.mxu0 %v4886
  %5187 = vmatprep.subr.mxu0 %v4889
  %5188 = vmatpush1.msra.mxu0 %v4888
  %5189 = vmatprep.subr.mxu0 %v4891
  %5190 = vmatpush1.msra.mxu0 %v4890
  %5191 = vmatprep.subr.mxu0 %v4893
  %5192 = vmatpush1.msra.mxu0 %v4892
  %5193 = vmatprep.subr.mxu0 %v4895
  %5194 = vmatpush1.msra.mxu0 %v4894
  %5195 = vmatprep.subr.mxu0 %v4897
  %5196 = vmatpush1.msra.mxu0 %v4896
  %5197 = vmatprep.subr.mxu0 %v4899
  %5198 = vmatpush1.msra.mxu0 %v4898
  %5199 = vmatprep.subr.mxu0 %v4901
  %5200 = vmatpush1.msra.mxu0 %v4900
  %5201 = vmatprep.subr.mxu0 %v4903
  %5202 = vmatpush1.msra.mxu0 %v4902
  %5203 = vmatprep.subr.mxu0 %v4905
  %5204 = vmatpush1.msra.mxu0 %v4904
  %5205 = vmatprep.subr.mxu0 %v4907
  %5206 = vmatpush1.msra.mxu0 %v4906
  %5207 = vmatprep.subr.mxu0 %v4909
  %5208 = vmatpush1.msra.mxu0 %v4908
  %5209 = vmatprep.subr.mxu0 %v4911
  %5210 = vmatpush1.msra.mxu0 %v4910
  %5211 = vmatprep.mubr.f32.mxu0 %v4723
  %5212 = vmatmul.mubr.f32.gmra.mrb[0].mxu0 %v4722
  %v5213 = vpop.f32.mrb[0].mxu0
  %v5214 = vadd.f32 %v5140, %v5213
  %v5215 = vpop.f32.mrb[0].mxu0
  %v5216 = vadd.f32 %v5144, %v5215
  %5217 = vmatprep.mubr.f32.mxu0 %v4732
  %5218 = vmatmul.mubr.f32.gmra.mrb[0].mxu0 %v4731
  %v5219 = vpop.f32.mrb[0].mxu0
  %v5220 = vadd.f32 %v5140, %v5219
  %v5221 = vpop.f32.mrb[0].mxu0
  %v5222 = vadd.f32 %v5144, %v5221
  %5223 = vmatprep.mubr.f32.mxu0 %v4741
  %5224 = vmatmul.mubr.f32.gmra.mrb[0].mxu0 %v4740
  %v5225 = vpop.f32.mrb[0].mxu0
  %v5226 = vadd.f32 %v5140, %v5225
  %v5227 = vpop.f32.mrb[0].mxu0
  %v5228 = vadd.f32 %v5144, %v5227
  %5229 = vmatprep.mubr.f32.mxu0 %v4750
  %5230 = vmatmul.mubr.f32.gmra.mrb[0].mxu0 %v4749
  %v5231 = vpop.f32.mrb[0].mxu0
  %v5232 = vadd.f32 %v5140, %v5231
  %v5233 = vpop.f32.mrb[0].mxu0
  %v5234 = vadd.f32 %v5144, %v5233
  %5235 = vmatprep.mubr.f32.mxu0 %v4759
  %5236 = vmatmul.mubr.f32.gmra.mrb[0].mxu0 %v4758
  %v5237 = vpop.f32.mrb[0].mxu0
  %v5238 = vadd.f32 %v5140, %v5237
  %v5239 = vpop.f32.mrb[0].mxu0
  %v5240 = vadd.f32 %v5144, %v5239
  %5241 = vmatprep.mubr.f32.mxu0 %v4768
  %5242 = vmatmul.mubr.f32.gmra.mrb[0].mxu0 %v4767
  %v5243 = vpop.f32.mrb[0].mxu0
  %v5244 = vadd.f32 %v5140, %v5243
  %v5245 = vpop.f32.mrb[0].mxu0
  %v5246 = vadd.f32 %v5144, %v5245
  %5247 = vmatprep.mubr.f32.mxu0 %v4777
  %5248 = vmatmul.mubr.f32.gmra.mrb[0].mxu0 %v4776
  %v5249 = vpop.f32.mrb[0].mxu0
  %v5250 = vadd.f32 %v5140, %v5249
  %v5251 = vpop.f32.mrb[0].mxu0
  %v5252 = vadd.f32 %v5144, %v5251
  %5253 = vmatprep.mubr.f32.mxu0 %v4786
  %5254 = vmatmul.mubr.f32.gmra.mrb[0].mxu0 %v4785
  %v5255 = vpop.f32.mrb[0].mxu0
  %v5256 = vadd.f32 %v5140, %v5255
  %v5257 = vpop.f32.mrb[0].mxu0
  %v5258 = vadd.f32 %v5144, %v5257
  %5259 = vmatprep.mubr.f32.mxu0 %v4795
  %5260 = vmatmul.mubr.f32.gmra.mrb[0].mxu0 %v4794
  %v5261 = vpop.f32.mrb[0].mxu0
  %v5262 = vadd.f32 %v5140, %v5261
  %v5263 = vpop.f32.mrb[0].mxu0
  %v5264 = vadd.f32 %v5144, %v5263
  %5265 = vmatprep.mubr.f32.mxu0 %v4804
  %5266 = vmatmul.mubr.f32.gmra.mrb[0].mxu0 %v4803
  %v5267 = vpop.f32.mrb[0].mxu0
  %v5268 = vadd.f32 %v5140, %v5267
  %v5269 = vpop.f32.mrb[0].mxu0
  %v5270 = vadd.f32 %v5144, %v5269
  %5271 = vmatprep.mubr.f32.mxu0 %v4813
  %5272 = vmatmul.mubr.f32.gmra.mrb[0].mxu0 %v4812
  %v5273 = vpop.f32.mrb[0].mxu0
  %v5274 = vadd.f32 %v5140, %v5273
  %v5275 = vpop.f32.mrb[0].mxu0
  %v5276 = vadd.f32 %v5144, %v5275
  %5277 = vmatprep.mubr.f32.mxu0 %v4822
  %5278 = vmatmul.mubr.f32.gmra.mrb[0].mxu0 %v4821
  %v5279 = vpop.f32.mrb[0].mxu0
  %v5280 = vadd.f32 %v5140, %v5279
  %v5281 = vpop.f32.mrb[0].mxu0
  %v5282 = vadd.f32 %v5144, %v5281
  %5283 = vmatprep.mubr.f32.mxu0 %v4831
  %5284 = vmatmul.mubr.f32.gmra.mrb[0].mxu0 %v4830
  %v5285 = vpop.f32.mrb[0].mxu0
  %v5286 = vadd.f32 %v5140, %v5285
  %v5287 = vpop.f32.mrb[0].mxu0
  %v5288 = vadd.f32 %v5144, %v5287
  %5289 = vmatprep.mubr.f32.mxu0 %v4840
  %5290 = vmatmul.mubr.f32.gmra.mrb[0].mxu0 %v4839
  %v5291 = vpop.f32.mrb[0].mxu0
  %v5292 = vadd.f32 %v5140, %v5291
  %v5293 = vpop.f32.mrb[0].mxu0
  %v5294 = vadd.f32 %v5144, %v5293
  %5295 = vdwg.mxu0
  %5296 = vmatprep.subr.mxu0 %v4913
  %5297 = vmatpush1.msra.mxu0 %v4912
  %5298 = vmatprep.subr.mxu0 %v4915
  %5299 = vmatpush1.msra.mxu0 %v4914
  %5300 = vmatprep.subr.mxu0 %v4917
  %5301 = vmatpush1.msra.mxu0 %v4916
  %5302 = vmatprep.subr.mxu0 %v4919
  %5303 = vmatpush1.msra.mxu0 %v4918
  %5304 = vmatprep.subr.mxu0 %v4921
  %5305 = vmatpush1.msra.mxu0 %v4920
  %5306 = vmatprep.subr.mxu0 %v4923
  %5307 = vmatpush1.msra.mxu0 %v4922
  %5308 = vmatprep.subr.mxu0 %v4925
  %5309 = vmatpush1.msra.mxu0 %v4924
  %5310 = vmatprep.subr.mxu0 %v4927
  %5311 = vmatpush1.msra.mxu0 %v4926
  %5312 = vmatprep.subr.mxu0 %v4929
  %5313 = vmatpush1.msra.mxu0 %v4928
  %5314 = vmatprep.subr.mxu0 %v4931
  %5315 = vmatpush1.msra.mxu0 %v4930
  %5316 = vmatprep.subr.mxu0 %v4933
  %5317 = vmatpush1.msra.mxu0 %v4932
  %5318 = vmatprep.subr.mxu0 %v4935
  %5319 = vmatpush1.msra.mxu0 %v4934
  %5320 = vmatprep.subr.mxu0 %v4937
  %5321 = vmatpush1.msra.mxu0 %v4936
  %5322 = vmatprep.subr.mxu0 %v4939
  %5323 = vmatpush1.msra.mxu0 %v4938
  %5324 = vmatprep.subr.mxu0 %v4941
  %5325 = vmatpush1.msra.mxu0 %v4940
  %5326 = vmatprep.subr.mxu0 %v4943
  %5327 = vmatpush1.msra.mxu0 %v4942
  %5328 = vmatprep.subr.mxu0 %v4945
  %5329 = vmatpush1.msra.mxu0 %v4944
  %5330 = vmatprep.subr.mxu0 %v4947
  %5331 = vmatpush1.msra.mxu0 %v4946
  %5332 = vmatprep.subr.mxu0 %v4949
  %5333 = vmatpush1.msra.mxu0 %v4948
  %5334 = vmatprep.subr.mxu0 %v4951
  %5335 = vmatpush1.msra.mxu0 %v4950
  %5336 = vmatprep.subr.mxu0 %v4953
  %5337 = vmatpush1.msra.mxu0 %v4952
  %5338 = vmatprep.subr.mxu0 %v4955
  %5339 = vmatpush1.msra.mxu0 %v4954
  %5340 = vmatprep.subr.mxu0 %v4957
  %5341 = vmatpush1.msra.mxu0 %v4956
  %5342 = vmatprep.subr.mxu0 %v4959
  %5343 = vmatpush1.msra.mxu0 %v4958
  %5344 = vmatprep.subr.mxu0 %v4961
  %5345 = vmatpush1.msra.mxu0 %v4960
  %5346 = vmatprep.subr.mxu0 %v4963
  %5347 = vmatpush1.msra.mxu0 %v4962
  %5348 = vmatprep.subr.mxu0 %v4965
  %5349 = vmatpush1.msra.mxu0 %v4964
  %5350 = vmatprep.subr.mxu0 %v4967
  %5351 = vmatpush1.msra.mxu0 %v4966
  %5352 = vmatprep.subr.mxu0 %v4969
  %5353 = vmatpush1.msra.mxu0 %v4968
  %5354 = vmatprep.subr.mxu0 %v4971
  %5355 = vmatpush1.msra.mxu0 %v4970
  %5356 = vmatprep.subr.mxu0 %v4973
  %5357 = vmatpush1.msra.mxu0 %v4972
  %5358 = vmatprep.subr.mxu0 %v4975
  %5359 = vmatpush1.msra.mxu0 %v4974
  %5360 = vmatprep.mubr.f32.mxu0 %v4725
  %5361 = vmatmul.mubr.f32.gmra.mrb[0].mxu0 %v4724
  %v5362 = vpop.f32.mrb[0].mxu0
  %v5363 = vadd.f32 %v5214, %v5362
  %v5364 = vpop.f32.mrb[0].mxu0
  %v5365 = vadd.f32 %v5216, %v5364
  %5366 = vmatprep.mubr.f32.mxu0 %v4734
  %5367 = vmatmul.mubr.f32.gmra.mrb[0].mxu0 %v4733
  %v5368 = vpop.f32.mrb[0].mxu0
  %v5369 = vadd.f32 %v5220, %v5368
  %v5370 = vpop.f32.mrb[0].mxu0
  %v5371 = vadd.f32 %v5222, %v5370
  %5372 = vmatprep.mubr.f32.mxu0 %v4743
  %5373 = vmatmul.mubr.f32.gmra.mrb[0].mxu0 %v4742
  %v5374 = vpop.f32.mrb[0].mxu0
  %v5375 = vadd.f32 %v5226, %v5374
  %v5376 = vpop.f32.mrb[0].mxu0
  %v5377 = vadd.f32 %v5228, %v5376
  %5378 = vmatprep.mubr.f32.mxu0 %v4752
  %5379 = vmatmul.mubr.f32.gmra.mrb[0].mxu0 %v4751
  %v5380 = vpop.f32.mrb[0].mxu0
  %v5381 = vadd.f32 %v5232, %v5380
  %v5382 = vpop.f32.mrb[0].mxu0
  %v5383 = vadd.f32 %v5234, %v5382
  %5384 = vmatprep.mubr.f32.mxu0 %v4761
  %5385 = vmatmul.mubr.f32.gmra.mrb[0].mxu0 %v4760
  %v5386 = vpop.f32.mrb[0].mxu0
  %v5387 = vadd.f32 %v5238, %v5386
  %v5388 = vpop.f32.mrb[0].mxu0
  %v5389 = vadd.f32 %v5240, %v5388
  %5390 = vmatprep.mubr.f32.mxu0 %v4770
  %5391 = vmatmul.mubr.f32.gmra.mrb[0].mxu0 %v4769
  %v5392 = vpop.f32.mrb[0].mxu0
  %v5393 = vadd.f32 %v5244, %v5392
  %v5394 = vpop.f32.mrb[0].mxu0
  %v5395 = vadd.f32 %v5246, %v5394
  %5396 = vmatprep.mubr.f32.mxu0 %v4779
  %5397 = vmatmul.mubr.f32.gmra.mrb[0].mxu0 %v4778
  %v5398 = vpop.f32.mrb[0].mxu0
  %v5399 = vadd.f32 %v5250, %v5398
  %v5400 = vpop.f32.mrb[0].mxu0
  %v5401 = vadd.f32 %v5252, %v5400
  %5402 = vmatprep.mubr.f32.mxu0 %v4788
  %5403 = vmatmul.mubr.f32.gmra.mrb[0].mxu0 %v4787
  %v5404 = vpop.f32.mrb[0].mxu0
  %v5405 = vadd.f32 %v5256, %v5404
  %v5406 = vpop.f32.mrb[0].mxu0
  %v5407 = vadd.f32 %v5258, %v5406
  %5408 = vmatprep.mubr.f32.mxu0 %v4797
  %5409 = vmatmul.mubr.f32.gmra.mrb[0].mxu0 %v4796
  %v5410 = vpop.f32.mrb[0].mxu0
  %v5411 = vadd.f32 %v5262, %v5410
  %v5412 = vpop.f32.mrb[0].mxu0
  %v5413 = vadd.f32 %v5264, %v5412
  %5414 = vmatprep.mubr.f32.mxu0 %v4806
  %5415 = vmatmul.mubr.f32.gmra.mrb[0].mxu0 %v4805
  %v5416 = vpop.f32.mrb[0].mxu0
  %v5417 = vadd.f32 %v5268, %v5416
  %v5418 = vpop.f32.mrb[0].mxu0
  %v5419 = vadd.f32 %v5270, %v5418
  %5420 = vmatprep.mubr.f32.mxu0 %v4815
  %5421 = vmatmul.mubr.f32.gmra.mrb[0].mxu0 %v4814
  %v5422 = vpop.f32.mrb[0].mxu0
  %v5423 = vadd.f32 %v5274, %v5422
  %v5424 = vpop.f32.mrb[0].mxu0
  %v5425 = vadd.f32 %v5276, %v5424
  %5426 = vmatprep.mubr.f32.mxu0 %v4824
  %5427 = vmatmul.mubr.f32.gmra.mrb[0].mxu0 %v4823
  %v5428 = vpop.f32.mrb[0].mxu0
  %v5429 = vadd.f32 %v5280, %v5428
  %v5430 = vpop.f32.mrb[0].mxu0
  %v5431 = vadd.f32 %v5282, %v5430
  %5432 = vmatprep.mubr.f32.mxu0 %v4833
  %5433 = vmatmul.mubr.f32.gmra.mrb[0].mxu0 %v4832
  %v5434 = vpop.f32.mrb[0].mxu0
  %v5435 = vadd.f32 %v5286, %v5434
  %v5436 = vpop.f32.mrb[0].mxu0
  %v5437 = vadd.f32 %v5288, %v5436
  %5438 = vmatprep.mubr.f32.mxu0 %v4842
  %5439 = vmatmul.mubr.f32.gmra.mrb[0].mxu0 %v4841
  %v5440 = vpop.f32.mrb[0].mxu0
  %v5441 = vadd.f32 %v5292, %v5440
  %v5442 = vpop.f32.mrb[0].mxu0
  %v5443 = vadd.f32 %v5294, %v5442
  %5444 = vdwg.mxu0
  %5445 = vmatprep.subr.mxu0 %v4977
  %5446 = vmatpush1.msra.mxu0 %v4976
  %5447 = vmatprep.subr.mxu0 %v4979
  %5448 = vmatpush1.msra.mxu0 %v4978
  %5449 = vmatprep.subr.mxu0 %v4981
  %5450 = vmatpush1.msra.mxu0 %v4980
  %5451 = vmatprep.subr.mxu0 %v4983
  %5452 = vmatpush1.msra.mxu0 %v4982
  %5453 = vmatprep.subr.mxu0 %v4985
  %5454 = vmatpush1.msra.mxu0 %v4984
  %5455 = vmatprep.subr.mxu0 %v4987
  %5456 = vmatpush1.msra.mxu0 %v4986
  %5457 = vmatprep.subr.mxu0 %v4989
  %5458 = vmatpush1.msra.mxu0 %v4988
  %5459 = vmatprep.subr.mxu0 %v4991
  %5460 = vmatpush1.msra.mxu0 %v4990
  %5461 = vmatprep.subr.mxu0 %v4993
  %5462 = vmatpush1.msra.mxu0 %v4992
  %5463 = vmatprep.subr.mxu0 %v4995
  %5464 = vmatpush1.msra.mxu0 %v4994
  %5465 = vmatprep.subr.mxu0 %v4997
  %5466 = vmatpush1.msra.mxu0 %v4996
  %5467 = vmatprep.subr.mxu0 %v4999
  %5468 = vmatpush1.msra.mxu0 %v4998
  %5469 = vmatprep.subr.mxu0 %v5001
  %5470 = vmatpush1.msra.mxu0 %v5000
  %5471 = vmatprep.subr.mxu0 %v5003
  %5472 = vmatpush1.msra.mxu0 %v5002
  %5473 = vmatprep.subr.mxu0 %v5005
  %5474 = vmatpush1.msra.mxu0 %v5004
  %5475 = vmatprep.subr.mxu0 %v5007
  %5476 = vmatpush1.msra.mxu0 %v5006
  %5477 = vmatprep.subr.mxu0 %v5009
  %5478 = vmatpush1.msra.mxu0 %v5008
  %5479 = vmatprep.subr.mxu0 %v5011
  %5480 = vmatpush1.msra.mxu0 %v5010
  %5481 = vmatprep.subr.mxu0 %v5013
  %5482 = vmatpush1.msra.mxu0 %v5012
  %5483 = vmatprep.subr.mxu0 %v5015
  %5484 = vmatpush1.msra.mxu0 %v5014
  %5485 = vmatprep.subr.mxu0 %v5017
  %5486 = vmatpush1.msra.mxu0 %v5016
  %5487 = vmatprep.subr.mxu0 %v5019
  %5488 = vmatpush1.msra.mxu0 %v5018
  %5489 = vmatprep.subr.mxu0 %v5021
  %5490 = vmatpush1.msra.mxu0 %v5020
  %5491 = vmatprep.subr.mxu0 %v5023
  %5492 = vmatpush1.msra.mxu0 %v5022
  %5493 = vmatprep.subr.mxu0 %v5025
  %5494 = vmatpush1.msra.mxu0 %v5024
  %5495 = vmatprep.subr.mxu0 %v5027
  %5496 = vmatpush1.msra.mxu0 %v5026
  %5497 = vmatprep.subr.mxu0 %v5029
  %5498 = vmatpush1.msra.mxu0 %v5028
  %5499 = vmatprep.subr.mxu0 %v5031
  %5500 = vmatpush1.msra.mxu0 %v5030
  %5501 = vmatprep.subr.mxu0 %v5033
  %5502 = vmatpush1.msra.mxu0 %v5032
  %5503 = vmatprep.subr.mxu0 %v5035
  %5504 = vmatpush1.msra.mxu0 %v5034
  %5505 = vmatprep.subr.mxu0 %v5037
  %5506 = vmatpush1.msra.mxu0 %v5036
  %5507 = vmatprep.subr.mxu0 %v5039
  %5508 = vmatpush1.msra.mxu0 %v5038
  %5509 = vmatprep.mubr.f32.mxu0 %v4727
  %5510 = vmatmul.mubr.f32.gmra.mrb[0].mxu0 %v4726
  %v5511 = vpop.f32.mrb[0].mxu0
  %v5512 = vadd.f32 %v5363, %v5511
  %v5513 = vpop.f32.mrb[0].mxu0
  %v5514 = vadd.f32 %v5365, %v5513
  %5515 = vmatprep.mubr.f32.mxu0 %v4736
  %5516 = vmatmul.mubr.f32.gmra.mrb[0].mxu0 %v4735
  %v5517 = vpop.f32.mrb[0].mxu0
  %v5518 = vadd.f32 %v5369, %v5517
  %v5519 = vpop.f32.mrb[0].mxu0
  %v5520 = vadd.f32 %v5371, %v5519
  %5521 = vmatprep.mubr.f32.mxu0 %v4745
  %5522 = vmatmul.mubr.f32.gmra.mrb[0].mxu0 %v4744
  %v5523 = vpop.f32.mrb[0].mxu0
  %v5524 = vadd.f32 %v5375, %v5523
  %v5525 = vpop.f32.mrb[0].mxu0
  %v5526 = vadd.f32 %v5377, %v5525
  %5527 = vmatprep.mubr.f32.mxu0 %v4754
  %5528 = vmatmul.mubr.f32.gmra.mrb[0].mxu0 %v4753
  %v5529 = vpop.f32.mrb[0].mxu0
  %v5530 = vadd.f32 %v5381, %v5529
  %v5531 = vpop.f32.mrb[0].mxu0
  %v5532 = vadd.f32 %v5383, %v5531
  %5533 = vmatprep.mubr.f32.mxu0 %v4763
  %5534 = vmatmul.mubr.f32.gmra.mrb[0].mxu0 %v4762
  %v5535 = vpop.f32.mrb[0].mxu0
  %v5536 = vadd.f32 %v5387, %v5535
  %v5537 = vpop.f32.mrb[0].mxu0
  %v5538 = vadd.f32 %v5389, %v5537
  %5539 = vmatprep.mubr.f32.mxu0 %v4772
  %5540 = vmatmul.mubr.f32.gmra.mrb[0].mxu0 %v4771
  %v5541 = vpop.f32.mrb[0].mxu0
  %v5542 = vadd.f32 %v5393, %v5541
  %v5543 = vpop.f32.mrb[0].mxu0
  %v5544 = vadd.f32 %v5395, %v5543
  %5545 = vmatprep.mubr.f32.mxu0 %v4781
  %5546 = vmatmul.mubr.f32.gmra.mrb[0].mxu0 %v4780
  %v5547 = vpop.f32.mrb[0].mxu0
  %v5548 = vadd.f32 %v5399, %v5547
  %v5549 = vpop.f32.mrb[0].mxu0
  %v5550 = vadd.f32 %v5401, %v5549
  %5551 = vmatprep.mubr.f32.mxu0 %v4790
  %5552 = vmatmul.mubr.f32.gmra.mrb[0].mxu0 %v4789
  %v5553 = vpop.f32.mrb[0].mxu0
  %v5554 = vadd.f32 %v5405, %v5553
  %v5555 = vpop.f32.mrb[0].mxu0
  %v5556 = vadd.f32 %v5407, %v5555
  %5557 = vmatprep.mubr.f32.mxu0 %v4799
  %5558 = vmatmul.mubr.f32.gmra.mrb[0].mxu0 %v4798
  %v5559 = vpop.f32.mrb[0].mxu0
  %v5560 = vadd.f32 %v5411, %v5559
  %v5561 = vpop.f32.mrb[0].mxu0
  %v5562 = vadd.f32 %v5413, %v5561
  %5563 = vmatprep.mubr.f32.mxu0 %v4808
  %5564 = vmatmul.mubr.f32.gmra.mrb[0].mxu0 %v4807
  %v5565 = vpop.f32.mrb[0].mxu0
  %v5566 = vadd.f32 %v5417, %v5565
  %v5567 = vpop.f32.mrb[0].mxu0
  %v5568 = vadd.f32 %v5419, %v5567
  %5569 = vmatprep.mubr.f32.mxu0 %v4817
  %5570 = vmatmul.mubr.f32.gmra.mrb[0].mxu0 %v4816
  %v5571 = vpop.f32.mrb[0].mxu0
  %v5572 = vadd.f32 %v5423, %v5571
  %v5573 = vpop.f32.mrb[0].mxu0
  %v5574 = vadd.f32 %v5425, %v5573
  %5575 = vmatprep.mubr.f32.mxu0 %v4826
  %5576 = vmatmul.mubr.f32.gmra.mrb[0].mxu0 %v4825
  %v5577 = vpop.f32.mrb[0].mxu0
  %v5578 = vadd.f32 %v5429, %v5577
  %v5579 = vpop.f32.mrb[0].mxu0
  %v5580 = vadd.f32 %v5431, %v5579
  %5581 = vmatprep.mubr.f32.mxu0 %v4835
  %5582 = vmatmul.mubr.f32.gmra.mrb[0].mxu0 %v4834
  %v5583 = vpop.f32.mrb[0].mxu0
  %v5584 = vadd.f32 %v5435, %v5583
  %v5585 = vpop.f32.mrb[0].mxu0
  %v5586 = vadd.f32 %v5437, %v5585
  %5587 = vmatprep.mubr.f32.mxu0 %v4844
  %5588 = vmatmul.mubr.f32.gmra.mrb[0].mxu0 %v4843
  %v5589 = vpop.f32.mrb[0].mxu0
  %v5590 = vadd.f32 %v5441, %v5589
  %v5591 = vpop.f32.mrb[0].mxu0
  %v5592 = vadd.f32 %v5443, %v5591
  %5593 = vdwg.mxu0
  %5594 = vmatprep.subr.mxu0 %v5041
  %5595 = vmatpush1.msra.mxu0 %v5040
  %5596 = vmatprep.subr.mxu0 %v5043
  %5597 = vmatpush1.msra.mxu0 %v5042
  %5598 = vmatprep.subr.mxu0 %v5045
  %5599 = vmatpush1.msra.mxu0 %v5044
  %5600 = vmatprep.subr.mxu0 %v5047
  %5601 = vmatpush1.msra.mxu0 %v5046
  %5602 = vmatprep.subr.mxu0 %v5049
  %5603 = vmatpush1.msra.mxu0 %v5048
  %5604 = vmatprep.subr.mxu0 %v5051
  %5605 = vmatpush1.msra.mxu0 %v5050
  %5606 = vmatprep.subr.mxu0 %v5053
  %5607 = vmatpush1.msra.mxu0 %v5052
  %5608 = vmatprep.subr.mxu0 %v5055
  %5609 = vmatpush1.msra.mxu0 %v5054
  %5610 = vmatprep.subr.mxu0 %v5057
  %5611 = vmatpush1.msra.mxu0 %v5056
  %5612 = vmatprep.subr.mxu0 %v5059
  %5613 = vmatpush1.msra.mxu0 %v5058
  %5614 = vmatprep.subr.mxu0 %v5061
  %5615 = vmatpush1.msra.mxu0 %v5060
  %5616 = vmatprep.subr.mxu0 %v5063
  %5617 = vmatpush1.msra.mxu0 %v5062
  %5618 = vmatprep.subr.mxu0 %v5065
  %5619 = vmatpush1.msra.mxu0 %v5064
  %5620 = vmatprep.subr.mxu0 %v5067
  %5621 = vmatpush1.msra.mxu0 %v5066
  %5622 = vmatprep.subr.mxu0 %v5069
  %5623 = vmatpush1.msra.mxu0 %v5068
  %5624 = vmatprep.subr.mxu0 %v5071
  %5625 = vmatpush1.msra.mxu0 %v5070
  %5626 = vmatprep.subr.mxu0 %v5073
  %5627 = vmatpush1.msra.mxu0 %v5072
  %5628 = vmatprep.subr.mxu0 %v5075
  %5629 = vmatpush1.msra.mxu0 %v5074
  %5630 = vmatprep.subr.mxu0 %v5077
  %5631 = vmatpush1.msra.mxu0 %v5076
  %5632 = vmatprep.subr.mxu0 %v5079
  %5633 = vmatpush1.msra.mxu0 %v5078
  %5634 = vmatprep.subr.mxu0 %v5081
  %5635 = vmatpush1.msra.mxu0 %v5080
  %5636 = vmatprep.subr.mxu0 %v5083
  %5637 = vmatpush1.msra.mxu0 %v5082
  %5638 = vmatprep.subr.mxu0 %v5085
  %5639 = vmatpush1.msra.mxu0 %v5084
  %5640 = vmatprep.subr.mxu0 %v5087
  %5641 = vmatpush1.msra.mxu0 %v5086
  %5642 = vmatprep.subr.mxu0 %v5089
  %5643 = vmatpush1.msra.mxu0 %v5088
  %5644 = vmatprep.subr.mxu0 %v5091
  %5645 = vmatpush1.msra.mxu0 %v5090
  %5646 = vmatprep.subr.mxu0 %v5093
  %5647 = vmatpush1.msra.mxu0 %v5092
  %5648 = vmatprep.subr.mxu0 %v5095
  %5649 = vmatpush1.msra.mxu0 %v5094
  %5650 = vmatprep.subr.mxu0 %v5097
  %5651 = vmatpush1.msra.mxu0 %v5096
  %5652 = vmatprep.subr.mxu0 %v5099
  %5653 = vmatpush1.msra.mxu0 %v5098
  %5654 = vmatprep.subr.mxu0 %v5101
  %5655 = vmatpush1.msra.mxu0 %v5100
  %5656 = vmatprep.subr.mxu0 %v5103
  %5657 = vmatpush1.msra.mxu0 %v5102
  %5658 = vmatprep.mubr.f32.mxu0 %v4729
  %5659 = vmatmul.mubr.f32.gmra.mrb[0].mxu0 %v4728
  %v5660 = vpop.f32.mrb[0].mxu0
  %v5661 = vadd.f32 %v5512, %v5660
  %v5662 = vpop.f32.mrb[0].mxu0
  %v5663 = vadd.f32 %v5514, %v5662
  %5664 = vmatprep.mubr.f32.mxu0 %v4738
  %5665 = vmatmul.mubr.f32.gmra.mrb[0].mxu0 %v4737
  %v5666 = vpop.f32.mrb[0].mxu0
  %v5667 = vadd.f32 %v5518, %v5666
  %v5668 = vpop.f32.mrb[0].mxu0
  %v5669 = vadd.f32 %v5520, %v5668
  %5670 = vmatprep.mubr.f32.mxu0 %v4747
  %5671 = vmatmul.mubr.f32.gmra.mrb[0].mxu0 %v4746
  %v5672 = vpop.f32.mrb[0].mxu0
  %v5673 = vadd.f32 %v5524, %v5672
  %v5674 = vpop.f32.mrb[0].mxu0
  %v5675 = vadd.f32 %v5526, %v5674
  %5676 = vmatprep.mubr.f32.mxu0 %v4756
  %5677 = vmatmul.mubr.f32.gmra.mrb[0].mxu0 %v4755
  %v5678 = vpop.f32.mrb[0].mxu0
  %v5679 = vadd.f32 %v5530, %v5678
  %v5680 = vpop.f32.mrb[0].mxu0
  %v5681 = vadd.f32 %v5532, %v5680
  %5682 = vmatprep.mubr.f32.mxu0 %v4765
  %5683 = vmatmul.mubr.f32.gmra.mrb[0].mxu0 %v4764
  %v5684 = vpop.f32.mrb[0].mxu0
  %v5685 = vadd.f32 %v5536, %v5684
  %v5686 = vpop.f32.mrb[0].mxu0
  %v5687 = vadd.f32 %v5538, %v5686
  %5688 = vmatprep.mubr.f32.mxu0 %v4774
  %5689 = vmatmul.mubr.f32.gmra.mrb[0].mxu0 %v4773
  %v5690 = vpop.f32.mrb[0].mxu0
  %v5691 = vadd.f32 %v5542, %v5690
  %v5692 = vpop.f32.mrb[0].mxu0
  %v5693 = vadd.f32 %v5544, %v5692
  %5694 = vmatprep.mubr.f32.mxu0 %v4783
  %5695 = vmatmul.mubr.f32.gmra.mrb[0].mxu0 %v4782
  %v5696 = vpop.f32.mrb[0].mxu0
  %v5697 = vadd.f32 %v5548, %v5696
  %v5698 = vpop.f32.mrb[0].mxu0
  %v5699 = vadd.f32 %v5550, %v5698
  %5700 = vmatprep.mubr.f32.mxu0 %v4792
  %5701 = vmatmul.mubr.f32.gmra.mrb[0].mxu0 %v4791
  %v5702 = vpop.f32.mrb[0].mxu0
  %v5703 = vadd.f32 %v5554, %v5702
  %v5704 = vpop.f32.mrb[0].mxu0
  %v5705 = vadd.f32 %v5556, %v5704
  %5706 = vmatprep.mubr.f32.mxu0 %v4801
  %5707 = vmatmul.mubr.f32.gmra.mrb[0].mxu0 %v4800
  %v5708 = vpop.f32.mrb[0].mxu0
  %v5709 = vadd.f32 %v5560, %v5708
  %v5710 = vpop.f32.mrb[0].mxu0
  %v5711 = vadd.f32 %v5562, %v5710
  %5712 = vmatprep.mubr.f32.mxu0 %v4810
  %5713 = vmatmul.mubr.f32.gmra.mrb[0].mxu0 %v4809
  %v5714 = vpop.f32.mrb[0].mxu0
  %v5715 = vadd.f32 %v5566, %v5714
  %v5716 = vpop.f32.mrb[0].mxu0
  %v5717 = vadd.f32 %v5568, %v5716
  %5718 = vmatprep.mubr.f32.mxu0 %v4819
  %5719 = vmatmul.mubr.f32.gmra.mrb[0].mxu0 %v4818
  %v5720 = vpop.f32.mrb[0].mxu0
  %v5721 = vadd.f32 %v5572, %v5720
  %v5722 = vpop.f32.mrb[0].mxu0
  %v5723 = vadd.f32 %v5574, %v5722
  %5724 = vmatprep.mubr.f32.mxu0 %v4828
  %5725 = vmatmul.mubr.f32.gmra.mrb[0].mxu0 %v4827
  %v5726 = vpop.f32.mrb[0].mxu0
  %v5727 = vadd.f32 %v5578, %v5726
  %v5728 = vpop.f32.mrb[0].mxu0
  %v5729 = vadd.f32 %v5580, %v5728
  %5730 = vmatprep.mubr.f32.mxu0 %v4837
  %5731 = vmatmul.mubr.f32.gmra.mrb[0].mxu0 %v4836
  %v5732 = vpop.f32.mrb[0].mxu0
  %v5733 = vadd.f32 %v5584, %v5732
  %v5734 = vpop.f32.mrb[0].mxu0
  %v5735 = vadd.f32 %v5586, %v5734
  %5736 = vmatprep.mubr.f32.mxu0 %v4846
  %5737 = vmatmul.mubr.f32.gmra.mrb[0].mxu0 %v4845
  %v5738 = vpop.f32.mrb[0].mxu0
  %v5739 = vadd.f32 %v5590, %v5738
  %v5740 = vpop.f32.mrb[0].mxu0
  %v5741 = vadd.f32 %v5592, %v5740
  %5742 = vdwg.mxu0
  %5743 = vmatprep.subr.mxu0 %v5105
  %5744 = vmatpush1.msra.mxu0 %v5104
  %5745 = vmatprep.subr.mxu0 %v5107
  %5746 = vmatpush1.msra.mxu0 %v5106
  %5747 = vmatprep.subr.mxu0 %v5109
  %5748 = vmatpush1.msra.mxu0 %v5108
  %5749 = vmatprep.subr.mxu0 %v5111
  %5750 = vmatpush1.msra.mxu0 %v5110
  %5751 = vmatprep.subr.mxu0 %v5113
  %5752 = vmatpush1.msra.mxu0 %v5112
  %5753 = vmatprep.subr.mxu0 %v5115
  %5754 = vmatpush1.msra.mxu0 %v5114
  %5755 = vmatprep.subr.mxu0 %v5117
  %5756 = vmatpush1.msra.mxu0 %v5116
  %5757 = vmatprep.subr.mxu0 %v5119
  %5758 = vmatpush1.msra.mxu0 %v5118
  %5759 = vmatprep.subr.mxu0 %v5121
  %5760 = vmatpush1.msra.mxu0 %v5120
  %5761 = vmatprep.subr.mxu0 %v5123
  %5762 = vmatpush1.msra.mxu0 %v5122
  %5763 = vmatprep.subr.mxu0 %v5125
  %5764 = vmatpush1.msra.mxu0 %v5124
  %5765 = vmatprep.subr.mxu0 %v5127
  %5766 = vmatpush1.msra.mxu0 %v5126
  %5767 = vmatprep.subr.mxu0 %v5129
  %5768 = vmatpush1.msra.mxu0 %v5128
  %5769 = vmatprep.subr.mxu0 %v5131
  %5770 = vmatpush1.msra.mxu0 %v5130
  %5771 = vmatprep.subr.mxu0 %v5133
  %5772 = vmatpush1.msra.mxu0 %v5132
  %5773 = vmatprep.subr.mxu0 %v5135
  %5774 = vmatpush1.msra.mxu0 %v5134
  %5775 = vmatprep.subr.mxu0 0.0
  %5776 = vmatpush1.msra.mxu0 0.0
  %5777 = vmatprep.subr.mxu0 0.0
  %5778 = vmatpush1.msra.mxu0 0.0
  %5779 = vmatprep.subr.mxu0 0.0
  %5780 = vmatpush1.msra.mxu0 0.0
  %5781 = vmatprep.subr.mxu0 0.0
  %5782 = vmatpush1.msra.mxu0 0.0
  %5783 = vmatprep.subr.mxu0 0.0
  %5784 = vmatpush1.msra.mxu0 0.0
  %5785 = vmatprep.subr.mxu0 0.0
  %5786 = vmatpush1.msra.mxu0 0.0
  %5787 = vmatprep.subr.mxu0 0.0
  %5788 = vmatpush1.msra.mxu0 0.0
  %5789 = vmatprep.subr.mxu0 0.0
  %5790 = vmatpush1.msra.mxu0 0.0
  %5791 = vmatprep.subr.mxu0 0.0
  %5792 = vmatpush1.msra.mxu0 0.0
  %5793 = vmatprep.subr.mxu0 0.0
  %5794 = vmatpush1.msra.mxu0 0.0
  %5795 = vmatprep.subr.mxu0 0.0
  %5796 = vmatpush1.msra.mxu0 0.0
  %5797 = vmatprep.subr.mxu0 0.0
  %5798 = vmatpush1.msra.mxu0 0.0
  %5799 = vmatprep.subr.mxu0 0.0
  %5800 = vmatpush1.msra.mxu0 0.0
  %5801 = vmatprep.subr.mxu0 0.0
  %5802 = vmatpush1.msra.mxu0 0.0
  %5803 = vmatprep.subr.mxu0 0.0
  %5804 = vmatpush1.msra.mxu0 0.0
  %5805 = vmatprep.subr.mxu0 0.0
  %5806 = vmatpush1.msra.mxu0 0.0
  %5807 = vmatprep.mubr.f32.mxu0 0.0
  %5808 = vmatmul.mubr.f32.gmra.mrb[0].mxu0 %v4730
  %v5809 = vpop.f32.mrb[0].mxu0
  %v5810 = vadd.f32 %v5661, %v5809
  %v5811 = vpop.f32.mrb[0].mxu0
  %v5812 = vadd.f32 %v5663, %v5811
  %5813 = vmatprep.mubr.f32.mxu0 0.0
  %5814 = vmatmul.mubr.f32.gmra.mrb[0].mxu0 %v4739
  %v5815 = vpop.f32.mrb[0].mxu0
  %v5816 = vadd.f32 %v5667, %v5815
  %v5817 = vpop.f32.mrb[0].mxu0
  %v5818 = vadd.f32 %v5669, %v5817
  %5819 = vmatprep.mubr.f32.mxu0 0.0
  %5820 = vmatmul.mubr.f32.gmra.mrb[0].mxu0 %v4748
  %v5821 = vpop.f32.mrb[0].mxu0
  %v5822 = vadd.f32 %v5673, %v5821
  %v5823 = vpop.f32.mrb[0].mxu0
  %v5824 = vadd.f32 %v5675, %v5823
  %5825 = vmatprep.mubr.f32.mxu0 0.0
  %5826 = vmatmul.mubr.f32.gmra.mrb[0].mxu0 %v4757
  %v5827 = vpop.f32.mrb[0].mxu0
  %v5828 = vadd.f32 %v5679, %v5827
  %v5829 = vpop.f32.mrb[0].mxu0
  %v5830 = vadd.f32 %v5681, %v5829
  %5831 = vmatprep.mubr.f32.mxu0 0.0
  %5832 = vmatmul.mubr.f32.gmra.mrb[0].mxu0 %v4766
  %v5833 = vpop.f32.mrb[0].mxu0
  %v5834 = vadd.f32 %v5685, %v5833
  %v5835 = vpop.f32.mrb[0].mxu0
  %v5836 = vadd.f32 %v5687, %v5835
  %5837 = vmatprep.mubr.f32.mxu0 0.0
  %5838 = vmatmul.mubr.f32.gmra.mrb[0].mxu0 %v4775
  %v5839 = vpop.f32.mrb[0].mxu0
  %v5840 = vadd.f32 %v5691, %v5839
  %v5841 = vpop.f32.mrb[0].mxu0
  %v5842 = vadd.f32 %v5693, %v5841
  %5843 = vmatprep.mubr.f32.mxu0 0.0
  %5844 = vmatmul.mubr.f32.gmra.mrb[0].mxu0 %v4784
  %v5845 = vpop.f32.mrb[0].mxu0
  %v5846 = vadd.f32 %v5697, %v5845
  %v5847 = vpop.f32.mrb[0].mxu0
  %v5848 = vadd.f32 %v5699, %v5847
  %5849 = vmatprep.mubr.f32.mxu0 0.0
  %5850 = vmatmul.mubr.f32.gmra.mrb[0].mxu0 %v4793
  %v5851 = vpop.f32.mrb[0].mxu0
  %v5852 = vadd.f32 %v5703, %v5851
  %v5853 = vpop.f32.mrb[0].mxu0
  %v5854 = vadd.f32 %v5705, %v5853
  %5855 = vmatprep.mubr.f32.mxu0 0.0
  %5856 = vmatmul.mubr.f32.gmra.mrb[0].mxu0 %v4802
  %v5857 = vpop.f32.mrb[0].mxu0
  %v5858 = vadd.f32 %v5709, %v5857
  %v5859 = vpop.f32.mrb[0].mxu0
  %v5860 = vadd.f32 %v5711, %v5859
  %5861 = vmatprep.mubr.f32.mxu0 0.0
  %5862 = vmatmul.mubr.f32.gmra.mrb[0].mxu0 %v4811
  %v5863 = vpop.f32.mrb[0].mxu0
  %v5864 = vadd.f32 %v5715, %v5863
  %v5865 = vpop.f32.mrb[0].mxu0
  %v5866 = vadd.f32 %v5717, %v5865
  %5867 = vmatprep.mubr.f32.mxu0 0.0
  %5868 = vmatmul.mubr.f32.gmra.mrb[0].mxu0 %v4820
  %v5869 = vpop.f32.mrb[0].mxu0
  %v5870 = vadd.f32 %v5721, %v5869
  %v5871 = vpop.f32.mrb[0].mxu0
  %v5872 = vadd.f32 %v5723, %v5871
  %5873 = vmatprep.mubr.f32.mxu0 0.0
  %5874 = vmatmul.mubr.f32.gmra.mrb[0].mxu0 %v4829
  %v5875 = vpop.f32.mrb[0].mxu0
  %v5876 = vadd.f32 %v5727, %v5875
  %v5877 = vpop.f32.mrb[0].mxu0
  %v5878 = vadd.f32 %v5729, %v5877
  %5879 = vmatprep.mubr.f32.mxu0 0.0
  %5880 = vmatmul.mubr.f32.gmra.mrb[0].mxu0 %v4838
  %v5881 = vpop.f32.mrb[0].mxu0
  %v5882 = vadd.f32 %v5733, %v5881
  %v5883 = vpop.f32.mrb[0].mxu0
  %v5884 = vadd.f32 %v5735, %v5883
  %5885 = vmatprep.mubr.f32.mxu0 0.0
  %5886 = vmatmul.mubr.f32.gmra.mrb[0].mxu0 %v4847
  %v5887 = vpop.f32.mrb[0].mxu0
  %v5888 = vadd.f32 %v5739, %v5887
  %v5889 = vpop.f32.mrb[0].mxu0
  %v5890 = vadd.f32 %v5741, %v5889
  %5891 = vdwg.mxu0
  %v5892 = vmax.f32 %v5810, 0.0
  %v5893 = vmax.f32 %v5812, 0.0
  %v5894 = vmax.f32 %v5816, 0.0
  %v5895 = vmax.f32 %v5818, 0.0
  %v5896 = vmax.f32 %v5822, 0.0
  %v5897 = vmax.f32 %v5824, 0.0
  %v5898 = vmax.f32 %v5828, 0.0
  %v5899 = vmax.f32 %v5830, 0.0
  %v5900 = vmax.f32 %v5834, 0.0
  %v5901 = vmax.f32 %v5836, 0.0
  %v5902 = vmax.f32 %v5840, 0.0
  %v5903 = vmax.f32 %v5842, 0.0
  %v5904 = vmax.f32 %v5846, 0.0
  %v5905 = vmax.f32 %v5848, 0.0
  %v5906 = vmax.f32 %v5852, 0.0
  %v5907 = vmax.f32 %v5854, 0.0
  %v5908 = vmax.f32 %v5858, 0.0
  %v5909 = vmax.f32 %v5860, 0.0
  %v5910 = vmax.f32 %v5864, 0.0
  %v5911 = vmax.f32 %v5866, 0.0
  %v5912 = vmax.f32 %v5870, 0.0
  %v5913 = vmax.f32 %v5872, 0.0
  %v5914 = vmax.f32 %v5876, 0.0
  %v5915 = vmax.f32 %v5878, 0.0
  %v5916 = vmax.f32 %v5882, 0.0
  %v5917 = vmax.f32 %v5884, 0.0
  %v5918 = vmax.f32 %v5888, 0.0
  %v5919 = vmax.f32 %v5890, 0.0
  %5920 = vst [vmem:[#allocation4] sm:$0xff] %v5892
  %5921 = vst [vmem:[#allocation4 + $0x8] sm:$0xff] %v5893
  %5922 = vst [vmem:[#allocation4 + $0x10] sm:$0xff] %v5894
  %5923 = vst [vmem:[#allocation4 + $0x18] sm:$0xff] %v5895
  %5924 = vst [vmem:[#allocation4 + $0x20] sm:$0xff] %v5896
  %5925 = vst [vmem:[#allocation4 + $0x28] sm:$0xff] %v5897
  %5926 = vst [vmem:[#allocation4 + $0x30] sm:$0xff] %v5898
  %5927 = vst [vmem:[#allocation4 + $0x38] sm:$0xff] %v5899
  %5928 = vst [vmem:[#allocation4 + $0x40] sm:$0xff] %v5900
  %5929 = vst [vmem:[#allocation4 + $0x48] sm:$0xff] %v5901
  %5930 = vst [vmem:[#allocation4 + $0x50] sm:$0xff] %v5902
  %5931 = vst [vmem:[#allocation4 + $0x58] sm:$0xff] %v5903
  %5932 = vst [vmem:[#allocation4 + $0x60] sm:$0xff] %v5904
  %5933 = vst [vmem:[#allocation4 + $0x68] sm:$0xff] %v5905
  %5934 = vst [vmem:[#allocation4 + $0x70] sm:$0xff] %v5906
  %5935 = vst [vmem:[#allocation4 + $0x78] sm:$0xff] %v5907
  %5936 = vst [vmem:[#allocation4 + $0x80] sm:$0xff] %v5908
  %5937 = vst [vmem:[#allocation4 + $0x88] sm:$0xff] %v5909
  %5938 = vst [vmem:[#allocation4 + $0x90] sm:$0xff] %v5910
  %5939 = vst [vmem:[#allocation4 + $0x98] sm:$0xff] %v5911
  %5940 = vst [vmem:[#allocation4 + $0xa0] sm:$0xff] %v5912
  %5941 = vst [vmem:[#allocation4 + $0xa8] sm:$0xff] %v5913
  %5942 = vst [vmem:[#allocation4 + $0xb0] sm:$0xff] %v5914
  %5943 = vst [vmem:[#allocation4 + $0xb8] sm:$0xff] %v5915
  %5944 = vst [vmem:[#allocation4 + $0xc0] sm:$0xff] %v5916
  %5945 = vst [vmem:[#allocation4 + $0xc8] sm:$0xff] %v5917
  %5946 = vst [vmem:[#allocation4 + $0xd0] sm:$0xff] %v5918
  %5947 = vst [vmem:[#allocation4 + $0xd8] sm:$0xff] %v5919
  %v5948 = vld [vmem:[#allocation3 + $0x3f0] sm:$0xff]
  %v5949 = vld [vmem:[#allocation3 + $0x3f8] sm:$0xff]
  %v5950 = vld [vmem:[#allocation3 + $0x400] sm:$0xff]
  %v5951 = vld [vmem:[#allocation3 + $0x408] sm:$0xff]
  %v5952 = vld [vmem:[#allocation3 + $0x410] sm:$0xff]
  %v5953 = vld [vmem:[#allocation3 + $0x418] sm:$0xff]
  %v5954 = vld [vmem:[#allocation3 + $0x420] sm:$0xff]
  %v5955 = vld [vmem:[#allocation3 + $0x428] sm:$0xff]
  %v5956 = vld [vmem:[#allocation3 + $0x430] sm:$0xff]
  %v5957 = vld [vmem:[#allocation3 + $0x438] sm:$0xff]
  %v5958 = vld [vmem:[#allocation3 + $0x440] sm:$0xff]
  %v5959 = vld [vmem:[#allocation3 + $0x448] sm:$0xff]
  %v5960 = vld [vmem:[#allocation3 + $0x450] sm:$0xff]
  %v5961 = vld [vmem:[#allocation3 + $0x458] sm:$0xff]
  %v5962 = vld [vmem:[#allocation3 + $0x460] sm:$0xff]
  %v5963 = vld [vmem:[#allocation3 + $0x468] sm:$0xff]
  %v5964 = vld [vmem:[#allocation3 + $0x470] sm:$0xff]
  %v5965 = vld [vmem:[#allocation3 + $0x478] sm:$0xff]
  %v5966 = vld [vmem:[#allocation3 + $0x480] sm:$0xff]
  %v5967 = vld [vmem:[#allocation3 + $0x488] sm:$0xff]
  %v5968 = vld [vmem:[#allocation3 + $0x490] sm:$0xff]
  %v5969 = vld [vmem:[#allocation3 + $0x498] sm:$0xff]
  %v5970 = vld [vmem:[#allocation3 + $0x4a0] sm:$0xff]
  %v5971 = vld [vmem:[#allocation3 + $0x4a8] sm:$0xff]
  %v5972 = vld [vmem:[#allocation3 + $0x4b0] sm:$0xff]
  %v5973 = vld [vmem:[#allocation3 + $0x4b8] sm:$0xff]
  %v5974 = vld [vmem:[#allocation3 + $0x4c0] sm:$0xff]
  %v5975 = vld [vmem:[#allocation3 + $0x4c8] sm:$0xff]
  %v5976 = vld [vmem:[#allocation3 + $0x4d0] sm:$0xff]
  %v5977 = vld [vmem:[#allocation3 + $0x4d8] sm:$0xff]
  %v5978 = vld [vmem:[#allocation3 + $0x4e0] sm:$0xff]
  %v5979 = vld [vmem:[#allocation3 + $0x4e8] sm:$0xff]
  %v5980 = vld [vmem:[#allocation3 + $0x4f0] sm:$0xff]
  %v5981 = vld [vmem:[#allocation3 + $0x4f8] sm:$0xff]
  %v5982 = vld [vmem:[#allocation3 + $0x500] sm:$0xff]
  %v5983 = vld [vmem:[#allocation3 + $0x508] sm:$0xff]
  %v5984 = vld [vmem:[#allocation3 + $0x510] sm:$0xff]
  %v5985 = vld [vmem:[#allocation3 + $0x518] sm:$0xff]
  %v5986 = vld [vmem:[#allocation3 + $0x520] sm:$0xff]
  %v5987 = vld [vmem:[#allocation3 + $0x528] sm:$0xff]
  %v5988 = vld [vmem:[#allocation3 + $0x530] sm:$0xff]
  %v5989 = vld [vmem:[#allocation3 + $0x538] sm:$0xff]
  %v5990 = vld [vmem:[#allocation3 + $0x540] sm:$0xff]
  %v5991 = vld [vmem:[#allocation3 + $0x548] sm:$0xff]
  %v5992 = vld [vmem:[#allocation3 + $0x550] sm:$0xff]
  %v5993 = vld [vmem:[#allocation3 + $0x558] sm:$0xff]
  %v5994 = vld [vmem:[#allocation3 + $0x560] sm:$0xff]
  %v5995 = vld [vmem:[#allocation3 + $0x568] sm:$0xff]
  %v5996 = vld [vmem:[#allocation3 + $0x570] sm:$0xff]
  %v5997 = vld [vmem:[#allocation3 + $0x578] sm:$0xff]
  %v5998 = vld [vmem:[#allocation3 + $0x580] sm:$0xff]
  %v5999 = vld [vmem:[#allocation3 + $0x588] sm:$0xff]
  %v6000 = vld [vmem:[#allocation3 + $0x590] sm:$0xff]
  %v6001 = vld [vmem:[#allocation3 + $0x598] sm:$0xff]
  %v6002 = vld [vmem:[#allocation3 + $0x5a0] sm:$0xff]
  %v6003 = vld [vmem:[#allocation3 + $0x5a8] sm:$0xff]
  %v6004 = vld [vmem:[#allocation3 + $0x5b0] sm:$0xff]
  %v6005 = vld [vmem:[#allocation3 + $0x5b8] sm:$0xff]
  %v6006 = vld [vmem:[#allocation3 + $0x5c0] sm:$0xff]
  %v6007 = vld [vmem:[#allocation3 + $0x5c8] sm:$0xff]
  %v6008 = vld [vmem:[#allocation3 + $0x5d0] sm:$0xff]
  %v6009 = vld [vmem:[#allocation3 + $0x5d8] sm:$0xff]
  %v6010 = vld [vmem:[#allocation3 + $0x5e0] sm:$0xff]
  %v6011 = vld [vmem:[#allocation3 + $0x5e8] sm:$0xff]
  %v6012 = vld [vmem:[#allocation3 + $0x5f0] sm:$0xff]
  %v6013 = vld [vmem:[#allocation3 + $0x5f8] sm:$0xff]
  %v6014 = vld [vmem:[#allocation3 + $0x600] sm:$0xff]
  %v6015 = vld [vmem:[#allocation3 + $0x608] sm:$0xff]
  %v6016 = vld [vmem:[#allocation3 + $0x610] sm:$0xff]
  %v6017 = vld [vmem:[#allocation3 + $0x618] sm:$0xff]
  %v6018 = vld [vmem:[#allocation3 + $0x620] sm:$0xff]
  %v6019 = vld [vmem:[#allocation3 + $0x628] sm:$0xff]
  %v6020 = vld [vmem:[#allocation3 + $0x630] sm:$0xff]
  %v6021 = vld [vmem:[#allocation3 + $0x638] sm:$0xff]
  %v6022 = vld [vmem:[#allocation3 + $0x640] sm:$0xff]
  %v6023 = vld [vmem:[#allocation3 + $0x648] sm:$0xff]
  %v6024 = vld [vmem:[#allocation3 + $0x650] sm:$0xff]
  %v6025 = vld [vmem:[#allocation3 + $0x658] sm:$0xff]
  %v6026 = vld [vmem:[#allocation3 + $0x660] sm:$0xff]
  %v6027 = vld [vmem:[#allocation3 + $0x668] sm:$0xff]
  %v6028 = vld [vmem:[#allocation3 + $0x670] sm:$0xff]
  %v6029 = vld [vmem:[#allocation3 + $0x678] sm:$0xff]
  %v6030 = vld [vmem:[#allocation3 + $0x680] sm:$0xff]
  %v6031 = vld [vmem:[#allocation3 + $0x688] sm:$0xff]
  %v6032 = vld [vmem:[#allocation3 + $0x690] sm:$0xff]
  %v6033 = vld [vmem:[#allocation3 + $0x698] sm:$0xff]
  %v6034 = vld [vmem:[#allocation3 + $0x6a0] sm:$0xff]
  %v6035 = vld [vmem:[#allocation3 + $0x6a8] sm:$0xff]
  %v6036 = vld [vmem:[#allocation3 + $0x6b0] sm:$0xff]
  %v6037 = vld [vmem:[#allocation3 + $0x6b8] sm:$0xff]
  %v6038 = vld [vmem:[#allocation3 + $0x6c0] sm:$0xff]
  %v6039 = vld [vmem:[#allocation3 + $0x6c8] sm:$0xff]
  %v6040 = vld [vmem:[#allocation3 + $0x6d0] sm:$0xff]
  %v6041 = vld [vmem:[#allocation3 + $0x6d8] sm:$0xff]
  %v6042 = vld [vmem:[#allocation3 + $0x6e0] sm:$0xff]
  %v6043 = vld [vmem:[#allocation3 + $0x6e8] sm:$0xff]
  %v6044 = vld [vmem:[#allocation3 + $0x6f0] sm:$0xff]
  %v6045 = vld [vmem:[#allocation3 + $0x6f8] sm:$0xff]
  %v6046 = vld [vmem:[#allocation3 + $0x700] sm:$0xff]
  %v6047 = vld [vmem:[#allocation3 + $0x708] sm:$0xff]
  %v6048 = vld [vmem:[#allocation3 + $0x710] sm:$0xff]
  %v6049 = vld [vmem:[#allocation3 + $0x718] sm:$0xff]
  %v6050 = vld [vmem:[#allocation3 + $0x720] sm:$0xff]
  %v6051 = vld [vmem:[#allocation3 + $0x728] sm:$0xff]
  %v6052 = vld [vmem:[#allocation3 + $0x730] sm:$0xff]
  %v6053 = vld [vmem:[#allocation3 + $0x738] sm:$0xff]
  %v6054 = vld [vmem:[#allocation3 + $0x740] sm:$0xff]
  %v6055 = vld [vmem:[#allocation3 + $0x748] sm:$0xff]
  %v6056 = vld [vmem:[#allocation3 + $0x750] sm:$0xff]
  %v6057 = vld [vmem:[#allocation3 + $0x758] sm:$0xff]
  %v6058 = vld [vmem:[#allocation3 + $0x760] sm:$0xff]
  %v6059 = vld [vmem:[#allocation3 + $0x768] sm:$0xff]
  %v6060 = vld [vmem:[#allocation3 + $0x770] sm:$0xff]
  %v6061 = vld [vmem:[#allocation3 + $0x778] sm:$0xff]
  %v6062 = vld [vmem:[#allocation3 + $0x780] sm:$0xff]
  %v6063 = vld [vmem:[#allocation3 + $0x788] sm:$0xff]
  %v6064 = vld [vmem:[#allocation3 + $0x790] sm:$0xff]
  %v6065 = vld [vmem:[#allocation3 + $0x798] sm:$0xff]
  %v6066 = vld [vmem:[#allocation3 + $0x7a0] sm:$0xff]
  %v6067 = vld [vmem:[#allocation3 + $0x7a8] sm:$0xff]
  %v6068 = vld [vmem:[#allocation3 + $0x7b0] sm:$0xff]
  %v6069 = vld [vmem:[#allocation3 + $0x7b8] sm:$0xff]
  %v6070 = vld [vmem:[#allocation3 + $0x7c0] sm:$0xff]
  %v6071 = vld [vmem:[#allocation3 + $0x7c8] sm:$0xff]
  %v6072 = vld [vmem:[#allocation3 + $0x7d0] sm:$0xff]
  %v6073 = vld [vmem:[#allocation3 + $0x7d8] sm:$0xff]
  %v6074 = vld [vmem:[%s3] sm:$0xff]
  %v6075 = vld [vmem:[%s3 + $0x8] sm:$0xff]
  %v6076 = vld [vmem:[%s3 + $0x10] sm:$0xff]
  %v6077 = vld [vmem:[%s3 + $0x18] sm:$0xff]
  %v6078 = vld [vmem:[%s3 + $0x20] sm:$0xff]
  %v6079 = vld [vmem:[%s3 + $0x28] sm:$0xff]
  %v6080 = vld [vmem:[%s3 + $0x30] sm:$0xff]
  %v6081 = vld [vmem:[%s3 + $0x38] sm:$0xff]
  %v6082 = vld [vmem:[%s3 + $0x40] sm:$0xff]
  %v6083 = vld [vmem:[%s3 + $0x48] sm:$0xff]
  %v6084 = vld [vmem:[%s3 + $0x50] sm:$0xff]
  %v6085 = vld [vmem:[%s3 + $0x58] sm:$0xff]
  %v6086 = vld [vmem:[%s3 + $0x60] sm:$0xff]
  %v6087 = vld [vmem:[%s3 + $0x68] sm:$0xff]
  %v6088 = vld [vmem:[%s3 + $0x70] sm:$0xff]
  %v6089 = vld [vmem:[%s3 + $0x78] sm:$0xff]
  %v6090 = vld [vmem:[%s3 + $0x80] sm:$0xff]
  %v6091 = vld [vmem:[%s3 + $0x88] sm:$0xff]
  %v6092 = vld [vmem:[%s3 + $0x90] sm:$0xff]
  %v6093 = vld [vmem:[%s3 + $0x98] sm:$0xff]
  %v6094 = vld [vmem:[%s3 + $0xa0] sm:$0xff]
  %v6095 = vld [vmem:[%s3 + $0xa8] sm:$0xff]
  %v6096 = vld [vmem:[%s3 + $0xb0] sm:$0xff]
  %v6097 = vld [vmem:[%s3 + $0xb8] sm:$0xff]
  %v6098 = vld [vmem:[%s3 + $0xc0] sm:$0xff]
  %v6099 = vld [vmem:[%s3 + $0xc8] sm:$0xff]
  %v6100 = vld [vmem:[%s3 + $0xd0] sm:$0xff]
  %v6101 = vld [vmem:[%s3 + $0xd8] sm:$0xff]
  %v6102 = vld [vmem:[%s3 + $0xe0] sm:$0xff]
  %v6103 = vld [vmem:[%s3 + $0xe8] sm:$0xff]
  %v6104 = vld [vmem:[%s3 + $0xf0] sm:$0xff]
  %v6105 = vld [vmem:[%s3 + $0xf8] sm:$0xff]
  %v6106 = vld [vmem:[%s3 + $0x100] sm:$0xff]
  %v6107 = vld [vmem:[%s3 + $0x108] sm:$0xff]
  %v6108 = vld [vmem:[%s3 + $0x110] sm:$0xff]
  %v6109 = vld [vmem:[%s3 + $0x118] sm:$0xff]
  %v6110 = vld [vmem:[%s3 + $0x120] sm:$0xff]
  %v6111 = vld [vmem:[%s3 + $0x128] sm:$0xff]
  %v6112 = vld [vmem:[%s3 + $0x130] sm:$0xff]
  %v6113 = vld [vmem:[%s3 + $0x138] sm:$0xff]
  %v6114 = vld [vmem:[%s3 + $0x140] sm:$0xff]
  %v6115 = vld [vmem:[%s3 + $0x148] sm:$0xff]
  %v6116 = vld [vmem:[%s3 + $0x150] sm:$0xff]
  %v6117 = vld [vmem:[%s3 + $0x158] sm:$0xff]
  %v6118 = vld [vmem:[%s3 + $0x160] sm:$0xff]
  %v6119 = vld [vmem:[%s3 + $0x168] sm:$0xff]
  %v6120 = vld [vmem:[%s3 + $0x170] sm:$0xff]
  %v6121 = vld [vmem:[%s3 + $0x178] sm:$0xff]
  %v6122 = vld [vmem:[%s3 + $0x180] sm:$0xff]
  %v6123 = vld [vmem:[%s3 + $0x188] sm:$0xff]
  %v6124 = vld [vmem:[%s3 + $0x190] sm:$0xff]
  %v6125 = vld [vmem:[%s3 + $0x198] sm:$0xff]
  %v6126 = vld [vmem:[%s3 + $0x1a0] sm:$0xff]
  %v6127 = vld [vmem:[%s3 + $0x1a8] sm:$0xff]
  %v6128 = vld [vmem:[%s3 + $0x1b0] sm:$0xff]
  %v6129 = vld [vmem:[%s3 + $0x1b8] sm:$0xff]
  %v6130 = vld [vmem:[%s3 + $0x1c0] sm:$0xff]
  %v6131 = vld [vmem:[%s3 + $0x1c8] sm:$0xff]
  %v6132 = vld [vmem:[%s3 + $0x1d0] sm:$0xff]
  %v6133 = vld [vmem:[%s3 + $0x1d8] sm:$0xff]
  %v6134 = vld [vmem:[%s3 + $0x1e0] sm:$0xff]
  %v6135 = vld [vmem:[%s3 + $0x1e8] sm:$0xff]
  %v6136 = vld [vmem:[%s3 + $0x1f0] sm:$0xff]
  %v6137 = vld [vmem:[%s3 + $0x1f8] sm:$0xff]
  %v6138 = vld [vmem:[%s3 + $0x200] sm:$0xff]
  %v6139 = vld [vmem:[%s3 + $0x208] sm:$0xff]
  %v6140 = vld [vmem:[%s3 + $0x210] sm:$0xff]
  %v6141 = vld [vmem:[%s3 + $0x218] sm:$0xff]
  %v6142 = vld [vmem:[%s3 + $0x220] sm:$0xff]
  %v6143 = vld [vmem:[%s3 + $0x228] sm:$0xff]
  %v6144 = vld [vmem:[%s3 + $0x230] sm:$0xff]
  %v6145 = vld [vmem:[%s3 + $0x238] sm:$0xff]
  %v6146 = vld [vmem:[%s3 + $0x240] sm:$0xff]
  %v6147 = vld [vmem:[%s3 + $0x248] sm:$0xff]
  %v6148 = vld [vmem:[%s3 + $0x250] sm:$0xff]
  %v6149 = vld [vmem:[%s3 + $0x258] sm:$0xff]
  %v6150 = vld [vmem:[%s3 + $0x260] sm:$0xff]
  %v6151 = vld [vmem:[%s3 + $0x268] sm:$0xff]
  %v6152 = vld [vmem:[%s3 + $0x270] sm:$0xff]
  %v6153 = vld [vmem:[%s3 + $0x278] sm:$0xff]
  %v6154 = vld [vmem:[%s3 + $0x280] sm:$0xff]
  %v6155 = vld [vmem:[%s3 + $0x288] sm:$0xff]
  %v6156 = vld [vmem:[%s3 + $0x290] sm:$0xff]
  %v6157 = vld [vmem:[%s3 + $0x298] sm:$0xff]
  %v6158 = vld [vmem:[%s3 + $0x2a0] sm:$0xff]
  %v6159 = vld [vmem:[%s3 + $0x2a8] sm:$0xff]
  %v6160 = vld [vmem:[%s3 + $0x2b0] sm:$0xff]
  %v6161 = vld [vmem:[%s3 + $0x2b8] sm:$0xff]
  %v6162 = vld [vmem:[%s3 + $0x2c0] sm:$0xff]
  %v6163 = vld [vmem:[%s3 + $0x2c8] sm:$0xff]
  %v6164 = vld [vmem:[%s3 + $0x2d0] sm:$0xff]
  %v6165 = vld [vmem:[%s3 + $0x2d8] sm:$0xff]
  %v6166 = vld [vmem:[%s3 + $0x2e0] sm:$0xff]
  %v6167 = vld [vmem:[%s3 + $0x2e8] sm:$0xff]
  %v6168 = vld [vmem:[%s3 + $0x2f0] sm:$0xff]
  %v6169 = vld [vmem:[%s3 + $0x2f8] sm:$0xff]
  %v6170 = vld [vmem:[%s3 + $0x300] sm:$0xff]
  %v6171 = vld [vmem:[%s3 + $0x308] sm:$0xff]
  %v6172 = vld [vmem:[%s3 + $0x310] sm:$0xff]
  %v6173 = vld [vmem:[%s3 + $0x318] sm:$0xff]
  %v6174 = vld [vmem:[%s3 + $0x320] sm:$0xff]
  %v6175 = vld [vmem:[%s3 + $0x328] sm:$0xff]
  %v6176 = vld [vmem:[%s3 + $0x330] sm:$0xff]
  %v6177 = vld [vmem:[%s3 + $0x338] sm:$0xff]
  %v6178 = vld [vmem:[%s3 + $0x340] sm:$0xff]
  %v6179 = vld [vmem:[%s3 + $0x348] sm:$0xff]
  %v6180 = vld [vmem:[%s3 + $0x350] sm:$0xff]
  %v6181 = vld [vmem:[%s3 + $0x358] sm:$0xff]
  %v6182 = vld [vmem:[%s3 + $0x360] sm:$0xff]
  %v6183 = vld [vmem:[%s3 + $0x368] sm:$0xff]
  %v6184 = vld [vmem:[%s3 + $0x370] sm:$0xff]
  %v6185 = vld [vmem:[%s3 + $0x378] sm:$0xff]
  %v6186 = vld [vmem:[%s3 + $0x380] sm:$0xff]
  %v6187 = vld [vmem:[%s3 + $0x388] sm:$0xff]
  %v6188 = vld [vmem:[%s3 + $0x390] sm:$0xff]
  %v6189 = vld [vmem:[%s3 + $0x398] sm:$0xff]
  %v6190 = vld [vmem:[%s3 + $0x3a0] sm:$0xff]
  %v6191 = vld [vmem:[%s3 + $0x3a8] sm:$0xff]
  %v6192 = vld [vmem:[%s3 + $0x3b0] sm:$0xff]
  %v6193 = vld [vmem:[%s3 + $0x3b8] sm:$0xff]
  %v6194 = vld [vmem:[%s3 + $0x3c0] sm:$0xff]
  %v6195 = vld [vmem:[%s3 + $0x3c8] sm:$0xff]
  %v6196 = vld [vmem:[%s3 + $0x3d0] sm:$0xff]
  %v6197 = vld [vmem:[%s3 + $0x3d8] sm:$0xff]
  %v6198 = vld [vmem:[%s3 + $0x3e0] sm:$0xff]
  %v6199 = vld [vmem:[%s3 + $0x3e8] sm:$0xff]
  %v6200 = vld [vmem:[%s3 + $0x3f0] sm:$0xff]
  %v6201 = vld [vmem:[%s3 + $0x3f8] sm:$0xff]
  %v6202 = vld [vmem:[%s3 + $0x400] sm:$0xff]
  %v6203 = vld [vmem:[%s3 + $0x408] sm:$0xff]
  %v6204 = vld [vmem:[%s3 + $0x410] sm:$0xff]
  %v6205 = vld [vmem:[%s3 + $0x418] sm:$0xff]
  %v6206 = vld [vmem:[%s3 + $0x420] sm:$0xff]
  %v6207 = vld [vmem:[%s3 + $0x428] sm:$0xff]
  %v6208 = vld [vmem:[%s3 + $0x430] sm:$0xff]
  %v6209 = vld [vmem:[%s3 + $0x438] sm:$0xff]
  %v6210 = vld [vmem:[%s3 + $0x440] sm:$0xff]
  %v6211 = vld [vmem:[%s3 + $0x448] sm:$0xff]
  %v6212 = vld [vmem:[%s3 + $0x450] sm:$0xff]
  %v6213 = vld [vmem:[%s3 + $0x458] sm:$0xff]
  %v6214 = vld [vmem:[%s3 + $0x460] sm:$0xff]
  %v6215 = vld [vmem:[%s3 + $0x468] sm:$0xff]
  %v6216 = vld [vmem:[%s3 + $0x470] sm:$0xff]
  %v6217 = vld [vmem:[%s3 + $0x478] sm:$0xff]
  %v6218 = vld [vmem:[%s3 + $0x480] sm:$0xff]
  %v6219 = vld [vmem:[%s3 + $0x488] sm:$0xff]
  %v6220 = vld [vmem:[%s3 + $0x490] sm:$0xff]
  %v6221 = vld [vmem:[%s3 + $0x498] sm:$0xff]
  %v6222 = vld [vmem:[%s3 + $0x4a0] sm:$0xff]
  %v6223 = vld [vmem:[%s3 + $0x4a8] sm:$0xff]
  %v6224 = vld [vmem:[%s3 + $0x4b0] sm:$0xff]
  %v6225 = vld [vmem:[%s3 + $0x4b8] sm:$0xff]
  %v6226 = vld [vmem:[%s3 + $0x4c0] sm:$0xff]
  %v6227 = vld [vmem:[%s3 + $0x4c8] sm:$0xff]
  %v6228 = vld [vmem:[%s3 + $0x4d0] sm:$0xff]
  %v6229 = vld [vmem:[%s3 + $0x4d8] sm:$0xff]
  %v6230 = vld [vmem:[%s3 + $0x4e0] sm:$0xff]
  %v6231 = vld [vmem:[%s3 + $0x4e8] sm:$0xff]
  %v6232 = vld [vmem:[%s3 + $0x4f0] sm:$0xff]
  %v6233 = vld [vmem:[%s3 + $0x4f8] sm:$0xff]
  %v6234 = vld [vmem:[%s3 + $0x500] sm:$0xff]
  %v6235 = vld [vmem:[%s3 + $0x508] sm:$0xff]
  %v6236 = vld [vmem:[%s3 + $0x510] sm:$0xff]
  %v6237 = vld [vmem:[%s3 + $0x518] sm:$0xff]
  %v6238 = vld [vmem:[%s3 + $0x520] sm:$0xff]
  %v6239 = vld [vmem:[%s3 + $0x528] sm:$0xff]
  %v6240 = vld [vmem:[%s3 + $0x530] sm:$0xff]
  %v6241 = vld [vmem:[%s3 + $0x538] sm:$0xff]
  %v6242 = vld [vmem:[%s3 + $0x540] sm:$0xff]
  %v6243 = vld [vmem:[%s3 + $0x548] sm:$0xff]
  %v6244 = vld [vmem:[%s3 + $0x550] sm:$0xff]
  %v6245 = vld [vmem:[%s3 + $0x558] sm:$0xff]
  %v6246 = vld [vmem:[%s3 + $0x560] sm:$0xff]
  %v6247 = vld [vmem:[%s3 + $0x568] sm:$0xff]
  %v6248 = vld [vmem:[%s3 + $0x570] sm:$0xff]
  %v6249 = vld [vmem:[%s3 + $0x578] sm:$0xff]
  %v6250 = vld [vmem:[%s3 + $0x580] sm:$0xff]
  %v6251 = vld [vmem:[%s3 + $0x588] sm:$0xff]
  %v6252 = vld [vmem:[%s3 + $0x590] sm:$0xff]
  %v6253 = vld [vmem:[%s3 + $0x598] sm:$0xff]
  %v6254 = vld [vmem:[%s3 + $0x5a0] sm:$0xff]
  %v6255 = vld [vmem:[%s3 + $0x5a8] sm:$0xff]
  %v6256 = vld [vmem:[%s3 + $0x5b0] sm:$0xff]
  %v6257 = vld [vmem:[%s3 + $0x5b8] sm:$0xff]
  %v6258 = vld [vmem:[%s3 + $0x5c0] sm:$0xff]
  %v6259 = vld [vmem:[%s3 + $0x5c8] sm:$0xff]
  %v6260 = vld [vmem:[%s3 + $0x5d0] sm:$0xff]
  %v6261 = vld [vmem:[%s3 + $0x5d8] sm:$0xff]
  %v6262 = vld [vmem:[%s3 + $0x5e0] sm:$0xff]
  %v6263 = vld [vmem:[%s3 + $0x5e8] sm:$0xff]
  %v6264 = vld [vmem:[%s3 + $0x5f0] sm:$0xff]
  %v6265 = vld [vmem:[%s3 + $0x5f8] sm:$0xff]
  %v6266 = vld [vmem:[%s3 + $0x600] sm:$0xff]
  %v6267 = vld [vmem:[%s3 + $0x608] sm:$0xff]
  %v6268 = vld [vmem:[%s3 + $0x610] sm:$0xff]
  %v6269 = vld [vmem:[%s3 + $0x618] sm:$0xff]
  %v6270 = vld [vmem:[%s3 + $0x620] sm:$0xff]
  %v6271 = vld [vmem:[%s3 + $0x628] sm:$0xff]
  %v6272 = vld [vmem:[%s3 + $0x630] sm:$0xff]
  %v6273 = vld [vmem:[%s3 + $0x638] sm:$0xff]
  %v6274 = vld [vmem:[%s3 + $0x640] sm:$0xff]
  %v6275 = vld [vmem:[%s3 + $0x648] sm:$0xff]
  %v6276 = vld [vmem:[%s3 + $0x650] sm:$0xff]
  %v6277 = vld [vmem:[%s3 + $0x658] sm:$0xff]
  %v6278 = vld [vmem:[%s3 + $0x660] sm:$0xff]
  %v6279 = vld [vmem:[%s3 + $0x668] sm:$0xff]
  %v6280 = vld [vmem:[%s3 + $0x670] sm:$0xff]
  %v6281 = vld [vmem:[%s3 + $0x678] sm:$0xff]
  %v6282 = vld [vmem:[%s3 + $0x680] sm:$0xff]
  %v6283 = vld [vmem:[%s3 + $0x688] sm:$0xff]
  %v6284 = vld [vmem:[%s3 + $0x690] sm:$0xff]
  %v6285 = vld [vmem:[%s3 + $0x698] sm:$0xff]
  %v6286 = vld [vmem:[%s3 + $0x6a0] sm:$0xff]
  %v6287 = vld [vmem:[%s3 + $0x6a8] sm:$0xff]
  %v6288 = vld [vmem:[%s3 + $0x6b0] sm:$0xff]
  %v6289 = vld [vmem:[%s3 + $0x6b8] sm:$0xff]
  %v6290 = vld [vmem:[%s3 + $0x6c0] sm:$0xff]
  %v6291 = vld [vmem:[%s3 + $0x6c8] sm:$0xff]
  %v6292 = vld [vmem:[%s3 + $0x6d0] sm:$0xff]
  %v6293 = vld [vmem:[%s3 + $0x6d8] sm:$0xff]
  %v6294 = vld [vmem:[%s3 + $0x6e0] sm:$0xff]
  %v6295 = vld [vmem:[%s3 + $0x6e8] sm:$0xff]
  %v6296 = vld [vmem:[%s3 + $0x6f0] sm:$0xff]
  %v6297 = vld [vmem:[%s3 + $0x6f8] sm:$0xff]
  %v6298 = vld [vmem:[%s3 + $0x700] sm:$0xff]
  %v6299 = vld [vmem:[%s3 + $0x708] sm:$0xff]
  %v6300 = vld [vmem:[%s3 + $0x710] sm:$0xff]
  %v6301 = vld [vmem:[%s3 + $0x718] sm:$0xff]
  %v6302 = vld [vmem:[%s3 + $0x720] sm:$0xff]
  %v6303 = vld [vmem:[%s3 + $0x728] sm:$0xff]
  %v6304 = vld [vmem:[%s3 + $0x730] sm:$0xff]
  %v6305 = vld [vmem:[%s3 + $0x738] sm:$0xff]
  %v6306 = vld [vmem:[%s3 + $0x740] sm:$0xff]
  %v6307 = vld [vmem:[%s3 + $0x748] sm:$0xff]
  %v6308 = vld [vmem:[%s3 + $0x750] sm:$0xff]
  %v6309 = vld [vmem:[%s3 + $0x758] sm:$0xff]
  %v6310 = vld [vmem:[%s3 + $0x760] sm:$0xff]
  %v6311 = vld [vmem:[%s3 + $0x768] sm:$0xff]
  %v6312 = vld [vmem:[%s3 + $0x770] sm:$0xff]
  %v6313 = vld [vmem:[%s3 + $0x778] sm:$0xff]
  %v6314 = vld [vmem:[%s3 + $0x780] sm:$0xff]
  %v6315 = vld [vmem:[%s3 + $0x788] sm:$0xff]
  %v6316 = vld [vmem:[%s3 + $0x790] sm:$0xff]
  %v6317 = vld [vmem:[%s3 + $0x798] sm:$0xff]
  %v6318 = vld [vmem:[%s3 + $0x7a0] sm:$0xff]
  %v6319 = vld [vmem:[%s3 + $0x7a8] sm:$0xff]
  %v6320 = vld [vmem:[%s3 + $0x7b0] sm:$0xff]
  %v6321 = vld [vmem:[%s3 + $0x7b8] sm:$0xff]
  %v6322 = vld [vmem:[%s3 + $0x7c0] sm:$0xff]
  %v6323 = vld [vmem:[%s3 + $0x7c8] sm:$0xff]
  %v6324 = vld [vmem:[%s3 + $0x7d0] sm:$0xff]
  %v6325 = vld [vmem:[%s3 + $0x7d8] sm:$0xff]
  %v6326 = vld [vmem:[%s3 + $0x7e0] sm:$0xff]
  %v6327 = vld [vmem:[%s3 + $0x7e8] sm:$0xff]
  %v6328 = vld [vmem:[%s3 + $0x7f0] sm:$0xff]
  %v6329 = vld [vmem:[%s3 + $0x7f8] sm:$0xff]
  %v6330 = vld [vmem:[%s3 + $0x800] sm:$0xff]
  %v6331 = vld [vmem:[%s3 + $0x808] sm:$0xff]
  %v6332 = vld [vmem:[%s3 + $0x810] sm:$0xff]
  %v6333 = vld [vmem:[%s3 + $0x818] sm:$0xff]
  %v6334 = vld [vmem:[%s3 + $0x820] sm:$0xff]
  %v6335 = vld [vmem:[%s3 + $0x828] sm:$0xff]
  %v6336 = vld [vmem:[%s3 + $0x830] sm:$0xff]
  %v6337 = vld [vmem:[%s3 + $0x838] sm:$0xff]
  %v6338 = vld [vmem:[%s3 + $0x840] sm:$0xff]
  %v6339 = vld [vmem:[%s3 + $0x848] sm:$0xff]
  %v6340 = vld [vmem:[%s3 + $0x850] sm:$0xff]
  %v6341 = vld [vmem:[%s3 + $0x858] sm:$0xff]
  %v6342 = vld [vmem:[%s3 + $0x860] sm:$0xff]
  %v6343 = vld [vmem:[%s3 + $0x868] sm:$0xff]
  %v6344 = vld [vmem:[%s3 + $0x870] sm:$0xff]
  %v6345 = vld [vmem:[%s3 + $0x878] sm:$0xff]
  %v6346 = vld [vmem:[%s3 + $0x880] sm:$0xff]
  %v6347 = vld [vmem:[%s3 + $0x888] sm:$0xff]
  %v6348 = vld [vmem:[%s3 + $0x890] sm:$0xff]
  %v6349 = vld [vmem:[%s3 + $0x898] sm:$0xff]
  %v6350 = vld [vmem:[%s3 + $0x8a0] sm:$0xff]
  %v6351 = vld [vmem:[%s3 + $0x8a8] sm:$0xff]
  %v6352 = vld [vmem:[%s3 + $0x8b0] sm:$0xff]
  %v6353 = vld [vmem:[%s3 + $0x8b8] sm:$0xff]
  %v6354 = vld [vmem:[%s3 + $0x8c0] sm:$0xff]
  %v6355 = vld [vmem:[%s3 + $0x8c8] sm:$0xff]
  %v6356 = vld [vmem:[%s3 + $0x8d0] sm:$0xff]
  %v6357 = vld [vmem:[%s3 + $0x8d8] sm:$0xff]
  %v6358 = vld [vmem:[%s3 + $0x8e0] sm:$0xff]
  %v6359 = vld [vmem:[%s3 + $0x8e8] sm:$0xff]
  %v6360 = vld [vmem:[%s3 + $0x8f0] sm:$0xff]
  %v6361 = vld [vmem:[%s3 + $0x8f8] sm:$0xff]
  %6362 = vmatprep.subr.mxu0 %v6075
  %6363 = vmatpush1.msra.mxu0 %v6074
  %6364 = vmatprep.subr.mxu0 %v6077
  %6365 = vmatpush1.msra.mxu0 %v6076
  %6366 = vmatprep.subr.mxu0 %v6079
  %6367 = vmatpush1.msra.mxu0 %v6078
  %6368 = vmatprep.subr.mxu0 %v6081
  %6369 = vmatpush1.msra.mxu0 %v6080
  %6370 = vmatprep.subr.mxu0 %v6083
  %6371 = vmatpush1.msra.mxu0 %v6082
  %6372 = vmatprep.subr.mxu0 %v6085
  %6373 = vmatpush1.msra.mxu0 %v6084
  %6374 = vmatprep.subr.mxu0 %v6087
  %6375 = vmatpush1.msra.mxu0 %v6086
  %6376 = vmatprep.subr.mxu0 %v6089
  %6377 = vmatpush1.msra.mxu0 %v6088
  %6378 = vmatprep.subr.mxu0 %v6091
  %6379 = vmatpush1.msra.mxu0 %v6090
  %6380 = vmatprep.subr.mxu0 %v6093
  %6381 = vmatpush1.msra.mxu0 %v6092
  %6382 = vmatprep.subr.mxu0 %v6095
  %6383 = vmatpush1.msra.mxu0 %v6094
  %6384 = vmatprep.subr.mxu0 %v6097
  %6385 = vmatpush1.msra.mxu0 %v6096
  %6386 = vmatprep.subr.mxu0 %v6099
  %6387 = vmatpush1.msra.mxu0 %v6098
  %6388 = vmatprep.subr.mxu0 %v6101
  %6389 = vmatpush1.msra.mxu0 %v6100
  %6390 = vmatprep.subr.mxu0 %v6103
  %6391 = vmatpush1.msra.mxu0 %v6102
  %6392 = vmatprep.subr.mxu0 %v6105
  %6393 = vmatpush1.msra.mxu0 %v6104
  %6394 = vmatprep.subr.mxu0 %v6107
  %6395 = vmatpush1.msra.mxu0 %v6106
  %6396 = vmatprep.subr.mxu0 %v6109
  %6397 = vmatpush1.msra.mxu0 %v6108
  %6398 = vmatprep.subr.mxu0 %v6111
  %6399 = vmatpush1.msra.mxu0 %v6110
  %6400 = vmatprep.subr.mxu0 %v6113
  %6401 = vmatpush1.msra.mxu0 %v6112
  %6402 = vmatprep.subr.mxu0 %v6115
  %6403 = vmatpush1.msra.mxu0 %v6114
  %6404 = vmatprep.subr.mxu0 %v6117
  %6405 = vmatpush1.msra.mxu0 %v6116
  %6406 = vmatprep.subr.mxu0 %v6119
  %6407 = vmatpush1.msra.mxu0 %v6118
  %6408 = vmatprep.subr.mxu0 %v6121
  %6409 = vmatpush1.msra.mxu0 %v6120
  %6410 = vmatprep.subr.mxu0 %v6123
  %6411 = vmatpush1.msra.mxu0 %v6122
  %6412 = vmatprep.subr.mxu0 %v6125
  %6413 = vmatpush1.msra.mxu0 %v6124
  %6414 = vmatprep.subr.mxu0 %v6127
  %6415 = vmatpush1.msra.mxu0 %v6126
  %6416 = vmatprep.subr.mxu0 %v6129
  %6417 = vmatpush1.msra.mxu0 %v6128
  %6418 = vmatprep.subr.mxu0 %v6131
  %6419 = vmatpush1.msra.mxu0 %v6130
  %6420 = vmatprep.subr.mxu0 %v6133
  %6421 = vmatpush1.msra.mxu0 %v6132
  %6422 = vmatprep.subr.mxu0 %v6135
  %6423 = vmatpush1.msra.mxu0 %v6134
  %6424 = vmatprep.subr.mxu0 %v6137
  %6425 = vmatpush1.msra.mxu0 %v6136
  %6426 = vmatprep.mubr.f32.mxu0 %v5949
  %6427 = vmatmul.mubr.f32.gmra.mrb[0].mxu0 %v5948
  %v6428 = vpop.f32.mrb[0].mxu0
  %v6429 = vadd.f32 %v5140, %v6428
  %v6430 = vpop.f32.mrb[0].mxu0
  %v6431 = vadd.f32 %v5144, %v6430
  %6432 = vmatprep.mubr.f32.mxu0 %v5958
  %6433 = vmatmul.mubr.f32.gmra.mrb[0].mxu0 %v5957
  %v6434 = vpop.f32.mrb[0].mxu0
  %v6435 = vadd.f32 %v5140, %v6434
  %v6436 = vpop.f32.mrb[0].mxu0
  %v6437 = vadd.f32 %v5144, %v6436
  %6438 = vmatprep.mubr.f32.mxu0 %v5967
  %6439 = vmatmul.mubr.f32.gmra.mrb[0].mxu0 %v5966
  %v6440 = vpop.f32.mrb[0].mxu0
  %v6441 = vadd.f32 %v5140, %v6440
  %v6442 = vpop.f32.mrb[0].mxu0
  %v6443 = vadd.f32 %v5144, %v6442
  %6444 = vmatprep.mubr.f32.mxu0 %v5976
  %6445 = vmatmul.mubr.f32.gmra.mrb[0].mxu0 %v5975
  %v6446 = vpop.f32.mrb[0].mxu0
  %v6447 = vadd.f32 %v5140, %v6446
  %v6448 = vpop.f32.mrb[0].mxu0
  %v6449 = vadd.f32 %v5144, %v6448
  %6450 = vmatprep.mubr.f32.mxu0 %v5985
  %6451 = vmatmul.mubr.f32.gmra.mrb[0].mxu0 %v5984
  %v6452 = vpop.f32.mrb[0].mxu0
  %v6453 = vadd.f32 %v5140, %v6452
  %v6454 = vpop.f32.mrb[0].mxu0
  %v6455 = vadd.f32 %v5144, %v6454
  %6456 = vmatprep.mubr.f32.mxu0 %v5994
  %6457 = vmatmul.mubr.f32.gmra.mrb[0].mxu0 %v5993
  %v6458 = vpop.f32.mrb[0].mxu0
  %v6459 = vadd.f32 %v5140, %v6458
  %v6460 = vpop.f32.mrb[0].mxu0
  %v6461 = vadd.f32 %v5144, %v6460
  %6462 = vmatprep.mubr.f32.mxu0 %v6003
  %6463 = vmatmul.mubr.f32.gmra.mrb[0].mxu0 %v6002
  %v6464 = vpop.f32.mrb[0].mxu0
  %v6465 = vadd.f32 %v5140, %v6464
  %v6466 = vpop.f32.mrb[0].mxu0
  %v6467 = vadd.f32 %v5144, %v6466
  %6468 = vmatprep.mubr.f32.mxu0 %v6012
  %6469 = vmatmul.mubr.f32.gmra.mrb[0].mxu0 %v6011
  %v6470 = vpop.f32.mrb[0].mxu0
  %v6471 = vadd.f32 %v5140, %v6470
  %v6472 = vpop.f32.mrb[0].mxu0
  %v6473 = vadd.f32 %v5144, %v6472
  %6474 = vmatprep.mubr.f32.mxu0 %v6021
  %6475 = vmatmul.mubr.f32.gmra.mrb[0].mxu0 %v6020
  %v6476 = vpop.f32.mrb[0].mxu0
  %v6477 = vadd.f32 %v5140, %v6476
  %v6478 = vpop.f32.mrb[0].mxu0
  %v6479 = vadd.f32 %v5144, %v6478
  %6480 = vmatprep.mubr.f32.mxu0 %v6030
  %6481 = vmatmul.mubr.f32.gmra.mrb[0].mxu0 %v6029
  %v6482 = vpop.f32.mrb[0].mxu0
  %v6483 = vadd.f32 %v5140, %v6482
  %v6484 = vpop.f32.mrb[0].mxu0
  %v6485 = vadd.f32 %v5144, %v6484
  %6486 = vmatprep.mubr.f32.mxu0 %v6039
  %6487 = vmatmul.mubr.f32.gmra.mrb[0].mxu0 %v6038
  %v6488 = vpop.f32.mrb[0].mxu0
  %v6489 = vadd.f32 %v5140, %v6488
  %v6490 = vpop.f32.mrb[0].mxu0
  %v6491 = vadd.f32 %v5144, %v6490
  %6492 = vmatprep.mubr.f32.mxu0 %v6048
  %6493 = vmatmul.mubr.f32.gmra.mrb[0].mxu0 %v6047
  %v6494 = vpop.f32.mrb[0].mxu0
  %v6495 = vadd.f32 %v5140, %v6494
  %v6496 = vpop.f32.mrb[0].mxu0
  %v6497 = vadd.f32 %v5144, %v6496
  %6498 = vmatprep.mubr.f32.mxu0 %v6057
  %6499 = vmatmul.mubr.f32.gmra.mrb[0].mxu0 %v6056
  %v6500 = vpop.f32.mrb[0].mxu0
  %v6501 = vadd.f32 %v5140, %v6500
  %v6502 = vpop.f32.mrb[0].mxu0
  %v6503 = vadd.f32 %v5144, %v6502
  %6504 = vmatprep.mubr.f32.mxu0 %v6066
  %6505 = vmatmul.mubr.f32.gmra.mrb[0].mxu0 %v6065
  %v6506 = vpop.f32.mrb[0].mxu0
  %v6507 = vadd.f32 %v5140, %v6506
  %v6508 = vpop.f32.mrb[0].mxu0
  %v6509 = vadd.f32 %v5144, %v6508
  %6510 = vdwg.mxu0
  %6511 = vmatprep.subr.mxu0 %v6139
  %6512 = vmatpush1.msra.mxu0 %v6138
  %6513 = vmatprep.subr.mxu0 %v6141
  %6514 = vmatpush1.msra.mxu0 %v6140
  %6515 = vmatprep.subr.mxu0 %v6143
  %6516 = vmatpush1.msra.mxu0 %v6142
  %6517 = vmatprep.subr.mxu0 %v6145
  %6518 = vmatpush1.msra.mxu0 %v6144
  %6519 = vmatprep.subr.mxu0 %v6147
  %6520 = vmatpush1.msra.mxu0 %v6146
  %6521 = vmatprep.subr.mxu0 %v6149
  %6522 = vmatpush1.msra.mxu0 %v6148
  %6523 = vmatprep.subr.mxu0 %v6151
  %6524 = vmatpush1.msra.mxu0 %v6150
  %6525 = vmatprep.subr.mxu0 %v6153
  %6526 = vmatpush1.msra.mxu0 %v6152
  %6527 = vmatprep.subr.mxu0 %v6155
  %6528 = vmatpush1.msra.mxu0 %v6154
  %6529 = vmatprep.subr.mxu0 %v6157
  %6530 = vmatpush1.msra.mxu0 %v6156
  %6531 = vmatprep.subr.mxu0 %v6159
  %6532 = vmatpush1.msra.mxu0 %v6158
  %6533 = vmatprep.subr.mxu0 %v6161
  %6534 = vmatpush1.msra.mxu0 %v6160
  %6535 = vmatprep.subr.mxu0 %v6163
  %6536 = vmatpush1.msra.mxu0 %v6162
  %6537 = vmatprep.subr.mxu0 %v6165
  %6538 = vmatpush1.msra.mxu0 %v6164
  %6539 = vmatprep.subr.mxu0 %v6167
  %6540 = vmatpush1.msra.mxu0 %v6166
  %6541 = vmatprep.subr.mxu0 %v6169
  %6542 = vmatpush1.msra.mxu0 %v6168
  %6543 = vmatprep.subr.mxu0 %v6171
  %6544 = vmatpush1.msra.mxu0 %v6170
  %6545 = vmatprep.subr.mxu0 %v6173
  %6546 = vmatpush1.msra.mxu0 %v6172
  %6547 = vmatprep.subr.mxu0 %v6175
  %6548 = vmatpush1.msra.mxu0 %v6174
  %6549 = vmatprep.subr.mxu0 %v6177
  %6550 = vmatpush1.msra.mxu0 %v6176
  %6551 = vmatprep.subr.mxu0 %v6179
  %6552 = vmatpush1.msra.mxu0 %v6178
  %6553 = vmatprep.subr.mxu0 %v6181
  %6554 = vmatpush1.msra.mxu0 %v6180
  %6555 = vmatprep.subr.mxu0 %v6183
  %6556 = vmatpush1.msra.mxu0 %v6182
  %6557 = vmatprep.subr.mxu0 %v6185
  %6558 = vmatpush1.msra.mxu0 %v6184
  %6559 = vmatprep.subr.mxu0 %v6187
  %6560 = vmatpush1.msra.mxu0 %v6186
  %6561 = vmatprep.subr.mxu0 %v6189
  %6562 = vmatpush1.msra.mxu0 %v6188
  %6563 = vmatprep.subr.mxu0 %v6191
  %6564 = vmatpush1.msra.mxu0 %v6190
  %6565 = vmatprep.subr.mxu0 %v6193
  %6566 = vmatpush1.msra.mxu0 %v6192
  %6567 = vmatprep.subr.mxu0 %v6195
  %6568 = vmatpush1.msra.mxu0 %v6194
  %6569 = vmatprep.subr.mxu0 %v6197
  %6570 = vmatpush1.msra.mxu0 %v6196
  %6571 = vmatprep.subr.mxu0 %v6199
  %6572 = vmatpush1.msra.mxu0 %v6198
  %6573 = vmatprep.subr.mxu0 %v6201
  %6574 = vmatpush1.msra.mxu0 %v6200
  %6575 = vmatprep.mubr.f32.mxu0 %v5951
  %6576 = vmatmul.mubr.f32.gmra.mrb[0].mxu0 %v5950
  %v6577 = vpop.f32.mrb[0].mxu0
  %v6578 = vadd.f32 %v6429, %v6577
  %v6579 = vpop.f32.mrb[0].mxu0
  %v6580 = vadd.f32 %v6431, %v6579
  %6581 = vmatprep.mubr.f32.mxu0 %v5960
  %6582 = vmatmul.mubr.f32.gmra.mrb[0].mxu0 %v5959
  %v6583 = vpop.f32.mrb[0].mxu0
  %v6584 = vadd.f32 %v6435, %v6583
  %v6585 = vpop.f32.mrb[0].mxu0
  %v6586 = vadd.f32 %v6437, %v6585
  %6587 = vmatprep.mubr.f32.mxu0 %v5969
  %6588 = vmatmul.mubr.f32.gmra.mrb[0].mxu0 %v5968
  %v6589 = vpop.f32.mrb[0].mxu0
  %v6590 = vadd.f32 %v6441, %v6589
  %v6591 = vpop.f32.mrb[0].mxu0
  %v6592 = vadd.f32 %v6443, %v6591
  %6593 = vmatprep.mubr.f32.mxu0 %v5978
  %6594 = vmatmul.mubr.f32.gmra.mrb[0].mxu0 %v5977
  %v6595 = vpop.f32.mrb[0].mxu0
  %v6596 = vadd.f32 %v6447, %v6595
  %v6597 = vpop.f32.mrb[0].mxu0
  %v6598 = vadd.f32 %v6449, %v6597
  %6599 = vmatprep.mubr.f32.mxu0 %v5987
  %6600 = vmatmul.mubr.f32.gmra.mrb[0].mxu0 %v5986
  %v6601 = vpop.f32.mrb[0].mxu0
  %v6602 = vadd.f32 %v6453, %v6601
  %v6603 = vpop.f32.mrb[0].mxu0
  %v6604 = vadd.f32 %v6455, %v6603
  %6605 = vmatprep.mubr.f32.mxu0 %v5996
  %6606 = vmatmul.mubr.f32.gmra.mrb[0].mxu0 %v5995
  %v6607 = vpop.f32.mrb[0].mxu0
  %v6608 = vadd.f32 %v6459, %v6607
  %v6609 = vpop.f32.mrb[0].mxu0
  %v6610 = vadd.f32 %v6461, %v6609
  %6611 = vmatprep.mubr.f32.mxu0 %v6005
  %6612 = vmatmul.mubr.f32.gmra.mrb[0].mxu0 %v6004
  %v6613 = vpop.f32.mrb[0].mxu0
  %v6614 = vadd.f32 %v6465, %v6613
  %v6615 = vpop.f32.mrb[0].mxu0
  %v6616 = vadd.f32 %v6467, %v6615
  %6617 = vmatprep.mubr.f32.mxu0 %v6014
  %6618 = vmatmul.mubr.f32.gmra.mrb[0].mxu0 %v6013
  %v6619 = vpop.f32.mrb[0].mxu0
  %v6620 = vadd.f32 %v6471, %v6619
  %v6621 = vpop.f32.mrb[0].mxu0
  %v6622 = vadd.f32 %v6473, %v6621
  %6623 = vmatprep.mubr.f32.mxu0 %v6023
  %6624 = vmatmul.mubr.f32.gmra.mrb[0].mxu0 %v6022
  %v6625 = vpop.f32.mrb[0].mxu0
  %v6626 = vadd.f32 %v6477, %v6625
  %v6627 = vpop.f32.mrb[0].mxu0
  %v6628 = vadd.f32 %v6479, %v6627
  %6629 = vmatprep.mubr.f32.mxu0 %v6032
  %6630 = vmatmul.mubr.f32.gmra.mrb[0].mxu0 %v6031
  %v6631 = vpop.f32.mrb[0].mxu0
  %v6632 = vadd.f32 %v6483, %v6631
  %v6633 = vpop.f32.mrb[0].mxu0
  %v6634 = vadd.f32 %v6485, %v6633
  %6635 = vmatprep.mubr.f32.mxu0 %v6041
  %6636 = vmatmul.mubr.f32.gmra.mrb[0].mxu0 %v6040
  %v6637 = vpop.f32.mrb[0].mxu0
  %v6638 = vadd.f32 %v6489, %v6637
  %v6639 = vpop.f32.mrb[0].mxu0
  %v6640 = vadd.f32 %v6491, %v6639
  %6641 = vmatprep.mubr.f32.mxu0 %v6050
  %6642 = vmatmul.mubr.f32.gmra.mrb[0].mxu0 %v6049
  %v6643 = vpop.f32.mrb[0].mxu0
  %v6644 = vadd.f32 %v6495, %v6643
  %v6645 = vpop.f32.mrb[0].mxu0
  %v6646 = vadd.f32 %v6497, %v6645
  %6647 = vmatprep.mubr.f32.mxu0 %v6059
  %6648 = vmatmul.mubr.f32.gmra.mrb[0].mxu0 %v6058
  %v6649 = vpop.f32.mrb[0].mxu0
  %v6650 = vadd.f32 %v6501, %v6649
  %v6651 = vpop.f32.mrb[0].mxu0
  %v6652 = vadd.f32 %v6503, %v6651
  %6653 = vmatprep.mubr.f32.mxu0 %v6068
  %6654 = vmatmul.mubr.f32.gmra.mrb[0].mxu0 %v6067
  %v6655 = vpop.f32.mrb[0].mxu0
  %v6656 = vadd.f32 %v6507, %v6655
  %v6657 = vpop.f32.mrb[0].mxu0
  %v6658 = vadd.f32 %v6509, %v6657
  %6659 = vdwg.mxu0
  %6660 = vmatprep.subr.mxu0 %v6203
  %6661 = vmatpush1.msra.mxu0 %v6202
  %6662 = vmatprep.subr.mxu0 %v6205
  %6663 = vmatpush1.msra.mxu0 %v6204
  %6664 = vmatprep.subr.mxu0 %v6207
  %6665 = vmatpush1.msra.mxu0 %v6206
  %6666 = vmatprep.subr.mxu0 %v6209
  %6667 = vmatpush1.msra.mxu0 %v6208
  %6668 = vmatprep.subr.mxu0 %v6211
  %6669 = vmatpush1.msra.mxu0 %v6210
  %6670 = vmatprep.subr.mxu0 %v6213
  %6671 = vmatpush1.msra.mxu0 %v6212
  %6672 = vmatprep.subr.mxu0 %v6215
  %6673 = vmatpush1.msra.mxu0 %v6214
  %6674 = vmatprep.subr.mxu0 %v6217
  %6675 = vmatpush1.msra.mxu0 %v6216
  %6676 = vmatprep.subr.mxu0 %v6219
  %6677 = vmatpush1.msra.mxu0 %v6218
  %6678 = vmatprep.subr.mxu0 %v6221
  %6679 = vmatpush1.msra.mxu0 %v6220
  %6680 = vmatprep.subr.mxu0 %v6223
  %6681 = vmatpush1.msra.mxu0 %v6222
  %6682 = vmatprep.subr.mxu0 %v6225
  %6683 = vmatpush1.msra.mxu0 %v6224
  %6684 = vmatprep.subr.mxu0 %v6227
  %6685 = vmatpush1.msra.mxu0 %v6226
  %6686 = vmatprep.subr.mxu0 %v6229
  %6687 = vmatpush1.msra.mxu0 %v6228
  %6688 = vmatprep.subr.mxu0 %v6231
  %6689 = vmatpush1.msra.mxu0 %v6230
  %6690 = vmatprep.subr.mxu0 %v6233
  %6691 = vmatpush1.msra.mxu0 %v6232
  %6692 = vmatprep.subr.mxu0 %v6235
  %6693 = vmatpush1.msra.mxu0 %v6234
  %6694 = vmatprep.subr.mxu0 %v6237
  %6695 = vmatpush1.msra.mxu0 %v6236
  %6696 = vmatprep.subr.mxu0 %v6239
  %6697 = vmatpush1.msra.mxu0 %v6238
  %6698 = vmatprep.subr.mxu0 %v6241
  %6699 = vmatpush1.msra.mxu0 %v6240
  %6700 = vmatprep.subr.mxu0 %v6243
  %6701 = vmatpush1.msra.mxu0 %v6242
  %6702 = vmatprep.subr.mxu0 %v6245
  %6703 = vmatpush1.msra.mxu0 %v6244
  %6704 = vmatprep.subr.mxu0 %v6247
  %6705 = vmatpush1.msra.mxu0 %v6246
  %6706 = vmatprep.subr.mxu0 %v6249
  %6707 = vmatpush1.msra.mxu0 %v6248
  %6708 = vmatprep.subr.mxu0 %v6251
  %6709 = vmatpush1.msra.mxu0 %v6250
  %6710 = vmatprep.subr.mxu0 %v6253
  %6711 = vmatpush1.msra.mxu0 %v6252
  %6712 = vmatprep.subr.mxu0 %v6255
  %6713 = vmatpush1.msra.mxu0 %v6254
  %6714 = vmatprep.subr.mxu0 %v6257
  %6715 = vmatpush1.msra.mxu0 %v6256
  %6716 = vmatprep.subr.mxu0 %v6259
  %6717 = vmatpush1.msra.mxu0 %v6258
  %6718 = vmatprep.subr.mxu0 %v6261
  %6719 = vmatpush1.msra.mxu0 %v6260
  %6720 = vmatprep.subr.mxu0 %v6263
  %6721 = vmatpush1.msra.mxu0 %v6262
  %6722 = vmatprep.subr.mxu0 %v6265
  %6723 = vmatpush1.msra.mxu0 %v6264
  %6724 = vmatprep.mubr.f32.mxu0 %v5953
  %6725 = vmatmul.mubr.f32.gmra.mrb[0].mxu0 %v5952
  %v6726 = vpop.f32.mrb[0].mxu0
  %v6727 = vadd.f32 %v6578, %v6726
  %v6728 = vpop.f32.mrb[0].mxu0
  %v6729 = vadd.f32 %v6580, %v6728
  %6730 = vmatprep.mubr.f32.mxu0 %v5962
  %6731 = vmatmul.mubr.f32.gmra.mrb[0].mxu0 %v5961
  %v6732 = vpop.f32.mrb[0].mxu0
  %v6733 = vadd.f32 %v6584, %v6732
  %v6734 = vpop.f32.mrb[0].mxu0
  %v6735 = vadd.f32 %v6586, %v6734
  %6736 = vmatprep.mubr.f32.mxu0 %v5971
  %6737 = vmatmul.mubr.f32.gmra.mrb[0].mxu0 %v5970
  %v6738 = vpop.f32.mrb[0].mxu0
  %v6739 = vadd.f32 %v6590, %v6738
  %v6740 = vpop.f32.mrb[0].mxu0
  %v6741 = vadd.f32 %v6592, %v6740
  %6742 = vmatprep.mubr.f32.mxu0 %v5980
  %6743 = vmatmul.mubr.f32.gmra.mrb[0].mxu0 %v5979
  %v6744 = vpop.f32.mrb[0].mxu0
  %v6745 = vadd.f32 %v6596, %v6744
  %v6746 = vpop.f32.mrb[0].mxu0
  %v6747 = vadd.f32 %v6598, %v6746
  %6748 = vmatprep.mubr.f32.mxu0 %v5989
  %6749 = vmatmul.mubr.f32.gmra.mrb[0].mxu0 %v5988
  %v6750 = vpop.f32.mrb[0].mxu0
  %v6751 = vadd.f32 %v6602, %v6750
  %v6752 = vpop.f32.mrb[0].mxu0
  %v6753 = vadd.f32 %v6604, %v6752
  %6754 = vmatprep.mubr.f32.mxu0 %v5998
  %6755 = vmatmul.mubr.f32.gmra.mrb[0].mxu0 %v5997
  %v6756 = vpop.f32.mrb[0].mxu0
  %v6757 = vadd.f32 %v6608, %v6756
  %v6758 = vpop.f32.mrb[0].mxu0
  %v6759 = vadd.f32 %v6610, %v6758
  %6760 = vmatprep.mubr.f32.mxu0 %v6007
  %6761 = vmatmul.mubr.f32.gmra.mrb[0].mxu0 %v6006
  %v6762 = vpop.f32.mrb[0].mxu0
  %v6763 = vadd.f32 %v6614, %v6762
  %v6764 = vpop.f32.mrb[0].mxu0
  %v6765 = vadd.f32 %v6616, %v6764
  %6766 = vmatprep.mubr.f32.mxu0 %v6016
  %6767 = vmatmul.mubr.f32.gmra.mrb[0].mxu0 %v6015
  %v6768 = vpop.f32.mrb[0].mxu0
  %v6769 = vadd.f32 %v6620, %v6768
  %v6770 = vpop.f32.mrb[0].mxu0
  %v6771 = vadd.f32 %v6622, %v6770
  %6772 = vmatprep.mubr.f32.mxu0 %v6025
  %6773 = vmatmul.mubr.f32.gmra.mrb[0].mxu0 %v6024
  %v6774 = vpop.f32.mrb[0].mxu0
  %v6775 = vadd.f32 %v6626, %v6774
  %v6776 = vpop.f32.mrb[0].mxu0
  %v6777 = vadd.f32 %v6628, %v6776
  %6778 = vmatprep.mubr.f32.mxu0 %v6034
  %6779 = vmatmul.mubr.f32.gmra.mrb[0].mxu0 %v6033
  %v6780 = vpop.f32.mrb[0].mxu0
  %v6781 = vadd.f32 %v6632, %v6780
  %v6782 = vpop.f32.mrb[0].mxu0
  %v6783 = vadd.f32 %v6634, %v6782
  %6784 = vmatprep.mubr.f32.mxu0 %v6043
  %6785 = vmatmul.mubr.f32.gmra.mrb[0].mxu0 %v6042
  %v6786 = vpop.f32.mrb[0].mxu0
  %v6787 = vadd.f32 %v6638, %v6786
  %v6788 = vpop.f32.mrb[0].mxu0
  %v6789 = vadd.f32 %v6640, %v6788
  %6790 = vmatprep.mubr.f32.mxu0 %v6052
  %6791 = vmatmul.mubr.f32.gmra.mrb[0].mxu0 %v6051
  %v6792 = vpop.f32.mrb[0].mxu0
  %v6793 = vadd.f32 %v6644, %v6792
  %v6794 = vpop.f32.mrb[0].mxu0
  %v6795 = vadd.f32 %v6646, %v6794
  %6796 = vmatprep.mubr.f32.mxu0 %v6061
  %6797 = vmatmul.mubr.f32.gmra.mrb[0].mxu0 %v6060
  %v6798 = vpop.f32.mrb[0].mxu0
  %v6799 = vadd.f32 %v6650, %v6798
  %v6800 = vpop.f32.mrb[0].mxu0
  %v6801 = vadd.f32 %v6652, %v6800
  %6802 = vmatprep.mubr.f32.mxu0 %v6070
  %6803 = vmatmul.mubr.f32.gmra.mrb[0].mxu0 %v6069
  %v6804 = vpop.f32.mrb[0].mxu0
  %v6805 = vadd.f32 %v6656, %v6804
  %v6806 = vpop.f32.mrb[0].mxu0
  %v6807 = vadd.f32 %v6658, %v6806
  %6808 = vdwg.mxu0
  %6809 = vmatprep.subr.mxu0 %v6267
  %6810 = vmatpush1.msra.mxu0 %v6266
  %6811 = vmatprep.subr.mxu0 %v6269
  %6812 = vmatpush1.msra.mxu0 %v6268
  %6813 = vmatprep.subr.mxu0 %v6271
  %6814 = vmatpush1.msra.mxu0 %v6270
  %6815 = vmatprep.subr.mxu0 %v6273
  %6816 = vmatpush1.msra.mxu0 %v6272
  %6817 = vmatprep.subr.mxu0 %v6275
  %6818 = vmatpush1.msra.mxu0 %v6274
  %6819 = vmatprep.subr.mxu0 %v6277
  %6820 = vmatpush1.msra.mxu0 %v6276
  %6821 = vmatprep.subr.mxu0 %v6279
  %6822 = vmatpush1.msra.mxu0 %v6278
  %6823 = vmatprep.subr.mxu0 %v6281
  %6824 = vmatpush1.msra.mxu0 %v6280
  %6825 = vmatprep.subr.mxu0 %v6283
  %6826 = vmatpush1.msra.mxu0 %v6282
  %6827 = vmatprep.subr.mxu0 %v6285
  %6828 = vmatpush1.msra.mxu0 %v6284
  %6829 = vmatprep.subr.mxu0 %v6287
  %6830 = vmatpush1.msra.mxu0 %v6286
  %6831 = vmatprep.subr.mxu0 %v6289
  %6832 = vmatpush1.msra.mxu0 %v6288
  %6833 = vmatprep.subr.mxu0 %v6291
  %6834 = vmatpush1.msra.mxu0 %v6290
  %6835 = vmatprep.subr.mxu0 %v6293
  %6836 = vmatpush1.msra.mxu0 %v6292
  %6837 = vmatprep.subr.mxu0 %v6295
  %6838 = vmatpush1.msra.mxu0 %v6294
  %6839 = vmatprep.subr.mxu0 %v6297
  %6840 = vmatpush1.msra.mxu0 %v6296
  %6841 = vmatprep.subr.mxu0 %v6299
  %6842 = vmatpush1.msra.mxu0 %v6298
  %6843 = vmatprep.subr.mxu0 %v6301
  %6844 = vmatpush1.msra.mxu0 %v6300
  %6845 = vmatprep.subr.mxu0 %v6303
  %6846 = vmatpush1.msra.mxu0 %v6302
  %6847 = vmatprep.subr.mxu0 %v6305
  %6848 = vmatpush1.msra.mxu0 %v6304
  %6849 = vmatprep.subr.mxu0 %v6307
  %6850 = vmatpush1.msra.mxu0 %v6306
  %6851 = vmatprep.subr.mxu0 %v6309
  %6852 = vmatpush1.msra.mxu0 %v6308
  %6853 = vmatprep.subr.mxu0 %v6311
  %6854 = vmatpush1.msra.mxu0 %v6310
  %6855 = vmatprep.subr.mxu0 %v6313
  %6856 = vmatpush1.msra.mxu0 %v6312
  %6857 = vmatprep.subr.mxu0 %v6315
  %6858 = vmatpush1.msra.mxu0 %v6314
  %6859 = vmatprep.subr.mxu0 %v6317
  %6860 = vmatpush1.msra.mxu0 %v6316
  %6861 = vmatprep.subr.mxu0 %v6319
  %6862 = vmatpush1.msra.mxu0 %v6318
  %6863 = vmatprep.subr.mxu0 %v6321
  %6864 = vmatpush1.msra.mxu0 %v6320
  %6865 = vmatprep.subr.mxu0 %v6323
  %6866 = vmatpush1.msra.mxu0 %v6322
  %6867 = vmatprep.subr.mxu0 %v6325
  %6868 = vmatpush1.msra.mxu0 %v6324
  %6869 = vmatprep.subr.mxu0 %v6327
  %6870 = vmatpush1.msra.mxu0 %v6326
  %6871 = vmatprep.subr.mxu0 %v6329
  %6872 = vmatpush1.msra.mxu0 %v6328
  %6873 = vmatprep.mubr.f32.mxu0 %v5955
  %6874 = vmatmul.mubr.f32.gmra.mrb[0].mxu0 %v5954
  %v6875 = vpop.f32.mrb[0].mxu0
  %v6876 = vadd.f32 %v6727, %v6875
  %v6877 = vpop.f32.mrb[0].mxu0
  %v6878 = vadd.f32 %v6729, %v6877
  %6879 = vmatprep.mubr.f32.mxu0 %v5964
  %6880 = vmatmul.mubr.f32.gmra.mrb[0].mxu0 %v5963
  %v6881 = vpop.f32.mrb[0].mxu0
  %v6882 = vadd.f32 %v6733, %v6881
  %v6883 = vpop.f32.mrb[0].mxu0
  %v6884 = vadd.f32 %v6735, %v6883
  %6885 = vmatprep.mubr.f32.mxu0 %v5973
  %6886 = vmatmul.mubr.f32.gmra.mrb[0].mxu0 %v5972
  %v6887 = vpop.f32.mrb[0].mxu0
  %v6888 = vadd.f32 %v6739, %v6887
  %v6889 = vpop.f32.mrb[0].mxu0
  %v6890 = vadd.f32 %v6741, %v6889
  %6891 = vmatprep.mubr.f32.mxu0 %v5982
  %6892 = vmatmul.mubr.f32.gmra.mrb[0].mxu0 %v5981
  %v6893 = vpop.f32.mrb[0].mxu0
  %v6894 = vadd.f32 %v6745, %v6893
  %v6895 = vpop.f32.mrb[0].mxu0
  %v6896 = vadd.f32 %v6747, %v6895
  %6897 = vmatprep.mubr.f32.mxu0 %v5991
  %6898 = vmatmul.mubr.f32.gmra.mrb[0].mxu0 %v5990
  %v6899 = vpop.f32.mrb[0].mxu0
  %v6900 = vadd.f32 %v6751, %v6899
  %v6901 = vpop.f32.mrb[0].mxu0
  %v6902 = vadd.f32 %v6753, %v6901
  %6903 = vmatprep.mubr.f32.mxu0 %v6000
  %6904 = vmatmul.mubr.f32.gmra.mrb[0].mxu0 %v5999
  %v6905 = vpop.f32.mrb[0].mxu0
  %v6906 = vadd.f32 %v6757, %v6905
  %v6907 = vpop.f32.mrb[0].mxu0
  %v6908 = vadd.f32 %v6759, %v6907
  %6909 = vmatprep.mubr.f32.mxu0 %v6009
  %6910 = vmatmul.mubr.f32.gmra.mrb[0].mxu0 %v6008
  %v6911 = vpop.f32.mrb[0].mxu0
  %v6912 = vadd.f32 %v6763, %v6911
  %v6913 = vpop.f32.mrb[0].mxu0
  %v6914 = vadd.f32 %v6765, %v6913
  %6915 = vmatprep.mubr.f32.mxu0 %v6018
  %6916 = vmatmul.mubr.f32.gmra.mrb[0].mxu0 %v6017
  %v6917 = vpop.f32.mrb[0].mxu0
  %v6918 = vadd.f32 %v6769, %v6917
  %v6919 = vpop.f32.mrb[0].mxu0
  %v6920 = vadd.f32 %v6771, %v6919
  %6921 = vmatprep.mubr.f32.mxu0 %v6027
  %6922 = vmatmul.mubr.f32.gmra.mrb[0].mxu0 %v6026
  %v6923 = vpop.f32.mrb[0].mxu0
  %v6924 = vadd.f32 %v6775, %v6923
  %v6925 = vpop.f32.mrb[0].mxu0
  %v6926 = vadd.f32 %v6777, %v6925
  %6927 = vmatprep.mubr.f32.mxu0 %v6036
  %6928 = vmatmul.mubr.f32.gmra.mrb[0].mxu0 %v6035
  %v6929 = vpop.f32.mrb[0].mxu0
  %v6930 = vadd.f32 %v6781, %v6929
  %v6931 = vpop.f32.mrb[0].mxu0
  %v6932 = vadd.f32 %v6783, %v6931
  %6933 = vmatprep.mubr.f32.mxu0 %v6045
  %6934 = vmatmul.mubr.f32.gmra.mrb[0].mxu0 %v6044
  %v6935 = vpop.f32.mrb[0].mxu0
  %v6936 = vadd.f32 %v6787, %v6935
  %v6937 = vpop.f32.mrb[0].mxu0
  %v6938 = vadd.f32 %v6789, %v6937
  %6939 = vmatprep.mubr.f32.mxu0 %v6054
  %6940 = vmatmul.mubr.f32.gmra.mrb[0].mxu0 %v6053
  %v6941 = vpop.f32.mrb[0].mxu0
  %v6942 = vadd.f32 %v6793, %v6941
  %v6943 = vpop.f32.mrb[0].mxu0
  %v6944 = vadd.f32 %v6795, %v6943
  %6945 = vmatprep.mubr.f32.mxu0 %v6063
  %6946 = vmatmul.mubr.f32.gmra.mrb[0].mxu0 %v6062
  %v6947 = vpop.f32.mrb[0].mxu0
  %v6948 = vadd.f32 %v6799, %v6947
  %v6949 = vpop.f32.mrb[0].mxu0
  %v6950 = vadd.f32 %v6801, %v6949
  %6951 = vmatprep.mubr.f32.mxu0 %v6072
  %6952 = vmatmul.mubr.f32.gmra.mrb[0].mxu0 %v6071
  %v6953 = vpop.f32.mrb[0].mxu0
  %v6954 = vadd.f32 %v6805, %v6953
  %v6955 = vpop.f32.mrb[0].mxu0
  %v6956 = vadd.f32 %v6807, %v6955
  %6957 = vdwg.mxu0
  %6958 = vmatprep.subr.mxu0 %v6331
  %6959 = vmatpush1.msra.mxu0 %v6330
  %6960 = vmatprep.subr.mxu0 %v6333
  %6961 = vmatpush1.msra.mxu0 %v6332
  %6962 = vmatprep.subr.mxu0 %v6335
  %6963 = vmatpush1.msra.mxu0 %v6334
  %6964 = vmatprep.subr.mxu0 %v6337
  %6965 = vmatpush1.msra.mxu0 %v6336
  %6966 = vmatprep.subr.mxu0 %v6339
  %6967 = vmatpush1.msra.mxu0 %v6338
  %6968 = vmatprep.subr.mxu0 %v6341
  %6969 = vmatpush1.msra.mxu0 %v6340
  %6970 = vmatprep.subr.mxu0 %v6343
  %6971 = vmatpush1.msra.mxu0 %v6342
  %6972 = vmatprep.subr.mxu0 %v6345
  %6973 = vmatpush1.msra.mxu0 %v6344
  %6974 = vmatprep.subr.mxu0 %v6347
  %6975 = vmatpush1.msra.mxu0 %v6346
  %6976 = vmatprep.subr.mxu0 %v6349
  %6977 = vmatpush1.msra.mxu0 %v6348
  %6978 = vmatprep.subr.mxu0 %v6351
  %6979 = vmatpush1.msra.mxu0 %v6350
  %6980 = vmatprep.subr.mxu0 %v6353
  %6981 = vmatpush1.msra.mxu0 %v6352
  %6982 = vmatprep.subr.mxu0 %v6355
  %6983 = vmatpush1.msra.mxu0 %v6354
  %6984 = vmatprep.subr.mxu0 %v6357
  %6985 = vmatpush1.msra.mxu0 %v6356
  %6986 = vmatprep.subr.mxu0 %v6359
  %6987 = vmatpush1.msra.mxu0 %v6358
  %6988 = vmatprep.subr.mxu0 %v6361
  %6989 = vmatpush1.msra.mxu0 %v6360
  %6990 = vmatprep.subr.mxu0 0.0
  %6991 = vmatpush1.msra.mxu0 0.0
  %6992 = vmatprep.subr.mxu0 0.0
  %6993 = vmatpush1.msra.mxu0 0.0
  %6994 = vmatprep.subr.mxu0 0.0
  %6995 = vmatpush1.msra.mxu0 0.0
  %6996 = vmatprep.subr.mxu0 0.0
  %6997 = vmatpush1.msra.mxu0 0.0
  %6998 = vmatprep.subr.mxu0 0.0
  %6999 = vmatpush1.msra.mxu0 0.0
  %7000 = vmatprep.subr.mxu0 0.0
  %7001 = vmatpush1.msra.mxu0 0.0
  %7002 = vmatprep.subr.mxu0 0.0
  %7003 = vmatpush1.msra.mxu0 0.0
  %7004 = vmatprep.subr.mxu0 0.0
  %7005 = vmatpush1.msra.mxu0 0.0
  %7006 = vmatprep.subr.mxu0 0.0
  %7007 = vmatpush1.msra.mxu0 0.0
  %7008 = vmatprep.subr.mxu0 0.0
  %7009 = vmatpush1.msra.mxu0 0.0
  %7010 = vmatprep.subr.mxu0 0.0
  %7011 = vmatpush1.msra.mxu0 0.0
  %7012 = vmatprep.subr.mxu0 0.0
  %7013 = vmatpush1.msra.mxu0 0.0
  %7014 = vmatprep.subr.mxu0 0.0
  %7015 = vmatpush1.msra.mxu0 0.0
  %7016 = vmatprep.subr.mxu0 0.0
  %7017 = vmatpush1.msra.mxu0 0.0
  %7018 = vmatprep.subr.mxu0 0.0
  %7019 = vmatpush1.msra.mxu0 0.0
  %7020 = vmatprep.subr.mxu0 0.0
  %7021 = vmatpush1.msra.mxu0 0.0
  %7022 = vmatprep.mubr.f32.mxu0 0.0
  %7023 = vmatmul.mubr.f32.gmra.mrb[0].mxu0 %v5956
  %v7024 = vpop.f32.mrb[0].mxu0
  %v7025 = vadd.f32 %v6876, %v7024
  %v7026 = vpop.f32.mrb[0].mxu0
  %v7027 = vadd.f32 %v6878, %v7026
  %7028 = vmatprep.mubr.f32.mxu0 0.0
  %7029 = vmatmul.mubr.f32.gmra.mrb[0].mxu0 %v5965
  %v7030 = vpop.f32.mrb[0].mxu0
  %v7031 = vadd.f32 %v6882, %v7030
  %v7032 = vpop.f32.mrb[0].mxu0
  %v7033 = vadd.f32 %v6884, %v7032
  %7034 = vmatprep.mubr.f32.mxu0 0.0
  %7035 = vmatmul.mubr.f32.gmra.mrb[0].mxu0 %v5974
  %v7036 = vpop.f32.mrb[0].mxu0
  %v7037 = vadd.f32 %v6888, %v7036
  %v7038 = vpop.f32.mrb[0].mxu0
  %v7039 = vadd.f32 %v6890, %v7038
  %7040 = vmatprep.mubr.f32.mxu0 0.0
  %7041 = vmatmul.mubr.f32.gmra.mrb[0].mxu0 %v5983
  %v7042 = vpop.f32.mrb[0].mxu0
  %v7043 = vadd.f32 %v6894, %v7042
  %v7044 = vpop.f32.mrb[0].mxu0
  %v7045 = vadd.f32 %v6896, %v7044
  %7046 = vmatprep.mubr.f32.mxu0 0.0
  %7047 = vmatmul.mubr.f32.gmra.mrb[0].mxu0 %v5992
  %v7048 = vpop.f32.mrb[0].mxu0
  %v7049 = vadd.f32 %v6900, %v7048
  %v7050 = vpop.f32.mrb[0].mxu0
  %v7051 = vadd.f32 %v6902, %v7050
  %7052 = vmatprep.mubr.f32.mxu0 0.0
  %7053 = vmatmul.mubr.f32.gmra.mrb[0].mxu0 %v6001
  %v7054 = vpop.f32.mrb[0].mxu0
  %v7055 = vadd.f32 %v6906, %v7054
  %v7056 = vpop.f32.mrb[0].mxu0
  %v7057 = vadd.f32 %v6908, %v7056
  %7058 = vmatprep.mubr.f32.mxu0 0.0
  %7059 = vmatmul.mubr.f32.gmra.mrb[0].mxu0 %v6010
  %v7060 = vpop.f32.mrb[0].mxu0
  %v7061 = vadd.f32 %v6912, %v7060
  %v7062 = vpop.f32.mrb[0].mxu0
  %v7063 = vadd.f32 %v6914, %v7062
  %7064 = vmatprep.mubr.f32.mxu0 0.0
  %7065 = vmatmul.mubr.f32.gmra.mrb[0].mxu0 %v6019
  %v7066 = vpop.f32.mrb[0].mxu0
  %v7067 = vadd.f32 %v6918, %v7066
  %v7068 = vpop.f32.mrb[0].mxu0
  %v7069 = vadd.f32 %v6920, %v7068
  %7070 = vmatprep.mubr.f32.mxu0 0.0
  %7071 = vmatmul.mubr.f32.gmra.mrb[0].mxu0 %v6028
  %v7072 = vpop.f32.mrb[0].mxu0
  %v7073 = vadd.f32 %v6924, %v7072
  %v7074 = vpop.f32.mrb[0].mxu0
  %v7075 = vadd.f32 %v6926, %v7074
  %7076 = vmatprep.mubr.f32.mxu0 0.0
  %7077 = vmatmul.mubr.f32.gmra.mrb[0].mxu0 %v6037
  %v7078 = vpop.f32.mrb[0].mxu0
  %v7079 = vadd.f32 %v6930, %v7078
  %v7080 = vpop.f32.mrb[0].mxu0
  %v7081 = vadd.f32 %v6932, %v7080
  %7082 = vmatprep.mubr.f32.mxu0 0.0
  %7083 = vmatmul.mubr.f32.gmra.mrb[0].mxu0 %v6046
  %v7084 = vpop.f32.mrb[0].mxu0
  %v7085 = vadd.f32 %v6936, %v7084
  %v7086 = vpop.f32.mrb[0].mxu0
  %v7087 = vadd.f32 %v6938, %v7086
  %7088 = vmatprep.mubr.f32.mxu0 0.0
  %7089 = vmatmul.mubr.f32.gmra.mrb[0].mxu0 %v6055
  %v7090 = vpop.f32.mrb[0].mxu0
  %v7091 = vadd.f32 %v6942, %v7090
  %v7092 = vpop.f32.mrb[0].mxu0
  %v7093 = vadd.f32 %v6944, %v7092
  %7094 = vmatprep.mubr.f32.mxu0 0.0
  %7095 = vmatmul.mubr.f32.gmra.mrb[0].mxu0 %v6064
  %v7096 = vpop.f32.mrb[0].mxu0
  %v7097 = vadd.f32 %v6948, %v7096
  %v7098 = vpop.f32.mrb[0].mxu0
  %v7099 = vadd.f32 %v6950, %v7098
  %7100 = vmatprep.mubr.f32.mxu0 0.0
  %7101 = vmatmul.mubr.f32.gmra.mrb[0].mxu0 %v6073
  %v7102 = vpop.f32.mrb[0].mxu0
  %v7103 = vadd.f32 %v6954, %v7102
  %v7104 = vpop.f32.mrb[0].mxu0
  %v7105 = vadd.f32 %v6956, %v7104
  %7106 = vdwg.mxu0
  %v7107 = vmax.f32 %v7025, 0.0
  %v7108 = vmax.f32 %v7027, 0.0
  %v7109 = vmax.f32 %v7031, 0.0
  %v7110 = vmax.f32 %v7033, 0.0
  %v7111 = vmax.f32 %v7037, 0.0
  %v7112 = vmax.f32 %v7039, 0.0
  %v7113 = vmax.f32 %v7043, 0.0
  %v7114 = vmax.f32 %v7045, 0.0
  %v7115 = vmax.f32 %v7049, 0.0
  %v7116 = vmax.f32 %v7051, 0.0
  %v7117 = vmax.f32 %v7055, 0.0
  %v7118 = vmax.f32 %v7057, 0.0
  %v7119 = vmax.f32 %v7061, 0.0
  %v7120 = vmax.f32 %v7063, 0.0
  %v7121 = vmax.f32 %v7067, 0.0
  %v7122 = vmax.f32 %v7069, 0.0
  %v7123 = vmax.f32 %v7073, 0.0
  %v7124 = vmax.f32 %v7075, 0.0
  %v7125 = vmax.f32 %v7079, 0.0
  %v7126 = vmax.f32 %v7081, 0.0
  %v7127 = vmax.f32 %v7085, 0.0
  %v7128 = vmax.f32 %v7087, 0.0
  %v7129 = vmax.f32 %v7091, 0.0
  %v7130 = vmax.f32 %v7093, 0.0
  %v7131 = vmax.f32 %v7097, 0.0
  %v7132 = vmax.f32 %v7099, 0.0
  %v7133 = vmax.f32 %v7103, 0.0
  %v7134 = vmax.f32 %v7105, 0.0
  %7135 = vst [vmem:[#allocation4 + $0xe0] sm:$0xff] %v7107
  %7136 = vst [vmem:[#allocation4 + $0xe8] sm:$0xff] %v7108
  %7137 = vst [vmem:[#allocation4 + $0xf0] sm:$0xff] %v7109
  %7138 = vst [vmem:[#allocation4 + $0xf8] sm:$0xff] %v7110
  %7139 = vst [vmem:[#allocation4 + $0x100] sm:$0xff] %v7111
  %7140 = vst [vmem:[#allocation4 + $0x108] sm:$0xff] %v7112
  %7141 = vst [vmem:[#allocation4 + $0x110] sm:$0xff] %v7113
  %7142 = vst [vmem:[#allocation4 + $0x118] sm:$0xff] %v7114
  %7143 = vst [vmem:[#allocation4 + $0x120] sm:$0xff] %v7115
  %7144 = vst [vmem:[#allocation4 + $0x128] sm:$0xff] %v7116
  %7145 = vst [vmem:[#allocation4 + $0x130] sm:$0xff] %v7117
  %7146 = vst [vmem:[#allocation4 + $0x138] sm:$0xff] %v7118
  %7147 = vst [vmem:[#allocation4 + $0x140] sm:$0xff] %v7119
  %7148 = vst [vmem:[#allocation4 + $0x148] sm:$0xff] %v7120
  %7149 = vst [vmem:[#allocation4 + $0x150] sm:$0xff] %v7121
  %7150 = vst [vmem:[#allocation4 + $0x158] sm:$0xff] %v7122
  %7151 = vst [vmem:[#allocation4 + $0x160] sm:$0xff] %v7123
  %7152 = vst [vmem:[#allocation4 + $0x168] sm:$0xff] %v7124
  %7153 = vst [vmem:[#allocation4 + $0x170] sm:$0xff] %v7125
  %7154 = vst [vmem:[#allocation4 + $0x178] sm:$0xff] %v7126
  %7155 = vst [vmem:[#allocation4 + $0x180] sm:$0xff] %v7127
  %7156 = vst [vmem:[#allocation4 + $0x188] sm:$0xff] %v7128
  %7157 = vst [vmem:[#allocation4 + $0x190] sm:$0xff] %v7129
  %7158 = vst [vmem:[#allocation4 + $0x198] sm:$0xff] %v7130
  %7159 = vst [vmem:[#allocation4 + $0x1a0] sm:$0xff] %v7131
  %7160 = vst [vmem:[#allocation4 + $0x1a8] sm:$0xff] %v7132
  %7161 = vst [vmem:[#allocation4 + $0x1b0] sm:$0xff] %v7133
  %7162 = vst [vmem:[#allocation4 + $0x1b8] sm:$0xff] %v7134
  %v7163 = vld [vmem:[#allocation4] sm:$0xff]
  %v7164 = vld [vmem:[#allocation4 + $0x8] sm:$0xff]
  %v7165 = vld [vmem:[#allocation4 + $0x10] sm:$0xff]
  %v7166 = vld [vmem:[#allocation4 + $0x18] sm:$0xff]
  %v7167 = vld [vmem:[#allocation4 + $0x20] sm:$0xff]
  %v7168 = vld [vmem:[#allocation4 + $0x28] sm:$0xff]
  %v7169 = vld [vmem:[#allocation4 + $0x30] sm:$0xff]
  %v7170 = vld [vmem:[#allocation4 + $0x38] sm:$0xff]
  %v7171 = vld [vmem:[#allocation4 + $0x40] sm:$0xff]
  %v7172 = vld [vmem:[#allocation4 + $0x48] sm:$0xff]
  %v7173 = vld [vmem:[#allocation4 + $0x50] sm:$0xff]
  %v7174 = vld [vmem:[#allocation4 + $0x58] sm:$0xff]
  %v7175 = vld [vmem:[#allocation4 + $0x60] sm:$0xff]
  %v7176 = vld [vmem:[#allocation4 + $0x68] sm:$0xff]
  %v7177 = vld [vmem:[#allocation4 + $0x70] sm:$0xff]
  %v7178 = vld [vmem:[#allocation4 + $0x78] sm:$0xff]
  %v7179 = vld [vmem:[#allocation4 + $0x80] sm:$0xff]
  %v7180 = vld [vmem:[#allocation4 + $0x88] sm:$0xff]
  %v7181 = vld [vmem:[#allocation4 + $0x90] sm:$0xff]
  %v7182 = vld [vmem:[#allocation4 + $0x98] sm:$0xff]
  %v7183 = vld [vmem:[#allocation4 + $0xa0] sm:$0xff]
  %v7184 = vld [vmem:[#allocation4 + $0xa8] sm:$0xff]
  %v7185 = vld [vmem:[#allocation4 + $0xb0] sm:$0xff]
  %v7186 = vld [vmem:[#allocation4 + $0xb8] sm:$0xff]
  %v7187 = vld [vmem:[#allocation4 + $0xc0] sm:$0xff]
  %v7188 = vld [vmem:[#allocation4 + $0xc8] sm:$0xff]
  %v7189 = vld [vmem:[#allocation4 + $0xd0] sm:$0xff]
  %v7190 = vld [vmem:[#allocation4 + $0xd8] sm:$0xff]
  %v7191 = vld [vmem:[#allocation4 + $0xe0] sm:$0xff]
  %v7192 = vld [vmem:[#allocation4 + $0xe8] sm:$0xff]
  %v7193 = vld [vmem:[#allocation4 + $0xf0] sm:$0xff]
  %v7194 = vld [vmem:[#allocation4 + $0xf8] sm:$0xff]
  %v7195 = vld [vmem:[#allocation4 + $0x100] sm:$0xff]
  %v7196 = vld [vmem:[#allocation4 + $0x108] sm:$0xff]
  %v7197 = vld [vmem:[#allocation4 + $0x110] sm:$0xff]
  %v7198 = vld [vmem:[#allocation4 + $0x118] sm:$0xff]
  %v7199 = vld [vmem:[#allocation4 + $0x120] sm:$0xff]
  %v7200 = vld [vmem:[#allocation4 + $0x128] sm:$0xff]
  %v7201 = vld [vmem:[#allocation4 + $0x130] sm:$0xff]
  %v7202 = vld [vmem:[#allocation4 + $0x138] sm:$0xff]
  %v7203 = vld [vmem:[#allocation4 + $0x140] sm:$0xff]
  %v7204 = vld [vmem:[#allocation4 + $0x148] sm:$0xff]
  %v7205 = vld [vmem:[#allocation4 + $0x150] sm:$0xff]
  %v7206 = vld [vmem:[#allocation4 + $0x158] sm:$0xff]
  %v7207 = vld [vmem:[#allocation4 + $0x160] sm:$0xff]
  %v7208 = vld [vmem:[#allocation4 + $0x168] sm:$0xff]
  %v7209 = vld [vmem:[#allocation4 + $0x170] sm:$0xff]
  %v7210 = vld [vmem:[#allocation4 + $0x178] sm:$0xff]
  %v7211 = vld [vmem:[#allocation4 + $0x180] sm:$0xff]
  %v7212 = vld [vmem:[#allocation4 + $0x188] sm:$0xff]
  %v7213 = vld [vmem:[#allocation4 + $0x190] sm:$0xff]
  %v7214 = vld [vmem:[#allocation4 + $0x198] sm:$0xff]
  %v7215 = vld [vmem:[#allocation4 + $0x20] sm:$0xff]
  %v7216 = vld [vmem:[#allocation4 + $0x28] sm:$0xff]
  %v7217 = vld [vmem:[#allocation4 + $0x30] sm:$0xff]
  %v7218 = vld [vmem:[#allocation4 + $0x38] sm:$0xff]
  %v7219 = vld [vmem:[#allocation4 + $0x40] sm:$0xff]
  %v7220 = vld [vmem:[#allocation4 + $0x48] sm:$0xff]
  %v7221 = vld [vmem:[#allocation4 + $0x50] sm:$0xff]
  %v7222 = vld [vmem:[#allocation4 + $0x58] sm:$0xff]
  %v7223 = vld [vmem:[#allocation4 + $0x60] sm:$0xff]
  %v7224 = vld [vmem:[#allocation4 + $0x68] sm:$0xff]
  %v7225 = vld [vmem:[#allocation4 + $0x70] sm:$0xff]
  %v7226 = vld [vmem:[#allocation4 + $0x78] sm:$0xff]
  %v7227 = vld [vmem:[#allocation4 + $0x80] sm:$0xff]
  %v7228 = vld [vmem:[#allocation4 + $0x88] sm:$0xff]
  %v7229 = vld [vmem:[#allocation4 + $0x90] sm:$0xff]
  %v7230 = vld [vmem:[#allocation4 + $0x98] sm:$0xff]
  %v7231 = vld [vmem:[#allocation4 + $0xa0] sm:$0xff]
  %v7232 = vld [vmem:[#allocation4 + $0xa8] sm:$0xff]
  %v7233 = vld [vmem:[#allocation4 + $0xb0] sm:$0xff]
  %v7234 = vld [vmem:[#allocation4 + $0xb8] sm:$0xff]
  %v7235 = vld [vmem:[#allocation4 + $0xc0] sm:$0xff]
  %v7236 = vld [vmem:[#allocation4 + $0xc8] sm:$0xff]
  %v7237 = vld [vmem:[#allocation4 + $0xd0] sm:$0xff]
  %v7238 = vld [vmem:[#allocation4 + $0xd8] sm:$0xff]
  %v7239 = vld [vmem:[#allocation4 + $0xe0] sm:$0xff]
  %v7240 = vld [vmem:[#allocation4 + $0xe8] sm:$0xff]
  %v7241 = vld [vmem:[#allocation4 + $0xf0] sm:$0xff]
  %v7242 = vld [vmem:[#allocation4 + $0xf8] sm:$0xff]
  %v7243 = vld [vmem:[#allocation4 + $0x100] sm:$0xff]
  %v7244 = vld [vmem:[#allocation4 + $0x108] sm:$0xff]
  %v7245 = vld [vmem:[#allocation4 + $0x110] sm:$0xff]
  %v7246 = vld [vmem:[#allocation4 + $0x118] sm:$0xff]
  %v7247 = vld [vmem:[#allocation4 + $0x120] sm:$0xff]
  %v7248 = vld [vmem:[#allocation4 + $0x128] sm:$0xff]
  %v7249 = vld [vmem:[#allocation4 + $0x130] sm:$0xff]
  %v7250 = vld [vmem:[#allocation4 + $0x138] sm:$0xff]
  %v7251 = vld [vmem:[#allocation4 + $0x140] sm:$0xff]
  %v7252 = vld [vmem:[#allocation4 + $0x148] sm:$0xff]
  %v7253 = vld [vmem:[#allocation4 + $0x150] sm:$0xff]
  %v7254 = vld [vmem:[#allocation4 + $0x158] sm:$0xff]
  %v7255 = vld [vmem:[#allocation4 + $0x160] sm:$0xff]
  %v7256 = vld [vmem:[#allocation4 + $0x168] sm:$0xff]
  %v7257 = vld [vmem:[#allocation4 + $0x170] sm:$0xff]
  %v7258 = vld [vmem:[#allocation4 + $0x178] sm:$0xff]
  %v7259 = vld [vmem:[#allocation4 + $0x180] sm:$0xff]
  %v7260 = vld [vmem:[#allocation4 + $0x188] sm:$0xff]
  %v7261 = vld [vmem:[#allocation4 + $0x190] sm:$0xff]
  %v7262 = vld [vmem:[#allocation4 + $0x198] sm:$0xff]
  %v7263 = vld [vmem:[#allocation4 + $0x1a0] sm:$0xff]
  %v7264 = vld [vmem:[#allocation4 + $0x1a8] sm:$0xff]
  %v7265 = vld [vmem:[#allocation4 + $0x1b0] sm:$0xff]
  %v7266 = vld [vmem:[#allocation4 + $0x1b8] sm:$0xff]
  %v7267 = vmax.f32 %v7163, %v7215
  %v7268 = vmax.f32 %v7164, %v7216
  %v7269 = vmax.f32 %v7165, %v7217
  %v7270 = vmax.f32 %v7166, %v7218
  %v7271 = vmax.f32 %v7167, %v7219
  %v7272 = vmax.f32 %v7168, %v7220
  %v7273 = vmax.f32 %v7169, %v7221
  %v7274 = vmax.f32 %v7170, %v7222
  %v7275 = vmax.f32 %v7171, %v7223
  %v7276 = vmax.f32 %v7172, %v7224
  %v7277 = vmax.f32 %v7173, %v7225
  %v7278 = vmax.f32 %v7174, %v7226
  %v7279 = vmax.f32 %v7175, %v7227
  %v7280 = vmax.f32 %v7176, %v7228
  %v7281 = vmax.f32 %v7177, %v7229
  %v7282 = vmax.f32 %v7178, %v7230
  %v7283 = vmax.f32 %v7179, %v7231
  %v7284 = vmax.f32 %v7180, %v7232
  %v7285 = vmax.f32 %v7181, %v7233
  %v7286 = vmax.f32 %v7182, %v7234
  %v7287 = vmax.f32 %v7183, %v7235
  %v7288 = vmax.f32 %v7184, %v7236
  %v7289 = vmax.f32 %v7185, %v7237
  %v7290 = vmax.f32 %v7186, %v7238
  %v7291 = vmax.f32 %v7187, %v7239
  %v7292 = vmax.f32 %v7188, %v7240
  %v7293 = vmax.f32 %v7189, %v7241
  %v7294 = vmax.f32 %v7190, %v7242
  %v7295 = vmax.f32 %v7191, %v7243
  %v7296 = vmax.f32 %v7192, %v7244
  %v7297 = vmax.f32 %v7193, %v7245
  %v7298 = vmax.f32 %v7194, %v7246
  %v7299 = vmax.f32 %v7195, %v7247
  %v7300 = vmax.f32 %v7196, %v7248
  %v7301 = vmax.f32 %v7197, %v7249
  %v7302 = vmax.f32 %v7198, %v7250
  %v7303 = vmax.f32 %v7199, %v7251
  %v7304 = vmax.f32 %v7200, %v7252
  %v7305 = vmax.f32 %v7201, %v7253
  %v7306 = vmax.f32 %v7202, %v7254
  %v7307 = vmax.f32 %v7203, %v7255
  %v7308 = vmax.f32 %v7204, %v7256
  %v7309 = vmax.f32 %v7205, %v7257
  %v7310 = vmax.f32 %v7206, %v7258
  %v7311 = vmax.f32 %v7207, %v7259
  %v7312 = vmax.f32 %v7208, %v7260
  %v7313 = vmax.f32 %v7209, %v7261
  %v7314 = vmax.f32 %v7210, %v7262
  %v7315 = vmax.f32 %v7211, %v7263
  %v7316 = vmax.f32 %v7212, %v7264
  %v7317 = vmax.f32 %v7213, %v7265
  %v7318 = vmax.f32 %v7214, %v7266
  %v7319 = vld [vmem:[%s7] sm:$0xff]
  %v7320 = vld [vmem:[%s7 + $0x8] sm:$0xff]
  %v7321 = vld [vmem:[%s7 + $0x10] sm:$0xff]
  %v7322 = vld [vmem:[%s7 + $0x18] sm:$0xff]
  %v7323 = vld [vmem:[%s7 + $0x20] sm:$0xff]
  %v7324 = vld [vmem:[%s7 + $0x28] sm:$0xff]
  %v7325 = vld [vmem:[%s7 + $0x30] sm:$0xff]
  %v7326 = vld [vmem:[%s7 + $0x38] sm:$0xff]
  %v7327 = vld [vmem:[%s7 + $0x40] sm:$0xff]
  %v7328 = vld [vmem:[%s7 + $0x48] sm:$0xff]
  %v7329 = vld [vmem:[%s7 + $0x50] sm:$0xff]
  %v7330 = vld [vmem:[%s7 + $0x58] sm:$0xff]
  %v7331 = vld [vmem:[%s7 + $0x60] sm:$0x1]
  %v7332 = vld [vmem:[%s7 + $0x68] sm:$0x1]
  %vm7333 = vcmask 654336
  %v7335 = vsel %vm7333, %v7320, 0
  %v7338 = vsel %vm7333, %v7322, 0
  %v7341 = vsel %vm7333, %v7324, 0
  %v7344 = vsel %vm7333, %v7326, 0
  %v7347 = vsel %vm7333, %v7328, 0
  %v7350 = vsel %vm7333, %v7330, 0
  %v7353 = vsel %vm7333, %v7332, 0
  %7355 = vmatprep.subr.mxu0 %v7268
  %7356 = vmatpush1.msra.mxu0 %v7267
  %7357 = vmatprep.subr.mxu0 %v7270
  %7358 = vmatpush1.msra.mxu0 %v7269
  %7359 = vmatprep.subr.mxu0 %v7272
  %7360 = vmatpush1.msra.mxu0 %v7271
  %7361 = vmatprep.subr.mxu0 %v7274
  %7362 = vmatpush1.msra.mxu0 %v7273
  %7363 = vmatprep.subr.mxu0 %v7276
  %7364 = vmatpush1.msra.mxu0 %v7275
  %7365 = vmatprep.subr.mxu0 %v7278
  %7366 = vmatpush1.msra.mxu0 %v7277
  %7367 = vmatprep.subr.mxu0 %v7280
  %7368 = vmatpush1.msra.mxu0 %v7279
  %7369 = vmatprep.subr.mxu0 %v7282
  %7370 = vmatpush1.msra.mxu0 %v7281
  %7371 = vmatprep.subr.mxu0 %v7284
  %7372 = vmatpush1.msra.mxu0 %v7283
  %7373 = vmatprep.subr.mxu0 %v7286
  %7374 = vmatpush1.msra.mxu0 %v7285
  %7375 = vmatprep.subr.mxu0 %v7288
  %7376 = vmatpush1.msra.mxu0 %v7287
  %7377 = vmatprep.subr.mxu0 %v7290
  %7378 = vmatpush1.msra.mxu0 %v7289
  %7379 = vmatprep.subr.mxu0 %v7292
  %7380 = vmatpush1.msra.mxu0 %v7291
  %7381 = vmatprep.subr.mxu0 %v7294
  %7382 = vmatpush1.msra.mxu0 %v7293
  %7383 = vmatprep.subr.mxu0 %v7296
  %7384 = vmatpush1.msra.mxu0 %v7295
  %7385 = vmatprep.subr.mxu0 %v7298
  %7386 = vmatpush1.msra.mxu0 %v7297
  %7387 = vmatprep.subr.mxu0 %v7300
  %7388 = vmatpush1.msra.mxu0 %v7299
  %7389 = vmatprep.subr.mxu0 %v7302
  %7390 = vmatpush1.msra.mxu0 %v7301
  %7391 = vmatprep.subr.mxu0 %v7304
  %7392 = vmatpush1.msra.mxu0 %v7303
  %7393 = vmatprep.subr.mxu0 %v7306
  %7394 = vmatpush1.msra.mxu0 %v7305
  %7395 = vmatprep.subr.mxu0 %v7308
  %7396 = vmatpush1.msra.mxu0 %v7307
  %7397 = vmatprep.subr.mxu0 %v7310
  %7398 = vmatpush1.msra.mxu0 %v7309
  %7399 = vmatprep.subr.mxu0 %v7312
  %7400 = vmatpush1.msra.mxu0 %v7311
  %7401 = vmatprep.subr.mxu0 %v7314
  %7402 = vmatpush1.msra.mxu0 %v7313
  %7403 = vmatprep.subr.mxu0 %v7316
  %7404 = vmatpush1.msra.mxu0 %v7315
  %7405 = vmatprep.subr.mxu0 %v7318
  %7406 = vmatpush1.msra.mxu0 %v7317
  %7407 = vmatprep.subr.mxu0 0.0
  %7408 = vmatpush1.msra.mxu0 0.0
  %7409 = vmatprep.subr.mxu0 0.0
  %7410 = vmatpush1.msra.mxu0 0.0
  %7411 = vmatprep.subr.mxu0 0.0
  %7412 = vmatpush1.msra.mxu0 0.0
  %7413 = vmatprep.subr.mxu0 0.0
  %7414 = vmatpush1.msra.mxu0 0.0
  %7415 = vmatprep.subr.mxu0 0.0
  %7416 = vmatpush1.msra.mxu0 0.0
  %7417 = vmatprep.subr.mxu0 0.0
  %7418 = vmatpush1.msra.mxu0 0.0
  %7419 = vmatprep.mubr.f32.mxu0 %v7335
  %7420 = vmatmul.mubr.f32.gmra.mrb[0].mxu0 %v7319
  %v7421 = vpop.f32.mrb[0].mxu0
  %v7422 = vadd.f32 0.0, %v7421
  %v7423 = vpop.f32.mrb[0].mxu0
  %v7424 = vadd.f32 0.0, %v7423
  %7425 = vmatprep.mubr.f32.mxu0 %v7338
  %7426 = vmatmul.mubr.f32.gmra.mrb[0].mxu0 %v7321
  %v7427 = vpop.f32.mrb[0].mxu0
  %v7428 = vadd.f32 0.0, %v7427
  %v7429 = vpop.f32.mrb[0].mxu0
  %v7430 = vadd.f32 0.0, %v7429
  %7431 = vmatprep.mubr.f32.mxu0 %v7341
  %7432 = vmatmul.mubr.f32.gmra.mrb[0].mxu0 %v7323
  %v7433 = vpop.f32.mrb[0].mxu0
  %v7434 = vadd.f32 0.0, %v7433
  %v7435 = vpop.f32.mrb[0].mxu0
  %v7436 = vadd.f32 0.0, %v7435
  %7437 = vmatprep.mubr.f32.mxu0 %v7344
  %7438 = vmatmul.mubr.f32.gmra.mrb[0].mxu0 %v7325
  %v7439 = vpop.f32.mrb[0].mxu0
  %v7440 = vadd.f32 0.0, %v7439
  %v7441 = vpop.f32.mrb[0].mxu0
  %v7442 = vadd.f32 0.0, %v7441
  %7443 = vmatprep.mubr.f32.mxu0 %v7347
  %7444 = vmatmul.mubr.f32.gmra.mrb[0].mxu0 %v7327
  %v7445 = vpop.f32.mrb[0].mxu0
  %v7446 = vadd.f32 0.0, %v7445
  %v7447 = vpop.f32.mrb[0].mxu0
  %v7448 = vadd.f32 0.0, %v7447
  %7449 = vmatprep.mubr.f32.mxu0 %v7350
  %7450 = vmatmul.mubr.f32.gmra.mrb[0].mxu0 %v7329
  %v7451 = vpop.f32.mrb[0].mxu0
  %v7452 = vadd.f32 0.0, %v7451
  %v7453 = vpop.f32.mrb[0].mxu0
  %v7454 = vadd.f32 0.0, %v7453
  %7455 = vmatprep.mubr.f32.mxu0 %v7353
  %7456 = vmatmul.mubr.f32.gmra.mrb[0].mxu0 %v7331
  %v7457 = vpop.f32.mrb[0].mxu0
  %v7458 = vadd.f32 0.0, %v7457
  %v7459 = vpop.f32.mrb[0].mxu0
  %v7460 = vadd.f32 0.0, %v7459
  %7461 = vdwg.mxu0
  %v7462 = vld [vmem:[%s8] sm:$0xff]
  %v7463 = vld [vmem:[%s8 + $0x8] sm:$0xff]
  %v7464 = vld [vmem:[%s8 + $0x10] sm:$0xff]
  %v7465 = vld [vmem:[%s8 + $0x18] sm:$0xff]
  %v7466 = vld [vmem:[%s8 + $0x20] sm:$0xff]
  %v7467 = vld [vmem:[%s8 + $0x28] sm:$0xff]
  %v7468 = vld [vmem:[%s8 + $0x30] sm:$0xff]
  %v7469 = vld [vmem:[%s8 + $0x38] sm:$0xff]
  %v7470 = vld [vmem:[%s8 + $0x40] sm:$0xff]
  %v7471 = vld [vmem:[%s8 + $0x48] sm:$0xff]
  %v7472 = vld [vmem:[%s8 + $0x50] sm:$0xff]
  %v7473 = vld [vmem:[%s8 + $0x58] sm:$0xff]
  %v7474 = vld [vmem:[%s8 + $0x60] sm:$0x1]
  %v7475 = vld [vmem:[%s8 + $0x68] sm:$0x1]
  %v7477 = vsel %vm7333, %v7463, 0
  %v7480 = vsel %vm7333, %v7465, 0
  %v7483 = vsel %vm7333, %v7467, 0
  %v7486 = vsel %vm7333, %v7469, 0
  %v7489 = vsel %vm7333, %v7471, 0
  %v7492 = vsel %vm7333, %v7473, 0
  %v7495 = vsel %vm7333, %v7475, 0
  %7497 = vmatprep.subr.mxu0 %v7268
  %7498 = vmatpush1.msra.mxu0 %v7267
  %7499 = vmatprep.subr.mxu0 %v7270
  %7500 = vmatpush1.msra.mxu0 %v7269
  %7501 = vmatprep.subr.mxu0 %v7272
  %7502 = vmatpush1.msra.mxu0 %v7271
  %7503 = vmatprep.subr.mxu0 %v7274
  %7504 = vmatpush1.msra.mxu0 %v7273
  %7505 = vmatprep.subr.mxu0 %v7276
  %7506 = vmatpush1.msra.mxu0 %v7275
  %7507 = vmatprep.subr.mxu0 %v7278
  %7508 = vmatpush1.msra.mxu0 %v7277
  %7509 = vmatprep.subr.mxu0 %v7280
  %7510 = vmatpush1.msra.mxu0 %v7279
  %7511 = vmatprep.subr.mxu0 %v7282
  %7512 = vmatpush1.msra.mxu0 %v7281
  %7513 = vmatprep.subr.mxu0 %v7284
  %7514 = vmatpush1.msra.mxu0 %v7283
  %7515 = vmatprep.subr.mxu0 %v7286
  %7516 = vmatpush1.msra.mxu0 %v7285
  %7517 = vmatprep.subr.mxu0 %v7288
  %7518 = vmatpush1.msra.mxu0 %v7287
  %7519 = vmatprep.subr.mxu0 %v7290
  %7520 = vmatpush1.msra.mxu0 %v7289
  %7521 = vmatprep.subr.mxu0 %v7292
  %7522 = vmatpush1.msra.mxu0 %v7291
  %7523 = vmatprep.subr.mxu0 %v7294
  %7524 = vmatpush1.msra.mxu0 %v7293
  %7525 = vmatprep.subr.mxu0 %v7296
  %7526 = vmatpush1.msra.mxu0 %v7295
  %7527 = vmatprep.subr.mxu0 %v7298
  %7528 = vmatpush1.msra.mxu0 %v7297
  %7529 = vmatprep.subr.mxu0 %v7300
  %7530 = vmatpush1.msra.mxu0 %v7299
  %7531 = vmatprep.subr.mxu0 %v7302
  %7532 = vmatpush1.msra.mxu0 %v7301
  %7533 = vmatprep.subr.mxu0 %v7304
  %7534 = vmatpush1.msra.mxu0 %v7303
  %7535 = vmatprep.subr.mxu0 %v7306
  %7536 = vmatpush1.msra.mxu0 %v7305
  %7537 = vmatprep.subr.mxu0 %v7308
  %7538 = vmatpush1.msra.mxu0 %v7307
  %7539 = vmatprep.subr.mxu0 %v7310
  %7540 = vmatpush1.msra.mxu0 %v7309
  %7541 = vmatprep.subr.mxu0 %v7312
  %7542 = vmatpush1.msra.mxu0 %v7311
  %7543 = vmatprep.subr.mxu0 %v7314
  %7544 = vmatpush1.msra.mxu0 %v7313
  %7545 = vmatprep.subr.mxu0 %v7316
  %7546 = vmatpush1.msra.mxu0 %v7315
  %7547 = vmatprep.subr.mxu0 %v7318
  %7548 = vmatpush1.msra.mxu0 %v7317
  %7549 = vmatprep.subr.mxu0 0.0
  %7550 = vmatpush1.msra.mxu0 0.0
  %7551 = vmatprep.subr.mxu0 0.0
  %7552 = vmatpush1.msra.mxu0 0.0
  %7553 = vmatprep.subr.mxu0 0.0
  %7554 = vmatpush1.msra.mxu0 0.0
  %7555 = vmatprep.subr.mxu0 0.0
  %7556 = vmatpush1.msra.mxu0 0.0
  %7557 = vmatprep.subr.mxu0 0.0
  %7558 = vmatpush1.msra.mxu0 0.0
  %7559 = vmatprep.subr.mxu0 0.0
  %7560 = vmatpush1.msra.mxu0 0.0
  %7561 = vmatprep.mubr.f32.mxu0 %v7477
  %7562 = vmatmul.mubr.f32.gmra.mrb[0].mxu0 %v7462
  %v7563 = vpop.f32.mrb[0].mxu0
  %v7564 = vadd.f32 0.0, %v7563
  %v7565 = vpop.f32.mrb[0].mxu0
  %v7566 = vadd.f32 0.0, %v7565
  %7567 = vmatprep.mubr.f32.mxu0 %v7480
  %7568 = vmatmul.mubr.f32.gmra.mrb[0].mxu0 %v7464
  %v7569 = vpop.f32.mrb[0].mxu0
  %v7570 = vadd.f32 0.0, %v7569
  %v7571 = vpop.f32.mrb[0].mxu0
  %v7572 = vadd.f32 0.0, %v7571
  %7573 = vmatprep.mubr.f32.mxu0 %v7483
  %7574 = vmatmul.mubr.f32.gmra.mrb[0].mxu0 %v7466
  %v7575 = vpop.f32.mrb[0].mxu0
  %v7576 = vadd.f32 0.0, %v7575
  %v7577 = vpop.f32.mrb[0].mxu0
  %v7578 = vadd.f32 0.0, %v7577
  %7579 = vmatprep.mubr.f32.mxu0 %v7486
  %7580 = vmatmul.mubr.f32.gmra.mrb[0].mxu0 %v7468
  %v7581 = vpop.f32.mrb[0].mxu0
  %v7582 = vadd.f32 0.0, %v7581
  %v7583 = vpop.f32.mrb[0].mxu0
  %v7584 = vadd.f32 0.0, %v7583
  %7585 = vmatprep.mubr.f32.mxu0 %v7489
  %7586 = vmatmul.mubr.f32.gmra.mrb[0].mxu0 %v7470
  %v7587 = vpop.f32.mrb[0].mxu0
  %v7588 = vadd.f32 0.0, %v7587
  %v7589 = vpop.f32.mrb[0].mxu0
  %v7590 = vadd.f32 0.0, %v7589
  %7591 = vmatprep.mubr.f32.mxu0 %v7492
  %7592 = vmatmul.mubr.f32.gmra.mrb[0].mxu0 %v7472
  %v7593 = vpop.f32.mrb[0].mxu0
  %v7594 = vadd.f32 0.0, %v7593
  %v7595 = vpop.f32.mrb[0].mxu0
  %v7596 = vadd.f32 0.0, %v7595
  %7597 = vmatprep.mubr.f32.mxu0 %v7495
  %7598 = vmatmul.mubr.f32.gmra.mrb[0].mxu0 %v7474
  %v7599 = vpop.f32.mrb[0].mxu0
  %v7600 = vadd.f32 0.0, %v7599
  %v7601 = vpop.f32.mrb[0].mxu0
  %v7602 = vadd.f32 0.0, %v7601
  %7603 = vdwg.mxu0
  %v7604 = vmax.f32 %v7422, %v7564
  %v7605 = vmax.f32 %v7424, %v7566
  %v7606 = vmax.f32 %v7428, %v7570
  %v7607 = vmax.f32 %v7430, %v7572
  %v7608 = vmax.f32 %v7434, %v7576
  %v7609 = vmax.f32 %v7436, %v7578
  %v7610 = vmax.f32 %v7440, %v7582
  %v7611 = vmax.f32 %v7442, %v7584
  %v7612 = vmax.f32 %v7446, %v7588
  %v7613 = vmax.f32 %v7448, %v7590
  %v7614 = vmax.f32 %v7452, %v7594
  %v7615 = vmax.f32 %v7454, %v7596
  %v7616 = vmax.f32 %v7458, %v7600
  %v7617 = vmax.f32 %v7460, %v7602
  %7618 = vst [vmem:[%s9] sm:$0xff] %v7604
  %7619 = vst [vmem:[%s9 + $0x8] sm:$0xff] %v7605
  %7620 = vst [vmem:[%s9 + $0x10] sm:$0xff] %v7606
  %7621 = vst [vmem:[%s9 + $0x18] sm:$0xff] %v7607
  %7622 = vst [vmem:[%s9 + $0x20] sm:$0xff] %v7608
  %7623 = vst [vmem:[%s9 + $0x28] sm:$0xff] %v7609
  %7624 = vst [vmem:[%s9 + $0x30] sm:$0xff] %v7610
  %7625 = vst [vmem:[%s9 + $0x38] sm:$0xff] %v7611
  %7626 = vst [vmem:[%s9 + $0x40] sm:$0xff] %v7612
  %7627 = vst [vmem:[%s9 + $0x48] sm:$0xff] %v7613
  %7628 = vst [vmem:[%s9 + $0x50] sm:$0xff] %v7614
  %7629 = vst [vmem:[%s9 + $0x58] sm:$0xff] %v7615
  %7630 = vst [vmem:[%s9 + $0x60] sm:$0x1] %v7616
  %7631 = vst [vmem:[%s9 + $0x68] sm:$0x1] %v7617
  // Predicated region
  $region38: #{multicnn_forward.2} parent=0 // pred_check
    _
  $region39: #{multicnn_forward.2} parent=0 // pred_check_branch
    %7633 = sbr.rel (0) target = $region41
  $region40: #{multicnn_forward.2} parent=0 // pred_region
    _
  $region41: #{multicnn_forward.2} parent=0 // pred_fallthru
    _
  // Predicated region
  $region42: #{multicnn_forward.2} parent=0 // pred_check
    _
  $region43: #{multicnn_forward.2} parent=0 // pred_check_branch
    %7635 = sbr.rel (0) target = $region45
  $region44: #{multicnn_forward.2} parent=0 // pred_region
    _
  $region45: #{multicnn_forward.2} parent=0 // pred_fallthru
    _

</llo_original>
